<compile_context>
chip_gen: v7x
topology: tpu7x:2x2x1
jax: 0.10.0
libtpu: 0.0.40
codegen_flags: <defaults>
</compile_context>

<pallas_src>
import functools

import jax
import jax.numpy as jnp
from jax import lax
from jax.experimental import pallas as pl
from jax.experimental.pallas import tpu as pltpu

_BN_EPS = 1e-3  # ultralytics Conv uses BatchNorm2d(eps=1e-3)


# ---------------------------------------------------------------------------
# Kernel A: fused 1x1 conv (matmul) + BatchNorm(eval) + SiLU
# ---------------------------------------------------------------------------
def _pw_conv_kernel(x_ref, w_ref, sc_ref, sh_ref, o_ref):
    y = jnp.dot(x_ref[...], w_ref[...], preferred_element_type=jnp.float32)
    y = y * sc_ref[...] + sh_ref[...]
    o_ref[...] = (y * jax.nn.sigmoid(y)).astype(o_ref.dtype)


def pointwise_conv_bn_silu(x2d, w, scale, shift, tm=128):
    """x2d: [M, Cin] -> [M, Cout] = SiLU(BN(x @ w)). Rows tiled by 128."""
    M, Cin = x2d.shape
    Cout = w.shape[1]
    grid_m = pl.cdiv(M, tm)
    Mp = grid_m * tm
    if Mp != M:                       # pad rows so every tile is full / pipelined
        x2d = jnp.pad(x2d, ((0, Mp - M), (0, 0)))
    out = pl.pallas_call(
        _pw_conv_kernel,
        out_shape=jax.ShapeDtypeStruct((Mp, Cout), jnp.float32),
        grid=(grid_m,),
        in_specs=[
            pl.BlockSpec((tm, Cin), lambda i: (i, 0)),
            pl.BlockSpec((Cin, Cout), lambda i: (0, 0)),
            pl.BlockSpec((1, Cout), lambda i: (0, 0)),
            pl.BlockSpec((1, Cout), lambda i: (0, 0)),
        ],
        out_specs=pl.BlockSpec((tm, Cout), lambda i: (i, 0)),
        compiler_params=pltpu.CompilerParams(dimension_semantics=("parallel",)),
    )(x2d.astype(jnp.float32), w.astype(jnp.float32),
      scale.reshape(1, Cout).astype(jnp.float32),
      shift.reshape(1, Cout).astype(jnp.float32))
    return out[:M]


# ---------------------------------------------------------------------------
# Kernel B: cv3 = 1x1 conv over cat(z, y2) + BN + SiLU (two in-kernel matmuls)
# ---------------------------------------------------------------------------
def _cv3_kernel(z_ref, y2_ref, wa_ref, wb_ref, sc_ref, sh_ref, o_ref):
    y = jnp.dot(z_ref[...], wa_ref[...], preferred_element_type=jnp.float32)
    y = y + jnp.dot(y2_ref[...], wb_ref[...], preferred_element_type=jnp.float32)
    y = y * sc_ref[...] + sh_ref[...]
    o_ref[...] = (y * jax.nn.sigmoid(y)).astype(o_ref.dtype)


def cv3_conv_bn_silu(z2d, y22d, wa, wb, scale, shift, tm=128):
    M, Ca = z2d.shape
    Cb = y22d.shape[1]
    Cout = wa.shape[1]
    grid_m = pl.cdiv(M, tm)
    Mp = grid_m * tm
    if Mp != M:
        z2d = jnp.pad(z2d, ((0, Mp - M), (0, 0)))
        y22d = jnp.pad(y22d, ((0, Mp - M), (0, 0)))
    out = pl.pallas_call(
        _cv3_kernel,
        out_shape=jax.ShapeDtypeStruct((Mp, Cout), jnp.float32),
        grid=(grid_m,),
        in_specs=[
            pl.BlockSpec((tm, Ca), lambda i: (i, 0)),
            pl.BlockSpec((tm, Cb), lambda i: (i, 0)),
            pl.BlockSpec((Ca, Cout), lambda i: (0, 0)),
            pl.BlockSpec((Cb, Cout), lambda i: (0, 0)),
            pl.BlockSpec((1, Cout), lambda i: (0, 0)),
            pl.BlockSpec((1, Cout), lambda i: (0, 0)),
        ],
        out_specs=pl.BlockSpec((tm, Cout), lambda i: (i, 0)),
        compiler_params=pltpu.CompilerParams(dimension_semantics=("parallel",)),
    )(z2d.astype(jnp.float32), y22d.astype(jnp.float32),
      wa.astype(jnp.float32), wb.astype(jnp.float32),
      scale.reshape(1, Cout).astype(jnp.float32),
      shift.reshape(1, Cout).astype(jnp.float32))
    return out[:M]


# ---------------------------------------------------------------------------
# Kernel C: 3x3 conv (stride 1, pad 1) + BN + SiLU (+ optional residual add)
# In-kernel im2col: the 9 shifted views are static slices of the padded VMEM
# block; each tap goes to the MXU; epilogue (BN, SiLU, residual) is fused.
# ---------------------------------------------------------------------------
def _make_conv3x3_kernel(H, W, C, Cout, add_residual):
    HW = H * W

    def kernel(xp_ref, w_ref, sc_ref, sh_ref, *rest):
        if add_residual:
            res_ref, o_ref = rest
        else:
            (o_ref,) = rest
        acc = jnp.zeros((HW, Cout), jnp.float32)
        for di in range(3):                      # static unroll over the 9 taps
            for dj in range(3):
                patch = xp_ref[0, di:di + H, dj:dj + W, :].reshape(HW, C)
                acc = acc + jnp.dot(patch, w_ref[di * 3 + dj],
                                    preferred_element_type=jnp.float32)
        y = acc * sc_ref[...] + sh_ref[...]      # folded conv-less-bias BatchNorm
        y = y * jax.nn.sigmoid(y)                # SiLU
        if add_residual:
            y = y + res_ref[0].reshape(HW, Cout)
        o_ref[0] = y.reshape(H, W, Cout).astype(o_ref.dtype)

    return kernel


def conv3x3_bn_silu(x_nhwc, w_oihw, scale, shift, residual=None):
    """x_nhwc: [N,H,W,Cin]; w_oihw: [Cout,Cin,3,3]. Returns [N,H,W,Cout]."""
    N, H, W, C = x_nhwc.shape
    Cout = w_oihw.shape[0]
    # [Cout, Cin, kh, kw] -> [9, Cin, Cout], tap t = ki*3 + kj
    w9 = jnp.transpose(w_oihw, (2, 3, 1, 0)).reshape(9, C, Cout).astype(jnp.float32)
    xp = jnp.pad(x_nhwc, ((0, 0), (1, 1), (1, 1), (0, 0)))
    Hp, Wp = H + 2, W + 2

    kern = _make_conv3x3_kernel(H, W, C, Cout, residual is not None)
    in_specs = [
        pl.BlockSpec((1, Hp, Wp, C), lambda n: (n, 0, 0, 0)),
        pl.BlockSpec((9, C, Cout), lambda n: (0, 0, 0)),
        pl.BlockSpec((1, Cout), lambda n: (0, 0)),
        pl.BlockSpec((1, Cout), lambda n: (0, 0)),
    ]
    args = [xp.astype(jnp.float32), w9,
            scale.reshape(1, Cout).astype(jnp.float32),
            shift.reshape(1, Cout).astype(jnp.float32)]
    if residual is not None:
        in_specs.append(pl.BlockSpec((1, H, W, Cout), lambda n: (n, 0, 0, 0)))
        args.append(residual.astype(jnp.float32))

    return pl.pallas_call(
        kern,
        out_shape=jax.ShapeDtypeStruct((N, H, W, Cout), jnp.float32),
        grid=(N,),
        in_specs=in_specs,
        out_specs=pl.BlockSpec((1, H, W, Cout), lambda n: (n, 0, 0, 0)),
        compiler_params=pltpu.CompilerParams(dimension_semantics=("parallel",)),
    )(*args)


# ---------------------------------------------------------------------------
# C3 forward
# ---------------------------------------------------------------------------
def _bn_fold(gamma, beta, mean, var, eps=_BN_EPS):
    scale = gamma / jnp.sqrt(var + eps)
    shift = beta - mean * scale
    return scale, shift


def c3_forward(x_nchw, params, n=1, shortcut=True):
    N, C1, H, W = x_nchw.shape
    c_ = params['cv1_w'].shape[0]
    c2 = params['cv3_w'].shape[0]
    M = N * H * W

    x_nhwc = jnp.transpose(x_nchw, (0, 2, 3, 1)).astype(jnp.float32)
    x2d = x_nhwc.reshape(M, C1)

    # --- cv1 & cv2 share the same input: fuse into one matmul, split after ---
    w1 = params['cv1_w'][:, :, 0, 0].T           # [C1, c_]
    w2 = params['cv2_w'][:, :, 0, 0].T           # [C1, c_]
    sc1, sh1 = _bn_fold(*params['cv1_bn'])
    sc2, sh2 = _bn_fold(*params['cv2_bn'])
    y12 = pointwise_conv_bn_silu(
        x2d, jnp.concatenate([w1, w2], axis=1),
        jnp.concatenate([sc1, sc2]), jnp.concatenate([sh1, sh2]))
    y1 = y12[:, :c_].reshape(N, H, W, c_)
    y2 = y12[:, c_:]                             # stays flat [M, c_]

    # --- bottleneck chain: 3x3 Conv -> 3x3 Conv (+ residual), fully fused ---
    y = y1
    for i in range(n):
        b = params['m'][i]
        sA, tA = _bn_fold(*b['cv1_bn'])
        sB, tB = _bn_fold(*b['cv2_bn'])
        t = conv3x3_bn_silu(y, b['cv1_w'], sA, tA)
        y = conv3x3_bn_silu(t, b['cv2_w'], sB, tB,
                            residual=y if shortcut else None)
    z2d = y.reshape(M, c_)

    # --- cv3 over cat(z, y2): two matmuls inside one kernel ---
    w3 = params['cv3_w'][:, :, 0, 0].T           # [2c_, c2]
    sc3, sh3 = _bn_fold(*params['cv3_bn'])
    out2d = cv3_conv_bn_silu(z2d, y2, w3[:c_], w3[c_:], sc3, sh3)
    return out2d.reshape(N, H, W, c2).transpose(0, 3, 1, 2)   # NCHW


# ---------------------------------------------------------------------------
# Pure-JAX reference (for correctness checking)
# ---------------------------------------------------------------------------
def _ref_conv_bn_silu(x, w, bn, padding=0):
    y = lax.conv_general_dilated(
        x, w, (1, 1), [(padding, padding), (padding, padding)],
        dimension_numbers=('NCHW', 'OIHW', 'NCHW'),
        precision=lax.Precision.HIGHEST)
    gamma, beta, mean, var = bn
    scale = gamma / jnp.sqrt(var + _BN_EPS)
    y = (y - mean[None, :, None, None]) * scale[None, :, None, None] \
        + beta[None, :, None, None]
    return y * jax.nn.sigmoid(y)


def c3_reference(x, params, n=1, shortcut=True):
    y1 = _ref_conv_bn_silu(x, params['cv1_w'], params['cv1_bn'])
    y2 = _ref_conv_bn_silu(x, params['cv2_w'], params['cv2_bn'])
    y = y1
    for i in range(n):
        b = params['m'][i]
        t = _ref_conv_bn_silu(y, b['cv1_w'], b['cv1_bn'], padding=1)
        t = _ref_conv_bn_silu(t, b['cv2_w'], b['cv2_bn'], padding=1)
        y = y + t if shortcut else t
    return _ref_conv_bn_silu(jnp.concatenate([y, y2], axis=1),
                             params['cv3_w'], params['cv3_bn'])


# ---------------------------------------------------------------------------
# Deterministic parameter construction + run
# ---------------------------------------------------------------------------
def make_params(key, c1, c2, n=1, e=0.5):
    c_ = int(c2 * e)
    keys = iter(jax.random.split(key, 8 + 4 * n))

    def bn(k, c):
        k1, k2, k3, k4 = jax.random.split(k, 4)
        return (jax.random.uniform(k1, (c,), jnp.float32, 0.8, 1.2),
                0.1 * jax.random.normal(k2, (c,), jnp.float32),
                0.1 * jax.random.normal(k3, (c,), jnp.float32),
                jax.random.uniform(k4, (c,), jnp.float32, 0.5, 1.5))

    def conv_w(k, cout, cin, kh, kw):
        fan = cin * kh * kw
        return jax.random.normal(k, (cout, cin, kh, kw), jnp.float32) / (fan ** 0.5)

    params = {
        'cv1_w': conv_w(next(keys), c_, c1, 1, 1), 'cv1_bn': bn(next(keys), c_),
        'cv2_w': conv_w(next(keys), c_, c1, 1, 1), 'cv2_bn': bn(next(keys), c_),
        'cv3_w': conv_w(next(keys), c2, 2 * c_, 1, 1), 'cv3_bn': bn(next(keys), c2),
        'm': [],
    }
    for _ in range(n):
        params['m'].append({
            'cv1_w': conv_w(next(keys), c_, c_, 3, 3), 'cv1_bn': bn(next(keys), c_),
            'cv2_w': conv_w(next(keys), c_, c_, 3, 3), 'cv2_bn': bn(next(keys), c_),
        })
    return params


if __name__ == "__main__":
    key = jax.random.PRNGKey(0)
    kp, kx = jax.random.split(key)

    N, c1, H, W = 2, 4, 16, 16
    c2, n_blocks, shortcut = 8, 1, True

    params = make_params(kp, c1, c2, n=n_blocks, e=0.5)
    x = jax.random.normal(kx, (N, c1, H, W), jnp.float32)

    fwd = jax.jit(functools.partial(c3_forward, n=n_blocks, shortcut=shortcut))
    out = jax.block_until_ready(fwd(x, params))

    assert out.shape == (N, c2, H, W), out.shape
    assert bool(jnp.all(jnp.isfinite(out)))

    ref = jax.block_until_ready(c3_reference(x, params, n=n_blocks, shortcut=shortcut))
    err = float(jnp.max(jnp.abs(out - ref)))
    assert err < 5e-3, f"max abs error vs reference: {err}"

    print("KERNEL_OK")
</pallas_src>

<mosaic_0001>
module attributes {stable_mosaic.version = 11 : i64} {
  func.func @_pw_conv_kernel(%arg0: i32, %arg1: memref<128x4xf32, #tpu.memory_space<vmem>>, %arg2: memref<4x8xf32, #tpu.memory_space<vmem>>, %arg3: memref<1x8xf32, #tpu.memory_space<vmem>>, %arg4: memref<1x8xf32, #tpu.memory_space<vmem>>, %arg5: memref<128x8xf32, #tpu.memory_space<vmem>>) attributes {dimension_semantics = [#tpu.dimension_semantics<parallel>], iteration_bounds = array<i64: 4>, scalar_prefetch = 0 : i64, scratch_operands = 0 : i64, tpu.core_type = #tpu.core_type<tc>, window_params = [{transform_indices = @transform_0, window_bounds = array<i64: 128, 4>}, {pipeline_mode = #tpu.pipeline_mode<synchronous>, transform_indices = @transform_1, window_bounds = array<i64: 4, 8>}, {pipeline_mode = #tpu.pipeline_mode<synchronous>, transform_indices = @transform_2, window_bounds = array<i64: 1, 8>}, {pipeline_mode = #tpu.pipeline_mode<synchronous>, transform_indices = @transform_3, window_bounds = array<i64: 1, 8>}, {transform_indices = @transform_4, window_bounds = array<i64: 128, 8>}]} {
    %c0 = arith.constant 0 : index
    %c0_0 = arith.constant 0 : index
    %0 = vector.load %arg1[%c0, %c0_0] : memref<128x4xf32, #tpu.memory_space<vmem>>, vector<128x4xf32>
    %c0_1 = arith.constant 0 : index
    %c0_2 = arith.constant 0 : index
    %1 = vector.load %arg2[%c0_1, %c0_2] : memref<4x8xf32, #tpu.memory_space<vmem>>, vector<4x8xf32>
    %cst = arith.constant dense<0.000000e+00> : vector<128x8xf32>
    %2 = tpu.matmul %0, %1, %cst {dimension_numbers = #tpu.dot_dimension_numbers<[1], [0], [0], [1], [0, 0, 1, 1], [], []>} : vector<128x4xf32>, vector<4x8xf32>, vector<128x8xf32> -> vector<128x8xf32>
    %c0_3 = arith.constant 0 : index
    %c0_4 = arith.constant 0 : index
    %3 = vector.load %arg3[%c0_3, %c0_4] : memref<1x8xf32, #tpu.memory_space<vmem>>, vector<1x8xf32>
    %4 = vector.broadcast %3 : vector<1x8xf32> to vector<128x8xf32>
    %5 = arith.mulf %2, %4 : vector<128x8xf32>
    %c0_5 = arith.constant 0 : index
    %c0_6 = arith.constant 0 : index
    %6 = vector.load %arg4[%c0_5, %c0_6] : memref<1x8xf32, #tpu.memory_space<vmem>>, vector<1x8xf32>
    %7 = vector.broadcast %6 : vector<1x8xf32> to vector<128x8xf32>
    %8 = arith.addf %5, %7 : vector<128x8xf32>
    %9 = arith.negf %8 : vector<128x8xf32>
    %10 = math.exp %9 : vector<128x8xf32>
    %cst_7 = arith.constant 1.000000e+00 : f32
    %11 = vector.broadcast %cst_7 : f32 to vector<128x8xf32>
    %12 = arith.addf %11, %10 : vector<128x8xf32>
    %13 = arith.divf %11, %12 : vector<128x8xf32>
    %14 = arith.mulf %8, %13 : vector<128x8xf32>
    %c0_8 = arith.constant 0 : index
    %c0_9 = arith.constant 0 : index
    %15 = vector.load %arg5[%c0_8, %c0_9] : memref<128x8xf32, #tpu.memory_space<vmem>>, vector<128x8xf32>
    tpu.vector_store %arg5[%c0_8, %c0_9], %14 {strides = array<i32>} : memref<128x8xf32, #tpu.memory_space<vmem>>, vector<128x8xf32>,
    return
  }
  func.func @transform_0(%arg0: i32) -> (i32, i32) {
    %c0_i32 = arith.constant 0 : i32
    %c0_i32_0 = arith.constant 0 : i32
    return %arg0, %c0_i32 : i32, i32
  }
  func.func @transform_1(%arg0: i32) -> (i32, i32) {
    %c0_i32 = arith.constant 0 : i32
    %c0_i32_0 = arith.constant 0 : i32
    %c0_i32_1 = arith.constant 0 : i32
    return %c0_i32, %c0_i32_0 : i32, i32
  }
  func.func @transform_2(%arg0: i32) -> (i32, i32) {
    %c0_i32 = arith.constant 0 : i32
    %c0_i32_0 = arith.constant 0 : i32
    %c0_i32_1 = arith.constant 0 : i32
    return %c0_i32, %c0_i32_0 : i32, i32
  }
  func.func @transform_3(%arg0: i32) -> (i32, i32) {
    %c0_i32 = arith.constant 0 : i32
    %c0_i32_0 = arith.constant 0 : i32
    %c0_i32_1 = arith.constant 0 : i32
    return %c0_i32, %c0_i32_0 : i32, i32
  }
  func.func @transform_4(%arg0: i32) -> (i32, i32) {
    %c0_i32 = arith.constant 0 : i32
    %c0_i32_0 = arith.constant 0 : i32
    return %arg0, %c0_i32 : i32, i32
  }
}

module attributes {stable_mosaic.version = 11 : i64} {
  func.func @kernel(%arg0: i32, %arg1: memref<1x18x18x4xf32, #tpu.memory_space<vmem>>, %arg2: memref<9x4x4xf32, #tpu.memory_space<vmem>>, %arg3: memref<1x4xf32, #tpu.memory_space<vmem>>, %arg4: memref<1x4xf32, #tpu.memory_space<vmem>>, %arg5: memref<1x16x16x4xf32, #tpu.memory_space<vmem>>) attributes {dimension_semantics = [#tpu.dimension_semantics<parallel>], iteration_bounds = array<i64: 2>, scalar_prefetch = 0 : i64, scratch_operands = 0 : i64, tpu.core_type = #tpu.core_type<tc>, window_params = [{transform_indices = @transform_0, window_bounds = array<i64: 1, 18, 18, 4>}, {pipeline_mode = #tpu.pipeline_mode<synchronous>, transform_indices = @transform_1, window_bounds = array<i64: 9, 4, 4>}, {pipeline_mode = #tpu.pipeline_mode<synchronous>, transform_indices = @transform_2, window_bounds = array<i64: 1, 4>}, {pipeline_mode = #tpu.pipeline_mode<synchronous>, transform_indices = @transform_3, window_bounds = array<i64: 1, 4>}, {transform_indices = @transform_4, window_bounds = array<i64: 1, 16, 16, 4>}]} {
    %cst = arith.constant 0.000000e+00 : f32
    %0 = vector.broadcast %cst : f32 to vector<256x4xf32>
    %c0 = arith.constant 0 : index
    %c0_0 = arith.constant 0 : index
    %c0_1 = arith.constant 0 : index
    %c0_2 = arith.constant 0 : index
    %1 = vector.load %arg1[%c0, %c0_0, %c0_1, %c0_2] : memref<1x18x18x4xf32, #tpu.memory_space<vmem>>, vector<1x16x16x4xf32>
    %2 = vector.shape_cast %1 : vector<1x16x16x4xf32> to vector<16x16x4xf32>
    %3 = vector.shape_cast %2 : vector<16x16x4xf32> to vector<256x4xf32>
    %c0_3 = arith.constant 0 : index
    %c0_4 = arith.constant 0 : index
    %c0_5 = arith.constant 0 : index
    %4 = vector.load %arg2[%c0_3, %c0_4, %c0_5] : memref<9x4x4xf32, #tpu.memory_space<vmem>>, vector<1x4x4xf32>
    %5 = vector.shape_cast %4 : vector<1x4x4xf32> to vector<4x4xf32>
    %cst_6 = arith.constant dense<0.000000e+00> : vector<256x4xf32>
    %6 = tpu.matmul %3, %5, %cst_6 {dimension_numbers = #tpu.dot_dimension_numbers<[1], [0], [0], [1], [0, 0, 1, 1], [], []>} : vector<256x4xf32>, vector<4x4xf32>, vector<256x4xf32> -> vector<256x4xf32>
    %7 = arith.addf %0, %6 : vector<256x4xf32>
    %c0_7 = arith.constant 0 : index
    %c0_8 = arith.constant 0 : index
    %c1 = arith.constant 1 : index
    %c0_9 = arith.constant 0 : index
    %8 = vector.load %arg1[%c0_7, %c0_8, %c1, %c0_9] : memref<1x18x18x4xf32, #tpu.memory_space<vmem>>, vector<1x16x16x4xf32>
    %9 = vector.shape_cast %8 : vector<1x16x16x4xf32> to vector<16x16x4xf32>
    %10 = vector.shape_cast %9 : vector<16x16x4xf32> to vector<256x4xf32>
    %c1_10 = arith.constant 1 : index
    %c0_11 = arith.constant 0 : index
    %c0_12 = arith.constant 0 : index
    %11 = vector.load %arg2[%c1_10, %c0_11, %c0_12] : memref<9x4x4xf32, #tpu.memory_space<vmem>>, vector<1x4x4xf32>
    %12 = vector.shape_cast %11 : vector<1x4x4xf32> to vector<4x4xf32>
    %cst_13 = arith.constant dense<0.000000e+00> : vector<256x4xf32>
    %13 = tpu.matmul %10, %12, %cst_13 {dimension_numbers = #tpu.dot_dimension_numbers<[1], [0], [0], [1], [0, 0, 1, 1], [], []>} : vector<256x4xf32>, vector<4x4xf32>, vector<256x4xf32> -> vector<256x4xf32>
    %14 = arith.addf %7, %13 : vector<256x4xf32>
    %c0_14 = arith.constant 0 : index
    %c0_15 = arith.constant 0 : index
    %c2 = arith.constant 2 : index
    %c0_16 = arith.constant 0 : index
    %15 = vector.load %arg1[%c0_14, %c0_15, %c2, %c0_16] : memref<1x18x18x4xf32, #tpu.memory_space<vmem>>, vector<1x16x16x4xf32>
    %16 = vector.shape_cast %15 : vector<1x16x16x4xf32> to vector<16x16x4xf32>
    %17 = vector.shape_cast %16 : vector<16x16x4xf32> to vector<256x4xf32>
    %c2_17 = arith.constant 2 : index
    %c0_18 = arith.constant 0 : index
    %c0_19 = arith.constant 0 : index
    %18 = vector.load %arg2[%c2_17, %c0_18, %c0_19] : memref<9x4x4xf32, #tpu.memory_space<vmem>>, vector<1x4x4xf32>
    %19 = vector.shape_cast %18 : vector<1x4x4xf32> to vector<4x4xf32>
    %cst_20 = arith.constant dense<0.000000e+00> : vector<256x4xf32>
    %20 = tpu.matmul %17, %19, %cst_20 {dimension_numbers = #tpu.dot_dimension_numbers<[1], [0], [0], [1], [0, 0, 1, 1], [], []>} : vector<256x4xf32>, vector<4x4xf32>, vector<256x4xf32> -> vector<256x4xf32>
    %21 = arith.addf %14, %20 : vector<256x4xf32>
    %c0_21 = arith.constant 0 : index
    %c1_22 = arith.constant 1 : index
    %c0_23 = arith.constant 0 : index
    %c0_24 = arith.constant 0 : index
    %22 = vector.load %arg1[%c0_21, %c1_22, %c0_23, %c0_24] : memref<1x18x18x4xf32, #tpu.memory_space<vmem>>, vector<1x16x16x4xf32>
    %23 = vector.shape_cast %22 : vector<1x16x16x4xf32> to vector<16x16x4xf32>
    %24 = vector.shape_cast %23 : vector<16x16x4xf32> to vector<256x4xf32>
    %c3 = arith.constant 3 : index
    %c0_25 = arith.constant 0 : index
    %c0_26 = arith.constant 0 : index
    %25 = vector.load %arg2[%c3, %c0_25, %c0_26] : memref<9x4x4xf32, #tpu.memory_space<vmem>>, vector<1x4x4xf32>
    %26 = vector.shape_cast %25 : vector<1x4x4xf32> to vector<4x4xf32>
    %cst_27 = arith.constant dense<0.000000e+00> : vector<256x4xf32>
    %27 = tpu.matmul %24, %26, %cst_27 {dimension_numbers = #tpu.dot_dimension_numbers<[1], [0], [0], [1], [0, 0, 1, 1], [], []>} : vector<256x4xf32>, vector<4x4xf32>, vector<256x4xf32> -> vector<256x4xf32>
    %28 = arith.addf %21, %27 : vector<256x4xf32>
    %c0_28 = arith.constant 0 : index
    %c1_29 = arith.constant 1 : index
    %c1_30 = arith.constant 1 : index
    %c0_31 = arith.constant 0 : index
    %29 = vector.load %arg1[%c0_28, %c1_29, %c1_30, %c0_31] : memref<1x18x18x4xf32, #tpu.memory_space<vmem>>, vector<1x16x16x4xf32>
    %30 = vector.shape_cast %29 : vector<1x16x16x4xf32> to vector<16x16x4xf32>
    %31 = vector.shape_cast %30 : vector<16x16x4xf32> to vector<256x4xf32>
    %c4 = arith.constant 4 : index
    %c0_32 = arith.constant 0 : index
    %c0_33 = arith.constant 0 : index
    %32 = vector.load %arg2[%c4, %c0_32, %c0_33] : memref<9x4x4xf32, #tpu.memory_space<vmem>>, vector<1x4x4xf32>
    %33 = vector.shape_cast %32 : vector<1x4x4xf32> to vector<4x4xf32>
    %cst_34 = arith.constant dense<0.000000e+00> : vector<256x4xf32>
    %34 = tpu.matmul %31, %33, %cst_34 {dimension_numbers = #tpu.dot_dimension_numbers<[1], [0], [0], [1], [0, 0, 1, 1], [], []>} : vector<256x4xf32>, vector<4x4xf32>, vector<256x4xf32> -> vector<256x4xf32>
    %35 = arith.addf %28, %34 : vector<256x4xf32>
    %c0_35 = arith.constant 0 : index
    %c1_36 = arith.constant 1 : index
    %c2_37 = arith.constant 2 : index
    %c0_38 = arith.constant 0 : index
    %36 = vector.load %arg1[%c0_35, %c1_36, %c2_37, %c0_38] : memref<1x18x18x4xf32, #tpu.memory_space<vmem>>, vector<1x16x16x4xf32>
    %37 = vector.shape_cast %36 : vector<1x16x16x4xf32> to vector<16x16x4xf32>
    %38 = vector.shape_cast %37 : vector<16x16x4xf32> to vector<256x4xf32>
    %c5 = arith.constant 5 : index
    %c0_39 = arith.constant 0 : index
    %c0_40 = arith.constant 0 : index
    %39 = vector.load %arg2[%c5, %c0_39, %c0_40] : memref<9x4x4xf32, #tpu.memory_space<vmem>>, vector<1x4x4xf32>
    %40 = vector.shape_cast %39 : vector<1x4x4xf32> to vector<4x4xf32>
    %cst_41 = arith.constant dense<0.000000e+00> : vector<256x4xf32>
    %41 = tpu.matmul %38, %40, %cst_41 {dimension_numbers = #tpu.dot_dimension_numbers<[1], [0], [0], [1], [0, 0, 1, 1], [], []>} : vector<256x4xf32>, vector<4x4xf32>, vector<256x4xf32> -> vector<256x4xf32>
    %42 = arith.addf %35, %41 : vector<256x4xf32>
    %c0_42 = arith.constant 0 : index
    %c2_43 = arith.constant 2 : index
    %c0_44 = arith.constant 0 : index
    %c0_45 = arith.constant 0 : index
    %43 = vector.load %arg1[%c0_42, %c2_43, %c0_44, %c0_45] : memref<1x18x18x4xf32, #tpu.memory_space<vmem>>, vector<1x16x16x4xf32>
    %44 = vector.shape_cast %43 : vector<1x16x16x4xf32> to vector<16x16x4xf32>
    %45 = vector.shape_cast %44 : vector<16x16x4xf32> to vector<256x4xf32>
    %c6 = arith.constant 6 : index
    %c0_46 = arith.constant 0 : index
    %c0_47 = arith.constant 0 : index
    %46 = vector.load %arg2[%c6, %c0_46, %c0_47] : memref<9x4x4xf32, #tpu.memory_space<vmem>>, vector<1x4x4xf32>
    %47 = vector.shape_cast %46 : vector<1x4x4xf32> to vector<4x4xf32>
    %cst_48 = arith.constant dense<0.000000e+00> : vector<256x4xf32>
    %48 = tpu.matmul %45, %47, %cst_48 {dimension_numbers = #tpu.dot_dimension_numbers<[1], [0], [0], [1], [0, 0, 1, 1], [], []>} : vector<256x4xf32>, vector<4x4xf32>, vector<256x4xf32> -> vector<256x4xf32>
    %49 = arith.addf %42, %48 : vector<256x4xf32>
    %c0_49 = arith.constant 0 : index
    %c2_50 = arith.constant 2 : index
    %c1_51 = arith.constant 1 : index
    %c0_52 = arith.constant 0 : index
    %50 = vector.load %arg1[%c0_49, %c2_50, %c1_51, %c0_52] : memref<1x18x18x4xf32, #tpu.memory_space<vmem>>, vector<1x16x16x4xf32>
    %51 = vector.shape_cast %50 : vector<1x16x16x4xf32> to vector<16x16x4xf32>
    %52 = vector.shape_cast %51 : vector<16x16x4xf32> to vector<256x4xf32>
    %c7 = arith.constant 7 : index
    %c0_53 = arith.constant 0 : index
    %c0_54 = arith.constant 0 : index
    %53 = vector.load %arg2[%c7, %c0_53, %c0_54] : memref<9x4x4xf32, #tpu.memory_space<vmem>>, vector<1x4x4xf32>
    %54 = vector.shape_cast %53 : vector<1x4x4xf32> to vector<4x4xf32>
    %cst_55 = arith.constant dense<0.000000e+00> : vector<256x4xf32>
    %55 = tpu.matmul %52, %54, %cst_55 {dimension_numbers = #tpu.dot_dimension_numbers<[1], [0], [0], [1], [0, 0, 1, 1], [], []>} : vector<256x4xf32>, vector<4x4xf32>, vector<256x4xf32> -> vector<256x4xf32>
    %56 = arith.addf %49, %55 : vector<256x4xf32>
    %c0_56 = arith.constant 0 : index
    %c2_57 = arith.constant 2 : index
    %c2_58 = arith.constant 2 : index
    %c0_59 = arith.constant 0 : index
    %57 = vector.load %arg1[%c0_56, %c2_57, %c2_58, %c0_59] : memref<1x18x18x4xf32, #tpu.memory_space<vmem>>, vector<1x16x16x4xf32>
    %58 = vector.shape_cast %57 : vector<1x16x16x4xf32> to vector<16x16x4xf32>
    %59 = vector.shape_cast %58 : vector<16x16x4xf32> to vector<256x4xf32>
    %c8 = arith.constant 8 : index
    %c0_60 = arith.constant 0 : index
    %c0_61 = arith.constant 0 : index
    %60 = vector.load %arg2[%c8, %c0_60, %c0_61] : memref<9x4x4xf32, #tpu.memory_space<vmem>>, vector<1x4x4xf32>
    %61 = vector.shape_cast %60 : vector<1x4x4xf32> to vector<4x4xf32>
    %cst_62 = arith.constant dense<0.000000e+00> : vector<256x4xf32>
    %62 = tpu.matmul %59, %61, %cst_62 {dimension_numbers = #tpu.dot_dimension_numbers<[1], [0], [0], [1], [0, 0, 1, 1], [], []>} : vector<256x4xf32>, vector<4x4xf32>, vector<256x4xf32> -> vector<256x4xf32>
    %63 = arith.addf %56, %62 : vector<256x4xf32>
    %c0_63 = arith.constant 0 : index
    %c0_64 = arith.constant 0 : index
    %64 = vector.load %arg3[%c0_63, %c0_64] : memref<1x4xf32, #tpu.memory_space<vmem>>, vector<1x4xf32>
    %65 = vector.broadcast %64 : vector<1x4xf32> to vector<256x4xf32>
    %66 = arith.mulf %63, %65 : vector<256x4xf32>
    %c0_65 = arith.constant 0 : index
    %c0_66 = arith.constant 0 : index
    %67 = vector.load %arg4[%c0_65, %c0_66] : memref<1x4xf32, #tpu.memory_space<vmem>>, vector<1x4xf32>
    %68 = vector.broadcast %67 : vector<1x4xf32> to vector<256x4xf32>
    %69 = arith.addf %66, %68 : vector<256x4xf32>
    %70 = arith.negf %69 : vector<256x4xf32>
    %71 = math.exp %70 : vector<256x4xf32>
    %cst_67 = arith.constant 1.000000e+00 : f32
    %72 = vector.broadcast %cst_67 : f32 to vector<256x4xf32>
    %73 = arith.addf %72, %71 : vector<256x4xf32>
    %74 = arith.divf %72, %73 : vector<256x4xf32>
    %75 = arith.mulf %69, %74 : vector<256x4xf32>
    %76 = vector.shape_cast %75 : vector<256x4xf32> to vector<16x16x4xf32>
    %c0_68 = arith.constant 0 : index
    %c0_69 = arith.constant 0 : index
    %c0_70 = arith.constant 0 : index
    %c0_71 = arith.constant 0 : index
    %77 = vector.load %arg5[%c0_68, %c0_69, %c0_70, %c0_71] : memref<1x16x16x4xf32, #tpu.memory_space<vmem>>, vector<1x16x16x4xf32>
    %78 = vector.shape_cast %77 : vector<1x16x16x4xf32> to vector<16x16x4xf32>
    %79 = vector.shape_cast %76 : vector<16x16x4xf32> to vector<1x16x16x4xf32>
    tpu.vector_store %arg5[%c0_68, %c0_69, %c0_70, %c0_71], %79 {strides = array<i32>} : memref<1x16x16x4xf32, #tpu.memory_space<vmem>>, vector<1x16x16x4xf32>,
    return
  }
  func.func @transform_0(%arg0: i32) -> (i32, i32, i32, i32) {
    %c0_i32 = arith.constant 0 : i32
    %c0_i32_0 = arith.constant 0 : i32
    %c0_i32_1 = arith.constant 0 : i32
    %c0_i32_2 = arith.constant 0 : i32
    return %arg0, %c0_i32, %c0_i32_0, %c0_i32_1 : i32, i32, i32, i32
  }
  func.func @transform_1(%arg0: i32) -> (i32, i32, i32) {
    %c0_i32 = arith.constant 0 : i32
    %c0_i32_0 = arith.constant 0 : i32
    %c0_i32_1 = arith.constant 0 : i32
    %c0_i32_2 = arith.constant 0 : i32
    return %c0_i32, %c0_i32_0, %c0_i32_1 : i32, i32, i32
  }
  func.func @transform_2(%arg0: i32) -> (i32, i32) {
    %c0_i32 = arith.constant 0 : i32
    %c0_i32_0 = arith.constant 0 : i32
    %c0_i32_1 = arith.constant 0 : i32
    return %c0_i32, %c0_i32_0 : i32, i32
  }
  func.func @transform_3(%arg0: i32) -> (i32, i32) {
    %c0_i32 = arith.constant 0 : i32
    %c0_i32_0 = arith.constant 0 : i32
    %c0_i32_1 = arith.constant 0 : i32
    return %c0_i32, %c0_i32_0 : i32, i32
  }
  func.func @transform_4(%arg0: i32) -> (i32, i32, i32, i32) {
    %c0_i32 = arith.constant 0 : i32
    %c0_i32_0 = arith.constant 0 : i32
    %c0_i32_1 = arith.constant 0 : i32
    %c0_i32_2 = arith.constant 0 : i32
    return %arg0, %c0_i32, %c0_i32_0, %c0_i32_1 : i32, i32, i32, i32
  }
}

module attributes {stable_mosaic.version = 11 : i64} {
  func.func @kernel(%arg0: i32, %arg1: memref<1x18x18x4xf32, #tpu.memory_space<vmem>>, %arg2: memref<9x4x4xf32, #tpu.memory_space<vmem>>, %arg3: memref<1x4xf32, #tpu.memory_space<vmem>>, %arg4: memref<1x4xf32, #tpu.memory_space<vmem>>, %arg5: memref<1x16x16x4xf32, #tpu.memory_space<vmem>>, %arg6: memref<1x16x16x4xf32, #tpu.memory_space<vmem>>) attributes {dimension_semantics = [#tpu.dimension_semantics<parallel>], iteration_bounds = array<i64: 2>, scalar_prefetch = 0 : i64, scratch_operands = 0 : i64, tpu.core_type = #tpu.core_type<tc>, window_params = [{transform_indices = @transform_0, window_bounds = array<i64: 1, 18, 18, 4>}, {pipeline_mode = #tpu.pipeline_mode<synchronous>, transform_indices = @transform_1, window_bounds = array<i64: 9, 4, 4>}, {pipeline_mode = #tpu.pipeline_mode<synchronous>, transform_indices = @transform_2, window_bounds = array<i64: 1, 4>}, {pipeline_mode = #tpu.pipeline_mode<synchronous>, transform_indices = @transform_3, window_bounds = array<i64: 1, 4>}, {transform_indices = @transform_4, window_bounds = array<i64: 1, 16, 16, 4>}, {transform_indices = @transform_5, window_bounds = array<i64: 1, 16, 16, 4>}]} {
    %cst = arith.constant 0.000000e+00 : f32
    %0 = vector.broadcast %cst : f32 to vector<256x4xf32>
    %c0 = arith.constant 0 : index
    %c0_0 = arith.constant 0 : index
    %c0_1 = arith.constant 0 : index
    %c0_2 = arith.constant 0 : index
    %1 = vector.load %arg1[%c0, %c0_0, %c0_1, %c0_2] : memref<1x18x18x4xf32, #tpu.memory_space<vmem>>, vector<1x16x16x4xf32>
    %2 = vector.shape_cast %1 : vector<1x16x16x4xf32> to vector<16x16x4xf32>
    %3 = vector.shape_cast %2 : vector<16x16x4xf32> to vector<256x4xf32>
    %c0_3 = arith.constant 0 : index
    %c0_4 = arith.constant 0 : index
    %c0_5 = arith.constant 0 : index
    %4 = vector.load %arg2[%c0_3, %c0_4, %c0_5] : memref<9x4x4xf32, #tpu.memory_space<vmem>>, vector<1x4x4xf32>
    %5 = vector.shape_cast %4 : vector<1x4x4xf32> to vector<4x4xf32>
    %cst_6 = arith.constant dense<0.000000e+00> : vector<256x4xf32>
    %6 = tpu.matmul %3, %5, %cst_6 {dimension_numbers = #tpu.dot_dimension_numbers<[1], [0], [0], [1], [0, 0, 1, 1], [], []>} : vector<256x4xf32>, vector<4x4xf32>, vector<256x4xf32> -> vector<256x4xf32>
    %7 = arith.addf %0, %6 : vector<256x4xf32>
    %c0_7 = arith.constant 0 : index
    %c0_8 = arith.constant 0 : index
    %c1 = arith.constant 1 : index
    %c0_9 = arith.constant 0 : index
    %8 = vector.load %arg1[%c0_7, %c0_8, %c1, %c0_9] : memref<1x18x18x4xf32, #tpu.memory_space<vmem>>, vector<1x16x16x4xf32>
    %9 = vector.shape_cast %8 : vector<1x16x16x4xf32> to vector<16x16x4xf32>
    %10 = vector.shape_cast %9 : vector<16x16x4xf32> to vector<256x4xf32>
    %c1_10 = arith.constant 1 : index
    %c0_11 = arith.constant 0 : index
    %c0_12 = arith.constant 0 : index
    %11 = vector.load %arg2[%c1_10, %c0_11, %c0_12] : memref<9x4x4xf32, #tpu.memory_space<vmem>>, vector<1x4x4xf32>
    %12 = vector.shape_cast %11 : vector<1x4x4xf32> to vector<4x4xf32>
    %cst_13 = arith.constant dense<0.000000e+00> : vector<256x4xf32>
    %13 = tpu.matmul %10, %12, %cst_13 {dimension_numbers = #tpu.dot_dimension_numbers<[1], [0], [0], [1], [0, 0, 1, 1], [], []>} : vector<256x4xf32>, vector<4x4xf32>, vector<256x4xf32> -> vector<256x4xf32>
    %14 = arith.addf %7, %13 : vector<256x4xf32>
    %c0_14 = arith.constant 0 : index
    %c0_15 = arith.constant 0 : index
    %c2 = arith.constant 2 : index
    %c0_16 = arith.constant 0 : index
    %15 = vector.load %arg1[%c0_14, %c0_15, %c2, %c0_16] : memref<1x18x18x4xf32, #tpu.memory_space<vmem>>, vector<1x16x16x4xf32>
    %16 = vector.shape_cast %15 : vector<1x16x16x4xf32> to vector<16x16x4xf32>
    %17 = vector.shape_cast %16 : vector<16x16x4xf32> to vector<256x4xf32>
    %c2_17 = arith.constant 2 : index
    %c0_18 = arith.constant 0 : index
    %c0_19 = arith.constant 0 : index
    %18 = vector.load %arg2[%c2_17, %c0_18, %c0_19] : memref<9x4x4xf32, #tpu.memory_space<vmem>>, vector<1x4x4xf32>
    %19 = vector.shape_cast %18 : vector<1x4x4xf32> to vector<4x4xf32>
    %cst_20 = arith.constant dense<0.000000e+00> : vector<256x4xf32>
    %20 = tpu.matmul %17, %19, %cst_20 {dimension_numbers = #tpu.dot_dimension_numbers<[1], [0], [0], [1], [0, 0, 1, 1], [], []>} : vector<256x4xf32>, vector<4x4xf32>, vector<256x4xf32> -> vector<256x4xf32>
    %21 = arith.addf %14, %20 : vector<256x4xf32>
    %c0_21 = arith.constant 0 : index
    %c1_22 = arith.constant 1 : index
    %c0_23 = arith.constant 0 : index
    %c0_24 = arith.constant 0 : index
    %22 = vector.load %arg1[%c0_21, %c1_22, %c0_23, %c0_24] : memref<1x18x18x4xf32, #tpu.memory_space<vmem>>, vector<1x16x16x4xf32>
    %23 = vector.shape_cast %22 : vector<1x16x16x4xf32> to vector<16x16x4xf32>
    %24 = vector.shape_cast %23 : vector<16x16x4xf32> to vector<256x4xf32>
    %c3 = arith.constant 3 : index
    %c0_25 = arith.constant 0 : index
    %c0_26 = arith.constant 0 : index
    %25 = vector.load %arg2[%c3, %c0_25, %c0_26] : memref<9x4x4xf32, #tpu.memory_space<vmem>>, vector<1x4x4xf32>
    %26 = vector.shape_cast %25 : vector<1x4x4xf32> to vector<4x4xf32>
    %cst_27 = arith.constant dense<0.000000e+00> : vector<256x4xf32>
    %27 = tpu.matmul %24, %26, %cst_27 {dimension_numbers = #tpu.dot_dimension_numbers<[1], [0], [0], [1], [0, 0, 1, 1], [], []>} : vector<256x4xf32>, vector<4x4xf32>, vector<256x4xf32> -> vector<256x4xf32>
    %28 = arith.addf %21, %27 : vector<256x4xf32>
    %c0_28 = arith.constant 0 : index
    %c1_29 = arith.constant 1 : index
    %c1_30 = arith.constant 1 : index
    %c0_31 = arith.constant 0 : index
    %29 = vector.load %arg1[%c0_28, %c1_29, %c1_30, %c0_31] : memref<1x18x18x4xf32, #tpu.memory_space<vmem>>, vector<1x16x16x4xf32>
    %30 = vector.shape_cast %29 : vector<1x16x16x4xf32> to vector<16x16x4xf32>
    %31 = vector.shape_cast %30 : vector<16x16x4xf32> to vector<256x4xf32>
    %c4 = arith.constant 4 : index
    %c0_32 = arith.constant 0 : index
    %c0_33 = arith.constant 0 : index
    %32 = vector.load %arg2[%c4, %c0_32, %c0_33] : memref<9x4x4xf32, #tpu.memory_space<vmem>>, vector<1x4x4xf32>
    %33 = vector.shape_cast %32 : vector<1x4x4xf32> to vector<4x4xf32>
    %cst_34 = arith.constant dense<0.000000e+00> : vector<256x4xf32>
    %34 = tpu.matmul %31, %33, %cst_34 {dimension_numbers = #tpu.dot_dimension_numbers<[1], [0], [0], [1], [0, 0, 1, 1], [], []>} : vector<256x4xf32>, vector<4x4xf32>, vector<256x4xf32> -> vector<256x4xf32>
    %35 = arith.addf %28, %34 : vector<256x4xf32>
    %c0_35 = arith.constant 0 : index
    %c1_36 = arith.constant 1 : index
    %c2_37 = arith.constant 2 : index
    %c0_38 = arith.constant 0 : index
    %36 = vector.load %arg1[%c0_35, %c1_36, %c2_37, %c0_38] : memref<1x18x18x4xf32, #tpu.memory_space<vmem>>, vector<1x16x16x4xf32>
    %37 = vector.shape_cast %36 : vector<1x16x16x4xf32> to vector<16x16x4xf32>
    %38 = vector.shape_cast %37 : vector<16x16x4xf32> to vector<256x4xf32>
    %c5 = arith.constant 5 : index
    %c0_39 = arith.constant 0 : index
    %c0_40 = arith.constant 0 : index
    %39 = vector.load %arg2[%c5, %c0_39, %c0_40] : memref<9x4x4xf32, #tpu.memory_space<vmem>>, vector<1x4x4xf32>
    %40 = vector.shape_cast %39 : vector<1x4x4xf32> to vector<4x4xf32>
    %cst_41 = arith.constant dense<0.000000e+00> : vector<256x4xf32>
    %41 = tpu.matmul %38, %40, %cst_41 {dimension_numbers = #tpu.dot_dimension_numbers<[1], [0], [0], [1], [0, 0, 1, 1], [], []>} : vector<256x4xf32>, vector<4x4xf32>, vector<256x4xf32> -> vector<256x4xf32>
    %42 = arith.addf %35, %41 : vector<256x4xf32>
    %c0_42 = arith.constant 0 : index
    %c2_43 = arith.constant 2 : index
    %c0_44 = arith.constant 0 : index
    %c0_45 = arith.constant 0 : index
    %43 = vector.load %arg1[%c0_42, %c2_43, %c0_44, %c0_45] : memref<1x18x18x4xf32, #tpu.memory_space<vmem>>, vector<1x16x16x4xf32>
    %44 = vector.shape_cast %43 : vector<1x16x16x4xf32> to vector<16x16x4xf32>
    %45 = vector.shape_cast %44 : vector<16x16x4xf32> to vector<256x4xf32>
    %c6 = arith.constant 6 : index
    %c0_46 = arith.constant 0 : index
    %c0_47 = arith.constant 0 : index
    %46 = vector.load %arg2[%c6, %c0_46, %c0_47] : memref<9x4x4xf32, #tpu.memory_space<vmem>>, vector<1x4x4xf32>
    %47 = vector.shape_cast %46 : vector<1x4x4xf32> to vector<4x4xf32>
    %cst_48 = arith.constant dense<0.000000e+00> : vector<256x4xf32>
    %48 = tpu.matmul %45, %47, %cst_48 {dimension_numbers = #tpu.dot_dimension_numbers<[1], [0], [0], [1], [0, 0, 1, 1], [], []>} : vector<256x4xf32>, vector<4x4xf32>, vector<256x4xf32> -> vector<256x4xf32>
    %49 = arith.addf %42, %48 : vector<256x4xf32>
    %c0_49 = arith.constant 0 : index
    %c2_50 = arith.constant 2 : index
    %c1_51 = arith.constant 1 : index
    %c0_52 = arith.constant 0 : index
    %50 = vector.load %arg1[%c0_49, %c2_50, %c1_51, %c0_52] : memref<1x18x18x4xf32, #tpu.memory_space<vmem>>, vector<1x16x16x4xf32>
    %51 = vector.shape_cast %50 : vector<1x16x16x4xf32> to vector<16x16x4xf32>
    %52 = vector.shape_cast %51 : vector<16x16x4xf32> to vector<256x4xf32>
    %c7 = arith.constant 7 : index
    %c0_53 = arith.constant 0 : index
    %c0_54 = arith.constant 0 : index
    %53 = vector.load %arg2[%c7, %c0_53, %c0_54] : memref<9x4x4xf32, #tpu.memory_space<vmem>>, vector<1x4x4xf32>
    %54 = vector.shape_cast %53 : vector<1x4x4xf32> to vector<4x4xf32>
    %cst_55 = arith.constant dense<0.000000e+00> : vector<256x4xf32>
    %55 = tpu.matmul %52, %54, %cst_55 {dimension_numbers = #tpu.dot_dimension_numbers<[1], [0], [0], [1], [0, 0, 1, 1], [], []>} : vector<256x4xf32>, vector<4x4xf32>, vector<256x4xf32> -> vector<256x4xf32>
    %56 = arith.addf %49, %55 : vector<256x4xf32>
    %c0_56 = arith.constant 0 : index
    %c2_57 = arith.constant 2 : index
    %c2_58 = arith.constant 2 : index
    %c0_59 = arith.constant 0 : index
    %57 = vector.load %arg1[%c0_56, %c2_57, %c2_58, %c0_59] : memref<1x18x18x4xf32, #tpu.memory_space<vmem>>, vector<1x16x16x4xf32>
    %58 = vector.shape_cast %57 : vector<1x16x16x4xf32> to vector<16x16x4xf32>
    %59 = vector.shape_cast %58 : vector<16x16x4xf32> to vector<256x4xf32>
    %c8 = arith.constant 8 : index
    %c0_60 = arith.constant 0 : index
    %c0_61 = arith.constant 0 : index
    %60 = vector.load %arg2[%c8, %c0_60, %c0_61] : memref<9x4x4xf32, #tpu.memory_space<vmem>>, vector<1x4x4xf32>
    %61 = vector.shape_cast %60 : vector<1x4x4xf32> to vector<4x4xf32>
    %cst_62 = arith.constant dense<0.000000e+00> : vector<256x4xf32>
    %62 = tpu.matmul %59, %61, %cst_62 {dimension_numbers = #tpu.dot_dimension_numbers<[1], [0], [0], [1], [0, 0, 1, 1], [], []>} : vector<256x4xf32>, vector<4x4xf32>, vector<256x4xf32> -> vector<256x4xf32>
    %63 = arith.addf %56, %62 : vector<256x4xf32>
    %c0_63 = arith.constant 0 : index
    %c0_64 = arith.constant 0 : index
    %64 = vector.load %arg3[%c0_63, %c0_64] : memref<1x4xf32, #tpu.memory_space<vmem>>, vector<1x4xf32>
    %65 = vector.broadcast %64 : vector<1x4xf32> to vector<256x4xf32>
    %66 = arith.mulf %63, %65 : vector<256x4xf32>
    %c0_65 = arith.constant 0 : index
    %c0_66 = arith.constant 0 : index
    %67 = vector.load %arg4[%c0_65, %c0_66] : memref<1x4xf32, #tpu.memory_space<vmem>>, vector<1x4xf32>
    %68 = vector.broadcast %67 : vector<1x4xf32> to vector<256x4xf32>
    %69 = arith.addf %66, %68 : vector<256x4xf32>
    %70 = arith.negf %69 : vector<256x4xf32>
    %71 = math.exp %70 : vector<256x4xf32>
    %cst_67 = arith.constant 1.000000e+00 : f32
    %72 = vector.broadcast %cst_67 : f32 to vector<256x4xf32>
    %73 = arith.addf %72, %71 : vector<256x4xf32>
    %74 = arith.divf %72, %73 : vector<256x4xf32>
    %75 = arith.mulf %69, %74 : vector<256x4xf32>
    %c0_68 = arith.constant 0 : index
    %c0_69 = arith.constant 0 : index
    %c0_70 = arith.constant 0 : index
    %c0_71 = arith.constant 0 : index
    %76 = vector.load %arg5[%c0_68, %c0_69, %c0_70, %c0_71] : memref<1x16x16x4xf32, #tpu.memory_space<vmem>>, vector<1x16x16x4xf32>
    %77 = vector.shape_cast %76 : vector<1x16x16x4xf32> to vector<16x16x4xf32>
    %78 = vector.shape_cast %77 : vector<16x16x4xf32> to vector<256x4xf32>
    %79 = arith.addf %75, %78 : vector<256x4xf32>
    %80 = vector.shape_cast %79 : vector<256x4xf32> to vector<16x16x4xf32>
    %c0_72 = arith.constant 0 : index
    %c0_73 = arith.constant 0 : index
    %c0_74 = arith.constant 0 : index
    %c0_75 = arith.constant 0 : index
    %81 = vector.load %arg6[%c0_72, %c0_73, %c0_74, %c0_75] : memref<1x16x16x4xf32, #tpu.memory_space<vmem>>, vector<1x16x16x4xf32>
    %82 = vector.shape_cast %81 : vector<1x16x16x4xf32> to vector<16x16x4xf32>
    %83 = vector.shape_cast %80 : vector<16x16x4xf32> to vector<1x16x16x4xf32>
    tpu.vector_store %arg6[%c0_72, %c0_73, %c0_74, %c0_75], %83 {strides = array<i32>} : memref<1x16x16x4xf32, #tpu.memory_space<vmem>>, vector<1x16x16x4xf32>,
    return
  }
  func.func @transform_0(%arg0: i32) -> (i32, i32, i32, i32) {
    %c0_i32 = arith.constant 0 : i32
    %c0_i32_0 = arith.constant 0 : i32
    %c0_i32_1 = arith.constant 0 : i32
    %c0_i32_2 = arith.constant 0 : i32
    return %arg0, %c0_i32, %c0_i32_0, %c0_i32_1 : i32, i32, i32, i32
  }
  func.func @transform_1(%arg0: i32) -> (i32, i32, i32) {
    %c0_i32 = arith.constant 0 : i32
    %c0_i32_0 = arith.constant 0 : i32
    %c0_i32_1 = arith.constant 0 : i32
    %c0_i32_2 = arith.constant 0 : i32
    return %c0_i32, %c0_i32_0, %c0_i32_1 : i32, i32, i32
  }
  func.func @transform_2(%arg0: i32) -> (i32, i32) {
    %c0_i32 = arith.constant 0 : i32
    %c0_i32_0 = arith.constant 0 : i32
    %c0_i32_1 = arith.constant 0 : i32
    return %c0_i32, %c0_i32_0 : i32, i32
  }
  func.func @transform_3(%arg0: i32) -> (i32, i32) {
    %c0_i32 = arith.constant 0 : i32
    %c0_i32_0 = arith.constant 0 : i32
    %c0_i32_1 = arith.constant 0 : i32
    return %c0_i32, %c0_i32_0 : i32, i32
  }
  func.func @transform_4(%arg0: i32) -> (i32, i32, i32, i32) {
    %c0_i32 = arith.constant 0 : i32
    %c0_i32_0 = arith.constant 0 : i32
    %c0_i32_1 = arith.constant 0 : i32
    %c0_i32_2 = arith.constant 0 : i32
    return %arg0, %c0_i32, %c0_i32_0, %c0_i32_1 : i32, i32, i32, i32
  }
  func.func @transform_5(%arg0: i32) -> (i32, i32, i32, i32) {
    %c0_i32 = arith.constant 0 : i32
    %c0_i32_0 = arith.constant 0 : i32
    %c0_i32_1 = arith.constant 0 : i32
    %c0_i32_2 = arith.constant 0 : i32
    return %arg0, %c0_i32, %c0_i32_0, %c0_i32_1 : i32, i32, i32, i32
  }
}

module attributes {stable_mosaic.version = 11 : i64} {
  func.func @_cv3_kernel(%arg0: i32, %arg1: memref<128x4xf32, #tpu.memory_space<vmem>>, %arg2: memref<128x4xf32, #tpu.memory_space<vmem>>, %arg3: memref<4x8xf32, #tpu.memory_space<vmem>>, %arg4: memref<4x8xf32, #tpu.memory_space<vmem>>, %arg5: memref<1x8xf32, #tpu.memory_space<vmem>>, %arg6: memref<1x8xf32, #tpu.memory_space<vmem>>, %arg7: memref<128x8xf32, #tpu.memory_space<vmem>>) attributes {dimension_semantics = [#tpu.dimension_semantics<parallel>], iteration_bounds = array<i64: 4>, scalar_prefetch = 0 : i64, scratch_operands = 0 : i64, tpu.core_type = #tpu.core_type<tc>, window_params = [{transform_indices = @transform_0, window_bounds = array<i64: 128, 4>}, {transform_indices = @transform_1, window_bounds = array<i64: 128, 4>}, {pipeline_mode = #tpu.pipeline_mode<synchronous>, transform_indices = @transform_2, window_bounds = array<i64: 4, 8>}, {pipeline_mode = #tpu.pipeline_mode<synchronous>, transform_indices = @transform_3, window_bounds = array<i64: 4, 8>}, {pipeline_mode = #tpu.pipeline_mode<synchronous>, transform_indices = @transform_4, window_bounds = array<i64: 1, 8>}, {pipeline_mode = #tpu.pipeline_mode<synchronous>, transform_indices = @transform_5, window_bounds = array<i64: 1, 8>}, {transform_indices = @transform_6, window_bounds = array<i64: 128, 8>}]} {
    %c0 = arith.constant 0 : index
    %c0_0 = arith.constant 0 : index
    %0 = vector.load %arg1[%c0, %c0_0] : memref<128x4xf32, #tpu.memory_space<vmem>>, vector<128x4xf32>
    %c0_1 = arith.constant 0 : index
    %c0_2 = arith.constant 0 : index
    %1 = vector.load %arg3[%c0_1, %c0_2] : memref<4x8xf32, #tpu.memory_space<vmem>>, vector<4x8xf32>
    %cst = arith.constant dense<0.000000e+00> : vector<128x8xf32>
    %2 = tpu.matmul %0, %1, %cst {dimension_numbers = #tpu.dot_dimension_numbers<[1], [0], [0], [1], [0, 0, 1, 1], [], []>} : vector<128x4xf32>, vector<4x8xf32>, vector<128x8xf32> -> vector<128x8xf32>
    %c0_3 = arith.constant 0 : index
    %c0_4 = arith.constant 0 : index
    %3 = vector.load %arg2[%c0_3, %c0_4] : memref<128x4xf32, #tpu.memory_space<vmem>>, vector<128x4xf32>
    %c0_5 = arith.constant 0 : index
    %c0_6 = arith.constant 0 : index
    %4 = vector.load %arg4[%c0_5, %c0_6] : memref<4x8xf32, #tpu.memory_space<vmem>>, vector<4x8xf32>
    %cst_7 = arith.constant dense<0.000000e+00> : vector<128x8xf32>
    %5 = tpu.matmul %3, %4, %cst_7 {dimension_numbers = #tpu.dot_dimension_numbers<[1], [0], [0], [1], [0, 0, 1, 1], [], []>} : vector<128x4xf32>, vector<4x8xf32>, vector<128x8xf32> -> vector<128x8xf32>
    %6 = arith.addf %2, %5 : vector<128x8xf32>
    %c0_8 = arith.constant 0 : index
    %c0_9 = arith.constant 0 : index
    %7 = vector.load %arg5[%c0_8, %c0_9] : memref<1x8xf32, #tpu.memory_space<vmem>>, vector<1x8xf32>
    %8 = vector.broadcast %7 : vector<1x8xf32> to vector<128x8xf32>
    %9 = arith.mulf %6, %8 : vector<128x8xf32>
    %c0_10 = arith.constant 0 : index
    %c0_11 = arith.constant 0 : index
    %10 = vector.load %arg6[%c0_10, %c0_11] : memref<1x8xf32, #tpu.memory_space<vmem>>, vector<1x8xf32>
    %11 = vector.broadcast %10 : vector<1x8xf32> to vector<128x8xf32>
    %12 = arith.addf %9, %11 : vector<128x8xf32>
    %13 = arith.negf %12 : vector<128x8xf32>
    %14 = math.exp %13 : vector<128x8xf32>
    %cst_12 = arith.constant 1.000000e+00 : f32
    %15 = vector.broadcast %cst_12 : f32 to vector<128x8xf32>
    %16 = arith.addf %15, %14 : vector<128x8xf32>
    %17 = arith.divf %15, %16 : vector<128x8xf32>
    %18 = arith.mulf %12, %17 : vector<128x8xf32>
    %c0_13 = arith.constant 0 : index
    %c0_14 = arith.constant 0 : index
    %19 = vector.load %arg7[%c0_13, %c0_14] : memref<128x8xf32, #tpu.memory_space<vmem>>, vector<128x8xf32>
    tpu.vector_store %arg7[%c0_13, %c0_14], %18 {strides = array<i32>} : memref<128x8xf32, #tpu.memory_space<vmem>>, vector<128x8xf32>,
    return
  }
  func.func @transform_0(%arg0: i32) -> (i32, i32) {
    %c0_i32 = arith.constant 0 : i32
    %c0_i32_0 = arith.constant 0 : i32
    return %arg0, %c0_i32 : i32, i32
  }
  func.func @transform_1(%arg0: i32) -> (i32, i32) {
    %c0_i32 = arith.constant 0 : i32
    %c0_i32_0 = arith.constant 0 : i32
    return %arg0, %c0_i32 : i32, i32
  }
  func.func @transform_2(%arg0: i32) -> (i32, i32) {
    %c0_i32 = arith.constant 0 : i32
    %c0_i32_0 = arith.constant 0 : i32
    %c0_i32_1 = arith.constant 0 : i32
    return %c0_i32, %c0_i32_0 : i32, i32
  }
  func.func @transform_3(%arg0: i32) -> (i32, i32) {
    %c0_i32 = arith.constant 0 : i32
    %c0_i32_0 = arith.constant 0 : i32
    %c0_i32_1 = arith.constant 0 : i32
    return %c0_i32, %c0_i32_0 : i32, i32
  }
  func.func @transform_4(%arg0: i32) -> (i32, i32) {
    %c0_i32 = arith.constant 0 : i32
    %c0_i32_0 = arith.constant 0 : i32
    %c0_i32_1 = arith.constant 0 : i32
    return %c0_i32, %c0_i32_0 : i32, i32
  }
  func.func @transform_5(%arg0: i32) -> (i32, i32) {
    %c0_i32 = arith.constant 0 : i32
    %c0_i32_0 = arith.constant 0 : i32
    %c0_i32_1 = arith.constant 0 : i32
    return %c0_i32, %c0_i32_0 : i32, i32
  }
  func.func @transform_6(%arg0: i32) -> (i32, i32) {
    %c0_i32 = arith.constant 0 : i32
    %c0_i32_0 = arith.constant 0 : i32
    return %arg0, %c0_i32 : i32, i32
  }
}

</mosaic_0001>

<llo_original>
// kernel: c3_forward.4
$region0: #{c3_forward.4}
  #allocation0 [shape = 'u32[]', space=smem, size = 0x4, offset = 0x4, fixed_abs, tag = 'smem constant byte address 0x4 - core index']
  #allocation1 [shape = 'u32[144,128]{1,0:T(1,128)}', space=vmem, size = 0x12000, scoped, tag = 'internal scratch']
  %s0 = inlined_call_operand.vmem [shape: f32[512,4], index: 0, kind: input, shape index: {}]
  %s1 = inlined_call_operand.vmem [shape: f32[4,8], index: 1, kind: input, shape index: {}]
  %s2 = inlined_call_operand.vmem [shape: f32[1,8], index: 2, kind: input, shape index: {}]
  %s3 = inlined_call_operand.vmem [shape: f32[1,8], index: 3, kind: input, shape index: {}]
  %s4 = inlined_call_operand.vmem [shape: f32[512,8], index: 4, kind: output, shape index: {}]
  %s5 = sld [smem:[#allocation0]]
  $region49: #{c3_forward.4} parent=0
    _
  %s7 = ssub.s32 1, %s5
  %s8 = scalar_select 0, %s7, %s5
  loop: start=0, step=1, limit=6
  $region2: #{c3_forward.4} parent=0 // loop_pre_header
    _
  $region3: #{c3_forward.4} parent=0 // loop_header
    %s10 = sphi 0, %s14
    %p11 = scmp.ge.s32.totalorder %s10, 6
    %s20 = sphi 0, %s22
    %s23 = sphi 0, %s20
    %s24 = sphi 0, %s23
    %s40 = sphi 0, %s24
    %s44 = sphi 0, %s44
    %s46 = sphi 0, %s44
    %s47 = sphi 0, %s46
    %s61 = sphi 0, %s47
    %s65 = sphi 0, %s65
    %s67 = sphi 0, %s65
    %s68 = sphi 0, %s67
    %s82 = sphi 0, %s68
    %s86 = sphi 0, %s86
    %s88 = sphi 0, %s86
    %s89 = sphi 0, %s88
    %s103 = sphi 0, %s89
    %s109 = sphi 0, %s111
    %s112 = sphi 0, %s109
    %s113 = sphi 0, %s112
    %s129 = sphi 0, %s113
  $region4: #{c3_forward.4} parent=0 // loop_header_branch
    %13 = sbr.rel (%p11) target = $region8
  $region5: #{c3_forward.4} parent=0 // loop_body
    %s15 = ssub.s32 %s10, 1
    %s16 = ssub.s32 %s10, 2
    %s17 = sadd.s32 %s10, 1
    %s18 = ssub.s32 %s10, %s17
    %p19 = scmp.eq.s32.totalorder %s18, 0
    %s21 = sadd.s32 %s20, 1
    %s22 = scalar_select %p19, %s20, %s21
    %p25 = pneg %p19
    %p26 = scmp.eq.s32.totalorder %s10, 3
    %p27 = por %p25, %p26
    %p28 = scmp.ne.s32.totalorder %s20, %s23
    %p29 = scmp.eq.s32.totalorder %s10, 0
    %p30 = por %p28, %p29
    %p31 = scmp.ne.s32.totalorder %s20, %s23
    %p32 = scmp.eq.s32.totalorder %s15, 3
    %p33 = por %p31, %p32
    %p34 = scmp.ne.s32.totalorder %s23, %s24
    %p35 = scmp.eq.s32.totalorder %s15, 0
    %p36 = por %p34, %p35
    %p37 = scmp.ne.s32.totalorder %s23, %s24
    %p38 = scmp.eq.s32.totalorder %s16, 3
    %p39 = por %p37, %p38
    %p41 = scmp.ne.s32.totalorder %s24, %s40
    %p42 = scmp.eq.s32.totalorder %s16, 0
    %p43 = por %p41, %p42
    %s45 = sadd.s32 %s44, 1
    %p48 = scmp.eq.s32.totalorder %s10, 3
    %p49 = scmp.ne.s32.totalorder %s44, %s46
    %p50 = scmp.eq.s32.totalorder %s10, 0
    %p51 = por %p49, %p50
    %p52 = scmp.ne.s32.totalorder %s44, %s46
    %p53 = scmp.eq.s32.totalorder %s15, 3
    %p54 = por %p52, %p53
    %p55 = scmp.ne.s32.totalorder %s46, %s47
    %p56 = scmp.eq.s32.totalorder %s15, 0
    %p57 = por %p55, %p56
    %p58 = scmp.ne.s32.totalorder %s46, %s47
    %p59 = scmp.eq.s32.totalorder %s16, 3
    %p60 = por %p58, %p59
    %p62 = scmp.ne.s32.totalorder %s47, %s61
    %p63 = scmp.eq.s32.totalorder %s16, 0
    %p64 = por %p62, %p63
    %s66 = sadd.s32 %s65, 1
    %p69 = scmp.eq.s32.totalorder %s10, 3
    %p70 = scmp.ne.s32.totalorder %s65, %s67
    %p71 = scmp.eq.s32.totalorder %s10, 0
    %p72 = por %p70, %p71
    %p73 = scmp.ne.s32.totalorder %s65, %s67
    %p74 = scmp.eq.s32.totalorder %s15, 3
    %p75 = por %p73, %p74
    %p76 = scmp.ne.s32.totalorder %s67, %s68
    %p77 = scmp.eq.s32.totalorder %s15, 0
    %p78 = por %p76, %p77
    %p79 = scmp.ne.s32.totalorder %s67, %s68
    %p80 = scmp.eq.s32.totalorder %s16, 3
    %p81 = por %p79, %p80
    %p83 = scmp.ne.s32.totalorder %s68, %s82
    %p84 = scmp.eq.s32.totalorder %s16, 0
    %p85 = por %p83, %p84
    %s87 = sadd.s32 %s86, 1
    %p90 = scmp.eq.s32.totalorder %s10, 3
    %p91 = scmp.ne.s32.totalorder %s86, %s88
    %p92 = scmp.eq.s32.totalorder %s10, 0
    %p93 = por %p91, %p92
    %p94 = scmp.ne.s32.totalorder %s86, %s88
    %p95 = scmp.eq.s32.totalorder %s15, 3
    %p96 = por %p94, %p95
    %p97 = scmp.ne.s32.totalorder %s88, %s89
    %p98 = scmp.eq.s32.totalorder %s15, 0
    %p99 = por %p97, %p98
    %p100 = scmp.ne.s32.totalorder %s88, %s89
    %p101 = scmp.eq.s32.totalorder %s16, 3
    %p102 = por %p100, %p101
    %p104 = scmp.ne.s32.totalorder %s89, %s103
    %p105 = scmp.eq.s32.totalorder %s16, 0
    %p106 = por %p104, %p105
    %s107 = ssub.s32 %s10, %s17
    %p108 = scmp.eq.s32.totalorder %s107, 0
    %s110 = sadd.s32 %s109, 1
    %s111 = scalar_select %p108, %s109, %s110
    %p114 = pneg %p108
    %p115 = scmp.eq.s32.totalorder %s10, 3
    %p116 = por %p114, %p115
    %p117 = scmp.ne.s32.totalorder %s109, %s112
    %p118 = scmp.eq.s32.totalorder %s10, 0
    %p119 = por %p117, %p118
    %p120 = scmp.ne.s32.totalorder %s109, %s112
    %p121 = scmp.eq.s32.totalorder %s15, 3
    %p122 = por %p120, %p121
    %p123 = scmp.ne.s32.totalorder %s112, %s113
    %p124 = scmp.eq.s32.totalorder %s15, 0
    %p125 = por %p123, %p124
    %p126 = scmp.ne.s32.totalorder %s112, %s113
    %p127 = scmp.eq.s32.totalorder %s16, 3
    %p128 = por %p126, %p127
    %p130 = scmp.ne.s32.totalorder %s113, %s129
    %p131 = scmp.eq.s32.totalorder %s16, 0
    %p132 = por %p130, %p131
    %p133 = scmp.le.s32.totalorder 1, %s10
    %p134 = scmp.lt.s32.totalorder %s10, 5
    %p135 = pnand %p133, %p134
    %p136 = pneg %p135
    // Predicated region
    $region9: #{c3_forward.4} parent=5 // pred_check
      _
    $region10: #{c3_forward.4} parent=5 // pred_check_branch
      %138 = sbr.rel (%p135) target = $region12
    $region11: #{c3_forward.4} parent=5 // pred_region
      %s139 = ssub.s32 %s10, 1
      // Predicated region
      $region13: #{c3_forward.4} parent=11 // pred_check
        %p140 = pneg %p57
      $region14: #{c3_forward.4} parent=11 // pred_check_branch
        %142 = sbr.rel (%p140) target = $region16
      $region15: #{c3_forward.4} parent=11 // pred_region
        _
      $region16: #{c3_forward.4} parent=11 // pred_fallthru
        _
      // Predicated region
      $region17: #{c3_forward.4} parent=11 // pred_check
        %p143 = pneg %p78
      $region18: #{c3_forward.4} parent=11 // pred_check_branch
        %145 = sbr.rel (%p143) target = $region20
      $region19: #{c3_forward.4} parent=11 // pred_region
        _
      $region20: #{c3_forward.4} parent=11 // pred_fallthru
        _
      // Predicated region
      $region21: #{c3_forward.4} parent=11 // pred_check
        %p146 = pneg %p99
      $region22: #{c3_forward.4} parent=11 // pred_check_branch
        %148 = sbr.rel (%p146) target = $region24
      $region23: #{c3_forward.4} parent=11 // pred_region
        _
      $region24: #{c3_forward.4} parent=11 // pred_fallthru
        _
    $region12: #{c3_forward.4} parent=5 // pred_fallthru
      _
    %p149 = scmp.lt.s32.totalorder %s10, 4
    // Predicated region
    $region25: #{c3_forward.4} parent=5 // pred_check
      %p150 = pneg %p149
    $region26: #{c3_forward.4} parent=5 // pred_check_branch
      %152 = sbr.rel (%p150) target = $region28
    $region27: #{c3_forward.4} parent=5 // pred_region
      // Predicated region
      $region29: #{c3_forward.4} parent=27 // pred_check
        %p153 = pneg %p30
      $region30: #{c3_forward.4} parent=27 // pred_check_branch
        %155 = sbr.rel (%p153) target = $region32
      $region31: #{c3_forward.4} parent=27 // pred_region
        %s156 = smul.u32 16, %s10
        %p157 = scmp.lt.s32.totalorder %s156, 63
        %s158 = scalar_select %p157, %s156, 63
        %s159 = smul.addr %s158, 8
        %s160 = scalar_lea.vmem %s0, %s159
        %s161 = smul.u32 16, %s10
      $region32: #{c3_forward.4} parent=27 // pred_fallthru
        _
    $region28: #{c3_forward.4} parent=5 // pred_fallthru
      _
    %p162 = scmp.le.s32.totalorder 1, %s10
    %p163 = scmp.lt.s32.totalorder %s10, 5
    %p164 = pnand %p162, %p163
    %p165 = pneg %p164
    // Predicated region
    $region33: #{c3_forward.4} parent=5 // pred_check
      _
    $region34: #{c3_forward.4} parent=5 // pred_check_branch
      %167 = sbr.rel (%p164) target = $region36
    $region35: #{c3_forward.4} parent=5 // pred_region
      %s168 = ssub.s32 %s10, 1
      %s169 = smul.u32 16, %s15
      %p170 = scmp.lt.s32.totalorder %s169, 63
      %s171 = scalar_select %p170, %s169, 63
      %s172 = smul.addr %s171, 8
      %s173 = scalar_lea.vmem %s0, %s172
      %p174 = pneg %p36
      %p175 = pneg %p33
      %p176 = pneg %p57
      %p177 = pneg %p54
      %p178 = pneg %p78
      %p179 = pneg %p75
      %p180 = pneg %p99
      %p181 = pneg %p96
      %p182 = pneg %p125
      %p183 = pneg %p122
      %s184 = smul.u32 16, %s15
      %p185 = scmp.lt.s32.totalorder %s184, 63
      %s186 = scalar_select %p185, %s184, 63
      %s187 = smul.addr %s186, 8
      %s188 = scalar_lea.vmem %s4, %s187
      %s189 = smul.u32 16, %s15
      %p190 = scmp.lt.s32.totalorder %s189, 63
      %s191 = scalar_select %p190, %s189, 63
      %s192 = smul.addr %s191, 8
      %s193 = scalar_lea.vmem %s0, %s192
      %s194 = smul.u32 16, %s15
      %s195 = smul.u32 16, %s15
      %p196 = scmp.lt.s32.totalorder %s195, 63
      %s197 = scalar_select %p196, %s195, 63
      %s198 = smul.addr %s197, 8
      %s199 = scalar_lea.vmem %s4, %s198
      %s200 = smul.u32 16, %s15
      %v201 = vld [vmem:[%s193] sm:$0xff]
      %v202 = vld [vmem:[%s193 + $0x8] sm:$0xff]
      %v203 = vld [vmem:[%s193 + $0x10] sm:$0xff]
      %v204 = vld [vmem:[%s193 + $0x18] sm:$0xff]
      %v205 = vld [vmem:[%s193 + $0x20] sm:$0xff]
      %v206 = vld [vmem:[%s193 + $0x28] sm:$0xff]
      %v207 = vld [vmem:[%s193 + $0x30] sm:$0xff]
      %v208 = vld [vmem:[%s193 + $0x38] sm:$0xff]
      %v209 = vld [vmem:[%s193 + $0x40] sm:$0xff]
      %v210 = vld [vmem:[%s193 + $0x48] sm:$0xff]
      %v211 = vld [vmem:[%s193 + $0x50] sm:$0xff]
      %v212 = vld [vmem:[%s193 + $0x58] sm:$0xff]
      %v213 = vld [vmem:[%s193 + $0x60] sm:$0xff]
      %v214 = vld [vmem:[%s193 + $0x68] sm:$0xff]
      %v215 = vld [vmem:[%s193 + $0x70] sm:$0xff]
      %v216 = vld [vmem:[%s193 + $0x78] sm:$0xff]
      %v217 = vld [vmem:[%s1] sm:$0xf]
      %vm218 = vcmask 31744
      %v220 = vsel %vm218, %v201, 0
      %v223 = vsel %vm218, %v202, 0
      %v226 = vsel %vm218, %v203, 0
      %v229 = vsel %vm218, %v204, 0
      %v232 = vsel %vm218, %v205, 0
      %v235 = vsel %vm218, %v206, 0
      %v238 = vsel %vm218, %v207, 0
      %v241 = vsel %vm218, %v208, 0
      %v244 = vsel %vm218, %v209, 0
      %v247 = vsel %vm218, %v210, 0
      %v250 = vsel %vm218, %v211, 0
      %v253 = vsel %vm218, %v212, 0
      %v256 = vsel %vm218, %v213, 0
      %v259 = vsel %vm218, %v214, 0
      %v262 = vsel %vm218, %v215, 0
      %v265 = vsel %vm218, %v216, 0
      %vm267 = vcmask 1043456
      %v269 = vsel %vm267, %v217, 0
      %271 = vmatprep.subr.mxu0 0.0
      %272 = vmatpush1.msra.mxu0 %v269
      %273 = vmatprep.subr.mxu0 0.0
      %274 = vmatpush1.msra.mxu0 0.0
      %275 = vmatprep.subr.mxu0 0.0
      %276 = vmatpush1.msra.mxu0 0.0
      %277 = vmatprep.subr.mxu0 0.0
      %278 = vmatpush1.msra.mxu0 0.0
      %279 = vmatprep.subr.mxu0 0.0
      %280 = vmatpush1.msra.mxu0 0.0
      %281 = vmatprep.subr.mxu0 0.0
      %282 = vmatpush1.msra.mxu0 0.0
      %283 = vmatprep.subr.mxu0 0.0
      %284 = vmatpush1.msra.mxu0 0.0
      %285 = vmatprep.subr.mxu0 0.0
      %286 = vmatpush1.msra.mxu0 0.0
      %287 = vmatprep.subr.mxu0 0.0
      %288 = vmatpush1.msra.mxu0 0.0
      %289 = vmatprep.subr.mxu0 0.0
      %290 = vmatpush1.msra.mxu0 0.0
      %291 = vmatprep.subr.mxu0 0.0
      %292 = vmatpush1.msra.mxu0 0.0
      %293 = vmatprep.subr.mxu0 0.0
      %294 = vmatpush1.msra.mxu0 0.0
      %295 = vmatprep.subr.mxu0 0.0
      %296 = vmatpush1.msra.mxu0 0.0
      %297 = vmatprep.subr.mxu0 0.0
      %298 = vmatpush1.msra.mxu0 0.0
      %299 = vmatprep.subr.mxu0 0.0
      %300 = vmatpush1.msra.mxu0 0.0
      %301 = vmatprep.subr.mxu0 0.0
      %302 = vmatpush1.msra.mxu0 0.0
      %303 = vmatprep.subr.mxu0 0.0
      %304 = vmatpush1.msra.mxu0 0.0
      %305 = vmatprep.subr.mxu0 0.0
      %306 = vmatpush1.msra.mxu0 0.0
      %307 = vmatprep.subr.mxu0 0.0
      %308 = vmatpush1.msra.mxu0 0.0
      %309 = vmatprep.subr.mxu0 0.0
      %310 = vmatpush1.msra.mxu0 0.0
      %311 = vmatprep.subr.mxu0 0.0
      %312 = vmatpush1.msra.mxu0 0.0
      %313 = vmatprep.subr.mxu0 0.0
      %314 = vmatpush1.msra.mxu0 0.0
      %315 = vmatprep.subr.mxu0 0.0
      %316 = vmatpush1.msra.mxu0 0.0
      %317 = vmatprep.subr.mxu0 0.0
      %318 = vmatpush1.msra.mxu0 0.0
      %319 = vmatprep.subr.mxu0 0.0
      %320 = vmatpush1.msra.mxu0 0.0
      %321 = vmatprep.subr.mxu0 0.0
      %322 = vmatpush1.msra.mxu0 0.0
      %323 = vmatprep.subr.mxu0 0.0
      %324 = vmatpush1.msra.mxu0 0.0
      %325 = vmatprep.subr.mxu0 0.0
      %326 = vmatpush1.msra.mxu0 0.0
      %327 = vmatprep.subr.mxu0 0.0
      %328 = vmatpush1.msra.mxu0 0.0
      %329 = vmatprep.subr.mxu0 0.0
      %330 = vmatpush1.msra.mxu0 0.0
      %331 = vmatprep.subr.mxu0 0.0
      %332 = vmatpush1.msra.mxu0 0.0
      %333 = vmatprep.subr.mxu0 0.0
      %334 = vmatpush1.msra.mxu0 0.0
      %335 = vmatprep.mubr.f32.mxu0 0.0
      %336 = vmatmul.mubr.f32.gmra.mrb[0].mxu0 %v220
      %v337 = vpop.f32.mrb[0].mxu0
      %v338 = vadd.f32 0.0, %v337
      %v339 = vpop.f32.mrb[0].mxu0
      %340 = vmatprep.mubr.f32.mxu0 0.0
      %341 = vmatmul.mubr.f32.gmra.mrb[0].mxu0 %v223
      %v342 = vpop.f32.mrb[0].mxu0
      %v343 = vadd.f32 0.0, %v342
      %v344 = vpop.f32.mrb[0].mxu0
      %345 = vmatprep.mubr.f32.mxu0 0.0
      %346 = vmatmul.mubr.f32.gmra.mrb[0].mxu0 %v226
      %v347 = vpop.f32.mrb[0].mxu0
      %v348 = vadd.f32 0.0, %v347
      %v349 = vpop.f32.mrb[0].mxu0
      %350 = vmatprep.mubr.f32.mxu0 0.0
      %351 = vmatmul.mubr.f32.gmra.mrb[0].mxu0 %v229
      %v352 = vpop.f32.mrb[0].mxu0
      %v353 = vadd.f32 0.0, %v352
      %v354 = vpop.f32.mrb[0].mxu0
      %355 = vmatprep.mubr.f32.mxu0 0.0
      %356 = vmatmul.mubr.f32.gmra.mrb[0].mxu0 %v232
      %v357 = vpop.f32.mrb[0].mxu0
      %v358 = vadd.f32 0.0, %v357
      %v359 = vpop.f32.mrb[0].mxu0
      %360 = vmatprep.mubr.f32.mxu0 0.0
      %361 = vmatmul.mubr.f32.gmra.mrb[0].mxu0 %v235
      %v362 = vpop.f32.mrb[0].mxu0
      %v363 = vadd.f32 0.0, %v362
      %v364 = vpop.f32.mrb[0].mxu0
      %365 = vmatprep.mubr.f32.mxu0 0.0
      %366 = vmatmul.mubr.f32.gmra.mrb[0].mxu0 %v238
      %v367 = vpop.f32.mrb[0].mxu0
      %v368 = vadd.f32 0.0, %v367
      %v369 = vpop.f32.mrb[0].mxu0
      %370 = vmatprep.mubr.f32.mxu0 0.0
      %371 = vmatmul.mubr.f32.gmra.mrb[0].mxu0 %v241
      %v372 = vpop.f32.mrb[0].mxu0
      %v373 = vadd.f32 0.0, %v372
      %v374 = vpop.f32.mrb[0].mxu0
      %375 = vmatprep.mubr.f32.mxu0 0.0
      %376 = vmatmul.mubr.f32.gmra.mrb[0].mxu0 %v244
      %v377 = vpop.f32.mrb[0].mxu0
      %v378 = vadd.f32 0.0, %v377
      %v379 = vpop.f32.mrb[0].mxu0
      %380 = vmatprep.mubr.f32.mxu0 0.0
      %381 = vmatmul.mubr.f32.gmra.mrb[0].mxu0 %v247
      %v382 = vpop.f32.mrb[0].mxu0
      %v383 = vadd.f32 0.0, %v382
      %v384 = vpop.f32.mrb[0].mxu0
      %385 = vmatprep.mubr.f32.mxu0 0.0
      %386 = vmatmul.mubr.f32.gmra.mrb[0].mxu0 %v250
      %v387 = vpop.f32.mrb[0].mxu0
      %v388 = vadd.f32 0.0, %v387
      %v389 = vpop.f32.mrb[0].mxu0
      %390 = vmatprep.mubr.f32.mxu0 0.0
      %391 = vmatmul.mubr.f32.gmra.mrb[0].mxu0 %v253
      %v392 = vpop.f32.mrb[0].mxu0
      %v393 = vadd.f32 0.0, %v392
      %v394 = vpop.f32.mrb[0].mxu0
      %395 = vmatprep.mubr.f32.mxu0 0.0
      %396 = vmatmul.mubr.f32.gmra.mrb[0].mxu0 %v256
      %v397 = vpop.f32.mrb[0].mxu0
      %v398 = vadd.f32 0.0, %v397
      %v399 = vpop.f32.mrb[0].mxu0
      %400 = vmatprep.mubr.f32.mxu0 0.0
      %401 = vmatmul.mubr.f32.gmra.mrb[0].mxu0 %v259
      %v402 = vpop.f32.mrb[0].mxu0
      %v403 = vadd.f32 0.0, %v402
      %v404 = vpop.f32.mrb[0].mxu0
      %405 = vmatprep.mubr.f32.mxu0 0.0
      %406 = vmatmul.mubr.f32.gmra.mrb[0].mxu0 %v262
      %v407 = vpop.f32.mrb[0].mxu0
      %v408 = vadd.f32 0.0, %v407
      %v409 = vpop.f32.mrb[0].mxu0
      %410 = vmatprep.mubr.f32.mxu0 0.0
      %411 = vmatmul.mubr.f32.gmra.mrb[0].mxu0 %v265
      %v412 = vpop.f32.mrb[0].mxu0
      %v413 = vadd.f32 0.0, %v412
      %v414 = vpop.f32.mrb[0].mxu0
      %415 = vdwg.mxu0
      %v416 = vld [vmem:[%s2] sm:$0x1]
      %v418 = vlaneseq
      %v419 = vshrl.u32 %v418, 7
      %v420 = vsub.s32 0, %v419
      %v421 = vrot.slane %v416, %v420
      %v423 = vmul.f32 %v338, %v421
      %v424 = vmul.f32 %v343, %v421
      %v425 = vmul.f32 %v348, %v421
      %v426 = vmul.f32 %v353, %v421
      %v427 = vmul.f32 %v358, %v421
      %v428 = vmul.f32 %v363, %v421
      %v429 = vmul.f32 %v368, %v421
      %v430 = vmul.f32 %v373, %v421
      %v431 = vmul.f32 %v378, %v421
      %v432 = vmul.f32 %v383, %v421
      %v433 = vmul.f32 %v388, %v421
      %v434 = vmul.f32 %v393, %v421
      %v435 = vmul.f32 %v398, %v421
      %v436 = vmul.f32 %v403, %v421
      %v437 = vmul.f32 %v408, %v421
      %v438 = vmul.f32 %v413, %v421
      %v439 = vld [vmem:[%s3] sm:$0x1]
      %v441 = vlaneseq
      %v442 = vshrl.u32 %v441, 7
      %v443 = vsub.s32 0, %v442
      %v444 = vrot.slane %v439, %v443
      %v446 = vadd.f32 %v423, %v444
      %v447 = vadd.f32 %v424, %v444
      %v448 = vadd.f32 %v425, %v444
      %v449 = vadd.f32 %v426, %v444
      %v450 = vadd.f32 %v427, %v444
      %v451 = vadd.f32 %v428, %v444
      %v452 = vadd.f32 %v429, %v444
      %v453 = vadd.f32 %v430, %v444
      %v454 = vadd.f32 %v431, %v444
      %v455 = vadd.f32 %v432, %v444
      %v456 = vadd.f32 %v433, %v444
      %v457 = vadd.f32 %v434, %v444
      %v458 = vadd.f32 %v435, %v444
      %v459 = vadd.f32 %v436, %v444
      %v460 = vadd.f32 %v437, %v444
      %v461 = vadd.f32 %v438, %v444
      %v462 = vxor.u32 %v446, 2147483648
      %v463 = vxor.u32 %v447, 2147483648
      %v464 = vxor.u32 %v448, 2147483648
      %v465 = vxor.u32 %v449, 2147483648
      %v466 = vxor.u32 %v450, 2147483648
      %v467 = vxor.u32 %v451, 2147483648
      %v468 = vxor.u32 %v452, 2147483648
      %v469 = vxor.u32 %v453, 2147483648
      %v470 = vxor.u32 %v454, 2147483648
      %v471 = vxor.u32 %v455, 2147483648
      %v472 = vxor.u32 %v456, 2147483648
      %v473 = vxor.u32 %v457, 2147483648
      %v474 = vxor.u32 %v458, 2147483648
      %v475 = vxor.u32 %v459, 2147483648
      %v476 = vxor.u32 %v460, 2147483648
      %v477 = vxor.u32 %v461, 2147483648
      %v478 = vmul.f32 %v462, 1.442695
      %v479 = vpow.pop %v478
      %v480 = vmul.f32 %v463, 1.442695
      %v481 = vpow.pop %v480
      %v482 = vmul.f32 %v464, 1.442695
      %v483 = vpow.pop %v482
      %v484 = vmul.f32 %v465, 1.442695
      %v485 = vpow.pop %v484
      %v486 = vmul.f32 %v466, 1.442695
      %v487 = vpow.pop %v486
      %v488 = vmul.f32 %v467, 1.442695
      %v489 = vpow.pop %v488
      %v490 = vmul.f32 %v468, 1.442695
      %v491 = vpow.pop %v490
      %v492 = vmul.f32 %v469, 1.442695
      %v493 = vpow.pop %v492
      %v494 = vmul.f32 %v470, 1.442695
      %v495 = vpow.pop %v494
      %v496 = vmul.f32 %v471, 1.442695
      %v497 = vpow.pop %v496
      %v498 = vmul.f32 %v472, 1.442695
      %v499 = vpow.pop %v498
      %v500 = vmul.f32 %v473, 1.442695
      %v501 = vpow.pop %v500
      %v502 = vmul.f32 %v474, 1.442695
      %v503 = vpow.pop %v502
      %v504 = vmul.f32 %v475, 1.442695
      %v505 = vpow.pop %v504
      %v506 = vmul.f32 %v476, 1.442695
      %v507 = vpow.pop %v506
      %v508 = vmul.f32 %v477, 1.442695
      %v509 = vpow.pop %v508
      %v510 = vadd.f32 %v479, 1.0
      %v511 = vadd.f32 %v481, 1.0
      %v512 = vadd.f32 %v483, 1.0
      %v513 = vadd.f32 %v485, 1.0
      %v514 = vadd.f32 %v487, 1.0
      %v515 = vadd.f32 %v489, 1.0
      %v516 = vadd.f32 %v491, 1.0
      %v517 = vadd.f32 %v493, 1.0
      %v518 = vadd.f32 %v495, 1.0
      %v519 = vadd.f32 %v497, 1.0
      %v520 = vadd.f32 %v499, 1.0
      %v521 = vadd.f32 %v501, 1.0
      %v522 = vadd.f32 %v503, 1.0
      %v523 = vadd.f32 %v505, 1.0
      %v524 = vadd.f32 %v507, 1.0
      %v525 = vadd.f32 %v509, 1.0
      %v526 = vrcp.pop %v510
      %v527 = vmul.f32 1.0, %v526
      %v528 = vrcp.pop %v511
      %v529 = vmul.f32 1.0, %v528
      %v530 = vrcp.pop %v512
      %v531 = vmul.f32 1.0, %v530
      %v532 = vrcp.pop %v513
      %v533 = vmul.f32 1.0, %v532
      %v534 = vrcp.pop %v514
      %v535 = vmul.f32 1.0, %v534
      %v536 = vrcp.pop %v515
      %v537 = vmul.f32 1.0, %v536
      %v538 = vrcp.pop %v516
      %v539 = vmul.f32 1.0, %v538
      %v540 = vrcp.pop %v517
      %v541 = vmul.f32 1.0, %v540
      %v542 = vrcp.pop %v518
      %v543 = vmul.f32 1.0, %v542
      %v544 = vrcp.pop %v519
      %v545 = vmul.f32 1.0, %v544
      %v546 = vrcp.pop %v520
      %v547 = vmul.f32 1.0, %v546
      %v548 = vrcp.pop %v521
      %v549 = vmul.f32 1.0, %v548
      %v550 = vrcp.pop %v522
      %v551 = vmul.f32 1.0, %v550
      %v552 = vrcp.pop %v523
      %v553 = vmul.f32 1.0, %v552
      %v554 = vrcp.pop %v524
      %v555 = vmul.f32 1.0, %v554
      %v556 = vrcp.pop %v525
      %v557 = vmul.f32 1.0, %v556
      %v558 = vmul.f32 %v446, %v527
      %v559 = vmul.f32 %v447, %v529
      %v560 = vmul.f32 %v448, %v531
      %v561 = vmul.f32 %v449, %v533
      %v562 = vmul.f32 %v450, %v535
      %v563 = vmul.f32 %v451, %v537
      %v564 = vmul.f32 %v452, %v539
      %v565 = vmul.f32 %v453, %v541
      %v566 = vmul.f32 %v454, %v543
      %v567 = vmul.f32 %v455, %v545
      %v568 = vmul.f32 %v456, %v547
      %v569 = vmul.f32 %v457, %v549
      %v570 = vmul.f32 %v458, %v551
      %v571 = vmul.f32 %v459, %v553
      %v572 = vmul.f32 %v460, %v555
      %v573 = vmul.f32 %v461, %v557
      %vm574 = vcmask 64512
      %575 = vst.msk [vmem:[%s199] sm:$0xff] %vm574, %v558
      %576 = vst.msk [vmem:[%s199 + $0x8] sm:$0xff] %vm574, %v559
      %577 = vst.msk [vmem:[%s199 + $0x10] sm:$0xff] %vm574, %v560
      %578 = vst.msk [vmem:[%s199 + $0x18] sm:$0xff] %vm574, %v561
      %579 = vst.msk [vmem:[%s199 + $0x20] sm:$0xff] %vm574, %v562
      %580 = vst.msk [vmem:[%s199 + $0x28] sm:$0xff] %vm574, %v563
      %581 = vst.msk [vmem:[%s199 + $0x30] sm:$0xff] %vm574, %v564
      %582 = vst.msk [vmem:[%s199 + $0x38] sm:$0xff] %vm574, %v565
      %583 = vst.msk [vmem:[%s199 + $0x40] sm:$0xff] %vm574, %v566
      %584 = vst.msk [vmem:[%s199 + $0x48] sm:$0xff] %vm574, %v567
      %585 = vst.msk [vmem:[%s199 + $0x50] sm:$0xff] %vm574, %v568
      %586 = vst.msk [vmem:[%s199 + $0x58] sm:$0xff] %vm574, %v569
      %587 = vst.msk [vmem:[%s199 + $0x60] sm:$0xff] %vm574, %v570
      %588 = vst.msk [vmem:[%s199 + $0x68] sm:$0xff] %vm574, %v571
      %589 = vst.msk [vmem:[%s199 + $0x70] sm:$0xff] %vm574, %v572
      %590 = vst.msk [vmem:[%s199 + $0x78] sm:$0xff] %vm574, %v573
      %s591 = smul.u32 16, %s15
      %p592 = scmp.lt.s32.totalorder %s591, 63
      %s593 = scalar_select %p592, %s591, 63
      %s594 = smul.addr %s593, 8
      %s595 = scalar_lea.vmem %s4, %s594
      // Predicated region
      $region37: #{c3_forward.4} parent=35 // pred_check
        %p596 = pneg %p122
      $region38: #{c3_forward.4} parent=35 // pred_check_branch
        %598 = sbr.rel (%p596) target = $region40
      $region39: #{c3_forward.4} parent=35 // pred_region
        %s599 = smul.u32 16, %s15
      $region40: #{c3_forward.4} parent=35 // pred_fallthru
        _
    $region36: #{c3_forward.4} parent=5 // pred_fallthru
      _
    %p600 = scmp.le.s32.totalorder 2, %s10
    // Predicated region
    $region41: #{c3_forward.4} parent=5 // pred_check
      %p601 = pneg %p600
    $region42: #{c3_forward.4} parent=5 // pred_check_branch
      %603 = sbr.rel (%p601) target = $region44
    $region43: #{c3_forward.4} parent=5 // pred_region
      %s604 = ssub.s32 %s10, 2
      // Predicated region
      $region45: #{c3_forward.4} parent=43 // pred_check
        %p605 = pneg %p128
      $region46: #{c3_forward.4} parent=43 // pred_check_branch
        %607 = sbr.rel (%p605) target = $region48
      $region47: #{c3_forward.4} parent=43 // pred_region
        %s608 = smul.u32 16, %s16
        %p609 = scmp.lt.s32.totalorder %s608, 63
        %s610 = scalar_select %p609, %s608, 63
        %s611 = smul.addr %s610, 8
        %s612 = scalar_lea.vmem %s4, %s611
      $region48: #{c3_forward.4} parent=43 // pred_fallthru
        _
    $region44: #{c3_forward.4} parent=5 // pred_fallthru
      _
  $region6: #{c3_forward.4} parent=0 // loop_footer
    %s14 = sadd.s32 1, %s10
  $region7: #{c3_forward.4} parent=0 // loop_footer_branch
    %9 = sbr.rel target = $region3
  $region8: #{c3_forward.4} parent=0 // loop_exit
    _

// kernel: c3_forward.7
$region0: #{c3_forward.7}
  #allocation0 [shape = 'u32[]', space=smem, size = 0x4, offset = 0x4, fixed_abs, tag = 'smem constant byte address 0x4 - core index']
  #allocation1 [shape = 'u32[144,128]{1,0:T(1,128)}', space=vmem, size = 0x12000, scoped, tag = 'internal scratch']
  %s0 = inlined_call_operand.vmem [shape: f32[512,4], index: 0, kind: input, shape index: {}]
  %s1 = inlined_call_operand.vmem [shape: f32[512,4], index: 1, kind: input, shape index: {}]
  %s2 = inlined_call_operand.vmem [shape: f32[4,8], index: 2, kind: input, shape index: {}]
  %s3 = inlined_call_operand.vmem [shape: f32[4,8], index: 3, kind: input, shape index: {}]
  %s4 = inlined_call_operand.vmem [shape: f32[1,8], index: 4, kind: input, shape index: {}]
  %s5 = inlined_call_operand.vmem [shape: f32[1,8], index: 5, kind: input, shape index: {}]
  %s6 = inlined_call_operand.vmem [shape: f32[512,8], index: 6, kind: output, shape index: {}]
  %s7 = sld [smem:[#allocation0]]
  $region57: #{c3_forward.7} parent=0
    _
  %s9 = ssub.s32 1, %s7
  %s10 = scalar_select 0, %s9, %s7
  loop: start=0, step=1, limit=6
  $region2: #{c3_forward.7} parent=0 // loop_pre_header
    _
  $region3: #{c3_forward.7} parent=0 // loop_header
    %s12 = sphi 0, %s16
    %p13 = scmp.ge.s32.totalorder %s12, 6
    %s22 = sphi 0, %s24
    %s25 = sphi 0, %s22
    %s26 = sphi 0, %s25
    %s42 = sphi 0, %s26
    %s48 = sphi 0, %s50
    %s51 = sphi 0, %s48
    %s52 = sphi 0, %s51
    %s68 = sphi 0, %s52
    %s72 = sphi 0, %s72
    %s74 = sphi 0, %s72
    %s75 = sphi 0, %s74
    %s89 = sphi 0, %s75
    %s93 = sphi 0, %s93
    %s95 = sphi 0, %s93
    %s96 = sphi 0, %s95
    %s110 = sphi 0, %s96
    %s114 = sphi 0, %s114
    %s116 = sphi 0, %s114
    %s117 = sphi 0, %s116
    %s131 = sphi 0, %s117
    %s135 = sphi 0, %s135
    %s137 = sphi 0, %s135
    %s138 = sphi 0, %s137
    %s152 = sphi 0, %s138
    %s158 = sphi 0, %s160
    %s161 = sphi 0, %s158
    %s162 = sphi 0, %s161
    %s178 = sphi 0, %s162
  $region4: #{c3_forward.7} parent=0 // loop_header_branch
    %15 = sbr.rel (%p13) target = $region8
  $region5: #{c3_forward.7} parent=0 // loop_body
    %s17 = ssub.s32 %s12, 1
    %s18 = ssub.s32 %s12, 2
    %s19 = sadd.s32 %s12, 1
    %s20 = ssub.s32 %s12, %s19
    %p21 = scmp.eq.s32.totalorder %s20, 0
    %s23 = sadd.s32 %s22, 1
    %s24 = scalar_select %p21, %s22, %s23
    %p27 = pneg %p21
    %p28 = scmp.eq.s32.totalorder %s12, 3
    %p29 = por %p27, %p28
    %p30 = scmp.ne.s32.totalorder %s22, %s25
    %p31 = scmp.eq.s32.totalorder %s12, 0
    %p32 = por %p30, %p31
    %p33 = scmp.ne.s32.totalorder %s22, %s25
    %p34 = scmp.eq.s32.totalorder %s17, 3
    %p35 = por %p33, %p34
    %p36 = scmp.ne.s32.totalorder %s25, %s26
    %p37 = scmp.eq.s32.totalorder %s17, 0
    %p38 = por %p36, %p37
    %p39 = scmp.ne.s32.totalorder %s25, %s26
    %p40 = scmp.eq.s32.totalorder %s18, 3
    %p41 = por %p39, %p40
    %p43 = scmp.ne.s32.totalorder %s26, %s42
    %p44 = scmp.eq.s32.totalorder %s18, 0
    %p45 = por %p43, %p44
    %s46 = ssub.s32 %s12, %s19
    %p47 = scmp.eq.s32.totalorder %s46, 0
    %s49 = sadd.s32 %s48, 1
    %s50 = scalar_select %p47, %s48, %s49
    %p53 = pneg %p47
    %p54 = scmp.eq.s32.totalorder %s12, 3
    %p55 = por %p53, %p54
    %p56 = scmp.ne.s32.totalorder %s48, %s51
    %p57 = scmp.eq.s32.totalorder %s12, 0
    %p58 = por %p56, %p57
    %p59 = scmp.ne.s32.totalorder %s48, %s51
    %p60 = scmp.eq.s32.totalorder %s17, 3
    %p61 = por %p59, %p60
    %p62 = scmp.ne.s32.totalorder %s51, %s52
    %p63 = scmp.eq.s32.totalorder %s17, 0
    %p64 = por %p62, %p63
    %p65 = scmp.ne.s32.totalorder %s51, %s52
    %p66 = scmp.eq.s32.totalorder %s18, 3
    %p67 = por %p65, %p66
    %p69 = scmp.ne.s32.totalorder %s52, %s68
    %p70 = scmp.eq.s32.totalorder %s18, 0
    %p71 = por %p69, %p70
    %s73 = sadd.s32 %s72, 1
    %p76 = scmp.eq.s32.totalorder %s12, 3
    %p77 = scmp.ne.s32.totalorder %s72, %s74
    %p78 = scmp.eq.s32.totalorder %s12, 0
    %p79 = por %p77, %p78
    %p80 = scmp.ne.s32.totalorder %s72, %s74
    %p81 = scmp.eq.s32.totalorder %s17, 3
    %p82 = por %p80, %p81
    %p83 = scmp.ne.s32.totalorder %s74, %s75
    %p84 = scmp.eq.s32.totalorder %s17, 0
    %p85 = por %p83, %p84
    %p86 = scmp.ne.s32.totalorder %s74, %s75
    %p87 = scmp.eq.s32.totalorder %s18, 3
    %p88 = por %p86, %p87
    %p90 = scmp.ne.s32.totalorder %s75, %s89
    %p91 = scmp.eq.s32.totalorder %s18, 0
    %p92 = por %p90, %p91
    %s94 = sadd.s32 %s93, 1
    %p97 = scmp.eq.s32.totalorder %s12, 3
    %p98 = scmp.ne.s32.totalorder %s93, %s95
    %p99 = scmp.eq.s32.totalorder %s12, 0
    %p100 = por %p98, %p99
    %p101 = scmp.ne.s32.totalorder %s93, %s95
    %p102 = scmp.eq.s32.totalorder %s17, 3
    %p103 = por %p101, %p102
    %p104 = scmp.ne.s32.totalorder %s95, %s96
    %p105 = scmp.eq.s32.totalorder %s17, 0
    %p106 = por %p104, %p105
    %p107 = scmp.ne.s32.totalorder %s95, %s96
    %p108 = scmp.eq.s32.totalorder %s18, 3
    %p109 = por %p107, %p108
    %p111 = scmp.ne.s32.totalorder %s96, %s110
    %p112 = scmp.eq.s32.totalorder %s18, 0
    %p113 = por %p111, %p112
    %s115 = sadd.s32 %s114, 1
    %p118 = scmp.eq.s32.totalorder %s12, 3
    %p119 = scmp.ne.s32.totalorder %s114, %s116
    %p120 = scmp.eq.s32.totalorder %s12, 0
    %p121 = por %p119, %p120
    %p122 = scmp.ne.s32.totalorder %s114, %s116
    %p123 = scmp.eq.s32.totalorder %s17, 3
    %p124 = por %p122, %p123
    %p125 = scmp.ne.s32.totalorder %s116, %s117
    %p126 = scmp.eq.s32.totalorder %s17, 0
    %p127 = por %p125, %p126
    %p128 = scmp.ne.s32.totalorder %s116, %s117
    %p129 = scmp.eq.s32.totalorder %s18, 3
    %p130 = por %p128, %p129
    %p132 = scmp.ne.s32.totalorder %s117, %s131
    %p133 = scmp.eq.s32.totalorder %s18, 0
    %p134 = por %p132, %p133
    %s136 = sadd.s32 %s135, 1
    %p139 = scmp.eq.s32.totalorder %s12, 3
    %p140 = scmp.ne.s32.totalorder %s135, %s137
    %p141 = scmp.eq.s32.totalorder %s12, 0
    %p142 = por %p140, %p141
    %p143 = scmp.ne.s32.totalorder %s135, %s137
    %p144 = scmp.eq.s32.totalorder %s17, 3
    %p145 = por %p143, %p144
    %p146 = scmp.ne.s32.totalorder %s137, %s138
    %p147 = scmp.eq.s32.totalorder %s17, 0
    %p148 = por %p146, %p147
    %p149 = scmp.ne.s32.totalorder %s137, %s138
    %p150 = scmp.eq.s32.totalorder %s18, 3
    %p151 = por %p149, %p150
    %p153 = scmp.ne.s32.totalorder %s138, %s152
    %p154 = scmp.eq.s32.totalorder %s18, 0
    %p155 = por %p153, %p154
    %s156 = ssub.s32 %s12, %s19
    %p157 = scmp.eq.s32.totalorder %s156, 0
    %s159 = sadd.s32 %s158, 1
    %s160 = scalar_select %p157, %s158, %s159
    %p163 = pneg %p157
    %p164 = scmp.eq.s32.totalorder %s12, 3
    %p165 = por %p163, %p164
    %p166 = scmp.ne.s32.totalorder %s158, %s161
    %p167 = scmp.eq.s32.totalorder %s12, 0
    %p168 = por %p166, %p167
    %p169 = scmp.ne.s32.totalorder %s158, %s161
    %p170 = scmp.eq.s32.totalorder %s17, 3
    %p171 = por %p169, %p170
    %p172 = scmp.ne.s32.totalorder %s161, %s162
    %p173 = scmp.eq.s32.totalorder %s17, 0
    %p174 = por %p172, %p173
    %p175 = scmp.ne.s32.totalorder %s161, %s162
    %p176 = scmp.eq.s32.totalorder %s18, 3
    %p177 = por %p175, %p176
    %p179 = scmp.ne.s32.totalorder %s162, %s178
    %p180 = scmp.eq.s32.totalorder %s18, 0
    %p181 = por %p179, %p180
    %p182 = scmp.le.s32.totalorder 1, %s12
    %p183 = scmp.lt.s32.totalorder %s12, 5
    %p184 = pnand %p182, %p183
    %p185 = pneg %p184
    // Predicated region
    $region9: #{c3_forward.7} parent=5 // pred_check
      _
    $region10: #{c3_forward.7} parent=5 // pred_check_branch
      %187 = sbr.rel (%p184) target = $region12
    $region11: #{c3_forward.7} parent=5 // pred_region
      %s188 = ssub.s32 %s12, 1
      // Predicated region
      $region13: #{c3_forward.7} parent=11 // pred_check
        %p189 = pneg %p85
      $region14: #{c3_forward.7} parent=11 // pred_check_branch
        %191 = sbr.rel (%p189) target = $region16
      $region15: #{c3_forward.7} parent=11 // pred_region
        _
      $region16: #{c3_forward.7} parent=11 // pred_fallthru
        _
      // Predicated region
      $region17: #{c3_forward.7} parent=11 // pred_check
        %p192 = pneg %p106
      $region18: #{c3_forward.7} parent=11 // pred_check_branch
        %194 = sbr.rel (%p192) target = $region20
      $region19: #{c3_forward.7} parent=11 // pred_region
        _
      $region20: #{c3_forward.7} parent=11 // pred_fallthru
        _
      // Predicated region
      $region21: #{c3_forward.7} parent=11 // pred_check
        %p195 = pneg %p127
      $region22: #{c3_forward.7} parent=11 // pred_check_branch
        %197 = sbr.rel (%p195) target = $region24
      $region23: #{c3_forward.7} parent=11 // pred_region
        _
      $region24: #{c3_forward.7} parent=11 // pred_fallthru
        _
      // Predicated region
      $region25: #{c3_forward.7} parent=11 // pred_check
        %p198 = pneg %p148
      $region26: #{c3_forward.7} parent=11 // pred_check_branch
        %200 = sbr.rel (%p198) target = $region28
      $region27: #{c3_forward.7} parent=11 // pred_region
        _
      $region28: #{c3_forward.7} parent=11 // pred_fallthru
        _
    $region12: #{c3_forward.7} parent=5 // pred_fallthru
      _
    %p201 = scmp.lt.s32.totalorder %s12, 4
    // Predicated region
    $region29: #{c3_forward.7} parent=5 // pred_check
      %p202 = pneg %p201
    $region30: #{c3_forward.7} parent=5 // pred_check_branch
      %204 = sbr.rel (%p202) target = $region32
    $region31: #{c3_forward.7} parent=5 // pred_region
      // Predicated region
      $region33: #{c3_forward.7} parent=31 // pred_check
        %p205 = pneg %p32
      $region34: #{c3_forward.7} parent=31 // pred_check_branch
        %207 = sbr.rel (%p205) target = $region36
      $region35: #{c3_forward.7} parent=31 // pred_region
        %s208 = smul.u32 16, %s12
        %p209 = scmp.lt.s32.totalorder %s208, 63
        %s210 = scalar_select %p209, %s208, 63
        %s211 = smul.addr %s210, 8
        %s212 = scalar_lea.vmem %s0, %s211
        %s213 = smul.u32 16, %s12
      $region36: #{c3_forward.7} parent=31 // pred_fallthru
        _
      // Predicated region
      $region37: #{c3_forward.7} parent=31 // pred_check
        %p214 = pneg %p58
      $region38: #{c3_forward.7} parent=31 // pred_check_branch
        %216 = sbr.rel (%p214) target = $region40
      $region39: #{c3_forward.7} parent=31 // pred_region
        %s217 = smul.u32 16, %s12
        %p218 = scmp.lt.s32.totalorder %s217, 63
        %s219 = scalar_select %p218, %s217, 63
        %s220 = smul.addr %s219, 8
        %s221 = scalar_lea.vmem %s1, %s220
        %s222 = smul.u32 16, %s12
      $region40: #{c3_forward.7} parent=31 // pred_fallthru
        _
    $region32: #{c3_forward.7} parent=5 // pred_fallthru
      _
    %p223 = scmp.le.s32.totalorder 1, %s12
    %p224 = scmp.lt.s32.totalorder %s12, 5
    %p225 = pnand %p223, %p224
    %p226 = pneg %p225
    // Predicated region
    $region41: #{c3_forward.7} parent=5 // pred_check
      _
    $region42: #{c3_forward.7} parent=5 // pred_check_branch
      %228 = sbr.rel (%p225) target = $region44
    $region43: #{c3_forward.7} parent=5 // pred_region
      %s229 = ssub.s32 %s12, 1
      %s230 = smul.u32 16, %s17
      %p231 = scmp.lt.s32.totalorder %s230, 63
      %s232 = scalar_select %p231, %s230, 63
      %s233 = smul.addr %s232, 8
      %s234 = scalar_lea.vmem %s0, %s233
      %p235 = pneg %p38
      %p236 = pneg %p35
      %s237 = smul.u32 16, %s17
      %p238 = scmp.lt.s32.totalorder %s237, 63
      %s239 = scalar_select %p238, %s237, 63
      %s240 = smul.addr %s239, 8
      %s241 = scalar_lea.vmem %s1, %s240
      %p242 = pneg %p64
      %p243 = pneg %p61
      %p244 = pneg %p85
      %p245 = pneg %p82
      %p246 = pneg %p106
      %p247 = pneg %p103
      %p248 = pneg %p127
      %p249 = pneg %p124
      %p250 = pneg %p148
      %p251 = pneg %p145
      %p252 = pneg %p174
      %p253 = pneg %p171
      %s254 = smul.u32 16, %s17
      %p255 = scmp.lt.s32.totalorder %s254, 63
      %s256 = scalar_select %p255, %s254, 63
      %s257 = smul.addr %s256, 8
      %s258 = scalar_lea.vmem %s6, %s257
      %s259 = smul.u32 16, %s17
      %p260 = scmp.lt.s32.totalorder %s259, 63
      %s261 = scalar_select %p260, %s259, 63
      %s262 = smul.addr %s261, 8
      %s263 = scalar_lea.vmem %s0, %s262
      %s264 = smul.u32 16, %s17
      %s265 = smul.u32 16, %s17
      %p266 = scmp.lt.s32.totalorder %s265, 63
      %s267 = scalar_select %p266, %s265, 63
      %s268 = smul.addr %s267, 8
      %s269 = scalar_lea.vmem %s1, %s268
      %s270 = smul.u32 16, %s17
      %s271 = smul.u32 16, %s17
      %p272 = scmp.lt.s32.totalorder %s271, 63
      %s273 = scalar_select %p272, %s271, 63
      %s274 = smul.addr %s273, 8
      %s275 = scalar_lea.vmem %s6, %s274
      %s276 = smul.u32 16, %s17
      %v277 = vld [vmem:[%s263] sm:$0xff]
      %v278 = vld [vmem:[%s263 + $0x8] sm:$0xff]
      %v279 = vld [vmem:[%s263 + $0x10] sm:$0xff]
      %v280 = vld [vmem:[%s263 + $0x18] sm:$0xff]
      %v281 = vld [vmem:[%s263 + $0x20] sm:$0xff]
      %v282 = vld [vmem:[%s263 + $0x28] sm:$0xff]
      %v283 = vld [vmem:[%s263 + $0x30] sm:$0xff]
      %v284 = vld [vmem:[%s263 + $0x38] sm:$0xff]
      %v285 = vld [vmem:[%s263 + $0x40] sm:$0xff]
      %v286 = vld [vmem:[%s263 + $0x48] sm:$0xff]
      %v287 = vld [vmem:[%s263 + $0x50] sm:$0xff]
      %v288 = vld [vmem:[%s263 + $0x58] sm:$0xff]
      %v289 = vld [vmem:[%s263 + $0x60] sm:$0xff]
      %v290 = vld [vmem:[%s263 + $0x68] sm:$0xff]
      %v291 = vld [vmem:[%s263 + $0x70] sm:$0xff]
      %v292 = vld [vmem:[%s263 + $0x78] sm:$0xff]
      %v293 = vld [vmem:[%s2] sm:$0xf]
      %v294 = vld [vmem:[%s269] sm:$0xff]
      %v295 = vld [vmem:[%s269 + $0x8] sm:$0xff]
      %v296 = vld [vmem:[%s269 + $0x10] sm:$0xff]
      %v297 = vld [vmem:[%s269 + $0x18] sm:$0xff]
      %v298 = vld [vmem:[%s269 + $0x20] sm:$0xff]
      %v299 = vld [vmem:[%s269 + $0x28] sm:$0xff]
      %v300 = vld [vmem:[%s269 + $0x30] sm:$0xff]
      %v301 = vld [vmem:[%s269 + $0x38] sm:$0xff]
      %v302 = vld [vmem:[%s269 + $0x40] sm:$0xff]
      %v303 = vld [vmem:[%s269 + $0x48] sm:$0xff]
      %v304 = vld [vmem:[%s269 + $0x50] sm:$0xff]
      %v305 = vld [vmem:[%s269 + $0x58] sm:$0xff]
      %v306 = vld [vmem:[%s269 + $0x60] sm:$0xff]
      %v307 = vld [vmem:[%s269 + $0x68] sm:$0xff]
      %v308 = vld [vmem:[%s269 + $0x70] sm:$0xff]
      %v309 = vld [vmem:[%s269 + $0x78] sm:$0xff]
      %v310 = vld [vmem:[%s3] sm:$0xf]
      %vm311 = vcmask 31744
      %v313 = vsel %vm311, %v294, 0
      %v316 = vsel %vm311, %v295, 0
      %v319 = vsel %vm311, %v296, 0
      %v322 = vsel %vm311, %v297, 0
      %v325 = vsel %vm311, %v298, 0
      %v328 = vsel %vm311, %v299, 0
      %v331 = vsel %vm311, %v300, 0
      %v334 = vsel %vm311, %v301, 0
      %v337 = vsel %vm311, %v302, 0
      %v340 = vsel %vm311, %v303, 0
      %v343 = vsel %vm311, %v304, 0
      %v346 = vsel %vm311, %v305, 0
      %v349 = vsel %vm311, %v306, 0
      %v352 = vsel %vm311, %v307, 0
      %v355 = vsel %vm311, %v308, 0
      %v358 = vsel %vm311, %v309, 0
      %vm360 = vcmask 1043456
      %v362 = vsel %vm360, %v310, 0
      %364 = vmatprep.subr.mxu0 0.0
      %365 = vmatpush1.msra.mxu0 %v362
      %366 = vmatprep.subr.mxu0 0.0
      %367 = vmatpush1.msra.mxu0 0.0
      %368 = vmatprep.subr.mxu0 0.0
      %369 = vmatpush1.msra.mxu0 0.0
      %370 = vmatprep.subr.mxu0 0.0
      %371 = vmatpush1.msra.mxu0 0.0
      %372 = vmatprep.subr.mxu0 0.0
      %373 = vmatpush1.msra.mxu0 0.0
      %374 = vmatprep.subr.mxu0 0.0
      %375 = vmatpush1.msra.mxu0 0.0
      %376 = vmatprep.subr.mxu0 0.0
      %377 = vmatpush1.msra.mxu0 0.0
      %378 = vmatprep.subr.mxu0 0.0
      %379 = vmatpush1.msra.mxu0 0.0
      %380 = vmatprep.subr.mxu0 0.0
      %381 = vmatpush1.msra.mxu0 0.0
      %382 = vmatprep.subr.mxu0 0.0
      %383 = vmatpush1.msra.mxu0 0.0
      %384 = vmatprep.subr.mxu0 0.0
      %385 = vmatpush1.msra.mxu0 0.0
      %386 = vmatprep.subr.mxu0 0.0
      %387 = vmatpush1.msra.mxu0 0.0
      %388 = vmatprep.subr.mxu0 0.0
      %389 = vmatpush1.msra.mxu0 0.0
      %390 = vmatprep.subr.mxu0 0.0
      %391 = vmatpush1.msra.mxu0 0.0
      %392 = vmatprep.subr.mxu0 0.0
      %393 = vmatpush1.msra.mxu0 0.0
      %394 = vmatprep.subr.mxu0 0.0
      %395 = vmatpush1.msra.mxu0 0.0
      %396 = vmatprep.subr.mxu0 0.0
      %397 = vmatpush1.msra.mxu0 0.0
      %398 = vmatprep.subr.mxu0 0.0
      %399 = vmatpush1.msra.mxu0 0.0
      %400 = vmatprep.subr.mxu0 0.0
      %401 = vmatpush1.msra.mxu0 0.0
      %402 = vmatprep.subr.mxu0 0.0
      %403 = vmatpush1.msra.mxu0 0.0
      %404 = vmatprep.subr.mxu0 0.0
      %405 = vmatpush1.msra.mxu0 0.0
      %406 = vmatprep.subr.mxu0 0.0
      %407 = vmatpush1.msra.mxu0 0.0
      %408 = vmatprep.subr.mxu0 0.0
      %409 = vmatpush1.msra.mxu0 0.0
      %410 = vmatprep.subr.mxu0 0.0
      %411 = vmatpush1.msra.mxu0 0.0
      %412 = vmatprep.subr.mxu0 0.0
      %413 = vmatpush1.msra.mxu0 0.0
      %414 = vmatprep.subr.mxu0 0.0
      %415 = vmatpush1.msra.mxu0 0.0
      %416 = vmatprep.subr.mxu0 0.0
      %417 = vmatpush1.msra.mxu0 0.0
      %418 = vmatprep.subr.mxu0 0.0
      %419 = vmatpush1.msra.mxu0 0.0
      %420 = vmatprep.subr.mxu0 0.0
      %421 = vmatpush1.msra.mxu0 0.0
      %422 = vmatprep.subr.mxu0 0.0
      %423 = vmatpush1.msra.mxu0 0.0
      %424 = vmatprep.subr.mxu0 0.0
      %425 = vmatpush1.msra.mxu0 0.0
      %426 = vmatprep.subr.mxu0 0.0
      %427 = vmatpush1.msra.mxu0 0.0
      %428 = vmatprep.mubr.f32.mxu0 0.0
      %429 = vmatmul.mubr.f32.gmra.mrb[0].mxu0 %v313
      %v430 = vpop.f32.mrb[0].mxu0
      %v431 = vadd.f32 0.0, %v430
      %v432 = vpop.f32.mrb[0].mxu0
      %433 = vmatprep.mubr.f32.mxu0 0.0
      %434 = vmatmul.mubr.f32.gmra.mrb[0].mxu0 %v316
      %v435 = vpop.f32.mrb[0].mxu0
      %v436 = vadd.f32 0.0, %v435
      %v437 = vpop.f32.mrb[0].mxu0
      %438 = vmatprep.mubr.f32.mxu0 0.0
      %439 = vmatmul.mubr.f32.gmra.mrb[0].mxu0 %v319
      %v440 = vpop.f32.mrb[0].mxu0
      %v441 = vadd.f32 0.0, %v440
      %v442 = vpop.f32.mrb[0].mxu0
      %443 = vmatprep.mubr.f32.mxu0 0.0
      %444 = vmatmul.mubr.f32.gmra.mrb[0].mxu0 %v322
      %v445 = vpop.f32.mrb[0].mxu0
      %v446 = vadd.f32 0.0, %v445
      %v447 = vpop.f32.mrb[0].mxu0
      %448 = vmatprep.mubr.f32.mxu0 0.0
      %449 = vmatmul.mubr.f32.gmra.mrb[0].mxu0 %v325
      %v450 = vpop.f32.mrb[0].mxu0
      %v451 = vadd.f32 0.0, %v450
      %v452 = vpop.f32.mrb[0].mxu0
      %453 = vmatprep.mubr.f32.mxu0 0.0
      %454 = vmatmul.mubr.f32.gmra.mrb[0].mxu0 %v328
      %v455 = vpop.f32.mrb[0].mxu0
      %v456 = vadd.f32 0.0, %v455
      %v457 = vpop.f32.mrb[0].mxu0
      %458 = vmatprep.mubr.f32.mxu0 0.0
      %459 = vmatmul.mubr.f32.gmra.mrb[0].mxu0 %v331
      %v460 = vpop.f32.mrb[0].mxu0
      %v461 = vadd.f32 0.0, %v460
      %v462 = vpop.f32.mrb[0].mxu0
      %463 = vmatprep.mubr.f32.mxu0 0.0
      %464 = vmatmul.mubr.f32.gmra.mrb[0].mxu0 %v334
      %v465 = vpop.f32.mrb[0].mxu0
      %v466 = vadd.f32 0.0, %v465
      %v467 = vpop.f32.mrb[0].mxu0
      %468 = vmatprep.mubr.f32.mxu0 0.0
      %469 = vmatmul.mubr.f32.gmra.mrb[0].mxu0 %v337
      %v470 = vpop.f32.mrb[0].mxu0
      %v471 = vadd.f32 0.0, %v470
      %v472 = vpop.f32.mrb[0].mxu0
      %473 = vmatprep.mubr.f32.mxu0 0.0
      %474 = vmatmul.mubr.f32.gmra.mrb[0].mxu0 %v340
      %v475 = vpop.f32.mrb[0].mxu0
      %v476 = vadd.f32 0.0, %v475
      %v477 = vpop.f32.mrb[0].mxu0
      %478 = vmatprep.mubr.f32.mxu0 0.0
      %479 = vmatmul.mubr.f32.gmra.mrb[0].mxu0 %v343
      %v480 = vpop.f32.mrb[0].mxu0
      %v481 = vadd.f32 0.0, %v480
      %v482 = vpop.f32.mrb[0].mxu0
      %483 = vmatprep.mubr.f32.mxu0 0.0
      %484 = vmatmul.mubr.f32.gmra.mrb[0].mxu0 %v346
      %v485 = vpop.f32.mrb[0].mxu0
      %v486 = vadd.f32 0.0, %v485
      %v487 = vpop.f32.mrb[0].mxu0
      %488 = vmatprep.mubr.f32.mxu0 0.0
      %489 = vmatmul.mubr.f32.gmra.mrb[0].mxu0 %v349
      %v490 = vpop.f32.mrb[0].mxu0
      %v491 = vadd.f32 0.0, %v490
      %v492 = vpop.f32.mrb[0].mxu0
      %493 = vmatprep.mubr.f32.mxu0 0.0
      %494 = vmatmul.mubr.f32.gmra.mrb[0].mxu0 %v352
      %v495 = vpop.f32.mrb[0].mxu0
      %v496 = vadd.f32 0.0, %v495
      %v497 = vpop.f32.mrb[0].mxu0
      %498 = vmatprep.mubr.f32.mxu0 0.0
      %499 = vmatmul.mubr.f32.gmra.mrb[0].mxu0 %v355
      %v500 = vpop.f32.mrb[0].mxu0
      %v501 = vadd.f32 0.0, %v500
      %v502 = vpop.f32.mrb[0].mxu0
      %503 = vmatprep.mubr.f32.mxu0 0.0
      %504 = vmatmul.mubr.f32.gmra.mrb[0].mxu0 %v358
      %v505 = vpop.f32.mrb[0].mxu0
      %v506 = vadd.f32 0.0, %v505
      %v507 = vpop.f32.mrb[0].mxu0
      %508 = vdwg.mxu0
      %v510 = vsel %vm311, %v277, 0
      %v513 = vsel %vm311, %v278, 0
      %v516 = vsel %vm311, %v279, 0
      %v519 = vsel %vm311, %v280, 0
      %v522 = vsel %vm311, %v281, 0
      %v525 = vsel %vm311, %v282, 0
      %v528 = vsel %vm311, %v283, 0
      %v531 = vsel %vm311, %v284, 0
      %v534 = vsel %vm311, %v285, 0
      %v537 = vsel %vm311, %v286, 0
      %v540 = vsel %vm311, %v287, 0
      %v543 = vsel %vm311, %v288, 0
      %v546 = vsel %vm311, %v289, 0
      %v549 = vsel %vm311, %v290, 0
      %v552 = vsel %vm311, %v291, 0
      %v555 = vsel %vm311, %v292, 0
      %v558 = vsel %vm360, %v293, 0
      %560 = vmatprep.subr.mxu0 0.0
      %561 = vmatpush1.msra.mxu0 %v558
      %562 = vmatprep.subr.mxu0 0.0
      %563 = vmatpush1.msra.mxu0 0.0
      %564 = vmatprep.subr.mxu0 0.0
      %565 = vmatpush1.msra.mxu0 0.0
      %566 = vmatprep.subr.mxu0 0.0
      %567 = vmatpush1.msra.mxu0 0.0
      %568 = vmatprep.subr.mxu0 0.0
      %569 = vmatpush1.msra.mxu0 0.0
      %570 = vmatprep.subr.mxu0 0.0
      %571 = vmatpush1.msra.mxu0 0.0
      %572 = vmatprep.subr.mxu0 0.0
      %573 = vmatpush1.msra.mxu0 0.0
      %574 = vmatprep.subr.mxu0 0.0
      %575 = vmatpush1.msra.mxu0 0.0
      %576 = vmatprep.subr.mxu0 0.0
      %577 = vmatpush1.msra.mxu0 0.0
      %578 = vmatprep.subr.mxu0 0.0
      %579 = vmatpush1.msra.mxu0 0.0
      %580 = vmatprep.subr.mxu0 0.0
      %581 = vmatpush1.msra.mxu0 0.0
      %582 = vmatprep.subr.mxu0 0.0
      %583 = vmatpush1.msra.mxu0 0.0
      %584 = vmatprep.subr.mxu0 0.0
      %585 = vmatpush1.msra.mxu0 0.0
      %586 = vmatprep.subr.mxu0 0.0
      %587 = vmatpush1.msra.mxu0 0.0
      %588 = vmatprep.subr.mxu0 0.0
      %589 = vmatpush1.msra.mxu0 0.0
      %590 = vmatprep.subr.mxu0 0.0
      %591 = vmatpush1.msra.mxu0 0.0
      %592 = vmatprep.subr.mxu0 0.0
      %593 = vmatpush1.msra.mxu0 0.0
      %594 = vmatprep.subr.mxu0 0.0
      %595 = vmatpush1.msra.mxu0 0.0
      %596 = vmatprep.subr.mxu0 0.0
      %597 = vmatpush1.msra.mxu0 0.0
      %598 = vmatprep.subr.mxu0 0.0
      %599 = vmatpush1.msra.mxu0 0.0
      %600 = vmatprep.subr.mxu0 0.0
      %601 = vmatpush1.msra.mxu0 0.0
      %602 = vmatprep.subr.mxu0 0.0
      %603 = vmatpush1.msra.mxu0 0.0
      %604 = vmatprep.subr.mxu0 0.0
      %605 = vmatpush1.msra.mxu0 0.0
      %606 = vmatprep.subr.mxu0 0.0
      %607 = vmatpush1.msra.mxu0 0.0
      %608 = vmatprep.subr.mxu0 0.0
      %609 = vmatpush1.msra.mxu0 0.0
      %610 = vmatprep.subr.mxu0 0.0
      %611 = vmatpush1.msra.mxu0 0.0
      %612 = vmatprep.subr.mxu0 0.0
      %613 = vmatpush1.msra.mxu0 0.0
      %614 = vmatprep.subr.mxu0 0.0
      %615 = vmatpush1.msra.mxu0 0.0
      %616 = vmatprep.subr.mxu0 0.0
      %617 = vmatpush1.msra.mxu0 0.0
      %618 = vmatprep.subr.mxu0 0.0
      %619 = vmatpush1.msra.mxu0 0.0
      %620 = vmatprep.subr.mxu0 0.0
      %621 = vmatpush1.msra.mxu0 0.0
      %622 = vmatprep.subr.mxu0 0.0
      %623 = vmatpush1.msra.mxu0 0.0
      %624 = vmatprep.mubr.f32.mxu0 0.0
      %625 = vmatmul.mubr.f32.gmra.mrb[0].mxu0 %v510
      %v626 = vpop.f32.mrb[0].mxu0
      %v627 = vadd.f32 %v431, %v626
      %v628 = vpop.f32.mrb[0].mxu0
      %629 = vmatprep.mubr.f32.mxu0 0.0
      %630 = vmatmul.mubr.f32.gmra.mrb[0].mxu0 %v513
      %v631 = vpop.f32.mrb[0].mxu0
      %v632 = vadd.f32 %v436, %v631
      %v633 = vpop.f32.mrb[0].mxu0
      %634 = vmatprep.mubr.f32.mxu0 0.0
      %635 = vmatmul.mubr.f32.gmra.mrb[0].mxu0 %v516
      %v636 = vpop.f32.mrb[0].mxu0
      %v637 = vadd.f32 %v441, %v636
      %v638 = vpop.f32.mrb[0].mxu0
      %639 = vmatprep.mubr.f32.mxu0 0.0
      %640 = vmatmul.mubr.f32.gmra.mrb[0].mxu0 %v519
      %v641 = vpop.f32.mrb[0].mxu0
      %v642 = vadd.f32 %v446, %v641
      %v643 = vpop.f32.mrb[0].mxu0
      %644 = vmatprep.mubr.f32.mxu0 0.0
      %645 = vmatmul.mubr.f32.gmra.mrb[0].mxu0 %v522
      %v646 = vpop.f32.mrb[0].mxu0
      %v647 = vadd.f32 %v451, %v646
      %v648 = vpop.f32.mrb[0].mxu0
      %649 = vmatprep.mubr.f32.mxu0 0.0
      %650 = vmatmul.mubr.f32.gmra.mrb[0].mxu0 %v525
      %v651 = vpop.f32.mrb[0].mxu0
      %v652 = vadd.f32 %v456, %v651
      %v653 = vpop.f32.mrb[0].mxu0
      %654 = vmatprep.mubr.f32.mxu0 0.0
      %655 = vmatmul.mubr.f32.gmra.mrb[0].mxu0 %v528
      %v656 = vpop.f32.mrb[0].mxu0
      %v657 = vadd.f32 %v461, %v656
      %v658 = vpop.f32.mrb[0].mxu0
      %659 = vmatprep.mubr.f32.mxu0 0.0
      %660 = vmatmul.mubr.f32.gmra.mrb[0].mxu0 %v531
      %v661 = vpop.f32.mrb[0].mxu0
      %v662 = vadd.f32 %v466, %v661
      %v663 = vpop.f32.mrb[0].mxu0
      %664 = vmatprep.mubr.f32.mxu0 0.0
      %665 = vmatmul.mubr.f32.gmra.mrb[0].mxu0 %v534
      %v666 = vpop.f32.mrb[0].mxu0
      %v667 = vadd.f32 %v471, %v666
      %v668 = vpop.f32.mrb[0].mxu0
      %669 = vmatprep.mubr.f32.mxu0 0.0
      %670 = vmatmul.mubr.f32.gmra.mrb[0].mxu0 %v537
      %v671 = vpop.f32.mrb[0].mxu0
      %v672 = vadd.f32 %v476, %v671
      %v673 = vpop.f32.mrb[0].mxu0
      %674 = vmatprep.mubr.f32.mxu0 0.0
      %675 = vmatmul.mubr.f32.gmra.mrb[0].mxu0 %v540
      %v676 = vpop.f32.mrb[0].mxu0
      %v677 = vadd.f32 %v481, %v676
      %v678 = vpop.f32.mrb[0].mxu0
      %679 = vmatprep.mubr.f32.mxu0 0.0
      %680 = vmatmul.mubr.f32.gmra.mrb[0].mxu0 %v543
      %v681 = vpop.f32.mrb[0].mxu0
      %v682 = vadd.f32 %v486, %v681
      %v683 = vpop.f32.mrb[0].mxu0
      %684 = vmatprep.mubr.f32.mxu0 0.0
      %685 = vmatmul.mubr.f32.gmra.mrb[0].mxu0 %v546
      %v686 = vpop.f32.mrb[0].mxu0
      %v687 = vadd.f32 %v491, %v686
      %v688 = vpop.f32.mrb[0].mxu0
      %689 = vmatprep.mubr.f32.mxu0 0.0
      %690 = vmatmul.mubr.f32.gmra.mrb[0].mxu0 %v549
      %v691 = vpop.f32.mrb[0].mxu0
      %v692 = vadd.f32 %v496, %v691
      %v693 = vpop.f32.mrb[0].mxu0
      %694 = vmatprep.mubr.f32.mxu0 0.0
      %695 = vmatmul.mubr.f32.gmra.mrb[0].mxu0 %v552
      %v696 = vpop.f32.mrb[0].mxu0
      %v697 = vadd.f32 %v501, %v696
      %v698 = vpop.f32.mrb[0].mxu0
      %699 = vmatprep.mubr.f32.mxu0 0.0
      %700 = vmatmul.mubr.f32.gmra.mrb[0].mxu0 %v555
      %v701 = vpop.f32.mrb[0].mxu0
      %v702 = vadd.f32 %v506, %v701
      %v703 = vpop.f32.mrb[0].mxu0
      %704 = vdwg.mxu0
      %v705 = vld [vmem:[%s4] sm:$0x1]
      %v707 = vlaneseq
      %v708 = vshrl.u32 %v707, 7
      %v709 = vsub.s32 0, %v708
      %v710 = vrot.slane %v705, %v709
      %v712 = vmul.f32 %v627, %v710
      %v713 = vmul.f32 %v632, %v710
      %v714 = vmul.f32 %v637, %v710
      %v715 = vmul.f32 %v642, %v710
      %v716 = vmul.f32 %v647, %v710
      %v717 = vmul.f32 %v652, %v710
      %v718 = vmul.f32 %v657, %v710
      %v719 = vmul.f32 %v662, %v710
      %v720 = vmul.f32 %v667, %v710
      %v721 = vmul.f32 %v672, %v710
      %v722 = vmul.f32 %v677, %v710
      %v723 = vmul.f32 %v682, %v710
      %v724 = vmul.f32 %v687, %v710
      %v725 = vmul.f32 %v692, %v710
      %v726 = vmul.f32 %v697, %v710
      %v727 = vmul.f32 %v702, %v710
      %v728 = vld [vmem:[%s5] sm:$0x1]
      %v730 = vlaneseq
      %v731 = vshrl.u32 %v730, 7
      %v732 = vsub.s32 0, %v731
      %v733 = vrot.slane %v728, %v732
      %v735 = vadd.f32 %v712, %v733
      %v736 = vadd.f32 %v713, %v733
      %v737 = vadd.f32 %v714, %v733
      %v738 = vadd.f32 %v715, %v733
      %v739 = vadd.f32 %v716, %v733
      %v740 = vadd.f32 %v717, %v733
      %v741 = vadd.f32 %v718, %v733
      %v742 = vadd.f32 %v719, %v733
      %v743 = vadd.f32 %v720, %v733
      %v744 = vadd.f32 %v721, %v733
      %v745 = vadd.f32 %v722, %v733
      %v746 = vadd.f32 %v723, %v733
      %v747 = vadd.f32 %v724, %v733
      %v748 = vadd.f32 %v725, %v733
      %v749 = vadd.f32 %v726, %v733
      %v750 = vadd.f32 %v727, %v733
      %v751 = vxor.u32 %v735, 2147483648
      %v752 = vxor.u32 %v736, 2147483648
      %v753 = vxor.u32 %v737, 2147483648
      %v754 = vxor.u32 %v738, 2147483648
      %v755 = vxor.u32 %v739, 2147483648
      %v756 = vxor.u32 %v740, 2147483648
      %v757 = vxor.u32 %v741, 2147483648
      %v758 = vxor.u32 %v742, 2147483648
      %v759 = vxor.u32 %v743, 2147483648
      %v760 = vxor.u32 %v744, 2147483648
      %v761 = vxor.u32 %v745, 2147483648
      %v762 = vxor.u32 %v746, 2147483648
      %v763 = vxor.u32 %v747, 2147483648
      %v764 = vxor.u32 %v748, 2147483648
      %v765 = vxor.u32 %v749, 2147483648
      %v766 = vxor.u32 %v750, 2147483648
      %v767 = vmul.f32 %v751, 1.442695
      %v768 = vpow.pop %v767
      %v769 = vmul.f32 %v752, 1.442695
      %v770 = vpow.pop %v769
      %v771 = vmul.f32 %v753, 1.442695
      %v772 = vpow.pop %v771
      %v773 = vmul.f32 %v754, 1.442695
      %v774 = vpow.pop %v773
      %v775 = vmul.f32 %v755, 1.442695
      %v776 = vpow.pop %v775
      %v777 = vmul.f32 %v756, 1.442695
      %v778 = vpow.pop %v777
      %v779 = vmul.f32 %v757, 1.442695
      %v780 = vpow.pop %v779
      %v781 = vmul.f32 %v758, 1.442695
      %v782 = vpow.pop %v781
      %v783 = vmul.f32 %v759, 1.442695
      %v784 = vpow.pop %v783
      %v785 = vmul.f32 %v760, 1.442695
      %v786 = vpow.pop %v785
      %v787 = vmul.f32 %v761, 1.442695
      %v788 = vpow.pop %v787
      %v789 = vmul.f32 %v762, 1.442695
      %v790 = vpow.pop %v789
      %v791 = vmul.f32 %v763, 1.442695
      %v792 = vpow.pop %v791
      %v793 = vmul.f32 %v764, 1.442695
      %v794 = vpow.pop %v793
      %v795 = vmul.f32 %v765, 1.442695
      %v796 = vpow.pop %v795
      %v797 = vmul.f32 %v766, 1.442695
      %v798 = vpow.pop %v797
      %v799 = vadd.f32 %v768, 1.0
      %v800 = vadd.f32 %v770, 1.0
      %v801 = vadd.f32 %v772, 1.0
      %v802 = vadd.f32 %v774, 1.0
      %v803 = vadd.f32 %v776, 1.0
      %v804 = vadd.f32 %v778, 1.0
      %v805 = vadd.f32 %v780, 1.0
      %v806 = vadd.f32 %v782, 1.0
      %v807 = vadd.f32 %v784, 1.0
      %v808 = vadd.f32 %v786, 1.0
      %v809 = vadd.f32 %v788, 1.0
      %v810 = vadd.f32 %v790, 1.0
      %v811 = vadd.f32 %v792, 1.0
      %v812 = vadd.f32 %v794, 1.0
      %v813 = vadd.f32 %v796, 1.0
      %v814 = vadd.f32 %v798, 1.0
      %v815 = vrcp.pop %v799
      %v816 = vmul.f32 1.0, %v815
      %v817 = vrcp.pop %v800
      %v818 = vmul.f32 1.0, %v817
      %v819 = vrcp.pop %v801
      %v820 = vmul.f32 1.0, %v819
      %v821 = vrcp.pop %v802
      %v822 = vmul.f32 1.0, %v821
      %v823 = vrcp.pop %v803
      %v824 = vmul.f32 1.0, %v823
      %v825 = vrcp.pop %v804
      %v826 = vmul.f32 1.0, %v825
      %v827 = vrcp.pop %v805
      %v828 = vmul.f32 1.0, %v827
      %v829 = vrcp.pop %v806
      %v830 = vmul.f32 1.0, %v829
      %v831 = vrcp.pop %v807
      %v832 = vmul.f32 1.0, %v831
      %v833 = vrcp.pop %v808
      %v834 = vmul.f32 1.0, %v833
      %v835 = vrcp.pop %v809
      %v836 = vmul.f32 1.0, %v835
      %v837 = vrcp.pop %v810
      %v838 = vmul.f32 1.0, %v837
      %v839 = vrcp.pop %v811
      %v840 = vmul.f32 1.0, %v839
      %v841 = vrcp.pop %v812
      %v842 = vmul.f32 1.0, %v841
      %v843 = vrcp.pop %v813
      %v844 = vmul.f32 1.0, %v843
      %v845 = vrcp.pop %v814
      %v846 = vmul.f32 1.0, %v845
      %v847 = vmul.f32 %v735, %v816
      %v848 = vmul.f32 %v736, %v818
      %v849 = vmul.f32 %v737, %v820
      %v850 = vmul.f32 %v738, %v822
      %v851 = vmul.f32 %v739, %v824
      %v852 = vmul.f32 %v740, %v826
      %v853 = vmul.f32 %v741, %v828
      %v854 = vmul.f32 %v742, %v830
      %v855 = vmul.f32 %v743, %v832
      %v856 = vmul.f32 %v744, %v834
      %v857 = vmul.f32 %v745, %v836
      %v858 = vmul.f32 %v746, %v838
      %v859 = vmul.f32 %v747, %v840
      %v860 = vmul.f32 %v748, %v842
      %v861 = vmul.f32 %v749, %v844
      %v862 = vmul.f32 %v750, %v846
      %vm863 = vcmask 64512
      %864 = vst.msk [vmem:[%s275] sm:$0xff] %vm863, %v847
      %865 = vst.msk [vmem:[%s275 + $0x8] sm:$0xff] %vm863, %v848
      %866 = vst.msk [vmem:[%s275 + $0x10] sm:$0xff] %vm863, %v849
      %867 = vst.msk [vmem:[%s275 + $0x18] sm:$0xff] %vm863, %v850
      %868 = vst.msk [vmem:[%s275 + $0x20] sm:$0xff] %vm863, %v851
      %869 = vst.msk [vmem:[%s275 + $0x28] sm:$0xff] %vm863, %v852
      %870 = vst.msk [vmem:[%s275 + $0x30] sm:$0xff] %vm863, %v853
      %871 = vst.msk [vmem:[%s275 + $0x38] sm:$0xff] %vm863, %v854
      %872 = vst.msk [vmem:[%s275 + $0x40] sm:$0xff] %vm863, %v855
      %873 = vst.msk [vmem:[%s275 + $0x48] sm:$0xff] %vm863, %v856
      %874 = vst.msk [vmem:[%s275 + $0x50] sm:$0xff] %vm863, %v857
      %875 = vst.msk [vmem:[%s275 + $0x58] sm:$0xff] %vm863, %v858
      %876 = vst.msk [vmem:[%s275 + $0x60] sm:$0xff] %vm863, %v859
      %877 = vst.msk [vmem:[%s275 + $0x68] sm:$0xff] %vm863, %v860
      %878 = vst.msk [vmem:[%s275 + $0x70] sm:$0xff] %vm863, %v861
      %879 = vst.msk [vmem:[%s275 + $0x78] sm:$0xff] %vm863, %v862
      %s880 = smul.u32 16, %s17
      %p881 = scmp.lt.s32.totalorder %s880, 63
      %s882 = scalar_select %p881, %s880, 63
      %s883 = smul.addr %s882, 8
      %s884 = scalar_lea.vmem %s6, %s883
      // Predicated region
      $region45: #{c3_forward.7} parent=43 // pred_check
        %p885 = pneg %p171
      $region46: #{c3_forward.7} parent=43 // pred_check_branch
        %887 = sbr.rel (%p885) target = $region48
      $region47: #{c3_forward.7} parent=43 // pred_region
        %s888 = smul.u32 16, %s17
      $region48: #{c3_forward.7} parent=43 // pred_fallthru
        _
    $region44: #{c3_forward.7} parent=5 // pred_fallthru
      _
    %p889 = scmp.le.s32.totalorder 2, %s12
    // Predicated region
    $region49: #{c3_forward.7} parent=5 // pred_check
      %p890 = pneg %p889
    $region50: #{c3_forward.7} parent=5 // pred_check_branch
      %892 = sbr.rel (%p890) target = $region52
    $region51: #{c3_forward.7} parent=5 // pred_region
      %s893 = ssub.s32 %s12, 2
      // Predicated region
      $region53: #{c3_forward.7} parent=51 // pred_check
        %p894 = pneg %p177
      $region54: #{c3_forward.7} parent=51 // pred_check_branch
        %896 = sbr.rel (%p894) target = $region56
      $region55: #{c3_forward.7} parent=51 // pred_region
        %s897 = smul.u32 16, %s18
        %p898 = scmp.lt.s32.totalorder %s897, 63
        %s899 = scalar_select %p898, %s897, 63
        %s900 = smul.addr %s899, 8
        %s901 = scalar_lea.vmem %s6, %s900
      $region56: #{c3_forward.7} parent=51 // pred_fallthru
        _
    $region52: #{c3_forward.7} parent=5 // pred_fallthru
      _
  $region6: #{c3_forward.7} parent=0 // loop_footer
    %s16 = sadd.s32 1, %s12
  $region7: #{c3_forward.7} parent=0 // loop_footer_branch
    %11 = sbr.rel target = $region3
  $region8: #{c3_forward.7} parent=0 // loop_exit
    _

// kernel: c3_forward.5
$region0: #{c3_forward.5}
  #allocation0 [shape = 'u32[]', space=smem, size = 0x4, offset = 0x4, fixed_abs, tag = 'smem constant byte address 0x4 - core index']
  #allocation1 [shape = 'u32[144,128]{1,0:T(1,128)}', space=vmem, size = 0x12000, scoped, tag = 'internal scratch']
  %s0 = inlined_call_operand.vmem [shape: f32[2,18,18,4], index: 0, kind: input, shape index: {}]
  %s1 = inlined_call_operand.vmem [shape: f32[9,4,4], index: 1, kind: input, shape index: {}]
  %s2 = inlined_call_operand.vmem [shape: f32[1,4], index: 2, kind: input, shape index: {}]
  %s3 = inlined_call_operand.vmem [shape: f32[1,4], index: 3, kind: input, shape index: {}]
  %s4 = inlined_call_operand.vmem [shape: f32[2,16,16,4], index: 4, kind: output, shape index: {}]
  %s5 = sld [smem:[#allocation0]]
  $region49: #{c3_forward.5} parent=0
    _
  %s7 = ssub.s32 1, %s5
  %s8 = scalar_select 0, %s7, %s5
  loop: start=0, step=1, limit=4
  $region2: #{c3_forward.5} parent=0 // loop_pre_header
    _
  $region3: #{c3_forward.5} parent=0 // loop_header
    %s10 = sphi 0, %s14
    %p11 = scmp.ge.s32.totalorder %s10, 4
    %s20 = sphi 0, %s22
    %s23 = sphi 0, %s20
    %s24 = sphi 0, %s23
    %s40 = sphi 0, %s24
    %s44 = sphi 0, %s44
    %s46 = sphi 0, %s44
    %s47 = sphi 0, %s46
    %s61 = sphi 0, %s47
    %s65 = sphi 0, %s65
    %s67 = sphi 0, %s65
    %s68 = sphi 0, %s67
    %s82 = sphi 0, %s68
    %s86 = sphi 0, %s86
    %s88 = sphi 0, %s86
    %s89 = sphi 0, %s88
    %s103 = sphi 0, %s89
    %s109 = sphi 0, %s111
    %s112 = sphi 0, %s109
    %s113 = sphi 0, %s112
    %s129 = sphi 0, %s113
  $region4: #{c3_forward.5} parent=0 // loop_header_branch
    %13 = sbr.rel (%p11) target = $region8
  $region5: #{c3_forward.5} parent=0 // loop_body
    %s15 = ssub.s32 %s10, 1
    %s16 = ssub.s32 %s10, 2
    %s17 = sadd.s32 %s10, 1
    %s18 = ssub.s32 %s10, %s17
    %p19 = scmp.eq.s32.totalorder %s18, 0
    %s21 = sadd.s32 %s20, 1
    %s22 = scalar_select %p19, %s20, %s21
    %p25 = pneg %p19
    %p26 = scmp.eq.s32.totalorder %s10, 1
    %p27 = por %p25, %p26
    %p28 = scmp.ne.s32.totalorder %s20, %s23
    %p29 = scmp.eq.s32.totalorder %s10, 0
    %p30 = por %p28, %p29
    %p31 = scmp.ne.s32.totalorder %s20, %s23
    %p32 = scmp.eq.s32.totalorder %s15, 1
    %p33 = por %p31, %p32
    %p34 = scmp.ne.s32.totalorder %s23, %s24
    %p35 = scmp.eq.s32.totalorder %s15, 0
    %p36 = por %p34, %p35
    %p37 = scmp.ne.s32.totalorder %s23, %s24
    %p38 = scmp.eq.s32.totalorder %s16, 1
    %p39 = por %p37, %p38
    %p41 = scmp.ne.s32.totalorder %s24, %s40
    %p42 = scmp.eq.s32.totalorder %s16, 0
    %p43 = por %p41, %p42
    %s45 = sadd.s32 %s44, 1
    %p48 = scmp.eq.s32.totalorder %s10, 1
    %p49 = scmp.ne.s32.totalorder %s44, %s46
    %p50 = scmp.eq.s32.totalorder %s10, 0
    %p51 = por %p49, %p50
    %p52 = scmp.ne.s32.totalorder %s44, %s46
    %p53 = scmp.eq.s32.totalorder %s15, 1
    %p54 = por %p52, %p53
    %p55 = scmp.ne.s32.totalorder %s46, %s47
    %p56 = scmp.eq.s32.totalorder %s15, 0
    %p57 = por %p55, %p56
    %p58 = scmp.ne.s32.totalorder %s46, %s47
    %p59 = scmp.eq.s32.totalorder %s16, 1
    %p60 = por %p58, %p59
    %p62 = scmp.ne.s32.totalorder %s47, %s61
    %p63 = scmp.eq.s32.totalorder %s16, 0
    %p64 = por %p62, %p63
    %s66 = sadd.s32 %s65, 1
    %p69 = scmp.eq.s32.totalorder %s10, 1
    %p70 = scmp.ne.s32.totalorder %s65, %s67
    %p71 = scmp.eq.s32.totalorder %s10, 0
    %p72 = por %p70, %p71
    %p73 = scmp.ne.s32.totalorder %s65, %s67
    %p74 = scmp.eq.s32.totalorder %s15, 1
    %p75 = por %p73, %p74
    %p76 = scmp.ne.s32.totalorder %s67, %s68
    %p77 = scmp.eq.s32.totalorder %s15, 0
    %p78 = por %p76, %p77
    %p79 = scmp.ne.s32.totalorder %s67, %s68
    %p80 = scmp.eq.s32.totalorder %s16, 1
    %p81 = por %p79, %p80
    %p83 = scmp.ne.s32.totalorder %s68, %s82
    %p84 = scmp.eq.s32.totalorder %s16, 0
    %p85 = por %p83, %p84
    %s87 = sadd.s32 %s86, 1
    %p90 = scmp.eq.s32.totalorder %s10, 1
    %p91 = scmp.ne.s32.totalorder %s86, %s88
    %p92 = scmp.eq.s32.totalorder %s10, 0
    %p93 = por %p91, %p92
    %p94 = scmp.ne.s32.totalorder %s86, %s88
    %p95 = scmp.eq.s32.totalorder %s15, 1
    %p96 = por %p94, %p95
    %p97 = scmp.ne.s32.totalorder %s88, %s89
    %p98 = scmp.eq.s32.totalorder %s15, 0
    %p99 = por %p97, %p98
    %p100 = scmp.ne.s32.totalorder %s88, %s89
    %p101 = scmp.eq.s32.totalorder %s16, 1
    %p102 = por %p100, %p101
    %p104 = scmp.ne.s32.totalorder %s89, %s103
    %p105 = scmp.eq.s32.totalorder %s16, 0
    %p106 = por %p104, %p105
    %s107 = ssub.s32 %s10, %s17
    %p108 = scmp.eq.s32.totalorder %s107, 0
    %s110 = sadd.s32 %s109, 1
    %s111 = scalar_select %p108, %s109, %s110
    %p114 = pneg %p108
    %p115 = scmp.eq.s32.totalorder %s10, 1
    %p116 = por %p114, %p115
    %p117 = scmp.ne.s32.totalorder %s109, %s112
    %p118 = scmp.eq.s32.totalorder %s10, 0
    %p119 = por %p117, %p118
    %p120 = scmp.ne.s32.totalorder %s109, %s112
    %p121 = scmp.eq.s32.totalorder %s15, 1
    %p122 = por %p120, %p121
    %p123 = scmp.ne.s32.totalorder %s112, %s113
    %p124 = scmp.eq.s32.totalorder %s15, 0
    %p125 = por %p123, %p124
    %p126 = scmp.ne.s32.totalorder %s112, %s113
    %p127 = scmp.eq.s32.totalorder %s16, 1
    %p128 = por %p126, %p127
    %p130 = scmp.ne.s32.totalorder %s113, %s129
    %p131 = scmp.eq.s32.totalorder %s16, 0
    %p132 = por %p130, %p131
    %p133 = scmp.le.s32.totalorder 1, %s10
    %p134 = scmp.lt.s32.totalorder %s10, 3
    %p135 = pnand %p133, %p134
    %p136 = pneg %p135
    // Predicated region
    $region9: #{c3_forward.5} parent=5 // pred_check
      _
    $region10: #{c3_forward.5} parent=5 // pred_check_branch
      %138 = sbr.rel (%p135) target = $region12
    $region11: #{c3_forward.5} parent=5 // pred_region
      %s139 = ssub.s32 %s10, 1
      // Predicated region
      $region13: #{c3_forward.5} parent=11 // pred_check
        %p140 = pneg %p57
      $region14: #{c3_forward.5} parent=11 // pred_check_branch
        %142 = sbr.rel (%p140) target = $region16
      $region15: #{c3_forward.5} parent=11 // pred_region
        _
      $region16: #{c3_forward.5} parent=11 // pred_fallthru
        _
      // Predicated region
      $region17: #{c3_forward.5} parent=11 // pred_check
        %p143 = pneg %p78
      $region18: #{c3_forward.5} parent=11 // pred_check_branch
        %145 = sbr.rel (%p143) target = $region20
      $region19: #{c3_forward.5} parent=11 // pred_region
        _
      $region20: #{c3_forward.5} parent=11 // pred_fallthru
        _
      // Predicated region
      $region21: #{c3_forward.5} parent=11 // pred_check
        %p146 = pneg %p99
      $region22: #{c3_forward.5} parent=11 // pred_check_branch
        %148 = sbr.rel (%p146) target = $region24
      $region23: #{c3_forward.5} parent=11 // pred_region
        _
      $region24: #{c3_forward.5} parent=11 // pred_fallthru
        _
    $region12: #{c3_forward.5} parent=5 // pred_fallthru
      _
    %p149 = scmp.lt.s32.totalorder %s10, 2
    // Predicated region
    $region25: #{c3_forward.5} parent=5 // pred_check
      %p150 = pneg %p149
    $region26: #{c3_forward.5} parent=5 // pred_check_branch
      %152 = sbr.rel (%p150) target = $region28
    $region27: #{c3_forward.5} parent=5 // pred_region
      // Predicated region
      $region29: #{c3_forward.5} parent=27 // pred_check
        %p153 = pneg %p30
      $region30: #{c3_forward.5} parent=27 // pred_check_branch
        %155 = sbr.rel (%p153) target = $region32
      $region31: #{c3_forward.5} parent=27 // pred_region
        %p156 = scmp.lt.s32.totalorder %s10, 1
        %s157 = scalar_select %p156, %s10, 1
        %s158 = smul.addr %s157, 54
        %s159 = smul.addr %s158, 8
        %s160 = scalar_lea.vmem %s0, %s159
      $region32: #{c3_forward.5} parent=27 // pred_fallthru
        _
    $region28: #{c3_forward.5} parent=5 // pred_fallthru
      _
    %p161 = scmp.le.s32.totalorder 1, %s10
    %p162 = scmp.lt.s32.totalorder %s10, 3
    %p163 = pnand %p161, %p162
    %p164 = pneg %p163
    // Predicated region
    $region33: #{c3_forward.5} parent=5 // pred_check
      _
    $region34: #{c3_forward.5} parent=5 // pred_check_branch
      %166 = sbr.rel (%p163) target = $region36
    $region35: #{c3_forward.5} parent=5 // pred_region
      %s167 = ssub.s32 %s10, 1
      %p168 = scmp.lt.s32.totalorder %s15, 1
      %s169 = scalar_select %p168, %s15, 1
      %s170 = smul.addr %s169, 54
      %s171 = smul.addr %s170, 8
      %s172 = scalar_lea.vmem %s0, %s171
      %p173 = pneg %p36
      %p174 = pneg %p33
      %p175 = pneg %p57
      %p176 = pneg %p54
      %p177 = pneg %p78
      %p178 = pneg %p75
      %p179 = pneg %p99
      %p180 = pneg %p96
      %p181 = pneg %p125
      %p182 = pneg %p122
      %p183 = scmp.lt.s32.totalorder %s15, 1
      %s184 = scalar_select %p183, %s15, 1
      %s185 = smul.addr %s184, 32
      %s186 = smul.addr %s185, 8
      %s187 = scalar_lea.vmem %s4, %s186
      %p188 = scmp.lt.s32.totalorder %s15, 1
      %s189 = scalar_select %p188, %s15, 1
      %s190 = smul.addr %s189, 54
      %s191 = smul.addr %s190, 8
      %s192 = scalar_lea.vmem %s0, %s191
      %p193 = scmp.lt.s32.totalorder %s15, 1
      %s194 = scalar_select %p193, %s15, 1
      %s195 = smul.addr %s194, 32
      %s196 = smul.addr %s195, 8
      %s197 = scalar_lea.vmem %s4, %s196
      %v198 = vld [vmem:[%s192] sm:$0xff]
      %v199 = vld [vmem:[%s192 + $0x8] sm:$0xff]
      %v200 = vld [vmem:[%s192 + $0x18] sm:$0xff]
      %v201 = vld [vmem:[%s192 + $0x20] sm:$0xff]
      %v202 = vld [vmem:[%s192 + $0x30] sm:$0xff]
      %v203 = vld [vmem:[%s192 + $0x38] sm:$0xff]
      %v204 = vld [vmem:[%s192 + $0x48] sm:$0xff]
      %v205 = vld [vmem:[%s192 + $0x50] sm:$0xff]
      %v206 = vld [vmem:[%s192 + $0x60] sm:$0xff]
      %v207 = vld [vmem:[%s192 + $0x68] sm:$0xff]
      %v208 = vld [vmem:[%s192 + $0x78] sm:$0xff]
      %v209 = vld [vmem:[%s192 + $0x80] sm:$0xff]
      %v210 = vld [vmem:[%s192 + $0x90] sm:$0xff]
      %v211 = vld [vmem:[%s192 + $0x98] sm:$0xff]
      %v212 = vld [vmem:[%s192 + $0xa8] sm:$0xff]
      %v213 = vld [vmem:[%s192 + $0xb0] sm:$0xff]
      %v214 = vld [vmem:[%s192 + $0xc0] sm:$0xff]
      %v215 = vld [vmem:[%s192 + $0xc8] sm:$0xff]
      %v216 = vld [vmem:[%s192 + $0xd8] sm:$0xff]
      %v217 = vld [vmem:[%s192 + $0xe0] sm:$0xff]
      %v218 = vld [vmem:[%s192 + $0xf0] sm:$0xff]
      %v219 = vld [vmem:[%s192 + $0xf8] sm:$0xff]
      %v220 = vld [vmem:[%s192 + $0x108] sm:$0xff]
      %v221 = vld [vmem:[%s192 + $0x110] sm:$0xff]
      %v222 = vld [vmem:[%s192 + $0x120] sm:$0xff]
      %v223 = vld [vmem:[%s192 + $0x128] sm:$0xff]
      %v224 = vld [vmem:[%s192 + $0x138] sm:$0xff]
      %v225 = vld [vmem:[%s192 + $0x140] sm:$0xff]
      %v226 = vld [vmem:[%s192 + $0x150] sm:$0xff]
      %v227 = vld [vmem:[%s192 + $0x158] sm:$0xff]
      %v228 = vld [vmem:[%s192 + $0x168] sm:$0xff]
      %v229 = vld [vmem:[%s192 + $0x170] sm:$0xff]
      %v230 = vld [vmem:[%s1] sm:$0xf]
      %v231 = vld [vmem:[%s192 + $0x1] sm:$0xff]
      %v232 = vld [vmem:[%s192 + $0x9] sm:$0xff]
      %v233 = vld [vmem:[%s192 + $0x19] sm:$0xff]
      %v234 = vld [vmem:[%s192 + $0x21] sm:$0xff]
      %v235 = vld [vmem:[%s192 + $0x31] sm:$0xff]
      %v236 = vld [vmem:[%s192 + $0x39] sm:$0xff]
      %v237 = vld [vmem:[%s192 + $0x49] sm:$0xff]
      %v238 = vld [vmem:[%s192 + $0x51] sm:$0xff]
      %v239 = vld [vmem:[%s192 + $0x61] sm:$0xff]
      %v240 = vld [vmem:[%s192 + $0x69] sm:$0xff]
      %v241 = vld [vmem:[%s192 + $0x79] sm:$0xff]
      %v242 = vld [vmem:[%s192 + $0x81] sm:$0xff]
      %v243 = vld [vmem:[%s192 + $0x91] sm:$0xff]
      %v244 = vld [vmem:[%s192 + $0x99] sm:$0xff]
      %v245 = vld [vmem:[%s192 + $0xa9] sm:$0xff]
      %v246 = vld [vmem:[%s192 + $0xb1] sm:$0xff]
      %v247 = vld [vmem:[%s192 + $0xc1] sm:$0xff]
      %v248 = vld [vmem:[%s192 + $0xc9] sm:$0xff]
      %v249 = vld [vmem:[%s192 + $0xd9] sm:$0xff]
      %v250 = vld [vmem:[%s192 + $0xe1] sm:$0xff]
      %v251 = vld [vmem:[%s192 + $0xf1] sm:$0xff]
      %v252 = vld [vmem:[%s192 + $0xf9] sm:$0xff]
      %v253 = vld [vmem:[%s192 + $0x109] sm:$0xff]
      %v254 = vld [vmem:[%s192 + $0x111] sm:$0xff]
      %v255 = vld [vmem:[%s192 + $0x121] sm:$0xff]
      %v256 = vld [vmem:[%s192 + $0x129] sm:$0xff]
      %v257 = vld [vmem:[%s192 + $0x139] sm:$0xff]
      %v258 = vld [vmem:[%s192 + $0x141] sm:$0xff]
      %v259 = vld [vmem:[%s192 + $0x151] sm:$0xff]
      %v260 = vld [vmem:[%s192 + $0x159] sm:$0xff]
      %v261 = vld [vmem:[%s192 + $0x169] sm:$0xff]
      %v262 = vld [vmem:[%s192 + $0x171] sm:$0xff]
      %s263 = scalar_lea.vmem %s1, 4
      %v264 = vld [vmem:[%s263] sm:$0xf]
      %vm265 = vcmask 31744
      %v267 = vsel %vm265, %v231, 0
      %v270 = vsel %vm265, %v232, 0
      %v273 = vsel %vm265, %v233, 0
      %v276 = vsel %vm265, %v234, 0
      %v279 = vsel %vm265, %v235, 0
      %v282 = vsel %vm265, %v236, 0
      %v285 = vsel %vm265, %v237, 0
      %v288 = vsel %vm265, %v238, 0
      %v291 = vsel %vm265, %v239, 0
      %v294 = vsel %vm265, %v240, 0
      %v297 = vsel %vm265, %v241, 0
      %v300 = vsel %vm265, %v242, 0
      %v303 = vsel %vm265, %v243, 0
      %v306 = vsel %vm265, %v244, 0
      %v309 = vsel %vm265, %v245, 0
      %v312 = vsel %vm265, %v246, 0
      %v315 = vsel %vm265, %v247, 0
      %v318 = vsel %vm265, %v248, 0
      %v321 = vsel %vm265, %v249, 0
      %v324 = vsel %vm265, %v250, 0
      %v327 = vsel %vm265, %v251, 0
      %v330 = vsel %vm265, %v252, 0
      %v333 = vsel %vm265, %v253, 0
      %v336 = vsel %vm265, %v254, 0
      %v339 = vsel %vm265, %v255, 0
      %v342 = vsel %vm265, %v256, 0
      %v345 = vsel %vm265, %v257, 0
      %v348 = vsel %vm265, %v258, 0
      %v351 = vsel %vm265, %v259, 0
      %v354 = vsel %vm265, %v260, 0
      %v357 = vsel %vm265, %v261, 0
      %v360 = vsel %vm265, %v262, 0
      %vm362 = vcmask 1043456
      %v364 = vsel %vm362, %v264, 0
      %366 = vmatprep.subr.mxu0 0.0
      %367 = vmatpush1.msra.mxu0 %v364
      %368 = vmatprep.subr.mxu0 0.0
      %369 = vmatpush1.msra.mxu0 0.0
      %370 = vmatprep.subr.mxu0 0.0
      %371 = vmatpush1.msra.mxu0 0.0
      %372 = vmatprep.subr.mxu0 0.0
      %373 = vmatpush1.msra.mxu0 0.0
      %374 = vmatprep.subr.mxu0 0.0
      %375 = vmatpush1.msra.mxu0 0.0
      %376 = vmatprep.subr.mxu0 0.0
      %377 = vmatpush1.msra.mxu0 0.0
      %378 = vmatprep.subr.mxu0 0.0
      %379 = vmatpush1.msra.mxu0 0.0
      %380 = vmatprep.subr.mxu0 0.0
      %381 = vmatpush1.msra.mxu0 0.0
      %382 = vmatprep.subr.mxu0 0.0
      %383 = vmatpush1.msra.mxu0 0.0
      %384 = vmatprep.subr.mxu0 0.0
      %385 = vmatpush1.msra.mxu0 0.0
      %386 = vmatprep.subr.mxu0 0.0
      %387 = vmatpush1.msra.mxu0 0.0
      %388 = vmatprep.subr.mxu0 0.0
      %389 = vmatpush1.msra.mxu0 0.0
      %390 = vmatprep.subr.mxu0 0.0
      %391 = vmatpush1.msra.mxu0 0.0
      %392 = vmatprep.subr.mxu0 0.0
      %393 = vmatpush1.msra.mxu0 0.0
      %394 = vmatprep.subr.mxu0 0.0
      %395 = vmatpush1.msra.mxu0 0.0
      %396 = vmatprep.subr.mxu0 0.0
      %397 = vmatpush1.msra.mxu0 0.0
      %398 = vmatprep.subr.mxu0 0.0
      %399 = vmatpush1.msra.mxu0 0.0
      %400 = vmatprep.subr.mxu0 0.0
      %401 = vmatpush1.msra.mxu0 0.0
      %402 = vmatprep.subr.mxu0 0.0
      %403 = vmatpush1.msra.mxu0 0.0
      %404 = vmatprep.subr.mxu0 0.0
      %405 = vmatpush1.msra.mxu0 0.0
      %406 = vmatprep.subr.mxu0 0.0
      %407 = vmatpush1.msra.mxu0 0.0
      %408 = vmatprep.subr.mxu0 0.0
      %409 = vmatpush1.msra.mxu0 0.0
      %410 = vmatprep.subr.mxu0 0.0
      %411 = vmatpush1.msra.mxu0 0.0
      %412 = vmatprep.subr.mxu0 0.0
      %413 = vmatpush1.msra.mxu0 0.0
      %414 = vmatprep.subr.mxu0 0.0
      %415 = vmatpush1.msra.mxu0 0.0
      %416 = vmatprep.subr.mxu0 0.0
      %417 = vmatpush1.msra.mxu0 0.0
      %418 = vmatprep.subr.mxu0 0.0
      %419 = vmatpush1.msra.mxu0 0.0
      %420 = vmatprep.subr.mxu0 0.0
      %421 = vmatpush1.msra.mxu0 0.0
      %422 = vmatprep.subr.mxu0 0.0
      %423 = vmatpush1.msra.mxu0 0.0
      %424 = vmatprep.subr.mxu0 0.0
      %425 = vmatpush1.msra.mxu0 0.0
      %426 = vmatprep.subr.mxu0 0.0
      %427 = vmatpush1.msra.mxu0 0.0
      %428 = vmatprep.subr.mxu0 0.0
      %429 = vmatpush1.msra.mxu0 0.0
      %430 = vmatprep.mubr.f32.mxu0 0.0
      %431 = vmatmul.mubr.f32.gmra.mrb[0].mxu0 %v267
      %v432 = vpop.f32.mrb[0].mxu0
      %v433 = vadd.f32 0.0, %v432
      %v434 = vpop.f32.mrb[0].mxu0
      %435 = vmatprep.mubr.f32.mxu0 0.0
      %436 = vmatmul.mubr.f32.gmra.mrb[0].mxu0 %v270
      %v437 = vpop.f32.mrb[0].mxu0
      %v438 = vadd.f32 0.0, %v437
      %v439 = vpop.f32.mrb[0].mxu0
      %440 = vmatprep.mubr.f32.mxu0 0.0
      %441 = vmatmul.mubr.f32.gmra.mrb[0].mxu0 %v273
      %v442 = vpop.f32.mrb[0].mxu0
      %v443 = vadd.f32 0.0, %v442
      %v444 = vpop.f32.mrb[0].mxu0
      %445 = vmatprep.mubr.f32.mxu0 0.0
      %446 = vmatmul.mubr.f32.gmra.mrb[0].mxu0 %v276
      %v447 = vpop.f32.mrb[0].mxu0
      %v448 = vadd.f32 0.0, %v447
      %v449 = vpop.f32.mrb[0].mxu0
      %450 = vmatprep.mubr.f32.mxu0 0.0
      %451 = vmatmul.mubr.f32.gmra.mrb[0].mxu0 %v279
      %v452 = vpop.f32.mrb[0].mxu0
      %v453 = vadd.f32 0.0, %v452
      %v454 = vpop.f32.mrb[0].mxu0
      %455 = vmatprep.mubr.f32.mxu0 0.0
      %456 = vmatmul.mubr.f32.gmra.mrb[0].mxu0 %v282
      %v457 = vpop.f32.mrb[0].mxu0
      %v458 = vadd.f32 0.0, %v457
      %v459 = vpop.f32.mrb[0].mxu0
      %460 = vmatprep.mubr.f32.mxu0 0.0
      %461 = vmatmul.mubr.f32.gmra.mrb[0].mxu0 %v285
      %v462 = vpop.f32.mrb[0].mxu0
      %v463 = vadd.f32 0.0, %v462
      %v464 = vpop.f32.mrb[0].mxu0
      %465 = vmatprep.mubr.f32.mxu0 0.0
      %466 = vmatmul.mubr.f32.gmra.mrb[0].mxu0 %v288
      %v467 = vpop.f32.mrb[0].mxu0
      %v468 = vadd.f32 0.0, %v467
      %v469 = vpop.f32.mrb[0].mxu0
      %470 = vmatprep.mubr.f32.mxu0 0.0
      %471 = vmatmul.mubr.f32.gmra.mrb[0].mxu0 %v291
      %v472 = vpop.f32.mrb[0].mxu0
      %v473 = vadd.f32 0.0, %v472
      %v474 = vpop.f32.mrb[0].mxu0
      %475 = vmatprep.mubr.f32.mxu0 0.0
      %476 = vmatmul.mubr.f32.gmra.mrb[0].mxu0 %v294
      %v477 = vpop.f32.mrb[0].mxu0
      %v478 = vadd.f32 0.0, %v477
      %v479 = vpop.f32.mrb[0].mxu0
      %480 = vmatprep.mubr.f32.mxu0 0.0
      %481 = vmatmul.mubr.f32.gmra.mrb[0].mxu0 %v297
      %v482 = vpop.f32.mrb[0].mxu0
      %v483 = vadd.f32 0.0, %v482
      %v484 = vpop.f32.mrb[0].mxu0
      %485 = vmatprep.mubr.f32.mxu0 0.0
      %486 = vmatmul.mubr.f32.gmra.mrb[0].mxu0 %v300
      %v487 = vpop.f32.mrb[0].mxu0
      %v488 = vadd.f32 0.0, %v487
      %v489 = vpop.f32.mrb[0].mxu0
      %490 = vmatprep.mubr.f32.mxu0 0.0
      %491 = vmatmul.mubr.f32.gmra.mrb[0].mxu0 %v303
      %v492 = vpop.f32.mrb[0].mxu0
      %v493 = vadd.f32 0.0, %v492
      %v494 = vpop.f32.mrb[0].mxu0
      %495 = vmatprep.mubr.f32.mxu0 0.0
      %496 = vmatmul.mubr.f32.gmra.mrb[0].mxu0 %v306
      %v497 = vpop.f32.mrb[0].mxu0
      %v498 = vadd.f32 0.0, %v497
      %v499 = vpop.f32.mrb[0].mxu0
      %500 = vmatprep.mubr.f32.mxu0 0.0
      %501 = vmatmul.mubr.f32.gmra.mrb[0].mxu0 %v309
      %v502 = vpop.f32.mrb[0].mxu0
      %v503 = vadd.f32 0.0, %v502
      %v504 = vpop.f32.mrb[0].mxu0
      %505 = vmatprep.mubr.f32.mxu0 0.0
      %506 = vmatmul.mubr.f32.gmra.mrb[0].mxu0 %v312
      %v507 = vpop.f32.mrb[0].mxu0
      %v508 = vadd.f32 0.0, %v507
      %v509 = vpop.f32.mrb[0].mxu0
      %510 = vmatprep.mubr.f32.mxu0 0.0
      %511 = vmatmul.mubr.f32.gmra.mrb[0].mxu0 %v315
      %v512 = vpop.f32.mrb[0].mxu0
      %v513 = vadd.f32 0.0, %v512
      %v514 = vpop.f32.mrb[0].mxu0
      %515 = vmatprep.mubr.f32.mxu0 0.0
      %516 = vmatmul.mubr.f32.gmra.mrb[0].mxu0 %v318
      %v517 = vpop.f32.mrb[0].mxu0
      %v518 = vadd.f32 0.0, %v517
      %v519 = vpop.f32.mrb[0].mxu0
      %520 = vmatprep.mubr.f32.mxu0 0.0
      %521 = vmatmul.mubr.f32.gmra.mrb[0].mxu0 %v321
      %v522 = vpop.f32.mrb[0].mxu0
      %v523 = vadd.f32 0.0, %v522
      %v524 = vpop.f32.mrb[0].mxu0
      %525 = vmatprep.mubr.f32.mxu0 0.0
      %526 = vmatmul.mubr.f32.gmra.mrb[0].mxu0 %v324
      %v527 = vpop.f32.mrb[0].mxu0
      %v528 = vadd.f32 0.0, %v527
      %v529 = vpop.f32.mrb[0].mxu0
      %530 = vmatprep.mubr.f32.mxu0 0.0
      %531 = vmatmul.mubr.f32.gmra.mrb[0].mxu0 %v327
      %v532 = vpop.f32.mrb[0].mxu0
      %v533 = vadd.f32 0.0, %v532
      %v534 = vpop.f32.mrb[0].mxu0
      %535 = vmatprep.mubr.f32.mxu0 0.0
      %536 = vmatmul.mubr.f32.gmra.mrb[0].mxu0 %v330
      %v537 = vpop.f32.mrb[0].mxu0
      %v538 = vadd.f32 0.0, %v537
      %v539 = vpop.f32.mrb[0].mxu0
      %540 = vmatprep.mubr.f32.mxu0 0.0
      %541 = vmatmul.mubr.f32.gmra.mrb[0].mxu0 %v333
      %v542 = vpop.f32.mrb[0].mxu0
      %v543 = vadd.f32 0.0, %v542
      %v544 = vpop.f32.mrb[0].mxu0
      %545 = vmatprep.mubr.f32.mxu0 0.0
      %546 = vmatmul.mubr.f32.gmra.mrb[0].mxu0 %v336
      %v547 = vpop.f32.mrb[0].mxu0
      %v548 = vadd.f32 0.0, %v547
      %v549 = vpop.f32.mrb[0].mxu0
      %550 = vmatprep.mubr.f32.mxu0 0.0
      %551 = vmatmul.mubr.f32.gmra.mrb[0].mxu0 %v339
      %v552 = vpop.f32.mrb[0].mxu0
      %v553 = vadd.f32 0.0, %v552
      %v554 = vpop.f32.mrb[0].mxu0
      %555 = vmatprep.mubr.f32.mxu0 0.0
      %556 = vmatmul.mubr.f32.gmra.mrb[0].mxu0 %v342
      %v557 = vpop.f32.mrb[0].mxu0
      %v558 = vadd.f32 0.0, %v557
      %v559 = vpop.f32.mrb[0].mxu0
      %560 = vmatprep.mubr.f32.mxu0 0.0
      %561 = vmatmul.mubr.f32.gmra.mrb[0].mxu0 %v345
      %v562 = vpop.f32.mrb[0].mxu0
      %v563 = vadd.f32 0.0, %v562
      %v564 = vpop.f32.mrb[0].mxu0
      %565 = vmatprep.mubr.f32.mxu0 0.0
      %566 = vmatmul.mubr.f32.gmra.mrb[0].mxu0 %v348
      %v567 = vpop.f32.mrb[0].mxu0
      %v568 = vadd.f32 0.0, %v567
      %v569 = vpop.f32.mrb[0].mxu0
      %570 = vmatprep.mubr.f32.mxu0 0.0
      %571 = vmatmul.mubr.f32.gmra.mrb[0].mxu0 %v351
      %v572 = vpop.f32.mrb[0].mxu0
      %v573 = vadd.f32 0.0, %v572
      %v574 = vpop.f32.mrb[0].mxu0
      %575 = vmatprep.mubr.f32.mxu0 0.0
      %576 = vmatmul.mubr.f32.gmra.mrb[0].mxu0 %v354
      %v577 = vpop.f32.mrb[0].mxu0
      %v578 = vadd.f32 0.0, %v577
      %v579 = vpop.f32.mrb[0].mxu0
      %580 = vmatprep.mubr.f32.mxu0 0.0
      %581 = vmatmul.mubr.f32.gmra.mrb[0].mxu0 %v357
      %v582 = vpop.f32.mrb[0].mxu0
      %v583 = vadd.f32 0.0, %v582
      %v584 = vpop.f32.mrb[0].mxu0
      %585 = vmatprep.mubr.f32.mxu0 0.0
      %586 = vmatmul.mubr.f32.gmra.mrb[0].mxu0 %v360
      %v587 = vpop.f32.mrb[0].mxu0
      %v588 = vadd.f32 0.0, %v587
      %v589 = vpop.f32.mrb[0].mxu0
      %590 = vdwg.mxu0
      %v592 = vsel %vm265, %v198, 0
      %v595 = vsel %vm265, %v199, 0
      %v598 = vsel %vm265, %v200, 0
      %v601 = vsel %vm265, %v201, 0
      %v604 = vsel %vm265, %v202, 0
      %v607 = vsel %vm265, %v203, 0
      %v610 = vsel %vm265, %v204, 0
      %v613 = vsel %vm265, %v205, 0
      %v616 = vsel %vm265, %v206, 0
      %v619 = vsel %vm265, %v207, 0
      %v622 = vsel %vm265, %v208, 0
      %v625 = vsel %vm265, %v209, 0
      %v628 = vsel %vm265, %v210, 0
      %v631 = vsel %vm265, %v211, 0
      %v634 = vsel %vm265, %v212, 0
      %v637 = vsel %vm265, %v213, 0
      %v640 = vsel %vm265, %v214, 0
      %v643 = vsel %vm265, %v215, 0
      %v646 = vsel %vm265, %v216, 0
      %v649 = vsel %vm265, %v217, 0
      %v652 = vsel %vm265, %v218, 0
      %v655 = vsel %vm265, %v219, 0
      %v658 = vsel %vm265, %v220, 0
      %v661 = vsel %vm265, %v221, 0
      %v664 = vsel %vm265, %v222, 0
      %v667 = vsel %vm265, %v223, 0
      %v670 = vsel %vm265, %v224, 0
      %v673 = vsel %vm265, %v225, 0
      %v676 = vsel %vm265, %v226, 0
      %v679 = vsel %vm265, %v227, 0
      %v682 = vsel %vm265, %v228, 0
      %v685 = vsel %vm265, %v229, 0
      %v688 = vsel %vm362, %v230, 0
      %690 = vmatprep.subr.mxu0 0.0
      %691 = vmatpush1.msra.mxu0 %v688
      %692 = vmatprep.subr.mxu0 0.0
      %693 = vmatpush1.msra.mxu0 0.0
      %694 = vmatprep.subr.mxu0 0.0
      %695 = vmatpush1.msra.mxu0 0.0
      %696 = vmatprep.subr.mxu0 0.0
      %697 = vmatpush1.msra.mxu0 0.0
      %698 = vmatprep.subr.mxu0 0.0
      %699 = vmatpush1.msra.mxu0 0.0
      %700 = vmatprep.subr.mxu0 0.0
      %701 = vmatpush1.msra.mxu0 0.0
      %702 = vmatprep.subr.mxu0 0.0
      %703 = vmatpush1.msra.mxu0 0.0
      %704 = vmatprep.subr.mxu0 0.0
      %705 = vmatpush1.msra.mxu0 0.0
      %706 = vmatprep.subr.mxu0 0.0
      %707 = vmatpush1.msra.mxu0 0.0
      %708 = vmatprep.subr.mxu0 0.0
      %709 = vmatpush1.msra.mxu0 0.0
      %710 = vmatprep.subr.mxu0 0.0
      %711 = vmatpush1.msra.mxu0 0.0
      %712 = vmatprep.subr.mxu0 0.0
      %713 = vmatpush1.msra.mxu0 0.0
      %714 = vmatprep.subr.mxu0 0.0
      %715 = vmatpush1.msra.mxu0 0.0
      %716 = vmatprep.subr.mxu0 0.0
      %717 = vmatpush1.msra.mxu0 0.0
      %718 = vmatprep.subr.mxu0 0.0
      %719 = vmatpush1.msra.mxu0 0.0
      %720 = vmatprep.subr.mxu0 0.0
      %721 = vmatpush1.msra.mxu0 0.0
      %722 = vmatprep.subr.mxu0 0.0
      %723 = vmatpush1.msra.mxu0 0.0
      %724 = vmatprep.subr.mxu0 0.0
      %725 = vmatpush1.msra.mxu0 0.0
      %726 = vmatprep.subr.mxu0 0.0
      %727 = vmatpush1.msra.mxu0 0.0
      %728 = vmatprep.subr.mxu0 0.0
      %729 = vmatpush1.msra.mxu0 0.0
      %730 = vmatprep.subr.mxu0 0.0
      %731 = vmatpush1.msra.mxu0 0.0
      %732 = vmatprep.subr.mxu0 0.0
      %733 = vmatpush1.msra.mxu0 0.0
      %734 = vmatprep.subr.mxu0 0.0
      %735 = vmatpush1.msra.mxu0 0.0
      %736 = vmatprep.subr.mxu0 0.0
      %737 = vmatpush1.msra.mxu0 0.0
      %738 = vmatprep.subr.mxu0 0.0
      %739 = vmatpush1.msra.mxu0 0.0
      %740 = vmatprep.subr.mxu0 0.0
      %741 = vmatpush1.msra.mxu0 0.0
      %742 = vmatprep.subr.mxu0 0.0
      %743 = vmatpush1.msra.mxu0 0.0
      %744 = vmatprep.subr.mxu0 0.0
      %745 = vmatpush1.msra.mxu0 0.0
      %746 = vmatprep.subr.mxu0 0.0
      %747 = vmatpush1.msra.mxu0 0.0
      %748 = vmatprep.subr.mxu0 0.0
      %749 = vmatpush1.msra.mxu0 0.0
      %750 = vmatprep.subr.mxu0 0.0
      %751 = vmatpush1.msra.mxu0 0.0
      %752 = vmatprep.subr.mxu0 0.0
      %753 = vmatpush1.msra.mxu0 0.0
      %754 = vmatprep.mubr.f32.mxu0 0.0
      %755 = vmatmul.mubr.f32.gmra.mrb[0].mxu0 %v592
      %v756 = vpop.f32.mrb[0].mxu0
      %v757 = vadd.f32 %v433, %v756
      %v758 = vpop.f32.mrb[0].mxu0
      %759 = vmatprep.mubr.f32.mxu0 0.0
      %760 = vmatmul.mubr.f32.gmra.mrb[0].mxu0 %v595
      %v761 = vpop.f32.mrb[0].mxu0
      %v762 = vadd.f32 %v438, %v761
      %v763 = vpop.f32.mrb[0].mxu0
      %764 = vmatprep.mubr.f32.mxu0 0.0
      %765 = vmatmul.mubr.f32.gmra.mrb[0].mxu0 %v598
      %v766 = vpop.f32.mrb[0].mxu0
      %v767 = vadd.f32 %v443, %v766
      %v768 = vpop.f32.mrb[0].mxu0
      %769 = vmatprep.mubr.f32.mxu0 0.0
      %770 = vmatmul.mubr.f32.gmra.mrb[0].mxu0 %v601
      %v771 = vpop.f32.mrb[0].mxu0
      %v772 = vadd.f32 %v448, %v771
      %v773 = vpop.f32.mrb[0].mxu0
      %774 = vmatprep.mubr.f32.mxu0 0.0
      %775 = vmatmul.mubr.f32.gmra.mrb[0].mxu0 %v604
      %v776 = vpop.f32.mrb[0].mxu0
      %v777 = vadd.f32 %v453, %v776
      %v778 = vpop.f32.mrb[0].mxu0
      %779 = vmatprep.mubr.f32.mxu0 0.0
      %780 = vmatmul.mubr.f32.gmra.mrb[0].mxu0 %v607
      %v781 = vpop.f32.mrb[0].mxu0
      %v782 = vadd.f32 %v458, %v781
      %v783 = vpop.f32.mrb[0].mxu0
      %784 = vmatprep.mubr.f32.mxu0 0.0
      %785 = vmatmul.mubr.f32.gmra.mrb[0].mxu0 %v610
      %v786 = vpop.f32.mrb[0].mxu0
      %v787 = vadd.f32 %v463, %v786
      %v788 = vpop.f32.mrb[0].mxu0
      %789 = vmatprep.mubr.f32.mxu0 0.0
      %790 = vmatmul.mubr.f32.gmra.mrb[0].mxu0 %v613
      %v791 = vpop.f32.mrb[0].mxu0
      %v792 = vadd.f32 %v468, %v791
      %v793 = vpop.f32.mrb[0].mxu0
      %794 = vmatprep.mubr.f32.mxu0 0.0
      %795 = vmatmul.mubr.f32.gmra.mrb[0].mxu0 %v616
      %v796 = vpop.f32.mrb[0].mxu0
      %v797 = vadd.f32 %v473, %v796
      %v798 = vpop.f32.mrb[0].mxu0
      %799 = vmatprep.mubr.f32.mxu0 0.0
      %800 = vmatmul.mubr.f32.gmra.mrb[0].mxu0 %v619
      %v801 = vpop.f32.mrb[0].mxu0
      %v802 = vadd.f32 %v478, %v801
      %v803 = vpop.f32.mrb[0].mxu0
      %804 = vmatprep.mubr.f32.mxu0 0.0
      %805 = vmatmul.mubr.f32.gmra.mrb[0].mxu0 %v622
      %v806 = vpop.f32.mrb[0].mxu0
      %v807 = vadd.f32 %v483, %v806
      %v808 = vpop.f32.mrb[0].mxu0
      %809 = vmatprep.mubr.f32.mxu0 0.0
      %810 = vmatmul.mubr.f32.gmra.mrb[0].mxu0 %v625
      %v811 = vpop.f32.mrb[0].mxu0
      %v812 = vadd.f32 %v488, %v811
      %v813 = vpop.f32.mrb[0].mxu0
      %814 = vmatprep.mubr.f32.mxu0 0.0
      %815 = vmatmul.mubr.f32.gmra.mrb[0].mxu0 %v628
      %v816 = vpop.f32.mrb[0].mxu0
      %v817 = vadd.f32 %v493, %v816
      %v818 = vpop.f32.mrb[0].mxu0
      %819 = vmatprep.mubr.f32.mxu0 0.0
      %820 = vmatmul.mubr.f32.gmra.mrb[0].mxu0 %v631
      %v821 = vpop.f32.mrb[0].mxu0
      %v822 = vadd.f32 %v498, %v821
      %v823 = vpop.f32.mrb[0].mxu0
      %824 = vmatprep.mubr.f32.mxu0 0.0
      %825 = vmatmul.mubr.f32.gmra.mrb[0].mxu0 %v634
      %v826 = vpop.f32.mrb[0].mxu0
      %v827 = vadd.f32 %v503, %v826
      %v828 = vpop.f32.mrb[0].mxu0
      %829 = vmatprep.mubr.f32.mxu0 0.0
      %830 = vmatmul.mubr.f32.gmra.mrb[0].mxu0 %v637
      %v831 = vpop.f32.mrb[0].mxu0
      %v832 = vadd.f32 %v508, %v831
      %v833 = vpop.f32.mrb[0].mxu0
      %834 = vmatprep.mubr.f32.mxu0 0.0
      %835 = vmatmul.mubr.f32.gmra.mrb[0].mxu0 %v640
      %v836 = vpop.f32.mrb[0].mxu0
      %v837 = vadd.f32 %v513, %v836
      %v838 = vpop.f32.mrb[0].mxu0
      %839 = vmatprep.mubr.f32.mxu0 0.0
      %840 = vmatmul.mubr.f32.gmra.mrb[0].mxu0 %v643
      %v841 = vpop.f32.mrb[0].mxu0
      %v842 = vadd.f32 %v518, %v841
      %v843 = vpop.f32.mrb[0].mxu0
      %844 = vmatprep.mubr.f32.mxu0 0.0
      %845 = vmatmul.mubr.f32.gmra.mrb[0].mxu0 %v646
      %v846 = vpop.f32.mrb[0].mxu0
      %v847 = vadd.f32 %v523, %v846
      %v848 = vpop.f32.mrb[0].mxu0
      %849 = vmatprep.mubr.f32.mxu0 0.0
      %850 = vmatmul.mubr.f32.gmra.mrb[0].mxu0 %v649
      %v851 = vpop.f32.mrb[0].mxu0
      %v852 = vadd.f32 %v528, %v851
      %v853 = vpop.f32.mrb[0].mxu0
      %854 = vmatprep.mubr.f32.mxu0 0.0
      %855 = vmatmul.mubr.f32.gmra.mrb[0].mxu0 %v652
      %v856 = vpop.f32.mrb[0].mxu0
      %v857 = vadd.f32 %v533, %v856
      %v858 = vpop.f32.mrb[0].mxu0
      %859 = vmatprep.mubr.f32.mxu0 0.0
      %860 = vmatmul.mubr.f32.gmra.mrb[0].mxu0 %v655
      %v861 = vpop.f32.mrb[0].mxu0
      %v862 = vadd.f32 %v538, %v861
      %v863 = vpop.f32.mrb[0].mxu0
      %864 = vmatprep.mubr.f32.mxu0 0.0
      %865 = vmatmul.mubr.f32.gmra.mrb[0].mxu0 %v658
      %v866 = vpop.f32.mrb[0].mxu0
      %v867 = vadd.f32 %v543, %v866
      %v868 = vpop.f32.mrb[0].mxu0
      %869 = vmatprep.mubr.f32.mxu0 0.0
      %870 = vmatmul.mubr.f32.gmra.mrb[0].mxu0 %v661
      %v871 = vpop.f32.mrb[0].mxu0
      %v872 = vadd.f32 %v548, %v871
      %v873 = vpop.f32.mrb[0].mxu0
      %874 = vmatprep.mubr.f32.mxu0 0.0
      %875 = vmatmul.mubr.f32.gmra.mrb[0].mxu0 %v664
      %v876 = vpop.f32.mrb[0].mxu0
      %v877 = vadd.f32 %v553, %v876
      %v878 = vpop.f32.mrb[0].mxu0
      %879 = vmatprep.mubr.f32.mxu0 0.0
      %880 = vmatmul.mubr.f32.gmra.mrb[0].mxu0 %v667
      %v881 = vpop.f32.mrb[0].mxu0
      %v882 = vadd.f32 %v558, %v881
      %v883 = vpop.f32.mrb[0].mxu0
      %884 = vmatprep.mubr.f32.mxu0 0.0
      %885 = vmatmul.mubr.f32.gmra.mrb[0].mxu0 %v670
      %v886 = vpop.f32.mrb[0].mxu0
      %v887 = vadd.f32 %v563, %v886
      %v888 = vpop.f32.mrb[0].mxu0
      %889 = vmatprep.mubr.f32.mxu0 0.0
      %890 = vmatmul.mubr.f32.gmra.mrb[0].mxu0 %v673
      %v891 = vpop.f32.mrb[0].mxu0
      %v892 = vadd.f32 %v568, %v891
      %v893 = vpop.f32.mrb[0].mxu0
      %894 = vmatprep.mubr.f32.mxu0 0.0
      %895 = vmatmul.mubr.f32.gmra.mrb[0].mxu0 %v676
      %v896 = vpop.f32.mrb[0].mxu0
      %v897 = vadd.f32 %v573, %v896
      %v898 = vpop.f32.mrb[0].mxu0
      %899 = vmatprep.mubr.f32.mxu0 0.0
      %900 = vmatmul.mubr.f32.gmra.mrb[0].mxu0 %v679
      %v901 = vpop.f32.mrb[0].mxu0
      %v902 = vadd.f32 %v578, %v901
      %v903 = vpop.f32.mrb[0].mxu0
      %904 = vmatprep.mubr.f32.mxu0 0.0
      %905 = vmatmul.mubr.f32.gmra.mrb[0].mxu0 %v682
      %v906 = vpop.f32.mrb[0].mxu0
      %v907 = vadd.f32 %v583, %v906
      %v908 = vpop.f32.mrb[0].mxu0
      %909 = vmatprep.mubr.f32.mxu0 0.0
      %910 = vmatmul.mubr.f32.gmra.mrb[0].mxu0 %v685
      %v911 = vpop.f32.mrb[0].mxu0
      %v912 = vadd.f32 %v588, %v911
      %v913 = vpop.f32.mrb[0].mxu0
      %914 = vdwg.mxu0
      %v915 = vld [vmem:[%s192 + $0x2] sm:$0xff]
      %v916 = vld [vmem:[%s192 + $0xa] sm:$0xff]
      %v917 = vld [vmem:[%s192 + $0x1a] sm:$0xff]
      %v918 = vld [vmem:[%s192 + $0x22] sm:$0xff]
      %v919 = vld [vmem:[%s192 + $0x32] sm:$0xff]
      %v920 = vld [vmem:[%s192 + $0x3a] sm:$0xff]
      %v921 = vld [vmem:[%s192 + $0x4a] sm:$0xff]
      %v922 = vld [vmem:[%s192 + $0x52] sm:$0xff]
      %v923 = vld [vmem:[%s192 + $0x62] sm:$0xff]
      %v924 = vld [vmem:[%s192 + $0x6a] sm:$0xff]
      %v925 = vld [vmem:[%s192 + $0x7a] sm:$0xff]
      %v926 = vld [vmem:[%s192 + $0x82] sm:$0xff]
      %v927 = vld [vmem:[%s192 + $0x92] sm:$0xff]
      %v928 = vld [vmem:[%s192 + $0x9a] sm:$0xff]
      %v929 = vld [vmem:[%s192 + $0xaa] sm:$0xff]
      %v930 = vld [vmem:[%s192 + $0xb2] sm:$0xff]
      %v931 = vld [vmem:[%s192 + $0xc2] sm:$0xff]
      %v932 = vld [vmem:[%s192 + $0xca] sm:$0xff]
      %v933 = vld [vmem:[%s192 + $0xda] sm:$0xff]
      %v934 = vld [vmem:[%s192 + $0xe2] sm:$0xff]
      %v935 = vld [vmem:[%s192 + $0xf2] sm:$0xff]
      %v936 = vld [vmem:[%s192 + $0xfa] sm:$0xff]
      %v937 = vld [vmem:[%s192 + $0x10a] sm:$0xff]
      %v938 = vld [vmem:[%s192 + $0x112] sm:$0xff]
      %v939 = vld [vmem:[%s192 + $0x122] sm:$0xff]
      %v940 = vld [vmem:[%s192 + $0x12a] sm:$0xff]
      %v941 = vld [vmem:[%s192 + $0x13a] sm:$0xff]
      %v942 = vld [vmem:[%s192 + $0x142] sm:$0xff]
      %v943 = vld [vmem:[%s192 + $0x152] sm:$0xff]
      %v944 = vld [vmem:[%s192 + $0x15a] sm:$0xff]
      %v945 = vld [vmem:[%s192 + $0x16a] sm:$0xff]
      %v946 = vld [vmem:[%s192 + $0x172] sm:$0xff]
      %s947 = scalar_lea.vmem %s1, 8
      %v948 = vld [vmem:[%s947] sm:$0xf]
      %v950 = vsel %vm265, %v915, 0
      %v953 = vsel %vm265, %v916, 0
      %v956 = vsel %vm265, %v917, 0
      %v959 = vsel %vm265, %v918, 0
      %v962 = vsel %vm265, %v919, 0
      %v965 = vsel %vm265, %v920, 0
      %v968 = vsel %vm265, %v921, 0
      %v971 = vsel %vm265, %v922, 0
      %v974 = vsel %vm265, %v923, 0
      %v977 = vsel %vm265, %v924, 0
      %v980 = vsel %vm265, %v925, 0
      %v983 = vsel %vm265, %v926, 0
      %v986 = vsel %vm265, %v927, 0
      %v989 = vsel %vm265, %v928, 0
      %v992 = vsel %vm265, %v929, 0
      %v995 = vsel %vm265, %v930, 0
      %v998 = vsel %vm265, %v931, 0
      %v1001 = vsel %vm265, %v932, 0
      %v1004 = vsel %vm265, %v933, 0
      %v1007 = vsel %vm265, %v934, 0
      %v1010 = vsel %vm265, %v935, 0
      %v1013 = vsel %vm265, %v936, 0
      %v1016 = vsel %vm265, %v937, 0
      %v1019 = vsel %vm265, %v938, 0
      %v1022 = vsel %vm265, %v939, 0
      %v1025 = vsel %vm265, %v940, 0
      %v1028 = vsel %vm265, %v941, 0
      %v1031 = vsel %vm265, %v942, 0
      %v1034 = vsel %vm265, %v943, 0
      %v1037 = vsel %vm265, %v944, 0
      %v1040 = vsel %vm265, %v945, 0
      %v1043 = vsel %vm265, %v946, 0
      %v1046 = vsel %vm362, %v948, 0
      %1048 = vmatprep.subr.mxu0 0.0
      %1049 = vmatpush1.msra.mxu0 %v1046
      %1050 = vmatprep.subr.mxu0 0.0
      %1051 = vmatpush1.msra.mxu0 0.0
      %1052 = vmatprep.subr.mxu0 0.0
      %1053 = vmatpush1.msra.mxu0 0.0
      %1054 = vmatprep.subr.mxu0 0.0
      %1055 = vmatpush1.msra.mxu0 0.0
      %1056 = vmatprep.subr.mxu0 0.0
      %1057 = vmatpush1.msra.mxu0 0.0
      %1058 = vmatprep.subr.mxu0 0.0
      %1059 = vmatpush1.msra.mxu0 0.0
      %1060 = vmatprep.subr.mxu0 0.0
      %1061 = vmatpush1.msra.mxu0 0.0
      %1062 = vmatprep.subr.mxu0 0.0
      %1063 = vmatpush1.msra.mxu0 0.0
      %1064 = vmatprep.subr.mxu0 0.0
      %1065 = vmatpush1.msra.mxu0 0.0
      %1066 = vmatprep.subr.mxu0 0.0
      %1067 = vmatpush1.msra.mxu0 0.0
      %1068 = vmatprep.subr.mxu0 0.0
      %1069 = vmatpush1.msra.mxu0 0.0
      %1070 = vmatprep.subr.mxu0 0.0
      %1071 = vmatpush1.msra.mxu0 0.0
      %1072 = vmatprep.subr.mxu0 0.0
      %1073 = vmatpush1.msra.mxu0 0.0
      %1074 = vmatprep.subr.mxu0 0.0
      %1075 = vmatpush1.msra.mxu0 0.0
      %1076 = vmatprep.subr.mxu0 0.0
      %1077 = vmatpush1.msra.mxu0 0.0
      %1078 = vmatprep.subr.mxu0 0.0
      %1079 = vmatpush1.msra.mxu0 0.0
      %1080 = vmatprep.subr.mxu0 0.0
      %1081 = vmatpush1.msra.mxu0 0.0
      %1082 = vmatprep.subr.mxu0 0.0
      %1083 = vmatpush1.msra.mxu0 0.0
      %1084 = vmatprep.subr.mxu0 0.0
      %1085 = vmatpush1.msra.mxu0 0.0
      %1086 = vmatprep.subr.mxu0 0.0
      %1087 = vmatpush1.msra.mxu0 0.0
      %1088 = vmatprep.subr.mxu0 0.0
      %1089 = vmatpush1.msra.mxu0 0.0
      %1090 = vmatprep.subr.mxu0 0.0
      %1091 = vmatpush1.msra.mxu0 0.0
      %1092 = vmatprep.subr.mxu0 0.0
      %1093 = vmatpush1.msra.mxu0 0.0
      %1094 = vmatprep.subr.mxu0 0.0
      %1095 = vmatpush1.msra.mxu0 0.0
      %1096 = vmatprep.subr.mxu0 0.0
      %1097 = vmatpush1.msra.mxu0 0.0
      %1098 = vmatprep.subr.mxu0 0.0
      %1099 = vmatpush1.msra.mxu0 0.0
      %1100 = vmatprep.subr.mxu0 0.0
      %1101 = vmatpush1.msra.mxu0 0.0
      %1102 = vmatprep.subr.mxu0 0.0
      %1103 = vmatpush1.msra.mxu0 0.0
      %1104 = vmatprep.subr.mxu0 0.0
      %1105 = vmatpush1.msra.mxu0 0.0
      %1106 = vmatprep.subr.mxu0 0.0
      %1107 = vmatpush1.msra.mxu0 0.0
      %1108 = vmatprep.subr.mxu0 0.0
      %1109 = vmatpush1.msra.mxu0 0.0
      %1110 = vmatprep.subr.mxu0 0.0
      %1111 = vmatpush1.msra.mxu0 0.0
      %1112 = vmatprep.mubr.f32.mxu0 0.0
      %1113 = vmatmul.mubr.f32.gmra.mrb[0].mxu0 %v950
      %v1114 = vpop.f32.mrb[0].mxu0
      %v1115 = vadd.f32 0.0, %v1114
      %v1116 = vpop.f32.mrb[0].mxu0
      %1117 = vmatprep.mubr.f32.mxu0 0.0
      %1118 = vmatmul.mubr.f32.gmra.mrb[0].mxu0 %v953
      %v1119 = vpop.f32.mrb[0].mxu0
      %v1120 = vadd.f32 0.0, %v1119
      %v1121 = vpop.f32.mrb[0].mxu0
      %1122 = vmatprep.mubr.f32.mxu0 0.0
      %1123 = vmatmul.mubr.f32.gmra.mrb[0].mxu0 %v956
      %v1124 = vpop.f32.mrb[0].mxu0
      %v1125 = vadd.f32 0.0, %v1124
      %v1126 = vpop.f32.mrb[0].mxu0
      %1127 = vmatprep.mubr.f32.mxu0 0.0
      %1128 = vmatmul.mubr.f32.gmra.mrb[0].mxu0 %v959
      %v1129 = vpop.f32.mrb[0].mxu0
      %v1130 = vadd.f32 0.0, %v1129
      %v1131 = vpop.f32.mrb[0].mxu0
      %1132 = vmatprep.mubr.f32.mxu0 0.0
      %1133 = vmatmul.mubr.f32.gmra.mrb[0].mxu0 %v962
      %v1134 = vpop.f32.mrb[0].mxu0
      %v1135 = vadd.f32 0.0, %v1134
      %v1136 = vpop.f32.mrb[0].mxu0
      %1137 = vmatprep.mubr.f32.mxu0 0.0
      %1138 = vmatmul.mubr.f32.gmra.mrb[0].mxu0 %v965
      %v1139 = vpop.f32.mrb[0].mxu0
      %v1140 = vadd.f32 0.0, %v1139
      %v1141 = vpop.f32.mrb[0].mxu0
      %1142 = vmatprep.mubr.f32.mxu0 0.0
      %1143 = vmatmul.mubr.f32.gmra.mrb[0].mxu0 %v968
      %v1144 = vpop.f32.mrb[0].mxu0
      %v1145 = vadd.f32 0.0, %v1144
      %v1146 = vpop.f32.mrb[0].mxu0
      %1147 = vmatprep.mubr.f32.mxu0 0.0
      %1148 = vmatmul.mubr.f32.gmra.mrb[0].mxu0 %v971
      %v1149 = vpop.f32.mrb[0].mxu0
      %v1150 = vadd.f32 0.0, %v1149
      %v1151 = vpop.f32.mrb[0].mxu0
      %1152 = vmatprep.mubr.f32.mxu0 0.0
      %1153 = vmatmul.mubr.f32.gmra.mrb[0].mxu0 %v974
      %v1154 = vpop.f32.mrb[0].mxu0
      %v1155 = vadd.f32 0.0, %v1154
      %v1156 = vpop.f32.mrb[0].mxu0
      %1157 = vmatprep.mubr.f32.mxu0 0.0
      %1158 = vmatmul.mubr.f32.gmra.mrb[0].mxu0 %v977
      %v1159 = vpop.f32.mrb[0].mxu0
      %v1160 = vadd.f32 0.0, %v1159
      %v1161 = vpop.f32.mrb[0].mxu0
      %1162 = vmatprep.mubr.f32.mxu0 0.0
      %1163 = vmatmul.mubr.f32.gmra.mrb[0].mxu0 %v980
      %v1164 = vpop.f32.mrb[0].mxu0
      %v1165 = vadd.f32 0.0, %v1164
      %v1166 = vpop.f32.mrb[0].mxu0
      %1167 = vmatprep.mubr.f32.mxu0 0.0
      %1168 = vmatmul.mubr.f32.gmra.mrb[0].mxu0 %v983
      %v1169 = vpop.f32.mrb[0].mxu0
      %v1170 = vadd.f32 0.0, %v1169
      %v1171 = vpop.f32.mrb[0].mxu0
      %1172 = vmatprep.mubr.f32.mxu0 0.0
      %1173 = vmatmul.mubr.f32.gmra.mrb[0].mxu0 %v986
      %v1174 = vpop.f32.mrb[0].mxu0
      %v1175 = vadd.f32 0.0, %v1174
      %v1176 = vpop.f32.mrb[0].mxu0
      %1177 = vmatprep.mubr.f32.mxu0 0.0
      %1178 = vmatmul.mubr.f32.gmra.mrb[0].mxu0 %v989
      %v1179 = vpop.f32.mrb[0].mxu0
      %v1180 = vadd.f32 0.0, %v1179
      %v1181 = vpop.f32.mrb[0].mxu0
      %1182 = vmatprep.mubr.f32.mxu0 0.0
      %1183 = vmatmul.mubr.f32.gmra.mrb[0].mxu0 %v992
      %v1184 = vpop.f32.mrb[0].mxu0
      %v1185 = vadd.f32 0.0, %v1184
      %v1186 = vpop.f32.mrb[0].mxu0
      %1187 = vmatprep.mubr.f32.mxu0 0.0
      %1188 = vmatmul.mubr.f32.gmra.mrb[0].mxu0 %v995
      %v1189 = vpop.f32.mrb[0].mxu0
      %v1190 = vadd.f32 0.0, %v1189
      %v1191 = vpop.f32.mrb[0].mxu0
      %1192 = vmatprep.mubr.f32.mxu0 0.0
      %1193 = vmatmul.mubr.f32.gmra.mrb[0].mxu0 %v998
      %v1194 = vpop.f32.mrb[0].mxu0
      %v1195 = vadd.f32 0.0, %v1194
      %v1196 = vpop.f32.mrb[0].mxu0
      %1197 = vmatprep.mubr.f32.mxu0 0.0
      %1198 = vmatmul.mubr.f32.gmra.mrb[0].mxu0 %v1001
      %v1199 = vpop.f32.mrb[0].mxu0
      %v1200 = vadd.f32 0.0, %v1199
      %v1201 = vpop.f32.mrb[0].mxu0
      %1202 = vmatprep.mubr.f32.mxu0 0.0
      %1203 = vmatmul.mubr.f32.gmra.mrb[0].mxu0 %v1004
      %v1204 = vpop.f32.mrb[0].mxu0
      %v1205 = vadd.f32 0.0, %v1204
      %v1206 = vpop.f32.mrb[0].mxu0
      %1207 = vmatprep.mubr.f32.mxu0 0.0
      %1208 = vmatmul.mubr.f32.gmra.mrb[0].mxu0 %v1007
      %v1209 = vpop.f32.mrb[0].mxu0
      %v1210 = vadd.f32 0.0, %v1209
      %v1211 = vpop.f32.mrb[0].mxu0
      %1212 = vmatprep.mubr.f32.mxu0 0.0
      %1213 = vmatmul.mubr.f32.gmra.mrb[0].mxu0 %v1010
      %v1214 = vpop.f32.mrb[0].mxu0
      %v1215 = vadd.f32 0.0, %v1214
      %v1216 = vpop.f32.mrb[0].mxu0
      %1217 = vmatprep.mubr.f32.mxu0 0.0
      %1218 = vmatmul.mubr.f32.gmra.mrb[0].mxu0 %v1013
      %v1219 = vpop.f32.mrb[0].mxu0
      %v1220 = vadd.f32 0.0, %v1219
      %v1221 = vpop.f32.mrb[0].mxu0
      %1222 = vmatprep.mubr.f32.mxu0 0.0
      %1223 = vmatmul.mubr.f32.gmra.mrb[0].mxu0 %v1016
      %v1224 = vpop.f32.mrb[0].mxu0
      %v1225 = vadd.f32 0.0, %v1224
      %v1226 = vpop.f32.mrb[0].mxu0
      %1227 = vmatprep.mubr.f32.mxu0 0.0
      %1228 = vmatmul.mubr.f32.gmra.mrb[0].mxu0 %v1019
      %v1229 = vpop.f32.mrb[0].mxu0
      %v1230 = vadd.f32 0.0, %v1229
      %v1231 = vpop.f32.mrb[0].mxu0
      %1232 = vmatprep.mubr.f32.mxu0 0.0
      %1233 = vmatmul.mubr.f32.gmra.mrb[0].mxu0 %v1022
      %v1234 = vpop.f32.mrb[0].mxu0
      %v1235 = vadd.f32 0.0, %v1234
      %v1236 = vpop.f32.mrb[0].mxu0
      %1237 = vmatprep.mubr.f32.mxu0 0.0
      %1238 = vmatmul.mubr.f32.gmra.mrb[0].mxu0 %v1025
      %v1239 = vpop.f32.mrb[0].mxu0
      %v1240 = vadd.f32 0.0, %v1239
      %v1241 = vpop.f32.mrb[0].mxu0
      %1242 = vmatprep.mubr.f32.mxu0 0.0
      %1243 = vmatmul.mubr.f32.gmra.mrb[0].mxu0 %v1028
      %v1244 = vpop.f32.mrb[0].mxu0
      %v1245 = vadd.f32 0.0, %v1244
      %v1246 = vpop.f32.mrb[0].mxu0
      %1247 = vmatprep.mubr.f32.mxu0 0.0
      %1248 = vmatmul.mubr.f32.gmra.mrb[0].mxu0 %v1031
      %v1249 = vpop.f32.mrb[0].mxu0
      %v1250 = vadd.f32 0.0, %v1249
      %v1251 = vpop.f32.mrb[0].mxu0
      %1252 = vmatprep.mubr.f32.mxu0 0.0
      %1253 = vmatmul.mubr.f32.gmra.mrb[0].mxu0 %v1034
      %v1254 = vpop.f32.mrb[0].mxu0
      %v1255 = vadd.f32 0.0, %v1254
      %v1256 = vpop.f32.mrb[0].mxu0
      %1257 = vmatprep.mubr.f32.mxu0 0.0
      %1258 = vmatmul.mubr.f32.gmra.mrb[0].mxu0 %v1037
      %v1259 = vpop.f32.mrb[0].mxu0
      %v1260 = vadd.f32 0.0, %v1259
      %v1261 = vpop.f32.mrb[0].mxu0
      %1262 = vmatprep.mubr.f32.mxu0 0.0
      %1263 = vmatmul.mubr.f32.gmra.mrb[0].mxu0 %v1040
      %v1264 = vpop.f32.mrb[0].mxu0
      %v1265 = vadd.f32 0.0, %v1264
      %v1266 = vpop.f32.mrb[0].mxu0
      %1267 = vmatprep.mubr.f32.mxu0 0.0
      %1268 = vmatmul.mubr.f32.gmra.mrb[0].mxu0 %v1043
      %v1269 = vpop.f32.mrb[0].mxu0
      %v1270 = vadd.f32 0.0, %v1269
      %v1271 = vpop.f32.mrb[0].mxu0
      %1272 = vdwg.mxu0
      %v1273 = vadd.f32 %v757, %v1115
      %v1274 = vadd.f32 %v762, %v1120
      %v1275 = vadd.f32 %v767, %v1125
      %v1276 = vadd.f32 %v772, %v1130
      %v1277 = vadd.f32 %v777, %v1135
      %v1278 = vadd.f32 %v782, %v1140
      %v1279 = vadd.f32 %v787, %v1145
      %v1280 = vadd.f32 %v792, %v1150
      %v1281 = vadd.f32 %v797, %v1155
      %v1282 = vadd.f32 %v802, %v1160
      %v1283 = vadd.f32 %v807, %v1165
      %v1284 = vadd.f32 %v812, %v1170
      %v1285 = vadd.f32 %v817, %v1175
      %v1286 = vadd.f32 %v822, %v1180
      %v1287 = vadd.f32 %v827, %v1185
      %v1288 = vadd.f32 %v832, %v1190
      %v1289 = vadd.f32 %v837, %v1195
      %v1290 = vadd.f32 %v842, %v1200
      %v1291 = vadd.f32 %v847, %v1205
      %v1292 = vadd.f32 %v852, %v1210
      %v1293 = vadd.f32 %v857, %v1215
      %v1294 = vadd.f32 %v862, %v1220
      %v1295 = vadd.f32 %v867, %v1225
      %v1296 = vadd.f32 %v872, %v1230
      %v1297 = vadd.f32 %v877, %v1235
      %v1298 = vadd.f32 %v882, %v1240
      %v1299 = vadd.f32 %v887, %v1245
      %v1300 = vadd.f32 %v892, %v1250
      %v1301 = vadd.f32 %v897, %v1255
      %v1302 = vadd.f32 %v902, %v1260
      %v1303 = vadd.f32 %v907, %v1265
      %v1304 = vadd.f32 %v912, %v1270
      %s1305 = scalar_lea.vmem %s192, 24
      %v1306 = vld [vmem:[%s1305] sm:$0xff]
      %v1307 = vld [vmem:[%s1305 + $0x8] sm:$0xff]
      %v1308 = vld [vmem:[%s1305 + $0x18] sm:$0xff]
      %v1309 = vld [vmem:[%s1305 + $0x20] sm:$0xff]
      %v1310 = vld [vmem:[%s1305 + $0x30] sm:$0xff]
      %v1311 = vld [vmem:[%s1305 + $0x38] sm:$0xff]
      %v1312 = vld [vmem:[%s1305 + $0x48] sm:$0xff]
      %v1313 = vld [vmem:[%s1305 + $0x50] sm:$0xff]
      %v1314 = vld [vmem:[%s1305 + $0x60] sm:$0xff]
      %v1315 = vld [vmem:[%s1305 + $0x68] sm:$0xff]
      %v1316 = vld [vmem:[%s1305 + $0x78] sm:$0xff]
      %v1317 = vld [vmem:[%s1305 + $0x80] sm:$0xff]
      %v1318 = vld [vmem:[%s1305 + $0x90] sm:$0xff]
      %v1319 = vld [vmem:[%s1305 + $0x98] sm:$0xff]
      %v1320 = vld [vmem:[%s1305 + $0xa8] sm:$0xff]
      %v1321 = vld [vmem:[%s1305 + $0xb0] sm:$0xff]
      %v1322 = vld [vmem:[%s1305 + $0xc0] sm:$0xff]
      %v1323 = vld [vmem:[%s1305 + $0xc8] sm:$0xff]
      %v1324 = vld [vmem:[%s1305 + $0xd8] sm:$0xff]
      %v1325 = vld [vmem:[%s1305 + $0xe0] sm:$0xff]
      %v1326 = vld [vmem:[%s1305 + $0xf0] sm:$0xff]
      %v1327 = vld [vmem:[%s1305 + $0xf8] sm:$0xff]
      %v1328 = vld [vmem:[%s1305 + $0x108] sm:$0xff]
      %v1329 = vld [vmem:[%s1305 + $0x110] sm:$0xff]
      %v1330 = vld [vmem:[%s1305 + $0x120] sm:$0xff]
      %v1331 = vld [vmem:[%s1305 + $0x128] sm:$0xff]
      %v1332 = vld [vmem:[%s1305 + $0x138] sm:$0xff]
      %v1333 = vld [vmem:[%s1305 + $0x140] sm:$0xff]
      %v1334 = vld [vmem:[%s1305 + $0x150] sm:$0xff]
      %v1335 = vld [vmem:[%s1305 + $0x158] sm:$0xff]
      %v1336 = vld [vmem:[%s1305 + $0x168] sm:$0xff]
      %v1337 = vld [vmem:[%s1305 + $0x170] sm:$0xff]
      %s1338 = scalar_lea.vmem %s1, 12
      %v1339 = vld [vmem:[%s1338] sm:$0xf]
      %v1341 = vsel %vm265, %v1306, 0
      %v1344 = vsel %vm265, %v1307, 0
      %v1347 = vsel %vm265, %v1308, 0
      %v1350 = vsel %vm265, %v1309, 0
      %v1353 = vsel %vm265, %v1310, 0
      %v1356 = vsel %vm265, %v1311, 0
      %v1359 = vsel %vm265, %v1312, 0
      %v1362 = vsel %vm265, %v1313, 0
      %v1365 = vsel %vm265, %v1314, 0
      %v1368 = vsel %vm265, %v1315, 0
      %v1371 = vsel %vm265, %v1316, 0
      %v1374 = vsel %vm265, %v1317, 0
      %v1377 = vsel %vm265, %v1318, 0
      %v1380 = vsel %vm265, %v1319, 0
      %v1383 = vsel %vm265, %v1320, 0
      %v1386 = vsel %vm265, %v1321, 0
      %v1389 = vsel %vm265, %v1322, 0
      %v1392 = vsel %vm265, %v1323, 0
      %v1395 = vsel %vm265, %v1324, 0
      %v1398 = vsel %vm265, %v1325, 0
      %v1401 = vsel %vm265, %v1326, 0
      %v1404 = vsel %vm265, %v1327, 0
      %v1407 = vsel %vm265, %v1328, 0
      %v1410 = vsel %vm265, %v1329, 0
      %v1413 = vsel %vm265, %v1330, 0
      %v1416 = vsel %vm265, %v1331, 0
      %v1419 = vsel %vm265, %v1332, 0
      %v1422 = vsel %vm265, %v1333, 0
      %v1425 = vsel %vm265, %v1334, 0
      %v1428 = vsel %vm265, %v1335, 0
      %v1431 = vsel %vm265, %v1336, 0
      %v1434 = vsel %vm265, %v1337, 0
      %v1437 = vsel %vm362, %v1339, 0
      %1439 = vmatprep.subr.mxu0 0.0
      %1440 = vmatpush1.msra.mxu0 %v1437
      %1441 = vmatprep.subr.mxu0 0.0
      %1442 = vmatpush1.msra.mxu0 0.0
      %1443 = vmatprep.subr.mxu0 0.0
      %1444 = vmatpush1.msra.mxu0 0.0
      %1445 = vmatprep.subr.mxu0 0.0
      %1446 = vmatpush1.msra.mxu0 0.0
      %1447 = vmatprep.subr.mxu0 0.0
      %1448 = vmatpush1.msra.mxu0 0.0
      %1449 = vmatprep.subr.mxu0 0.0
      %1450 = vmatpush1.msra.mxu0 0.0
      %1451 = vmatprep.subr.mxu0 0.0
      %1452 = vmatpush1.msra.mxu0 0.0
      %1453 = vmatprep.subr.mxu0 0.0
      %1454 = vmatpush1.msra.mxu0 0.0
      %1455 = vmatprep.subr.mxu0 0.0
      %1456 = vmatpush1.msra.mxu0 0.0
      %1457 = vmatprep.subr.mxu0 0.0
      %1458 = vmatpush1.msra.mxu0 0.0
      %1459 = vmatprep.subr.mxu0 0.0
      %1460 = vmatpush1.msra.mxu0 0.0
      %1461 = vmatprep.subr.mxu0 0.0
      %1462 = vmatpush1.msra.mxu0 0.0
      %1463 = vmatprep.subr.mxu0 0.0
      %1464 = vmatpush1.msra.mxu0 0.0
      %1465 = vmatprep.subr.mxu0 0.0
      %1466 = vmatpush1.msra.mxu0 0.0
      %1467 = vmatprep.subr.mxu0 0.0
      %1468 = vmatpush1.msra.mxu0 0.0
      %1469 = vmatprep.subr.mxu0 0.0
      %1470 = vmatpush1.msra.mxu0 0.0
      %1471 = vmatprep.subr.mxu0 0.0
      %1472 = vmatpush1.msra.mxu0 0.0
      %1473 = vmatprep.subr.mxu0 0.0
      %1474 = vmatpush1.msra.mxu0 0.0
      %1475 = vmatprep.subr.mxu0 0.0
      %1476 = vmatpush1.msra.mxu0 0.0
      %1477 = vmatprep.subr.mxu0 0.0
      %1478 = vmatpush1.msra.mxu0 0.0
      %1479 = vmatprep.subr.mxu0 0.0
      %1480 = vmatpush1.msra.mxu0 0.0
      %1481 = vmatprep.subr.mxu0 0.0
      %1482 = vmatpush1.msra.mxu0 0.0
      %1483 = vmatprep.subr.mxu0 0.0
      %1484 = vmatpush1.msra.mxu0 0.0
      %1485 = vmatprep.subr.mxu0 0.0
      %1486 = vmatpush1.msra.mxu0 0.0
      %1487 = vmatprep.subr.mxu0 0.0
      %1488 = vmatpush1.msra.mxu0 0.0
      %1489 = vmatprep.subr.mxu0 0.0
      %1490 = vmatpush1.msra.mxu0 0.0
      %1491 = vmatprep.subr.mxu0 0.0
      %1492 = vmatpush1.msra.mxu0 0.0
      %1493 = vmatprep.subr.mxu0 0.0
      %1494 = vmatpush1.msra.mxu0 0.0
      %1495 = vmatprep.subr.mxu0 0.0
      %1496 = vmatpush1.msra.mxu0 0.0
      %1497 = vmatprep.subr.mxu0 0.0
      %1498 = vmatpush1.msra.mxu0 0.0
      %1499 = vmatprep.subr.mxu0 0.0
      %1500 = vmatpush1.msra.mxu0 0.0
      %1501 = vmatprep.subr.mxu0 0.0
      %1502 = vmatpush1.msra.mxu0 0.0
      %1503 = vmatprep.mubr.f32.mxu0 0.0
      %1504 = vmatmul.mubr.f32.gmra.mrb[0].mxu0 %v1341
      %v1505 = vpop.f32.mrb[0].mxu0
      %v1506 = vadd.f32 0.0, %v1505
      %v1507 = vpop.f32.mrb[0].mxu0
      %1508 = vmatprep.mubr.f32.mxu0 0.0
      %1509 = vmatmul.mubr.f32.gmra.mrb[0].mxu0 %v1344
      %v1510 = vpop.f32.mrb[0].mxu0
      %v1511 = vadd.f32 0.0, %v1510
      %v1512 = vpop.f32.mrb[0].mxu0
      %1513 = vmatprep.mubr.f32.mxu0 0.0
      %1514 = vmatmul.mubr.f32.gmra.mrb[0].mxu0 %v1347
      %v1515 = vpop.f32.mrb[0].mxu0
      %v1516 = vadd.f32 0.0, %v1515
      %v1517 = vpop.f32.mrb[0].mxu0
      %1518 = vmatprep.mubr.f32.mxu0 0.0
      %1519 = vmatmul.mubr.f32.gmra.mrb[0].mxu0 %v1350
      %v1520 = vpop.f32.mrb[0].mxu0
      %v1521 = vadd.f32 0.0, %v1520
      %v1522 = vpop.f32.mrb[0].mxu0
      %1523 = vmatprep.mubr.f32.mxu0 0.0
      %1524 = vmatmul.mubr.f32.gmra.mrb[0].mxu0 %v1353
      %v1525 = vpop.f32.mrb[0].mxu0
      %v1526 = vadd.f32 0.0, %v1525
      %v1527 = vpop.f32.mrb[0].mxu0
      %1528 = vmatprep.mubr.f32.mxu0 0.0
      %1529 = vmatmul.mubr.f32.gmra.mrb[0].mxu0 %v1356
      %v1530 = vpop.f32.mrb[0].mxu0
      %v1531 = vadd.f32 0.0, %v1530
      %v1532 = vpop.f32.mrb[0].mxu0
      %1533 = vmatprep.mubr.f32.mxu0 0.0
      %1534 = vmatmul.mubr.f32.gmra.mrb[0].mxu0 %v1359
      %v1535 = vpop.f32.mrb[0].mxu0
      %v1536 = vadd.f32 0.0, %v1535
      %v1537 = vpop.f32.mrb[0].mxu0
      %1538 = vmatprep.mubr.f32.mxu0 0.0
      %1539 = vmatmul.mubr.f32.gmra.mrb[0].mxu0 %v1362
      %v1540 = vpop.f32.mrb[0].mxu0
      %v1541 = vadd.f32 0.0, %v1540
      %v1542 = vpop.f32.mrb[0].mxu0
      %1543 = vmatprep.mubr.f32.mxu0 0.0
      %1544 = vmatmul.mubr.f32.gmra.mrb[0].mxu0 %v1365
      %v1545 = vpop.f32.mrb[0].mxu0
      %v1546 = vadd.f32 0.0, %v1545
      %v1547 = vpop.f32.mrb[0].mxu0
      %1548 = vmatprep.mubr.f32.mxu0 0.0
      %1549 = vmatmul.mubr.f32.gmra.mrb[0].mxu0 %v1368
      %v1550 = vpop.f32.mrb[0].mxu0
      %v1551 = vadd.f32 0.0, %v1550
      %v1552 = vpop.f32.mrb[0].mxu0
      %1553 = vmatprep.mubr.f32.mxu0 0.0
      %1554 = vmatmul.mubr.f32.gmra.mrb[0].mxu0 %v1371
      %v1555 = vpop.f32.mrb[0].mxu0
      %v1556 = vadd.f32 0.0, %v1555
      %v1557 = vpop.f32.mrb[0].mxu0
      %1558 = vmatprep.mubr.f32.mxu0 0.0
      %1559 = vmatmul.mubr.f32.gmra.mrb[0].mxu0 %v1374
      %v1560 = vpop.f32.mrb[0].mxu0
      %v1561 = vadd.f32 0.0, %v1560
      %v1562 = vpop.f32.mrb[0].mxu0
      %1563 = vmatprep.mubr.f32.mxu0 0.0
      %1564 = vmatmul.mubr.f32.gmra.mrb[0].mxu0 %v1377
      %v1565 = vpop.f32.mrb[0].mxu0
      %v1566 = vadd.f32 0.0, %v1565
      %v1567 = vpop.f32.mrb[0].mxu0
      %1568 = vmatprep.mubr.f32.mxu0 0.0
      %1569 = vmatmul.mubr.f32.gmra.mrb[0].mxu0 %v1380
      %v1570 = vpop.f32.mrb[0].mxu0
      %v1571 = vadd.f32 0.0, %v1570
      %v1572 = vpop.f32.mrb[0].mxu0
      %1573 = vmatprep.mubr.f32.mxu0 0.0
      %1574 = vmatmul.mubr.f32.gmra.mrb[0].mxu0 %v1383
      %v1575 = vpop.f32.mrb[0].mxu0
      %v1576 = vadd.f32 0.0, %v1575
      %v1577 = vpop.f32.mrb[0].mxu0
      %1578 = vmatprep.mubr.f32.mxu0 0.0
      %1579 = vmatmul.mubr.f32.gmra.mrb[0].mxu0 %v1386
      %v1580 = vpop.f32.mrb[0].mxu0
      %v1581 = vadd.f32 0.0, %v1580
      %v1582 = vpop.f32.mrb[0].mxu0
      %1583 = vmatprep.mubr.f32.mxu0 0.0
      %1584 = vmatmul.mubr.f32.gmra.mrb[0].mxu0 %v1389
      %v1585 = vpop.f32.mrb[0].mxu0
      %v1586 = vadd.f32 0.0, %v1585
      %v1587 = vpop.f32.mrb[0].mxu0
      %1588 = vmatprep.mubr.f32.mxu0 0.0
      %1589 = vmatmul.mubr.f32.gmra.mrb[0].mxu0 %v1392
      %v1590 = vpop.f32.mrb[0].mxu0
      %v1591 = vadd.f32 0.0, %v1590
      %v1592 = vpop.f32.mrb[0].mxu0
      %1593 = vmatprep.mubr.f32.mxu0 0.0
      %1594 = vmatmul.mubr.f32.gmra.mrb[0].mxu0 %v1395
      %v1595 = vpop.f32.mrb[0].mxu0
      %v1596 = vadd.f32 0.0, %v1595
      %v1597 = vpop.f32.mrb[0].mxu0
      %1598 = vmatprep.mubr.f32.mxu0 0.0
      %1599 = vmatmul.mubr.f32.gmra.mrb[0].mxu0 %v1398
      %v1600 = vpop.f32.mrb[0].mxu0
      %v1601 = vadd.f32 0.0, %v1600
      %v1602 = vpop.f32.mrb[0].mxu0
      %1603 = vmatprep.mubr.f32.mxu0 0.0
      %1604 = vmatmul.mubr.f32.gmra.mrb[0].mxu0 %v1401
      %v1605 = vpop.f32.mrb[0].mxu0
      %v1606 = vadd.f32 0.0, %v1605
      %v1607 = vpop.f32.mrb[0].mxu0
      %1608 = vmatprep.mubr.f32.mxu0 0.0
      %1609 = vmatmul.mubr.f32.gmra.mrb[0].mxu0 %v1404
      %v1610 = vpop.f32.mrb[0].mxu0
      %v1611 = vadd.f32 0.0, %v1610
      %v1612 = vpop.f32.mrb[0].mxu0
      %1613 = vmatprep.mubr.f32.mxu0 0.0
      %1614 = vmatmul.mubr.f32.gmra.mrb[0].mxu0 %v1407
      %v1615 = vpop.f32.mrb[0].mxu0
      %v1616 = vadd.f32 0.0, %v1615
      %v1617 = vpop.f32.mrb[0].mxu0
      %1618 = vmatprep.mubr.f32.mxu0 0.0
      %1619 = vmatmul.mubr.f32.gmra.mrb[0].mxu0 %v1410
      %v1620 = vpop.f32.mrb[0].mxu0
      %v1621 = vadd.f32 0.0, %v1620
      %v1622 = vpop.f32.mrb[0].mxu0
      %1623 = vmatprep.mubr.f32.mxu0 0.0
      %1624 = vmatmul.mubr.f32.gmra.mrb[0].mxu0 %v1413
      %v1625 = vpop.f32.mrb[0].mxu0
      %v1626 = vadd.f32 0.0, %v1625
      %v1627 = vpop.f32.mrb[0].mxu0
      %1628 = vmatprep.mubr.f32.mxu0 0.0
      %1629 = vmatmul.mubr.f32.gmra.mrb[0].mxu0 %v1416
      %v1630 = vpop.f32.mrb[0].mxu0
      %v1631 = vadd.f32 0.0, %v1630
      %v1632 = vpop.f32.mrb[0].mxu0
      %1633 = vmatprep.mubr.f32.mxu0 0.0
      %1634 = vmatmul.mubr.f32.gmra.mrb[0].mxu0 %v1419
      %v1635 = vpop.f32.mrb[0].mxu0
      %v1636 = vadd.f32 0.0, %v1635
      %v1637 = vpop.f32.mrb[0].mxu0
      %1638 = vmatprep.mubr.f32.mxu0 0.0
      %1639 = vmatmul.mubr.f32.gmra.mrb[0].mxu0 %v1422
      %v1640 = vpop.f32.mrb[0].mxu0
      %v1641 = vadd.f32 0.0, %v1640
      %v1642 = vpop.f32.mrb[0].mxu0
      %1643 = vmatprep.mubr.f32.mxu0 0.0
      %1644 = vmatmul.mubr.f32.gmra.mrb[0].mxu0 %v1425
      %v1645 = vpop.f32.mrb[0].mxu0
      %v1646 = vadd.f32 0.0, %v1645
      %v1647 = vpop.f32.mrb[0].mxu0
      %1648 = vmatprep.mubr.f32.mxu0 0.0
      %1649 = vmatmul.mubr.f32.gmra.mrb[0].mxu0 %v1428
      %v1650 = vpop.f32.mrb[0].mxu0
      %v1651 = vadd.f32 0.0, %v1650
      %v1652 = vpop.f32.mrb[0].mxu0
      %1653 = vmatprep.mubr.f32.mxu0 0.0
      %1654 = vmatmul.mubr.f32.gmra.mrb[0].mxu0 %v1431
      %v1655 = vpop.f32.mrb[0].mxu0
      %v1656 = vadd.f32 0.0, %v1655
      %v1657 = vpop.f32.mrb[0].mxu0
      %1658 = vmatprep.mubr.f32.mxu0 0.0
      %1659 = vmatmul.mubr.f32.gmra.mrb[0].mxu0 %v1434
      %v1660 = vpop.f32.mrb[0].mxu0
      %v1661 = vadd.f32 0.0, %v1660
      %v1662 = vpop.f32.mrb[0].mxu0
      %1663 = vdwg.mxu0
      %v1664 = vadd.f32 %v1273, %v1506
      %v1665 = vadd.f32 %v1274, %v1511
      %v1666 = vadd.f32 %v1275, %v1516
      %v1667 = vadd.f32 %v1276, %v1521
      %v1668 = vadd.f32 %v1277, %v1526
      %v1669 = vadd.f32 %v1278, %v1531
      %v1670 = vadd.f32 %v1279, %v1536
      %v1671 = vadd.f32 %v1280, %v1541
      %v1672 = vadd.f32 %v1281, %v1546
      %v1673 = vadd.f32 %v1282, %v1551
      %v1674 = vadd.f32 %v1283, %v1556
      %v1675 = vadd.f32 %v1284, %v1561
      %v1676 = vadd.f32 %v1285, %v1566
      %v1677 = vadd.f32 %v1286, %v1571
      %v1678 = vadd.f32 %v1287, %v1576
      %v1679 = vadd.f32 %v1288, %v1581
      %v1680 = vadd.f32 %v1289, %v1586
      %v1681 = vadd.f32 %v1290, %v1591
      %v1682 = vadd.f32 %v1291, %v1596
      %v1683 = vadd.f32 %v1292, %v1601
      %v1684 = vadd.f32 %v1293, %v1606
      %v1685 = vadd.f32 %v1294, %v1611
      %v1686 = vadd.f32 %v1295, %v1616
      %v1687 = vadd.f32 %v1296, %v1621
      %v1688 = vadd.f32 %v1297, %v1626
      %v1689 = vadd.f32 %v1298, %v1631
      %v1690 = vadd.f32 %v1299, %v1636
      %v1691 = vadd.f32 %v1300, %v1641
      %v1692 = vadd.f32 %v1301, %v1646
      %v1693 = vadd.f32 %v1302, %v1651
      %v1694 = vadd.f32 %v1303, %v1656
      %v1695 = vadd.f32 %v1304, %v1661
      %v1696 = vld [vmem:[%s1305 + $0x1] sm:$0xff]
      %v1697 = vld [vmem:[%s1305 + $0x9] sm:$0xff]
      %v1698 = vld [vmem:[%s1305 + $0x19] sm:$0xff]
      %v1699 = vld [vmem:[%s1305 + $0x21] sm:$0xff]
      %v1700 = vld [vmem:[%s1305 + $0x31] sm:$0xff]
      %v1701 = vld [vmem:[%s1305 + $0x39] sm:$0xff]
      %v1702 = vld [vmem:[%s1305 + $0x49] sm:$0xff]
      %v1703 = vld [vmem:[%s1305 + $0x51] sm:$0xff]
      %v1704 = vld [vmem:[%s1305 + $0x61] sm:$0xff]
      %v1705 = vld [vmem:[%s1305 + $0x69] sm:$0xff]
      %v1706 = vld [vmem:[%s1305 + $0x79] sm:$0xff]
      %v1707 = vld [vmem:[%s1305 + $0x81] sm:$0xff]
      %v1708 = vld [vmem:[%s1305 + $0x91] sm:$0xff]
      %v1709 = vld [vmem:[%s1305 + $0x99] sm:$0xff]
      %v1710 = vld [vmem:[%s1305 + $0xa9] sm:$0xff]
      %v1711 = vld [vmem:[%s1305 + $0xb1] sm:$0xff]
      %v1712 = vld [vmem:[%s1305 + $0xc1] sm:$0xff]
      %v1713 = vld [vmem:[%s1305 + $0xc9] sm:$0xff]
      %v1714 = vld [vmem:[%s1305 + $0xd9] sm:$0xff]
      %v1715 = vld [vmem:[%s1305 + $0xe1] sm:$0xff]
      %v1716 = vld [vmem:[%s1305 + $0xf1] sm:$0xff]
      %v1717 = vld [vmem:[%s1305 + $0xf9] sm:$0xff]
      %v1718 = vld [vmem:[%s1305 + $0x109] sm:$0xff]
      %v1719 = vld [vmem:[%s1305 + $0x111] sm:$0xff]
      %v1720 = vld [vmem:[%s1305 + $0x121] sm:$0xff]
      %v1721 = vld [vmem:[%s1305 + $0x129] sm:$0xff]
      %v1722 = vld [vmem:[%s1305 + $0x139] sm:$0xff]
      %v1723 = vld [vmem:[%s1305 + $0x141] sm:$0xff]
      %v1724 = vld [vmem:[%s1305 + $0x151] sm:$0xff]
      %v1725 = vld [vmem:[%s1305 + $0x159] sm:$0xff]
      %v1726 = vld [vmem:[%s1305 + $0x169] sm:$0xff]
      %v1727 = vld [vmem:[%s1305 + $0x171] sm:$0xff]
      %s1728 = scalar_lea.vmem %s1, 16
      %v1729 = vld [vmem:[%s1728] sm:$0xf]
      %v1731 = vsel %vm265, %v1696, 0
      %v1734 = vsel %vm265, %v1697, 0
      %v1737 = vsel %vm265, %v1698, 0
      %v1740 = vsel %vm265, %v1699, 0
      %v1743 = vsel %vm265, %v1700, 0
      %v1746 = vsel %vm265, %v1701, 0
      %v1749 = vsel %vm265, %v1702, 0
      %v1752 = vsel %vm265, %v1703, 0
      %v1755 = vsel %vm265, %v1704, 0
      %v1758 = vsel %vm265, %v1705, 0
      %v1761 = vsel %vm265, %v1706, 0
      %v1764 = vsel %vm265, %v1707, 0
      %v1767 = vsel %vm265, %v1708, 0
      %v1770 = vsel %vm265, %v1709, 0
      %v1773 = vsel %vm265, %v1710, 0
      %v1776 = vsel %vm265, %v1711, 0
      %v1779 = vsel %vm265, %v1712, 0
      %v1782 = vsel %vm265, %v1713, 0
      %v1785 = vsel %vm265, %v1714, 0
      %v1788 = vsel %vm265, %v1715, 0
      %v1791 = vsel %vm265, %v1716, 0
      %v1794 = vsel %vm265, %v1717, 0
      %v1797 = vsel %vm265, %v1718, 0
      %v1800 = vsel %vm265, %v1719, 0
      %v1803 = vsel %vm265, %v1720, 0
      %v1806 = vsel %vm265, %v1721, 0
      %v1809 = vsel %vm265, %v1722, 0
      %v1812 = vsel %vm265, %v1723, 0
      %v1815 = vsel %vm265, %v1724, 0
      %v1818 = vsel %vm265, %v1725, 0
      %v1821 = vsel %vm265, %v1726, 0
      %v1824 = vsel %vm265, %v1727, 0
      %v1827 = vsel %vm362, %v1729, 0
      %1829 = vmatprep.subr.mxu0 0.0
      %1830 = vmatpush1.msra.mxu0 %v1827
      %1831 = vmatprep.subr.mxu0 0.0
      %1832 = vmatpush1.msra.mxu0 0.0
      %1833 = vmatprep.subr.mxu0 0.0
      %1834 = vmatpush1.msra.mxu0 0.0
      %1835 = vmatprep.subr.mxu0 0.0
      %1836 = vmatpush1.msra.mxu0 0.0
      %1837 = vmatprep.subr.mxu0 0.0
      %1838 = vmatpush1.msra.mxu0 0.0
      %1839 = vmatprep.subr.mxu0 0.0
      %1840 = vmatpush1.msra.mxu0 0.0
      %1841 = vmatprep.subr.mxu0 0.0
      %1842 = vmatpush1.msra.mxu0 0.0
      %1843 = vmatprep.subr.mxu0 0.0
      %1844 = vmatpush1.msra.mxu0 0.0
      %1845 = vmatprep.subr.mxu0 0.0
      %1846 = vmatpush1.msra.mxu0 0.0
      %1847 = vmatprep.subr.mxu0 0.0
      %1848 = vmatpush1.msra.mxu0 0.0
      %1849 = vmatprep.subr.mxu0 0.0
      %1850 = vmatpush1.msra.mxu0 0.0
      %1851 = vmatprep.subr.mxu0 0.0
      %1852 = vmatpush1.msra.mxu0 0.0
      %1853 = vmatprep.subr.mxu0 0.0
      %1854 = vmatpush1.msra.mxu0 0.0
      %1855 = vmatprep.subr.mxu0 0.0
      %1856 = vmatpush1.msra.mxu0 0.0
      %1857 = vmatprep.subr.mxu0 0.0
      %1858 = vmatpush1.msra.mxu0 0.0
      %1859 = vmatprep.subr.mxu0 0.0
      %1860 = vmatpush1.msra.mxu0 0.0
      %1861 = vmatprep.subr.mxu0 0.0
      %1862 = vmatpush1.msra.mxu0 0.0
      %1863 = vmatprep.subr.mxu0 0.0
      %1864 = vmatpush1.msra.mxu0 0.0
      %1865 = vmatprep.subr.mxu0 0.0
      %1866 = vmatpush1.msra.mxu0 0.0
      %1867 = vmatprep.subr.mxu0 0.0
      %1868 = vmatpush1.msra.mxu0 0.0
      %1869 = vmatprep.subr.mxu0 0.0
      %1870 = vmatpush1.msra.mxu0 0.0
      %1871 = vmatprep.subr.mxu0 0.0
      %1872 = vmatpush1.msra.mxu0 0.0
      %1873 = vmatprep.subr.mxu0 0.0
      %1874 = vmatpush1.msra.mxu0 0.0
      %1875 = vmatprep.subr.mxu0 0.0
      %1876 = vmatpush1.msra.mxu0 0.0
      %1877 = vmatprep.subr.mxu0 0.0
      %1878 = vmatpush1.msra.mxu0 0.0
      %1879 = vmatprep.subr.mxu0 0.0
      %1880 = vmatpush1.msra.mxu0 0.0
      %1881 = vmatprep.subr.mxu0 0.0
      %1882 = vmatpush1.msra.mxu0 0.0
      %1883 = vmatprep.subr.mxu0 0.0
      %1884 = vmatpush1.msra.mxu0 0.0
      %1885 = vmatprep.subr.mxu0 0.0
      %1886 = vmatpush1.msra.mxu0 0.0
      %1887 = vmatprep.subr.mxu0 0.0
      %1888 = vmatpush1.msra.mxu0 0.0
      %1889 = vmatprep.subr.mxu0 0.0
      %1890 = vmatpush1.msra.mxu0 0.0
      %1891 = vmatprep.subr.mxu0 0.0
      %1892 = vmatpush1.msra.mxu0 0.0
      %1893 = vmatprep.mubr.f32.mxu0 0.0
      %1894 = vmatmul.mubr.f32.gmra.mrb[0].mxu0 %v1731
      %v1895 = vpop.f32.mrb[0].mxu0
      %v1896 = vadd.f32 0.0, %v1895
      %v1897 = vpop.f32.mrb[0].mxu0
      %1898 = vmatprep.mubr.f32.mxu0 0.0
      %1899 = vmatmul.mubr.f32.gmra.mrb[0].mxu0 %v1734
      %v1900 = vpop.f32.mrb[0].mxu0
      %v1901 = vadd.f32 0.0, %v1900
      %v1902 = vpop.f32.mrb[0].mxu0
      %1903 = vmatprep.mubr.f32.mxu0 0.0
      %1904 = vmatmul.mubr.f32.gmra.mrb[0].mxu0 %v1737
      %v1905 = vpop.f32.mrb[0].mxu0
      %v1906 = vadd.f32 0.0, %v1905
      %v1907 = vpop.f32.mrb[0].mxu0
      %1908 = vmatprep.mubr.f32.mxu0 0.0
      %1909 = vmatmul.mubr.f32.gmra.mrb[0].mxu0 %v1740
      %v1910 = vpop.f32.mrb[0].mxu0
      %v1911 = vadd.f32 0.0, %v1910
      %v1912 = vpop.f32.mrb[0].mxu0
      %1913 = vmatprep.mubr.f32.mxu0 0.0
      %1914 = vmatmul.mubr.f32.gmra.mrb[0].mxu0 %v1743
      %v1915 = vpop.f32.mrb[0].mxu0
      %v1916 = vadd.f32 0.0, %v1915
      %v1917 = vpop.f32.mrb[0].mxu0
      %1918 = vmatprep.mubr.f32.mxu0 0.0
      %1919 = vmatmul.mubr.f32.gmra.mrb[0].mxu0 %v1746
      %v1920 = vpop.f32.mrb[0].mxu0
      %v1921 = vadd.f32 0.0, %v1920
      %v1922 = vpop.f32.mrb[0].mxu0
      %1923 = vmatprep.mubr.f32.mxu0 0.0
      %1924 = vmatmul.mubr.f32.gmra.mrb[0].mxu0 %v1749
      %v1925 = vpop.f32.mrb[0].mxu0
      %v1926 = vadd.f32 0.0, %v1925
      %v1927 = vpop.f32.mrb[0].mxu0
      %1928 = vmatprep.mubr.f32.mxu0 0.0
      %1929 = vmatmul.mubr.f32.gmra.mrb[0].mxu0 %v1752
      %v1930 = vpop.f32.mrb[0].mxu0
      %v1931 = vadd.f32 0.0, %v1930
      %v1932 = vpop.f32.mrb[0].mxu0
      %1933 = vmatprep.mubr.f32.mxu0 0.0
      %1934 = vmatmul.mubr.f32.gmra.mrb[0].mxu0 %v1755
      %v1935 = vpop.f32.mrb[0].mxu0
      %v1936 = vadd.f32 0.0, %v1935
      %v1937 = vpop.f32.mrb[0].mxu0
      %1938 = vmatprep.mubr.f32.mxu0 0.0
      %1939 = vmatmul.mubr.f32.gmra.mrb[0].mxu0 %v1758
      %v1940 = vpop.f32.mrb[0].mxu0
      %v1941 = vadd.f32 0.0, %v1940
      %v1942 = vpop.f32.mrb[0].mxu0
      %1943 = vmatprep.mubr.f32.mxu0 0.0
      %1944 = vmatmul.mubr.f32.gmra.mrb[0].mxu0 %v1761
      %v1945 = vpop.f32.mrb[0].mxu0
      %v1946 = vadd.f32 0.0, %v1945
      %v1947 = vpop.f32.mrb[0].mxu0
      %1948 = vmatprep.mubr.f32.mxu0 0.0
      %1949 = vmatmul.mubr.f32.gmra.mrb[0].mxu0 %v1764
      %v1950 = vpop.f32.mrb[0].mxu0
      %v1951 = vadd.f32 0.0, %v1950
      %v1952 = vpop.f32.mrb[0].mxu0
      %1953 = vmatprep.mubr.f32.mxu0 0.0
      %1954 = vmatmul.mubr.f32.gmra.mrb[0].mxu0 %v1767
      %v1955 = vpop.f32.mrb[0].mxu0
      %v1956 = vadd.f32 0.0, %v1955
      %v1957 = vpop.f32.mrb[0].mxu0
      %1958 = vmatprep.mubr.f32.mxu0 0.0
      %1959 = vmatmul.mubr.f32.gmra.mrb[0].mxu0 %v1770
      %v1960 = vpop.f32.mrb[0].mxu0
      %v1961 = vadd.f32 0.0, %v1960
      %v1962 = vpop.f32.mrb[0].mxu0
      %1963 = vmatprep.mubr.f32.mxu0 0.0
      %1964 = vmatmul.mubr.f32.gmra.mrb[0].mxu0 %v1773
      %v1965 = vpop.f32.mrb[0].mxu0
      %v1966 = vadd.f32 0.0, %v1965
      %v1967 = vpop.f32.mrb[0].mxu0
      %1968 = vmatprep.mubr.f32.mxu0 0.0
      %1969 = vmatmul.mubr.f32.gmra.mrb[0].mxu0 %v1776
      %v1970 = vpop.f32.mrb[0].mxu0
      %v1971 = vadd.f32 0.0, %v1970
      %v1972 = vpop.f32.mrb[0].mxu0
      %1973 = vmatprep.mubr.f32.mxu0 0.0
      %1974 = vmatmul.mubr.f32.gmra.mrb[0].mxu0 %v1779
      %v1975 = vpop.f32.mrb[0].mxu0
      %v1976 = vadd.f32 0.0, %v1975
      %v1977 = vpop.f32.mrb[0].mxu0
      %1978 = vmatprep.mubr.f32.mxu0 0.0
      %1979 = vmatmul.mubr.f32.gmra.mrb[0].mxu0 %v1782
      %v1980 = vpop.f32.mrb[0].mxu0
      %v1981 = vadd.f32 0.0, %v1980
      %v1982 = vpop.f32.mrb[0].mxu0
      %1983 = vmatprep.mubr.f32.mxu0 0.0
      %1984 = vmatmul.mubr.f32.gmra.mrb[0].mxu0 %v1785
      %v1985 = vpop.f32.mrb[0].mxu0
      %v1986 = vadd.f32 0.0, %v1985
      %v1987 = vpop.f32.mrb[0].mxu0
      %1988 = vmatprep.mubr.f32.mxu0 0.0
      %1989 = vmatmul.mubr.f32.gmra.mrb[0].mxu0 %v1788
      %v1990 = vpop.f32.mrb[0].mxu0
      %v1991 = vadd.f32 0.0, %v1990
      %v1992 = vpop.f32.mrb[0].mxu0
      %1993 = vmatprep.mubr.f32.mxu0 0.0
      %1994 = vmatmul.mubr.f32.gmra.mrb[0].mxu0 %v1791
      %v1995 = vpop.f32.mrb[0].mxu0
      %v1996 = vadd.f32 0.0, %v1995
      %v1997 = vpop.f32.mrb[0].mxu0
      %1998 = vmatprep.mubr.f32.mxu0 0.0
      %1999 = vmatmul.mubr.f32.gmra.mrb[0].mxu0 %v1794
      %v2000 = vpop.f32.mrb[0].mxu0
      %v2001 = vadd.f32 0.0, %v2000
      %v2002 = vpop.f32.mrb[0].mxu0
      %2003 = vmatprep.mubr.f32.mxu0 0.0
      %2004 = vmatmul.mubr.f32.gmra.mrb[0].mxu0 %v1797
      %v2005 = vpop.f32.mrb[0].mxu0
      %v2006 = vadd.f32 0.0, %v2005
      %v2007 = vpop.f32.mrb[0].mxu0
      %2008 = vmatprep.mubr.f32.mxu0 0.0
      %2009 = vmatmul.mubr.f32.gmra.mrb[0].mxu0 %v1800
      %v2010 = vpop.f32.mrb[0].mxu0
      %v2011 = vadd.f32 0.0, %v2010
      %v2012 = vpop.f32.mrb[0].mxu0
      %2013 = vmatprep.mubr.f32.mxu0 0.0
      %2014 = vmatmul.mubr.f32.gmra.mrb[0].mxu0 %v1803
      %v2015 = vpop.f32.mrb[0].mxu0
      %v2016 = vadd.f32 0.0, %v2015
      %v2017 = vpop.f32.mrb[0].mxu0
      %2018 = vmatprep.mubr.f32.mxu0 0.0
      %2019 = vmatmul.mubr.f32.gmra.mrb[0].mxu0 %v1806
      %v2020 = vpop.f32.mrb[0].mxu0
      %v2021 = vadd.f32 0.0, %v2020
      %v2022 = vpop.f32.mrb[0].mxu0
      %2023 = vmatprep.mubr.f32.mxu0 0.0
      %2024 = vmatmul.mubr.f32.gmra.mrb[0].mxu0 %v1809
      %v2025 = vpop.f32.mrb[0].mxu0
      %v2026 = vadd.f32 0.0, %v2025
      %v2027 = vpop.f32.mrb[0].mxu0
      %2028 = vmatprep.mubr.f32.mxu0 0.0
      %2029 = vmatmul.mubr.f32.gmra.mrb[0].mxu0 %v1812
      %v2030 = vpop.f32.mrb[0].mxu0
      %v2031 = vadd.f32 0.0, %v2030
      %v2032 = vpop.f32.mrb[0].mxu0
      %2033 = vmatprep.mubr.f32.mxu0 0.0
      %2034 = vmatmul.mubr.f32.gmra.mrb[0].mxu0 %v1815
      %v2035 = vpop.f32.mrb[0].mxu0
      %v2036 = vadd.f32 0.0, %v2035
      %v2037 = vpop.f32.mrb[0].mxu0
      %2038 = vmatprep.mubr.f32.mxu0 0.0
      %2039 = vmatmul.mubr.f32.gmra.mrb[0].mxu0 %v1818
      %v2040 = vpop.f32.mrb[0].mxu0
      %v2041 = vadd.f32 0.0, %v2040
      %v2042 = vpop.f32.mrb[0].mxu0
      %2043 = vmatprep.mubr.f32.mxu0 0.0
      %2044 = vmatmul.mubr.f32.gmra.mrb[0].mxu0 %v1821
      %v2045 = vpop.f32.mrb[0].mxu0
      %v2046 = vadd.f32 0.0, %v2045
      %v2047 = vpop.f32.mrb[0].mxu0
      %2048 = vmatprep.mubr.f32.mxu0 0.0
      %2049 = vmatmul.mubr.f32.gmra.mrb[0].mxu0 %v1824
      %v2050 = vpop.f32.mrb[0].mxu0
      %v2051 = vadd.f32 0.0, %v2050
      %v2052 = vpop.f32.mrb[0].mxu0
      %2053 = vdwg.mxu0
      %v2054 = vadd.f32 %v1664, %v1896
      %v2055 = vadd.f32 %v1665, %v1901
      %v2056 = vadd.f32 %v1666, %v1906
      %v2057 = vadd.f32 %v1667, %v1911
      %v2058 = vadd.f32 %v1668, %v1916
      %v2059 = vadd.f32 %v1669, %v1921
      %v2060 = vadd.f32 %v1670, %v1926
      %v2061 = vadd.f32 %v1671, %v1931
      %v2062 = vadd.f32 %v1672, %v1936
      %v2063 = vadd.f32 %v1673, %v1941
      %v2064 = vadd.f32 %v1674, %v1946
      %v2065 = vadd.f32 %v1675, %v1951
      %v2066 = vadd.f32 %v1676, %v1956
      %v2067 = vadd.f32 %v1677, %v1961
      %v2068 = vadd.f32 %v1678, %v1966
      %v2069 = vadd.f32 %v1679, %v1971
      %v2070 = vadd.f32 %v1680, %v1976
      %v2071 = vadd.f32 %v1681, %v1981
      %v2072 = vadd.f32 %v1682, %v1986
      %v2073 = vadd.f32 %v1683, %v1991
      %v2074 = vadd.f32 %v1684, %v1996
      %v2075 = vadd.f32 %v1685, %v2001
      %v2076 = vadd.f32 %v1686, %v2006
      %v2077 = vadd.f32 %v1687, %v2011
      %v2078 = vadd.f32 %v1688, %v2016
      %v2079 = vadd.f32 %v1689, %v2021
      %v2080 = vadd.f32 %v1690, %v2026
      %v2081 = vadd.f32 %v1691, %v2031
      %v2082 = vadd.f32 %v1692, %v2036
      %v2083 = vadd.f32 %v1693, %v2041
      %v2084 = vadd.f32 %v1694, %v2046
      %v2085 = vadd.f32 %v1695, %v2051
      %v2086 = vld [vmem:[%s1305 + $0x2] sm:$0xff]
      %v2087 = vld [vmem:[%s1305 + $0xa] sm:$0xff]
      %v2088 = vld [vmem:[%s1305 + $0x1a] sm:$0xff]
      %v2089 = vld [vmem:[%s1305 + $0x22] sm:$0xff]
      %v2090 = vld [vmem:[%s1305 + $0x32] sm:$0xff]
      %v2091 = vld [vmem:[%s1305 + $0x3a] sm:$0xff]
      %v2092 = vld [vmem:[%s1305 + $0x4a] sm:$0xff]
      %v2093 = vld [vmem:[%s1305 + $0x52] sm:$0xff]
      %v2094 = vld [vmem:[%s1305 + $0x62] sm:$0xff]
      %v2095 = vld [vmem:[%s1305 + $0x6a] sm:$0xff]
      %v2096 = vld [vmem:[%s1305 + $0x7a] sm:$0xff]
      %v2097 = vld [vmem:[%s1305 + $0x82] sm:$0xff]
      %v2098 = vld [vmem:[%s1305 + $0x92] sm:$0xff]
      %v2099 = vld [vmem:[%s1305 + $0x9a] sm:$0xff]
      %v2100 = vld [vmem:[%s1305 + $0xaa] sm:$0xff]
      %v2101 = vld [vmem:[%s1305 + $0xb2] sm:$0xff]
      %v2102 = vld [vmem:[%s1305 + $0xc2] sm:$0xff]
      %v2103 = vld [vmem:[%s1305 + $0xca] sm:$0xff]
      %v2104 = vld [vmem:[%s1305 + $0xda] sm:$0xff]
      %v2105 = vld [vmem:[%s1305 + $0xe2] sm:$0xff]
      %v2106 = vld [vmem:[%s1305 + $0xf2] sm:$0xff]
      %v2107 = vld [vmem:[%s1305 + $0xfa] sm:$0xff]
      %v2108 = vld [vmem:[%s1305 + $0x10a] sm:$0xff]
      %v2109 = vld [vmem:[%s1305 + $0x112] sm:$0xff]
      %v2110 = vld [vmem:[%s1305 + $0x122] sm:$0xff]
      %v2111 = vld [vmem:[%s1305 + $0x12a] sm:$0xff]
      %v2112 = vld [vmem:[%s1305 + $0x13a] sm:$0xff]
      %v2113 = vld [vmem:[%s1305 + $0x142] sm:$0xff]
      %v2114 = vld [vmem:[%s1305 + $0x152] sm:$0xff]
      %v2115 = vld [vmem:[%s1305 + $0x15a] sm:$0xff]
      %v2116 = vld [vmem:[%s1305 + $0x16a] sm:$0xff]
      %v2117 = vld [vmem:[%s1305 + $0x172] sm:$0xff]
      %s2118 = scalar_lea.vmem %s1, 20
      %v2119 = vld [vmem:[%s2118] sm:$0xf]
      %v2121 = vsel %vm265, %v2086, 0
      %v2124 = vsel %vm265, %v2087, 0
      %v2127 = vsel %vm265, %v2088, 0
      %v2130 = vsel %vm265, %v2089, 0
      %v2133 = vsel %vm265, %v2090, 0
      %v2136 = vsel %vm265, %v2091, 0
      %v2139 = vsel %vm265, %v2092, 0
      %v2142 = vsel %vm265, %v2093, 0
      %v2145 = vsel %vm265, %v2094, 0
      %v2148 = vsel %vm265, %v2095, 0
      %v2151 = vsel %vm265, %v2096, 0
      %v2154 = vsel %vm265, %v2097, 0
      %v2157 = vsel %vm265, %v2098, 0
      %v2160 = vsel %vm265, %v2099, 0
      %v2163 = vsel %vm265, %v2100, 0
      %v2166 = vsel %vm265, %v2101, 0
      %v2169 = vsel %vm265, %v2102, 0
      %v2172 = vsel %vm265, %v2103, 0
      %v2175 = vsel %vm265, %v2104, 0
      %v2178 = vsel %vm265, %v2105, 0
      %v2181 = vsel %vm265, %v2106, 0
      %v2184 = vsel %vm265, %v2107, 0
      %v2187 = vsel %vm265, %v2108, 0
      %v2190 = vsel %vm265, %v2109, 0
      %v2193 = vsel %vm265, %v2110, 0
      %v2196 = vsel %vm265, %v2111, 0
      %v2199 = vsel %vm265, %v2112, 0
      %v2202 = vsel %vm265, %v2113, 0
      %v2205 = vsel %vm265, %v2114, 0
      %v2208 = vsel %vm265, %v2115, 0
      %v2211 = vsel %vm265, %v2116, 0
      %v2214 = vsel %vm265, %v2117, 0
      %v2217 = vsel %vm362, %v2119, 0
      %2219 = vmatprep.subr.mxu0 0.0
      %2220 = vmatpush1.msra.mxu0 %v2217
      %2221 = vmatprep.subr.mxu0 0.0
      %2222 = vmatpush1.msra.mxu0 0.0
      %2223 = vmatprep.subr.mxu0 0.0
      %2224 = vmatpush1.msra.mxu0 0.0
      %2225 = vmatprep.subr.mxu0 0.0
      %2226 = vmatpush1.msra.mxu0 0.0
      %2227 = vmatprep.subr.mxu0 0.0
      %2228 = vmatpush1.msra.mxu0 0.0
      %2229 = vmatprep.subr.mxu0 0.0
      %2230 = vmatpush1.msra.mxu0 0.0
      %2231 = vmatprep.subr.mxu0 0.0
      %2232 = vmatpush1.msra.mxu0 0.0
      %2233 = vmatprep.subr.mxu0 0.0
      %2234 = vmatpush1.msra.mxu0 0.0
      %2235 = vmatprep.subr.mxu0 0.0
      %2236 = vmatpush1.msra.mxu0 0.0
      %2237 = vmatprep.subr.mxu0 0.0
      %2238 = vmatpush1.msra.mxu0 0.0
      %2239 = vmatprep.subr.mxu0 0.0
      %2240 = vmatpush1.msra.mxu0 0.0
      %2241 = vmatprep.subr.mxu0 0.0
      %2242 = vmatpush1.msra.mxu0 0.0
      %2243 = vmatprep.subr.mxu0 0.0
      %2244 = vmatpush1.msra.mxu0 0.0
      %2245 = vmatprep.subr.mxu0 0.0
      %2246 = vmatpush1.msra.mxu0 0.0
      %2247 = vmatprep.subr.mxu0 0.0
      %2248 = vmatpush1.msra.mxu0 0.0
      %2249 = vmatprep.subr.mxu0 0.0
      %2250 = vmatpush1.msra.mxu0 0.0
      %2251 = vmatprep.subr.mxu0 0.0
      %2252 = vmatpush1.msra.mxu0 0.0
      %2253 = vmatprep.subr.mxu0 0.0
      %2254 = vmatpush1.msra.mxu0 0.0
      %2255 = vmatprep.subr.mxu0 0.0
      %2256 = vmatpush1.msra.mxu0 0.0
      %2257 = vmatprep.subr.mxu0 0.0
      %2258 = vmatpush1.msra.mxu0 0.0
      %2259 = vmatprep.subr.mxu0 0.0
      %2260 = vmatpush1.msra.mxu0 0.0
      %2261 = vmatprep.subr.mxu0 0.0
      %2262 = vmatpush1.msra.mxu0 0.0
      %2263 = vmatprep.subr.mxu0 0.0
      %2264 = vmatpush1.msra.mxu0 0.0
      %2265 = vmatprep.subr.mxu0 0.0
      %2266 = vmatpush1.msra.mxu0 0.0
      %2267 = vmatprep.subr.mxu0 0.0
      %2268 = vmatpush1.msra.mxu0 0.0
      %2269 = vmatprep.subr.mxu0 0.0
      %2270 = vmatpush1.msra.mxu0 0.0
      %2271 = vmatprep.subr.mxu0 0.0
      %2272 = vmatpush1.msra.mxu0 0.0
      %2273 = vmatprep.subr.mxu0 0.0
      %2274 = vmatpush1.msra.mxu0 0.0
      %2275 = vmatprep.subr.mxu0 0.0
      %2276 = vmatpush1.msra.mxu0 0.0
      %2277 = vmatprep.subr.mxu0 0.0
      %2278 = vmatpush1.msra.mxu0 0.0
      %2279 = vmatprep.subr.mxu0 0.0
      %2280 = vmatpush1.msra.mxu0 0.0
      %2281 = vmatprep.subr.mxu0 0.0
      %2282 = vmatpush1.msra.mxu0 0.0
      %2283 = vmatprep.mubr.f32.mxu0 0.0
      %2284 = vmatmul.mubr.f32.gmra.mrb[0].mxu0 %v2121
      %v2285 = vpop.f32.mrb[0].mxu0
      %v2286 = vadd.f32 0.0, %v2285
      %v2287 = vpop.f32.mrb[0].mxu0
      %2288 = vmatprep.mubr.f32.mxu0 0.0
      %2289 = vmatmul.mubr.f32.gmra.mrb[0].mxu0 %v2124
      %v2290 = vpop.f32.mrb[0].mxu0
      %v2291 = vadd.f32 0.0, %v2290
      %v2292 = vpop.f32.mrb[0].mxu0
      %2293 = vmatprep.mubr.f32.mxu0 0.0
      %2294 = vmatmul.mubr.f32.gmra.mrb[0].mxu0 %v2127
      %v2295 = vpop.f32.mrb[0].mxu0
      %v2296 = vadd.f32 0.0, %v2295
      %v2297 = vpop.f32.mrb[0].mxu0
      %2298 = vmatprep.mubr.f32.mxu0 0.0
      %2299 = vmatmul.mubr.f32.gmra.mrb[0].mxu0 %v2130
      %v2300 = vpop.f32.mrb[0].mxu0
      %v2301 = vadd.f32 0.0, %v2300
      %v2302 = vpop.f32.mrb[0].mxu0
      %2303 = vmatprep.mubr.f32.mxu0 0.0
      %2304 = vmatmul.mubr.f32.gmra.mrb[0].mxu0 %v2133
      %v2305 = vpop.f32.mrb[0].mxu0
      %v2306 = vadd.f32 0.0, %v2305
      %v2307 = vpop.f32.mrb[0].mxu0
      %2308 = vmatprep.mubr.f32.mxu0 0.0
      %2309 = vmatmul.mubr.f32.gmra.mrb[0].mxu0 %v2136
      %v2310 = vpop.f32.mrb[0].mxu0
      %v2311 = vadd.f32 0.0, %v2310
      %v2312 = vpop.f32.mrb[0].mxu0
      %2313 = vmatprep.mubr.f32.mxu0 0.0
      %2314 = vmatmul.mubr.f32.gmra.mrb[0].mxu0 %v2139
      %v2315 = vpop.f32.mrb[0].mxu0
      %v2316 = vadd.f32 0.0, %v2315
      %v2317 = vpop.f32.mrb[0].mxu0
      %2318 = vmatprep.mubr.f32.mxu0 0.0
      %2319 = vmatmul.mubr.f32.gmra.mrb[0].mxu0 %v2142
      %v2320 = vpop.f32.mrb[0].mxu0
      %v2321 = vadd.f32 0.0, %v2320
      %v2322 = vpop.f32.mrb[0].mxu0
      %2323 = vmatprep.mubr.f32.mxu0 0.0
      %2324 = vmatmul.mubr.f32.gmra.mrb[0].mxu0 %v2145
      %v2325 = vpop.f32.mrb[0].mxu0
      %v2326 = vadd.f32 0.0, %v2325
      %v2327 = vpop.f32.mrb[0].mxu0
      %2328 = vmatprep.mubr.f32.mxu0 0.0
      %2329 = vmatmul.mubr.f32.gmra.mrb[0].mxu0 %v2148
      %v2330 = vpop.f32.mrb[0].mxu0
      %v2331 = vadd.f32 0.0, %v2330
      %v2332 = vpop.f32.mrb[0].mxu0
      %2333 = vmatprep.mubr.f32.mxu0 0.0
      %2334 = vmatmul.mubr.f32.gmra.mrb[0].mxu0 %v2151
      %v2335 = vpop.f32.mrb[0].mxu0
      %v2336 = vadd.f32 0.0, %v2335
      %v2337 = vpop.f32.mrb[0].mxu0
      %2338 = vmatprep.mubr.f32.mxu0 0.0
      %2339 = vmatmul.mubr.f32.gmra.mrb[0].mxu0 %v2154
      %v2340 = vpop.f32.mrb[0].mxu0
      %v2341 = vadd.f32 0.0, %v2340
      %v2342 = vpop.f32.mrb[0].mxu0
      %2343 = vmatprep.mubr.f32.mxu0 0.0
      %2344 = vmatmul.mubr.f32.gmra.mrb[0].mxu0 %v2157
      %v2345 = vpop.f32.mrb[0].mxu0
      %v2346 = vadd.f32 0.0, %v2345
      %v2347 = vpop.f32.mrb[0].mxu0
      %2348 = vmatprep.mubr.f32.mxu0 0.0
      %2349 = vmatmul.mubr.f32.gmra.mrb[0].mxu0 %v2160
      %v2350 = vpop.f32.mrb[0].mxu0
      %v2351 = vadd.f32 0.0, %v2350
      %v2352 = vpop.f32.mrb[0].mxu0
      %2353 = vmatprep.mubr.f32.mxu0 0.0
      %2354 = vmatmul.mubr.f32.gmra.mrb[0].mxu0 %v2163
      %v2355 = vpop.f32.mrb[0].mxu0
      %v2356 = vadd.f32 0.0, %v2355
      %v2357 = vpop.f32.mrb[0].mxu0
      %2358 = vmatprep.mubr.f32.mxu0 0.0
      %2359 = vmatmul.mubr.f32.gmra.mrb[0].mxu0 %v2166
      %v2360 = vpop.f32.mrb[0].mxu0
      %v2361 = vadd.f32 0.0, %v2360
      %v2362 = vpop.f32.mrb[0].mxu0
      %2363 = vmatprep.mubr.f32.mxu0 0.0
      %2364 = vmatmul.mubr.f32.gmra.mrb[0].mxu0 %v2169
      %v2365 = vpop.f32.mrb[0].mxu0
      %v2366 = vadd.f32 0.0, %v2365
      %v2367 = vpop.f32.mrb[0].mxu0
      %2368 = vmatprep.mubr.f32.mxu0 0.0
      %2369 = vmatmul.mubr.f32.gmra.mrb[0].mxu0 %v2172
      %v2370 = vpop.f32.mrb[0].mxu0
      %v2371 = vadd.f32 0.0, %v2370
      %v2372 = vpop.f32.mrb[0].mxu0
      %2373 = vmatprep.mubr.f32.mxu0 0.0
      %2374 = vmatmul.mubr.f32.gmra.mrb[0].mxu0 %v2175
      %v2375 = vpop.f32.mrb[0].mxu0
      %v2376 = vadd.f32 0.0, %v2375
      %v2377 = vpop.f32.mrb[0].mxu0
      %2378 = vmatprep.mubr.f32.mxu0 0.0
      %2379 = vmatmul.mubr.f32.gmra.mrb[0].mxu0 %v2178
      %v2380 = vpop.f32.mrb[0].mxu0
      %v2381 = vadd.f32 0.0, %v2380
      %v2382 = vpop.f32.mrb[0].mxu0
      %2383 = vmatprep.mubr.f32.mxu0 0.0
      %2384 = vmatmul.mubr.f32.gmra.mrb[0].mxu0 %v2181
      %v2385 = vpop.f32.mrb[0].mxu0
      %v2386 = vadd.f32 0.0, %v2385
      %v2387 = vpop.f32.mrb[0].mxu0
      %2388 = vmatprep.mubr.f32.mxu0 0.0
      %2389 = vmatmul.mubr.f32.gmra.mrb[0].mxu0 %v2184
      %v2390 = vpop.f32.mrb[0].mxu0
      %v2391 = vadd.f32 0.0, %v2390
      %v2392 = vpop.f32.mrb[0].mxu0
      %2393 = vmatprep.mubr.f32.mxu0 0.0
      %2394 = vmatmul.mubr.f32.gmra.mrb[0].mxu0 %v2187
      %v2395 = vpop.f32.mrb[0].mxu0
      %v2396 = vadd.f32 0.0, %v2395
      %v2397 = vpop.f32.mrb[0].mxu0
      %2398 = vmatprep.mubr.f32.mxu0 0.0
      %2399 = vmatmul.mubr.f32.gmra.mrb[0].mxu0 %v2190
      %v2400 = vpop.f32.mrb[0].mxu0
      %v2401 = vadd.f32 0.0, %v2400
      %v2402 = vpop.f32.mrb[0].mxu0
      %2403 = vmatprep.mubr.f32.mxu0 0.0
      %2404 = vmatmul.mubr.f32.gmra.mrb[0].mxu0 %v2193
      %v2405 = vpop.f32.mrb[0].mxu0
      %v2406 = vadd.f32 0.0, %v2405
      %v2407 = vpop.f32.mrb[0].mxu0
      %2408 = vmatprep.mubr.f32.mxu0 0.0
      %2409 = vmatmul.mubr.f32.gmra.mrb[0].mxu0 %v2196
      %v2410 = vpop.f32.mrb[0].mxu0
      %v2411 = vadd.f32 0.0, %v2410
      %v2412 = vpop.f32.mrb[0].mxu0
      %2413 = vmatprep.mubr.f32.mxu0 0.0
      %2414 = vmatmul.mubr.f32.gmra.mrb[0].mxu0 %v2199
      %v2415 = vpop.f32.mrb[0].mxu0
      %v2416 = vadd.f32 0.0, %v2415
      %v2417 = vpop.f32.mrb[0].mxu0
      %2418 = vmatprep.mubr.f32.mxu0 0.0
      %2419 = vmatmul.mubr.f32.gmra.mrb[0].mxu0 %v2202
      %v2420 = vpop.f32.mrb[0].mxu0
      %v2421 = vadd.f32 0.0, %v2420
      %v2422 = vpop.f32.mrb[0].mxu0
      %2423 = vmatprep.mubr.f32.mxu0 0.0
      %2424 = vmatmul.mubr.f32.gmra.mrb[0].mxu0 %v2205
      %v2425 = vpop.f32.mrb[0].mxu0
      %v2426 = vadd.f32 0.0, %v2425
      %v2427 = vpop.f32.mrb[0].mxu0
      %2428 = vmatprep.mubr.f32.mxu0 0.0
      %2429 = vmatmul.mubr.f32.gmra.mrb[0].mxu0 %v2208
      %v2430 = vpop.f32.mrb[0].mxu0
      %v2431 = vadd.f32 0.0, %v2430
      %v2432 = vpop.f32.mrb[0].mxu0
      %2433 = vmatprep.mubr.f32.mxu0 0.0
      %2434 = vmatmul.mubr.f32.gmra.mrb[0].mxu0 %v2211
      %v2435 = vpop.f32.mrb[0].mxu0
      %v2436 = vadd.f32 0.0, %v2435
      %v2437 = vpop.f32.mrb[0].mxu0
      %2438 = vmatprep.mubr.f32.mxu0 0.0
      %2439 = vmatmul.mubr.f32.gmra.mrb[0].mxu0 %v2214
      %v2440 = vpop.f32.mrb[0].mxu0
      %v2441 = vadd.f32 0.0, %v2440
      %v2442 = vpop.f32.mrb[0].mxu0
      %2443 = vdwg.mxu0
      %v2444 = vadd.f32 %v2054, %v2286
      %v2445 = vadd.f32 %v2055, %v2291
      %v2446 = vadd.f32 %v2056, %v2296
      %v2447 = vadd.f32 %v2057, %v2301
      %v2448 = vadd.f32 %v2058, %v2306
      %v2449 = vadd.f32 %v2059, %v2311
      %v2450 = vadd.f32 %v2060, %v2316
      %v2451 = vadd.f32 %v2061, %v2321
      %v2452 = vadd.f32 %v2062, %v2326
      %v2453 = vadd.f32 %v2063, %v2331
      %v2454 = vadd.f32 %v2064, %v2336
      %v2455 = vadd.f32 %v2065, %v2341
      %v2456 = vadd.f32 %v2066, %v2346
      %v2457 = vadd.f32 %v2067, %v2351
      %v2458 = vadd.f32 %v2068, %v2356
      %v2459 = vadd.f32 %v2069, %v2361
      %v2460 = vadd.f32 %v2070, %v2366
      %v2461 = vadd.f32 %v2071, %v2371
      %v2462 = vadd.f32 %v2072, %v2376
      %v2463 = vadd.f32 %v2073, %v2381
      %v2464 = vadd.f32 %v2074, %v2386
      %v2465 = vadd.f32 %v2075, %v2391
      %v2466 = vadd.f32 %v2076, %v2396
      %v2467 = vadd.f32 %v2077, %v2401
      %v2468 = vadd.f32 %v2078, %v2406
      %v2469 = vadd.f32 %v2079, %v2411
      %v2470 = vadd.f32 %v2080, %v2416
      %v2471 = vadd.f32 %v2081, %v2421
      %v2472 = vadd.f32 %v2082, %v2426
      %v2473 = vadd.f32 %v2083, %v2431
      %v2474 = vadd.f32 %v2084, %v2436
      %v2475 = vadd.f32 %v2085, %v2441
      %s2476 = scalar_lea.vmem %s192, 48
      %v2477 = vld [vmem:[%s2476] sm:$0xff]
      %v2478 = vld [vmem:[%s2476 + $0x8] sm:$0xff]
      %v2479 = vld [vmem:[%s2476 + $0x18] sm:$0xff]
      %v2480 = vld [vmem:[%s2476 + $0x20] sm:$0xff]
      %v2481 = vld [vmem:[%s2476 + $0x30] sm:$0xff]
      %v2482 = vld [vmem:[%s2476 + $0x38] sm:$0xff]
      %v2483 = vld [vmem:[%s2476 + $0x48] sm:$0xff]
      %v2484 = vld [vmem:[%s2476 + $0x50] sm:$0xff]
      %v2485 = vld [vmem:[%s2476 + $0x60] sm:$0xff]
      %v2486 = vld [vmem:[%s2476 + $0x68] sm:$0xff]
      %v2487 = vld [vmem:[%s2476 + $0x78] sm:$0xff]
      %v2488 = vld [vmem:[%s2476 + $0x80] sm:$0xff]
      %v2489 = vld [vmem:[%s2476 + $0x90] sm:$0xff]
      %v2490 = vld [vmem:[%s2476 + $0x98] sm:$0xff]
      %v2491 = vld [vmem:[%s2476 + $0xa8] sm:$0xff]
      %v2492 = vld [vmem:[%s2476 + $0xb0] sm:$0xff]
      %v2493 = vld [vmem:[%s2476 + $0xc0] sm:$0xff]
      %v2494 = vld [vmem:[%s2476 + $0xc8] sm:$0xff]
      %v2495 = vld [vmem:[%s2476 + $0xd8] sm:$0xff]
      %v2496 = vld [vmem:[%s2476 + $0xe0] sm:$0xff]
      %v2497 = vld [vmem:[%s2476 + $0xf0] sm:$0xff]
      %v2498 = vld [vmem:[%s2476 + $0xf8] sm:$0xff]
      %v2499 = vld [vmem:[%s2476 + $0x108] sm:$0xff]
      %v2500 = vld [vmem:[%s2476 + $0x110] sm:$0xff]
      %v2501 = vld [vmem:[%s2476 + $0x120] sm:$0xff]
      %v2502 = vld [vmem:[%s2476 + $0x128] sm:$0xff]
      %v2503 = vld [vmem:[%s2476 + $0x138] sm:$0xff]
      %v2504 = vld [vmem:[%s2476 + $0x140] sm:$0xff]
      %v2505 = vld [vmem:[%s2476 + $0x150] sm:$0xff]
      %v2506 = vld [vmem:[%s2476 + $0x158] sm:$0xff]
      %v2507 = vld [vmem:[%s2476 + $0x168] sm:$0xff]
      %v2508 = vld [vmem:[%s2476 + $0x170] sm:$0xff]
      %s2509 = scalar_lea.vmem %s1, 24
      %v2510 = vld [vmem:[%s2509] sm:$0xf]
      %v2512 = vsel %vm265, %v2477, 0
      %v2515 = vsel %vm265, %v2478, 0
      %v2518 = vsel %vm265, %v2479, 0
      %v2521 = vsel %vm265, %v2480, 0
      %v2524 = vsel %vm265, %v2481, 0
      %v2527 = vsel %vm265, %v2482, 0
      %v2530 = vsel %vm265, %v2483, 0
      %v2533 = vsel %vm265, %v2484, 0
      %v2536 = vsel %vm265, %v2485, 0
      %v2539 = vsel %vm265, %v2486, 0
      %v2542 = vsel %vm265, %v2487, 0
      %v2545 = vsel %vm265, %v2488, 0
      %v2548 = vsel %vm265, %v2489, 0
      %v2551 = vsel %vm265, %v2490, 0
      %v2554 = vsel %vm265, %v2491, 0
      %v2557 = vsel %vm265, %v2492, 0
      %v2560 = vsel %vm265, %v2493, 0
      %v2563 = vsel %vm265, %v2494, 0
      %v2566 = vsel %vm265, %v2495, 0
      %v2569 = vsel %vm265, %v2496, 0
      %v2572 = vsel %vm265, %v2497, 0
      %v2575 = vsel %vm265, %v2498, 0
      %v2578 = vsel %vm265, %v2499, 0
      %v2581 = vsel %vm265, %v2500, 0
      %v2584 = vsel %vm265, %v2501, 0
      %v2587 = vsel %vm265, %v2502, 0
      %v2590 = vsel %vm265, %v2503, 0
      %v2593 = vsel %vm265, %v2504, 0
      %v2596 = vsel %vm265, %v2505, 0
      %v2599 = vsel %vm265, %v2506, 0
      %v2602 = vsel %vm265, %v2507, 0
      %v2605 = vsel %vm265, %v2508, 0
      %v2608 = vsel %vm362, %v2510, 0
      %2610 = vmatprep.subr.mxu0 0.0
      %2611 = vmatpush1.msra.mxu0 %v2608
      %2612 = vmatprep.subr.mxu0 0.0
      %2613 = vmatpush1.msra.mxu0 0.0
      %2614 = vmatprep.subr.mxu0 0.0
      %2615 = vmatpush1.msra.mxu0 0.0
      %2616 = vmatprep.subr.mxu0 0.0
      %2617 = vmatpush1.msra.mxu0 0.0
      %2618 = vmatprep.subr.mxu0 0.0
      %2619 = vmatpush1.msra.mxu0 0.0
      %2620 = vmatprep.subr.mxu0 0.0
      %2621 = vmatpush1.msra.mxu0 0.0
      %2622 = vmatprep.subr.mxu0 0.0
      %2623 = vmatpush1.msra.mxu0 0.0
      %2624 = vmatprep.subr.mxu0 0.0
      %2625 = vmatpush1.msra.mxu0 0.0
      %2626 = vmatprep.subr.mxu0 0.0
      %2627 = vmatpush1.msra.mxu0 0.0
      %2628 = vmatprep.subr.mxu0 0.0
      %2629 = vmatpush1.msra.mxu0 0.0
      %2630 = vmatprep.subr.mxu0 0.0
      %2631 = vmatpush1.msra.mxu0 0.0
      %2632 = vmatprep.subr.mxu0 0.0
      %2633 = vmatpush1.msra.mxu0 0.0
      %2634 = vmatprep.subr.mxu0 0.0
      %2635 = vmatpush1.msra.mxu0 0.0
      %2636 = vmatprep.subr.mxu0 0.0
      %2637 = vmatpush1.msra.mxu0 0.0
      %2638 = vmatprep.subr.mxu0 0.0
      %2639 = vmatpush1.msra.mxu0 0.0
      %2640 = vmatprep.subr.mxu0 0.0
      %2641 = vmatpush1.msra.mxu0 0.0
      %2642 = vmatprep.subr.mxu0 0.0
      %2643 = vmatpush1.msra.mxu0 0.0
      %2644 = vmatprep.subr.mxu0 0.0
      %2645 = vmatpush1.msra.mxu0 0.0
      %2646 = vmatprep.subr.mxu0 0.0
      %2647 = vmatpush1.msra.mxu0 0.0
      %2648 = vmatprep.subr.mxu0 0.0
      %2649 = vmatpush1.msra.mxu0 0.0
      %2650 = vmatprep.subr.mxu0 0.0
      %2651 = vmatpush1.msra.mxu0 0.0
      %2652 = vmatprep.subr.mxu0 0.0
      %2653 = vmatpush1.msra.mxu0 0.0
      %2654 = vmatprep.subr.mxu0 0.0
      %2655 = vmatpush1.msra.mxu0 0.0
      %2656 = vmatprep.subr.mxu0 0.0
      %2657 = vmatpush1.msra.mxu0 0.0
      %2658 = vmatprep.subr.mxu0 0.0
      %2659 = vmatpush1.msra.mxu0 0.0
      %2660 = vmatprep.subr.mxu0 0.0
      %2661 = vmatpush1.msra.mxu0 0.0
      %2662 = vmatprep.subr.mxu0 0.0
      %2663 = vmatpush1.msra.mxu0 0.0
      %2664 = vmatprep.subr.mxu0 0.0
      %2665 = vmatpush1.msra.mxu0 0.0
      %2666 = vmatprep.subr.mxu0 0.0
      %2667 = vmatpush1.msra.mxu0 0.0
      %2668 = vmatprep.subr.mxu0 0.0
      %2669 = vmatpush1.msra.mxu0 0.0
      %2670 = vmatprep.subr.mxu0 0.0
      %2671 = vmatpush1.msra.mxu0 0.0
      %2672 = vmatprep.subr.mxu0 0.0
      %2673 = vmatpush1.msra.mxu0 0.0
      %2674 = vmatprep.mubr.f32.mxu0 0.0
      %2675 = vmatmul.mubr.f32.gmra.mrb[0].mxu0 %v2512
      %v2676 = vpop.f32.mrb[0].mxu0
      %v2677 = vadd.f32 0.0, %v2676
      %v2678 = vpop.f32.mrb[0].mxu0
      %2679 = vmatprep.mubr.f32.mxu0 0.0
      %2680 = vmatmul.mubr.f32.gmra.mrb[0].mxu0 %v2515
      %v2681 = vpop.f32.mrb[0].mxu0
      %v2682 = vadd.f32 0.0, %v2681
      %v2683 = vpop.f32.mrb[0].mxu0
      %2684 = vmatprep.mubr.f32.mxu0 0.0
      %2685 = vmatmul.mubr.f32.gmra.mrb[0].mxu0 %v2518
      %v2686 = vpop.f32.mrb[0].mxu0
      %v2687 = vadd.f32 0.0, %v2686
      %v2688 = vpop.f32.mrb[0].mxu0
      %2689 = vmatprep.mubr.f32.mxu0 0.0
      %2690 = vmatmul.mubr.f32.gmra.mrb[0].mxu0 %v2521
      %v2691 = vpop.f32.mrb[0].mxu0
      %v2692 = vadd.f32 0.0, %v2691
      %v2693 = vpop.f32.mrb[0].mxu0
      %2694 = vmatprep.mubr.f32.mxu0 0.0
      %2695 = vmatmul.mubr.f32.gmra.mrb[0].mxu0 %v2524
      %v2696 = vpop.f32.mrb[0].mxu0
      %v2697 = vadd.f32 0.0, %v2696
      %v2698 = vpop.f32.mrb[0].mxu0
      %2699 = vmatprep.mubr.f32.mxu0 0.0
      %2700 = vmatmul.mubr.f32.gmra.mrb[0].mxu0 %v2527
      %v2701 = vpop.f32.mrb[0].mxu0
      %v2702 = vadd.f32 0.0, %v2701
      %v2703 = vpop.f32.mrb[0].mxu0
      %2704 = vmatprep.mubr.f32.mxu0 0.0
      %2705 = vmatmul.mubr.f32.gmra.mrb[0].mxu0 %v2530
      %v2706 = vpop.f32.mrb[0].mxu0
      %v2707 = vadd.f32 0.0, %v2706
      %v2708 = vpop.f32.mrb[0].mxu0
      %2709 = vmatprep.mubr.f32.mxu0 0.0
      %2710 = vmatmul.mubr.f32.gmra.mrb[0].mxu0 %v2533
      %v2711 = vpop.f32.mrb[0].mxu0
      %v2712 = vadd.f32 0.0, %v2711
      %v2713 = vpop.f32.mrb[0].mxu0
      %2714 = vmatprep.mubr.f32.mxu0 0.0
      %2715 = vmatmul.mubr.f32.gmra.mrb[0].mxu0 %v2536
      %v2716 = vpop.f32.mrb[0].mxu0
      %v2717 = vadd.f32 0.0, %v2716
      %v2718 = vpop.f32.mrb[0].mxu0
      %2719 = vmatprep.mubr.f32.mxu0 0.0
      %2720 = vmatmul.mubr.f32.gmra.mrb[0].mxu0 %v2539
      %v2721 = vpop.f32.mrb[0].mxu0
      %v2722 = vadd.f32 0.0, %v2721
      %v2723 = vpop.f32.mrb[0].mxu0
      %2724 = vmatprep.mubr.f32.mxu0 0.0
      %2725 = vmatmul.mubr.f32.gmra.mrb[0].mxu0 %v2542
      %v2726 = vpop.f32.mrb[0].mxu0
      %v2727 = vadd.f32 0.0, %v2726
      %v2728 = vpop.f32.mrb[0].mxu0
      %2729 = vmatprep.mubr.f32.mxu0 0.0
      %2730 = vmatmul.mubr.f32.gmra.mrb[0].mxu0 %v2545
      %v2731 = vpop.f32.mrb[0].mxu0
      %v2732 = vadd.f32 0.0, %v2731
      %v2733 = vpop.f32.mrb[0].mxu0
      %2734 = vmatprep.mubr.f32.mxu0 0.0
      %2735 = vmatmul.mubr.f32.gmra.mrb[0].mxu0 %v2548
      %v2736 = vpop.f32.mrb[0].mxu0
      %v2737 = vadd.f32 0.0, %v2736
      %v2738 = vpop.f32.mrb[0].mxu0
      %2739 = vmatprep.mubr.f32.mxu0 0.0
      %2740 = vmatmul.mubr.f32.gmra.mrb[0].mxu0 %v2551
      %v2741 = vpop.f32.mrb[0].mxu0
      %v2742 = vadd.f32 0.0, %v2741
      %v2743 = vpop.f32.mrb[0].mxu0
      %2744 = vmatprep.mubr.f32.mxu0 0.0
      %2745 = vmatmul.mubr.f32.gmra.mrb[0].mxu0 %v2554
      %v2746 = vpop.f32.mrb[0].mxu0
      %v2747 = vadd.f32 0.0, %v2746
      %v2748 = vpop.f32.mrb[0].mxu0
      %2749 = vmatprep.mubr.f32.mxu0 0.0
      %2750 = vmatmul.mubr.f32.gmra.mrb[0].mxu0 %v2557
      %v2751 = vpop.f32.mrb[0].mxu0
      %v2752 = vadd.f32 0.0, %v2751
      %v2753 = vpop.f32.mrb[0].mxu0
      %2754 = vmatprep.mubr.f32.mxu0 0.0
      %2755 = vmatmul.mubr.f32.gmra.mrb[0].mxu0 %v2560
      %v2756 = vpop.f32.mrb[0].mxu0
      %v2757 = vadd.f32 0.0, %v2756
      %v2758 = vpop.f32.mrb[0].mxu0
      %2759 = vmatprep.mubr.f32.mxu0 0.0
      %2760 = vmatmul.mubr.f32.gmra.mrb[0].mxu0 %v2563
      %v2761 = vpop.f32.mrb[0].mxu0
      %v2762 = vadd.f32 0.0, %v2761
      %v2763 = vpop.f32.mrb[0].mxu0
      %2764 = vmatprep.mubr.f32.mxu0 0.0
      %2765 = vmatmul.mubr.f32.gmra.mrb[0].mxu0 %v2566
      %v2766 = vpop.f32.mrb[0].mxu0
      %v2767 = vadd.f32 0.0, %v2766
      %v2768 = vpop.f32.mrb[0].mxu0
      %2769 = vmatprep.mubr.f32.mxu0 0.0
      %2770 = vmatmul.mubr.f32.gmra.mrb[0].mxu0 %v2569
      %v2771 = vpop.f32.mrb[0].mxu0
      %v2772 = vadd.f32 0.0, %v2771
      %v2773 = vpop.f32.mrb[0].mxu0
      %2774 = vmatprep.mubr.f32.mxu0 0.0
      %2775 = vmatmul.mubr.f32.gmra.mrb[0].mxu0 %v2572
      %v2776 = vpop.f32.mrb[0].mxu0
      %v2777 = vadd.f32 0.0, %v2776
      %v2778 = vpop.f32.mrb[0].mxu0
      %2779 = vmatprep.mubr.f32.mxu0 0.0
      %2780 = vmatmul.mubr.f32.gmra.mrb[0].mxu0 %v2575
      %v2781 = vpop.f32.mrb[0].mxu0
      %v2782 = vadd.f32 0.0, %v2781
      %v2783 = vpop.f32.mrb[0].mxu0
      %2784 = vmatprep.mubr.f32.mxu0 0.0
      %2785 = vmatmul.mubr.f32.gmra.mrb[0].mxu0 %v2578
      %v2786 = vpop.f32.mrb[0].mxu0
      %v2787 = vadd.f32 0.0, %v2786
      %v2788 = vpop.f32.mrb[0].mxu0
      %2789 = vmatprep.mubr.f32.mxu0 0.0
      %2790 = vmatmul.mubr.f32.gmra.mrb[0].mxu0 %v2581
      %v2791 = vpop.f32.mrb[0].mxu0
      %v2792 = vadd.f32 0.0, %v2791
      %v2793 = vpop.f32.mrb[0].mxu0
      %2794 = vmatprep.mubr.f32.mxu0 0.0
      %2795 = vmatmul.mubr.f32.gmra.mrb[0].mxu0 %v2584
      %v2796 = vpop.f32.mrb[0].mxu0
      %v2797 = vadd.f32 0.0, %v2796
      %v2798 = vpop.f32.mrb[0].mxu0
      %2799 = vmatprep.mubr.f32.mxu0 0.0
      %2800 = vmatmul.mubr.f32.gmra.mrb[0].mxu0 %v2587
      %v2801 = vpop.f32.mrb[0].mxu0
      %v2802 = vadd.f32 0.0, %v2801
      %v2803 = vpop.f32.mrb[0].mxu0
      %2804 = vmatprep.mubr.f32.mxu0 0.0
      %2805 = vmatmul.mubr.f32.gmra.mrb[0].mxu0 %v2590
      %v2806 = vpop.f32.mrb[0].mxu0
      %v2807 = vadd.f32 0.0, %v2806
      %v2808 = vpop.f32.mrb[0].mxu0
      %2809 = vmatprep.mubr.f32.mxu0 0.0
      %2810 = vmatmul.mubr.f32.gmra.mrb[0].mxu0 %v2593
      %v2811 = vpop.f32.mrb[0].mxu0
      %v2812 = vadd.f32 0.0, %v2811
      %v2813 = vpop.f32.mrb[0].mxu0
      %2814 = vmatprep.mubr.f32.mxu0 0.0
      %2815 = vmatmul.mubr.f32.gmra.mrb[0].mxu0 %v2596
      %v2816 = vpop.f32.mrb[0].mxu0
      %v2817 = vadd.f32 0.0, %v2816
      %v2818 = vpop.f32.mrb[0].mxu0
      %2819 = vmatprep.mubr.f32.mxu0 0.0
      %2820 = vmatmul.mubr.f32.gmra.mrb[0].mxu0 %v2599
      %v2821 = vpop.f32.mrb[0].mxu0
      %v2822 = vadd.f32 0.0, %v2821
      %v2823 = vpop.f32.mrb[0].mxu0
      %2824 = vmatprep.mubr.f32.mxu0 0.0
      %2825 = vmatmul.mubr.f32.gmra.mrb[0].mxu0 %v2602
      %v2826 = vpop.f32.mrb[0].mxu0
      %v2827 = vadd.f32 0.0, %v2826
      %v2828 = vpop.f32.mrb[0].mxu0
      %2829 = vmatprep.mubr.f32.mxu0 0.0
      %2830 = vmatmul.mubr.f32.gmra.mrb[0].mxu0 %v2605
      %v2831 = vpop.f32.mrb[0].mxu0
      %v2832 = vadd.f32 0.0, %v2831
      %v2833 = vpop.f32.mrb[0].mxu0
      %2834 = vdwg.mxu0
      %v2835 = vadd.f32 %v2444, %v2677
      %v2836 = vadd.f32 %v2445, %v2682
      %v2837 = vadd.f32 %v2446, %v2687
      %v2838 = vadd.f32 %v2447, %v2692
      %v2839 = vadd.f32 %v2448, %v2697
      %v2840 = vadd.f32 %v2449, %v2702
      %v2841 = vadd.f32 %v2450, %v2707
      %v2842 = vadd.f32 %v2451, %v2712
      %v2843 = vadd.f32 %v2452, %v2717
      %v2844 = vadd.f32 %v2453, %v2722
      %v2845 = vadd.f32 %v2454, %v2727
      %v2846 = vadd.f32 %v2455, %v2732
      %v2847 = vadd.f32 %v2456, %v2737
      %v2848 = vadd.f32 %v2457, %v2742
      %v2849 = vadd.f32 %v2458, %v2747
      %v2850 = vadd.f32 %v2459, %v2752
      %v2851 = vadd.f32 %v2460, %v2757
      %v2852 = vadd.f32 %v2461, %v2762
      %v2853 = vadd.f32 %v2462, %v2767
      %v2854 = vadd.f32 %v2463, %v2772
      %v2855 = vadd.f32 %v2464, %v2777
      %v2856 = vadd.f32 %v2465, %v2782
      %v2857 = vadd.f32 %v2466, %v2787
      %v2858 = vadd.f32 %v2467, %v2792
      %v2859 = vadd.f32 %v2468, %v2797
      %v2860 = vadd.f32 %v2469, %v2802
      %v2861 = vadd.f32 %v2470, %v2807
      %v2862 = vadd.f32 %v2471, %v2812
      %v2863 = vadd.f32 %v2472, %v2817
      %v2864 = vadd.f32 %v2473, %v2822
      %v2865 = vadd.f32 %v2474, %v2827
      %v2866 = vadd.f32 %v2475, %v2832
      %v2867 = vld [vmem:[%s2476 + $0x1] sm:$0xff]
      %v2868 = vld [vmem:[%s2476 + $0x9] sm:$0xff]
      %v2869 = vld [vmem:[%s2476 + $0x19] sm:$0xff]
      %v2870 = vld [vmem:[%s2476 + $0x21] sm:$0xff]
      %v2871 = vld [vmem:[%s2476 + $0x31] sm:$0xff]
      %v2872 = vld [vmem:[%s2476 + $0x39] sm:$0xff]
      %v2873 = vld [vmem:[%s2476 + $0x49] sm:$0xff]
      %v2874 = vld [vmem:[%s2476 + $0x51] sm:$0xff]
      %v2875 = vld [vmem:[%s2476 + $0x61] sm:$0xff]
      %v2876 = vld [vmem:[%s2476 + $0x69] sm:$0xff]
      %v2877 = vld [vmem:[%s2476 + $0x79] sm:$0xff]
      %v2878 = vld [vmem:[%s2476 + $0x81] sm:$0xff]
      %v2879 = vld [vmem:[%s2476 + $0x91] sm:$0xff]
      %v2880 = vld [vmem:[%s2476 + $0x99] sm:$0xff]
      %v2881 = vld [vmem:[%s2476 + $0xa9] sm:$0xff]
      %v2882 = vld [vmem:[%s2476 + $0xb1] sm:$0xff]
      %v2883 = vld [vmem:[%s2476 + $0xc1] sm:$0xff]
      %v2884 = vld [vmem:[%s2476 + $0xc9] sm:$0xff]
      %v2885 = vld [vmem:[%s2476 + $0xd9] sm:$0xff]
      %v2886 = vld [vmem:[%s2476 + $0xe1] sm:$0xff]
      %v2887 = vld [vmem:[%s2476 + $0xf1] sm:$0xff]
      %v2888 = vld [vmem:[%s2476 + $0xf9] sm:$0xff]
      %v2889 = vld [vmem:[%s2476 + $0x109] sm:$0xff]
      %v2890 = vld [vmem:[%s2476 + $0x111] sm:$0xff]
      %v2891 = vld [vmem:[%s2476 + $0x121] sm:$0xff]
      %v2892 = vld [vmem:[%s2476 + $0x129] sm:$0xff]
      %v2893 = vld [vmem:[%s2476 + $0x139] sm:$0xff]
      %v2894 = vld [vmem:[%s2476 + $0x141] sm:$0xff]
      %v2895 = vld [vmem:[%s2476 + $0x151] sm:$0xff]
      %v2896 = vld [vmem:[%s2476 + $0x159] sm:$0xff]
      %v2897 = vld [vmem:[%s2476 + $0x169] sm:$0xff]
      %v2898 = vld [vmem:[%s2476 + $0x171] sm:$0xff]
      %s2899 = scalar_lea.vmem %s1, 28
      %v2900 = vld [vmem:[%s2899] sm:$0xf]
      %v2902 = vsel %vm265, %v2867, 0
      %v2905 = vsel %vm265, %v2868, 0
      %v2908 = vsel %vm265, %v2869, 0
      %v2911 = vsel %vm265, %v2870, 0
      %v2914 = vsel %vm265, %v2871, 0
      %v2917 = vsel %vm265, %v2872, 0
      %v2920 = vsel %vm265, %v2873, 0
      %v2923 = vsel %vm265, %v2874, 0
      %v2926 = vsel %vm265, %v2875, 0
      %v2929 = vsel %vm265, %v2876, 0
      %v2932 = vsel %vm265, %v2877, 0
      %v2935 = vsel %vm265, %v2878, 0
      %v2938 = vsel %vm265, %v2879, 0
      %v2941 = vsel %vm265, %v2880, 0
      %v2944 = vsel %vm265, %v2881, 0
      %v2947 = vsel %vm265, %v2882, 0
      %v2950 = vsel %vm265, %v2883, 0
      %v2953 = vsel %vm265, %v2884, 0
      %v2956 = vsel %vm265, %v2885, 0
      %v2959 = vsel %vm265, %v2886, 0
      %v2962 = vsel %vm265, %v2887, 0
      %v2965 = vsel %vm265, %v2888, 0
      %v2968 = vsel %vm265, %v2889, 0
      %v2971 = vsel %vm265, %v2890, 0
      %v2974 = vsel %vm265, %v2891, 0
      %v2977 = vsel %vm265, %v2892, 0
      %v2980 = vsel %vm265, %v2893, 0
      %v2983 = vsel %vm265, %v2894, 0
      %v2986 = vsel %vm265, %v2895, 0
      %v2989 = vsel %vm265, %v2896, 0
      %v2992 = vsel %vm265, %v2897, 0
      %v2995 = vsel %vm265, %v2898, 0
      %v2998 = vsel %vm362, %v2900, 0
      %3000 = vmatprep.subr.mxu0 0.0
      %3001 = vmatpush1.msra.mxu0 %v2998
      %3002 = vmatprep.subr.mxu0 0.0
      %3003 = vmatpush1.msra.mxu0 0.0
      %3004 = vmatprep.subr.mxu0 0.0
      %3005 = vmatpush1.msra.mxu0 0.0
      %3006 = vmatprep.subr.mxu0 0.0
      %3007 = vmatpush1.msra.mxu0 0.0
      %3008 = vmatprep.subr.mxu0 0.0
      %3009 = vmatpush1.msra.mxu0 0.0
      %3010 = vmatprep.subr.mxu0 0.0
      %3011 = vmatpush1.msra.mxu0 0.0
      %3012 = vmatprep.subr.mxu0 0.0
      %3013 = vmatpush1.msra.mxu0 0.0
      %3014 = vmatprep.subr.mxu0 0.0
      %3015 = vmatpush1.msra.mxu0 0.0
      %3016 = vmatprep.subr.mxu0 0.0
      %3017 = vmatpush1.msra.mxu0 0.0
      %3018 = vmatprep.subr.mxu0 0.0
      %3019 = vmatpush1.msra.mxu0 0.0
      %3020 = vmatprep.subr.mxu0 0.0
      %3021 = vmatpush1.msra.mxu0 0.0
      %3022 = vmatprep.subr.mxu0 0.0
      %3023 = vmatpush1.msra.mxu0 0.0
      %3024 = vmatprep.subr.mxu0 0.0
      %3025 = vmatpush1.msra.mxu0 0.0
      %3026 = vmatprep.subr.mxu0 0.0
      %3027 = vmatpush1.msra.mxu0 0.0
      %3028 = vmatprep.subr.mxu0 0.0
      %3029 = vmatpush1.msra.mxu0 0.0
      %3030 = vmatprep.subr.mxu0 0.0
      %3031 = vmatpush1.msra.mxu0 0.0
      %3032 = vmatprep.subr.mxu0 0.0
      %3033 = vmatpush1.msra.mxu0 0.0
      %3034 = vmatprep.subr.mxu0 0.0
      %3035 = vmatpush1.msra.mxu0 0.0
      %3036 = vmatprep.subr.mxu0 0.0
      %3037 = vmatpush1.msra.mxu0 0.0
      %3038 = vmatprep.subr.mxu0 0.0
      %3039 = vmatpush1.msra.mxu0 0.0
      %3040 = vmatprep.subr.mxu0 0.0
      %3041 = vmatpush1.msra.mxu0 0.0
      %3042 = vmatprep.subr.mxu0 0.0
      %3043 = vmatpush1.msra.mxu0 0.0
      %3044 = vmatprep.subr.mxu0 0.0
      %3045 = vmatpush1.msra.mxu0 0.0
      %3046 = vmatprep.subr.mxu0 0.0
      %3047 = vmatpush1.msra.mxu0 0.0
      %3048 = vmatprep.subr.mxu0 0.0
      %3049 = vmatpush1.msra.mxu0 0.0
      %3050 = vmatprep.subr.mxu0 0.0
      %3051 = vmatpush1.msra.mxu0 0.0
      %3052 = vmatprep.subr.mxu0 0.0
      %3053 = vmatpush1.msra.mxu0 0.0
      %3054 = vmatprep.subr.mxu0 0.0
      %3055 = vmatpush1.msra.mxu0 0.0
      %3056 = vmatprep.subr.mxu0 0.0
      %3057 = vmatpush1.msra.mxu0 0.0
      %3058 = vmatprep.subr.mxu0 0.0
      %3059 = vmatpush1.msra.mxu0 0.0
      %3060 = vmatprep.subr.mxu0 0.0
      %3061 = vmatpush1.msra.mxu0 0.0
      %3062 = vmatprep.subr.mxu0 0.0
      %3063 = vmatpush1.msra.mxu0 0.0
      %3064 = vmatprep.mubr.f32.mxu0 0.0
      %3065 = vmatmul.mubr.f32.gmra.mrb[0].mxu0 %v2902
      %v3066 = vpop.f32.mrb[0].mxu0
      %v3067 = vadd.f32 0.0, %v3066
      %v3068 = vpop.f32.mrb[0].mxu0
      %3069 = vmatprep.mubr.f32.mxu0 0.0
      %3070 = vmatmul.mubr.f32.gmra.mrb[0].mxu0 %v2905
      %v3071 = vpop.f32.mrb[0].mxu0
      %v3072 = vadd.f32 0.0, %v3071
      %v3073 = vpop.f32.mrb[0].mxu0
      %3074 = vmatprep.mubr.f32.mxu0 0.0
      %3075 = vmatmul.mubr.f32.gmra.mrb[0].mxu0 %v2908
      %v3076 = vpop.f32.mrb[0].mxu0
      %v3077 = vadd.f32 0.0, %v3076
      %v3078 = vpop.f32.mrb[0].mxu0
      %3079 = vmatprep.mubr.f32.mxu0 0.0
      %3080 = vmatmul.mubr.f32.gmra.mrb[0].mxu0 %v2911
      %v3081 = vpop.f32.mrb[0].mxu0
      %v3082 = vadd.f32 0.0, %v3081
      %v3083 = vpop.f32.mrb[0].mxu0
      %3084 = vmatprep.mubr.f32.mxu0 0.0
      %3085 = vmatmul.mubr.f32.gmra.mrb[0].mxu0 %v2914
      %v3086 = vpop.f32.mrb[0].mxu0
      %v3087 = vadd.f32 0.0, %v3086
      %v3088 = vpop.f32.mrb[0].mxu0
      %3089 = vmatprep.mubr.f32.mxu0 0.0
      %3090 = vmatmul.mubr.f32.gmra.mrb[0].mxu0 %v2917
      %v3091 = vpop.f32.mrb[0].mxu0
      %v3092 = vadd.f32 0.0, %v3091
      %v3093 = vpop.f32.mrb[0].mxu0
      %3094 = vmatprep.mubr.f32.mxu0 0.0
      %3095 = vmatmul.mubr.f32.gmra.mrb[0].mxu0 %v2920
      %v3096 = vpop.f32.mrb[0].mxu0
      %v3097 = vadd.f32 0.0, %v3096
      %v3098 = vpop.f32.mrb[0].mxu0
      %3099 = vmatprep.mubr.f32.mxu0 0.0
      %3100 = vmatmul.mubr.f32.gmra.mrb[0].mxu0 %v2923
      %v3101 = vpop.f32.mrb[0].mxu0
      %v3102 = vadd.f32 0.0, %v3101
      %v3103 = vpop.f32.mrb[0].mxu0
      %3104 = vmatprep.mubr.f32.mxu0 0.0
      %3105 = vmatmul.mubr.f32.gmra.mrb[0].mxu0 %v2926
      %v3106 = vpop.f32.mrb[0].mxu0
      %v3107 = vadd.f32 0.0, %v3106
      %v3108 = vpop.f32.mrb[0].mxu0
      %3109 = vmatprep.mubr.f32.mxu0 0.0
      %3110 = vmatmul.mubr.f32.gmra.mrb[0].mxu0 %v2929
      %v3111 = vpop.f32.mrb[0].mxu0
      %v3112 = vadd.f32 0.0, %v3111
      %v3113 = vpop.f32.mrb[0].mxu0
      %3114 = vmatprep.mubr.f32.mxu0 0.0
      %3115 = vmatmul.mubr.f32.gmra.mrb[0].mxu0 %v2932
      %v3116 = vpop.f32.mrb[0].mxu0
      %v3117 = vadd.f32 0.0, %v3116
      %v3118 = vpop.f32.mrb[0].mxu0
      %3119 = vmatprep.mubr.f32.mxu0 0.0
      %3120 = vmatmul.mubr.f32.gmra.mrb[0].mxu0 %v2935
      %v3121 = vpop.f32.mrb[0].mxu0
      %v3122 = vadd.f32 0.0, %v3121
      %v3123 = vpop.f32.mrb[0].mxu0
      %3124 = vmatprep.mubr.f32.mxu0 0.0
      %3125 = vmatmul.mubr.f32.gmra.mrb[0].mxu0 %v2938
      %v3126 = vpop.f32.mrb[0].mxu0
      %v3127 = vadd.f32 0.0, %v3126
      %v3128 = vpop.f32.mrb[0].mxu0
      %3129 = vmatprep.mubr.f32.mxu0 0.0
      %3130 = vmatmul.mubr.f32.gmra.mrb[0].mxu0 %v2941
      %v3131 = vpop.f32.mrb[0].mxu0
      %v3132 = vadd.f32 0.0, %v3131
      %v3133 = vpop.f32.mrb[0].mxu0
      %3134 = vmatprep.mubr.f32.mxu0 0.0
      %3135 = vmatmul.mubr.f32.gmra.mrb[0].mxu0 %v2944
      %v3136 = vpop.f32.mrb[0].mxu0
      %v3137 = vadd.f32 0.0, %v3136
      %v3138 = vpop.f32.mrb[0].mxu0
      %3139 = vmatprep.mubr.f32.mxu0 0.0
      %3140 = vmatmul.mubr.f32.gmra.mrb[0].mxu0 %v2947
      %v3141 = vpop.f32.mrb[0].mxu0
      %v3142 = vadd.f32 0.0, %v3141
      %v3143 = vpop.f32.mrb[0].mxu0
      %3144 = vmatprep.mubr.f32.mxu0 0.0
      %3145 = vmatmul.mubr.f32.gmra.mrb[0].mxu0 %v2950
      %v3146 = vpop.f32.mrb[0].mxu0
      %v3147 = vadd.f32 0.0, %v3146
      %v3148 = vpop.f32.mrb[0].mxu0
      %3149 = vmatprep.mubr.f32.mxu0 0.0
      %3150 = vmatmul.mubr.f32.gmra.mrb[0].mxu0 %v2953
      %v3151 = vpop.f32.mrb[0].mxu0
      %v3152 = vadd.f32 0.0, %v3151
      %v3153 = vpop.f32.mrb[0].mxu0
      %3154 = vmatprep.mubr.f32.mxu0 0.0
      %3155 = vmatmul.mubr.f32.gmra.mrb[0].mxu0 %v2956
      %v3156 = vpop.f32.mrb[0].mxu0
      %v3157 = vadd.f32 0.0, %v3156
      %v3158 = vpop.f32.mrb[0].mxu0
      %3159 = vmatprep.mubr.f32.mxu0 0.0
      %3160 = vmatmul.mubr.f32.gmra.mrb[0].mxu0 %v2959
      %v3161 = vpop.f32.mrb[0].mxu0
      %v3162 = vadd.f32 0.0, %v3161
      %v3163 = vpop.f32.mrb[0].mxu0
      %3164 = vmatprep.mubr.f32.mxu0 0.0
      %3165 = vmatmul.mubr.f32.gmra.mrb[0].mxu0 %v2962
      %v3166 = vpop.f32.mrb[0].mxu0
      %v3167 = vadd.f32 0.0, %v3166
      %v3168 = vpop.f32.mrb[0].mxu0
      %3169 = vmatprep.mubr.f32.mxu0 0.0
      %3170 = vmatmul.mubr.f32.gmra.mrb[0].mxu0 %v2965
      %v3171 = vpop.f32.mrb[0].mxu0
      %v3172 = vadd.f32 0.0, %v3171
      %v3173 = vpop.f32.mrb[0].mxu0
      %3174 = vmatprep.mubr.f32.mxu0 0.0
      %3175 = vmatmul.mubr.f32.gmra.mrb[0].mxu0 %v2968
      %v3176 = vpop.f32.mrb[0].mxu0
      %v3177 = vadd.f32 0.0, %v3176
      %v3178 = vpop.f32.mrb[0].mxu0
      %3179 = vmatprep.mubr.f32.mxu0 0.0
      %3180 = vmatmul.mubr.f32.gmra.mrb[0].mxu0 %v2971
      %v3181 = vpop.f32.mrb[0].mxu0
      %v3182 = vadd.f32 0.0, %v3181
      %v3183 = vpop.f32.mrb[0].mxu0
      %3184 = vmatprep.mubr.f32.mxu0 0.0
      %3185 = vmatmul.mubr.f32.gmra.mrb[0].mxu0 %v2974
      %v3186 = vpop.f32.mrb[0].mxu0
      %v3187 = vadd.f32 0.0, %v3186
      %v3188 = vpop.f32.mrb[0].mxu0
      %3189 = vmatprep.mubr.f32.mxu0 0.0
      %3190 = vmatmul.mubr.f32.gmra.mrb[0].mxu0 %v2977
      %v3191 = vpop.f32.mrb[0].mxu0
      %v3192 = vadd.f32 0.0, %v3191
      %v3193 = vpop.f32.mrb[0].mxu0
      %3194 = vmatprep.mubr.f32.mxu0 0.0
      %3195 = vmatmul.mubr.f32.gmra.mrb[0].mxu0 %v2980
      %v3196 = vpop.f32.mrb[0].mxu0
      %v3197 = vadd.f32 0.0, %v3196
      %v3198 = vpop.f32.mrb[0].mxu0
      %3199 = vmatprep.mubr.f32.mxu0 0.0
      %3200 = vmatmul.mubr.f32.gmra.mrb[0].mxu0 %v2983
      %v3201 = vpop.f32.mrb[0].mxu0
      %v3202 = vadd.f32 0.0, %v3201
      %v3203 = vpop.f32.mrb[0].mxu0
      %3204 = vmatprep.mubr.f32.mxu0 0.0
      %3205 = vmatmul.mubr.f32.gmra.mrb[0].mxu0 %v2986
      %v3206 = vpop.f32.mrb[0].mxu0
      %v3207 = vadd.f32 0.0, %v3206
      %v3208 = vpop.f32.mrb[0].mxu0
      %3209 = vmatprep.mubr.f32.mxu0 0.0
      %3210 = vmatmul.mubr.f32.gmra.mrb[0].mxu0 %v2989
      %v3211 = vpop.f32.mrb[0].mxu0
      %v3212 = vadd.f32 0.0, %v3211
      %v3213 = vpop.f32.mrb[0].mxu0
      %3214 = vmatprep.mubr.f32.mxu0 0.0
      %3215 = vmatmul.mubr.f32.gmra.mrb[0].mxu0 %v2992
      %v3216 = vpop.f32.mrb[0].mxu0
      %v3217 = vadd.f32 0.0, %v3216
      %v3218 = vpop.f32.mrb[0].mxu0
      %3219 = vmatprep.mubr.f32.mxu0 0.0
      %3220 = vmatmul.mubr.f32.gmra.mrb[0].mxu0 %v2995
      %v3221 = vpop.f32.mrb[0].mxu0
      %v3222 = vadd.f32 0.0, %v3221
      %v3223 = vpop.f32.mrb[0].mxu0
      %3224 = vdwg.mxu0
      %v3225 = vadd.f32 %v2835, %v3067
      %v3226 = vadd.f32 %v2836, %v3072
      %v3227 = vadd.f32 %v2837, %v3077
      %v3228 = vadd.f32 %v2838, %v3082
      %v3229 = vadd.f32 %v2839, %v3087
      %v3230 = vadd.f32 %v2840, %v3092
      %v3231 = vadd.f32 %v2841, %v3097
      %v3232 = vadd.f32 %v2842, %v3102
      %v3233 = vadd.f32 %v2843, %v3107
      %v3234 = vadd.f32 %v2844, %v3112
      %v3235 = vadd.f32 %v2845, %v3117
      %v3236 = vadd.f32 %v2846, %v3122
      %v3237 = vadd.f32 %v2847, %v3127
      %v3238 = vadd.f32 %v2848, %v3132
      %v3239 = vadd.f32 %v2849, %v3137
      %v3240 = vadd.f32 %v2850, %v3142
      %v3241 = vadd.f32 %v2851, %v3147
      %v3242 = vadd.f32 %v2852, %v3152
      %v3243 = vadd.f32 %v2853, %v3157
      %v3244 = vadd.f32 %v2854, %v3162
      %v3245 = vadd.f32 %v2855, %v3167
      %v3246 = vadd.f32 %v2856, %v3172
      %v3247 = vadd.f32 %v2857, %v3177
      %v3248 = vadd.f32 %v2858, %v3182
      %v3249 = vadd.f32 %v2859, %v3187
      %v3250 = vadd.f32 %v2860, %v3192
      %v3251 = vadd.f32 %v2861, %v3197
      %v3252 = vadd.f32 %v2862, %v3202
      %v3253 = vadd.f32 %v2863, %v3207
      %v3254 = vadd.f32 %v2864, %v3212
      %v3255 = vadd.f32 %v2865, %v3217
      %v3256 = vadd.f32 %v2866, %v3222
      %v3257 = vld [vmem:[%s2476 + $0x2] sm:$0xff]
      %v3258 = vld [vmem:[%s2476 + $0xa] sm:$0xff]
      %v3259 = vld [vmem:[%s2476 + $0x1a] sm:$0xff]
      %v3260 = vld [vmem:[%s2476 + $0x22] sm:$0xff]
      %v3261 = vld [vmem:[%s2476 + $0x32] sm:$0xff]
      %v3262 = vld [vmem:[%s2476 + $0x3a] sm:$0xff]
      %v3263 = vld [vmem:[%s2476 + $0x4a] sm:$0xff]
      %v3264 = vld [vmem:[%s2476 + $0x52] sm:$0xff]
      %v3265 = vld [vmem:[%s2476 + $0x62] sm:$0xff]
      %v3266 = vld [vmem:[%s2476 + $0x6a] sm:$0xff]
      %v3267 = vld [vmem:[%s2476 + $0x7a] sm:$0xff]
      %v3268 = vld [vmem:[%s2476 + $0x82] sm:$0xff]
      %v3269 = vld [vmem:[%s2476 + $0x92] sm:$0xff]
      %v3270 = vld [vmem:[%s2476 + $0x9a] sm:$0xff]
      %v3271 = vld [vmem:[%s2476 + $0xaa] sm:$0xff]
      %v3272 = vld [vmem:[%s2476 + $0xb2] sm:$0xff]
      %v3273 = vld [vmem:[%s2476 + $0xc2] sm:$0xff]
      %v3274 = vld [vmem:[%s2476 + $0xca] sm:$0xff]
      %v3275 = vld [vmem:[%s2476 + $0xda] sm:$0xff]
      %v3276 = vld [vmem:[%s2476 + $0xe2] sm:$0xff]
      %v3277 = vld [vmem:[%s2476 + $0xf2] sm:$0xff]
      %v3278 = vld [vmem:[%s2476 + $0xfa] sm:$0xff]
      %v3279 = vld [vmem:[%s2476 + $0x10a] sm:$0xff]
      %v3280 = vld [vmem:[%s2476 + $0x112] sm:$0xff]
      %v3281 = vld [vmem:[%s2476 + $0x122] sm:$0xff]
      %v3282 = vld [vmem:[%s2476 + $0x12a] sm:$0xff]
      %v3283 = vld [vmem:[%s2476 + $0x13a] sm:$0xff]
      %v3284 = vld [vmem:[%s2476 + $0x142] sm:$0xff]
      %v3285 = vld [vmem:[%s2476 + $0x152] sm:$0xff]
      %v3286 = vld [vmem:[%s2476 + $0x15a] sm:$0xff]
      %v3287 = vld [vmem:[%s2476 + $0x16a] sm:$0xff]
      %v3288 = vld [vmem:[%s2476 + $0x172] sm:$0xff]
      %s3289 = scalar_lea.vmem %s1, 32
      %v3290 = vld [vmem:[%s3289] sm:$0xf]
      %v3292 = vsel %vm265, %v3257, 0
      %v3295 = vsel %vm265, %v3258, 0
      %v3298 = vsel %vm265, %v3259, 0
      %v3301 = vsel %vm265, %v3260, 0
      %v3304 = vsel %vm265, %v3261, 0
      %v3307 = vsel %vm265, %v3262, 0
      %v3310 = vsel %vm265, %v3263, 0
      %v3313 = vsel %vm265, %v3264, 0
      %v3316 = vsel %vm265, %v3265, 0
      %v3319 = vsel %vm265, %v3266, 0
      %v3322 = vsel %vm265, %v3267, 0
      %v3325 = vsel %vm265, %v3268, 0
      %v3328 = vsel %vm265, %v3269, 0
      %v3331 = vsel %vm265, %v3270, 0
      %v3334 = vsel %vm265, %v3271, 0
      %v3337 = vsel %vm265, %v3272, 0
      %v3340 = vsel %vm265, %v3273, 0
      %v3343 = vsel %vm265, %v3274, 0
      %v3346 = vsel %vm265, %v3275, 0
      %v3349 = vsel %vm265, %v3276, 0
      %v3352 = vsel %vm265, %v3277, 0
      %v3355 = vsel %vm265, %v3278, 0
      %v3358 = vsel %vm265, %v3279, 0
      %v3361 = vsel %vm265, %v3280, 0
      %v3364 = vsel %vm265, %v3281, 0
      %v3367 = vsel %vm265, %v3282, 0
      %v3370 = vsel %vm265, %v3283, 0
      %v3373 = vsel %vm265, %v3284, 0
      %v3376 = vsel %vm265, %v3285, 0
      %v3379 = vsel %vm265, %v3286, 0
      %v3382 = vsel %vm265, %v3287, 0
      %v3385 = vsel %vm265, %v3288, 0
      %v3388 = vsel %vm362, %v3290, 0
      %3390 = vmatprep.subr.mxu0 0.0
      %3391 = vmatpush1.msra.mxu0 %v3388
      %3392 = vmatprep.subr.mxu0 0.0
      %3393 = vmatpush1.msra.mxu0 0.0
      %3394 = vmatprep.subr.mxu0 0.0
      %3395 = vmatpush1.msra.mxu0 0.0
      %3396 = vmatprep.subr.mxu0 0.0
      %3397 = vmatpush1.msra.mxu0 0.0
      %3398 = vmatprep.subr.mxu0 0.0
      %3399 = vmatpush1.msra.mxu0 0.0
      %3400 = vmatprep.subr.mxu0 0.0
      %3401 = vmatpush1.msra.mxu0 0.0
      %3402 = vmatprep.subr.mxu0 0.0
      %3403 = vmatpush1.msra.mxu0 0.0
      %3404 = vmatprep.subr.mxu0 0.0
      %3405 = vmatpush1.msra.mxu0 0.0
      %3406 = vmatprep.subr.mxu0 0.0
      %3407 = vmatpush1.msra.mxu0 0.0
      %3408 = vmatprep.subr.mxu0 0.0
      %3409 = vmatpush1.msra.mxu0 0.0
      %3410 = vmatprep.subr.mxu0 0.0
      %3411 = vmatpush1.msra.mxu0 0.0
      %3412 = vmatprep.subr.mxu0 0.0
      %3413 = vmatpush1.msra.mxu0 0.0
      %3414 = vmatprep.subr.mxu0 0.0
      %3415 = vmatpush1.msra.mxu0 0.0
      %3416 = vmatprep.subr.mxu0 0.0
      %3417 = vmatpush1.msra.mxu0 0.0
      %3418 = vmatprep.subr.mxu0 0.0
      %3419 = vmatpush1.msra.mxu0 0.0
      %3420 = vmatprep.subr.mxu0 0.0
      %3421 = vmatpush1.msra.mxu0 0.0
      %3422 = vmatprep.subr.mxu0 0.0
      %3423 = vmatpush1.msra.mxu0 0.0
      %3424 = vmatprep.subr.mxu0 0.0
      %3425 = vmatpush1.msra.mxu0 0.0
      %3426 = vmatprep.subr.mxu0 0.0
      %3427 = vmatpush1.msra.mxu0 0.0
      %3428 = vmatprep.subr.mxu0 0.0
      %3429 = vmatpush1.msra.mxu0 0.0
      %3430 = vmatprep.subr.mxu0 0.0
      %3431 = vmatpush1.msra.mxu0 0.0
      %3432 = vmatprep.subr.mxu0 0.0
      %3433 = vmatpush1.msra.mxu0 0.0
      %3434 = vmatprep.subr.mxu0 0.0
      %3435 = vmatpush1.msra.mxu0 0.0
      %3436 = vmatprep.subr.mxu0 0.0
      %3437 = vmatpush1.msra.mxu0 0.0
      %3438 = vmatprep.subr.mxu0 0.0
      %3439 = vmatpush1.msra.mxu0 0.0
      %3440 = vmatprep.subr.mxu0 0.0
      %3441 = vmatpush1.msra.mxu0 0.0
      %3442 = vmatprep.subr.mxu0 0.0
      %3443 = vmatpush1.msra.mxu0 0.0
      %3444 = vmatprep.subr.mxu0 0.0
      %3445 = vmatpush1.msra.mxu0 0.0
      %3446 = vmatprep.subr.mxu0 0.0
      %3447 = vmatpush1.msra.mxu0 0.0
      %3448 = vmatprep.subr.mxu0 0.0
      %3449 = vmatpush1.msra.mxu0 0.0
      %3450 = vmatprep.subr.mxu0 0.0
      %3451 = vmatpush1.msra.mxu0 0.0
      %3452 = vmatprep.subr.mxu0 0.0
      %3453 = vmatpush1.msra.mxu0 0.0
      %3454 = vmatprep.mubr.f32.mxu0 0.0
      %3455 = vmatmul.mubr.f32.gmra.mrb[0].mxu0 %v3292
      %v3456 = vpop.f32.mrb[0].mxu0
      %v3457 = vadd.f32 0.0, %v3456
      %v3458 = vpop.f32.mrb[0].mxu0
      %3459 = vmatprep.mubr.f32.mxu0 0.0
      %3460 = vmatmul.mubr.f32.gmra.mrb[0].mxu0 %v3295
      %v3461 = vpop.f32.mrb[0].mxu0
      %v3462 = vadd.f32 0.0, %v3461
      %v3463 = vpop.f32.mrb[0].mxu0
      %3464 = vmatprep.mubr.f32.mxu0 0.0
      %3465 = vmatmul.mubr.f32.gmra.mrb[0].mxu0 %v3298
      %v3466 = vpop.f32.mrb[0].mxu0
      %v3467 = vadd.f32 0.0, %v3466
      %v3468 = vpop.f32.mrb[0].mxu0
      %3469 = vmatprep.mubr.f32.mxu0 0.0
      %3470 = vmatmul.mubr.f32.gmra.mrb[0].mxu0 %v3301
      %v3471 = vpop.f32.mrb[0].mxu0
      %v3472 = vadd.f32 0.0, %v3471
      %v3473 = vpop.f32.mrb[0].mxu0
      %3474 = vmatprep.mubr.f32.mxu0 0.0
      %3475 = vmatmul.mubr.f32.gmra.mrb[0].mxu0 %v3304
      %v3476 = vpop.f32.mrb[0].mxu0
      %v3477 = vadd.f32 0.0, %v3476
      %v3478 = vpop.f32.mrb[0].mxu0
      %3479 = vmatprep.mubr.f32.mxu0 0.0
      %3480 = vmatmul.mubr.f32.gmra.mrb[0].mxu0 %v3307
      %v3481 = vpop.f32.mrb[0].mxu0
      %v3482 = vadd.f32 0.0, %v3481
      %v3483 = vpop.f32.mrb[0].mxu0
      %3484 = vmatprep.mubr.f32.mxu0 0.0
      %3485 = vmatmul.mubr.f32.gmra.mrb[0].mxu0 %v3310
      %v3486 = vpop.f32.mrb[0].mxu0
      %v3487 = vadd.f32 0.0, %v3486
      %v3488 = vpop.f32.mrb[0].mxu0
      %3489 = vmatprep.mubr.f32.mxu0 0.0
      %3490 = vmatmul.mubr.f32.gmra.mrb[0].mxu0 %v3313
      %v3491 = vpop.f32.mrb[0].mxu0
      %v3492 = vadd.f32 0.0, %v3491
      %v3493 = vpop.f32.mrb[0].mxu0
      %3494 = vmatprep.mubr.f32.mxu0 0.0
      %3495 = vmatmul.mubr.f32.gmra.mrb[0].mxu0 %v3316
      %v3496 = vpop.f32.mrb[0].mxu0
      %v3497 = vadd.f32 0.0, %v3496
      %v3498 = vpop.f32.mrb[0].mxu0
      %3499 = vmatprep.mubr.f32.mxu0 0.0
      %3500 = vmatmul.mubr.f32.gmra.mrb[0].mxu0 %v3319
      %v3501 = vpop.f32.mrb[0].mxu0
      %v3502 = vadd.f32 0.0, %v3501
      %v3503 = vpop.f32.mrb[0].mxu0
      %3504 = vmatprep.mubr.f32.mxu0 0.0
      %3505 = vmatmul.mubr.f32.gmra.mrb[0].mxu0 %v3322
      %v3506 = vpop.f32.mrb[0].mxu0
      %v3507 = vadd.f32 0.0, %v3506
      %v3508 = vpop.f32.mrb[0].mxu0
      %3509 = vmatprep.mubr.f32.mxu0 0.0
      %3510 = vmatmul.mubr.f32.gmra.mrb[0].mxu0 %v3325
      %v3511 = vpop.f32.mrb[0].mxu0
      %v3512 = vadd.f32 0.0, %v3511
      %v3513 = vpop.f32.mrb[0].mxu0
      %3514 = vmatprep.mubr.f32.mxu0 0.0
      %3515 = vmatmul.mubr.f32.gmra.mrb[0].mxu0 %v3328
      %v3516 = vpop.f32.mrb[0].mxu0
      %v3517 = vadd.f32 0.0, %v3516
      %v3518 = vpop.f32.mrb[0].mxu0
      %3519 = vmatprep.mubr.f32.mxu0 0.0
      %3520 = vmatmul.mubr.f32.gmra.mrb[0].mxu0 %v3331
      %v3521 = vpop.f32.mrb[0].mxu0
      %v3522 = vadd.f32 0.0, %v3521
      %v3523 = vpop.f32.mrb[0].mxu0
      %3524 = vmatprep.mubr.f32.mxu0 0.0
      %3525 = vmatmul.mubr.f32.gmra.mrb[0].mxu0 %v3334
      %v3526 = vpop.f32.mrb[0].mxu0
      %v3527 = vadd.f32 0.0, %v3526
      %v3528 = vpop.f32.mrb[0].mxu0
      %3529 = vmatprep.mubr.f32.mxu0 0.0
      %3530 = vmatmul.mubr.f32.gmra.mrb[0].mxu0 %v3337
      %v3531 = vpop.f32.mrb[0].mxu0
      %v3532 = vadd.f32 0.0, %v3531
      %v3533 = vpop.f32.mrb[0].mxu0
      %3534 = vmatprep.mubr.f32.mxu0 0.0
      %3535 = vmatmul.mubr.f32.gmra.mrb[0].mxu0 %v3340
      %v3536 = vpop.f32.mrb[0].mxu0
      %v3537 = vadd.f32 0.0, %v3536
      %v3538 = vpop.f32.mrb[0].mxu0
      %3539 = vmatprep.mubr.f32.mxu0 0.0
      %3540 = vmatmul.mubr.f32.gmra.mrb[0].mxu0 %v3343
      %v3541 = vpop.f32.mrb[0].mxu0
      %v3542 = vadd.f32 0.0, %v3541
      %v3543 = vpop.f32.mrb[0].mxu0
      %3544 = vmatprep.mubr.f32.mxu0 0.0
      %3545 = vmatmul.mubr.f32.gmra.mrb[0].mxu0 %v3346
      %v3546 = vpop.f32.mrb[0].mxu0
      %v3547 = vadd.f32 0.0, %v3546
      %v3548 = vpop.f32.mrb[0].mxu0
      %3549 = vmatprep.mubr.f32.mxu0 0.0
      %3550 = vmatmul.mubr.f32.gmra.mrb[0].mxu0 %v3349
      %v3551 = vpop.f32.mrb[0].mxu0
      %v3552 = vadd.f32 0.0, %v3551
      %v3553 = vpop.f32.mrb[0].mxu0
      %3554 = vmatprep.mubr.f32.mxu0 0.0
      %3555 = vmatmul.mubr.f32.gmra.mrb[0].mxu0 %v3352
      %v3556 = vpop.f32.mrb[0].mxu0
      %v3557 = vadd.f32 0.0, %v3556
      %v3558 = vpop.f32.mrb[0].mxu0
      %3559 = vmatprep.mubr.f32.mxu0 0.0
      %3560 = vmatmul.mubr.f32.gmra.mrb[0].mxu0 %v3355
      %v3561 = vpop.f32.mrb[0].mxu0
      %v3562 = vadd.f32 0.0, %v3561
      %v3563 = vpop.f32.mrb[0].mxu0
      %3564 = vmatprep.mubr.f32.mxu0 0.0
      %3565 = vmatmul.mubr.f32.gmra.mrb[0].mxu0 %v3358
      %v3566 = vpop.f32.mrb[0].mxu0
      %v3567 = vadd.f32 0.0, %v3566
      %v3568 = vpop.f32.mrb[0].mxu0
      %3569 = vmatprep.mubr.f32.mxu0 0.0
      %3570 = vmatmul.mubr.f32.gmra.mrb[0].mxu0 %v3361
      %v3571 = vpop.f32.mrb[0].mxu0
      %v3572 = vadd.f32 0.0, %v3571
      %v3573 = vpop.f32.mrb[0].mxu0
      %3574 = vmatprep.mubr.f32.mxu0 0.0
      %3575 = vmatmul.mubr.f32.gmra.mrb[0].mxu0 %v3364
      %v3576 = vpop.f32.mrb[0].mxu0
      %v3577 = vadd.f32 0.0, %v3576
      %v3578 = vpop.f32.mrb[0].mxu0
      %3579 = vmatprep.mubr.f32.mxu0 0.0
      %3580 = vmatmul.mubr.f32.gmra.mrb[0].mxu0 %v3367
      %v3581 = vpop.f32.mrb[0].mxu0
      %v3582 = vadd.f32 0.0, %v3581
      %v3583 = vpop.f32.mrb[0].mxu0
      %3584 = vmatprep.mubr.f32.mxu0 0.0
      %3585 = vmatmul.mubr.f32.gmra.mrb[0].mxu0 %v3370
      %v3586 = vpop.f32.mrb[0].mxu0
      %v3587 = vadd.f32 0.0, %v3586
      %v3588 = vpop.f32.mrb[0].mxu0
      %3589 = vmatprep.mubr.f32.mxu0 0.0
      %3590 = vmatmul.mubr.f32.gmra.mrb[0].mxu0 %v3373
      %v3591 = vpop.f32.mrb[0].mxu0
      %v3592 = vadd.f32 0.0, %v3591
      %v3593 = vpop.f32.mrb[0].mxu0
      %3594 = vmatprep.mubr.f32.mxu0 0.0
      %3595 = vmatmul.mubr.f32.gmra.mrb[0].mxu0 %v3376
      %v3596 = vpop.f32.mrb[0].mxu0
      %v3597 = vadd.f32 0.0, %v3596
      %v3598 = vpop.f32.mrb[0].mxu0
      %3599 = vmatprep.mubr.f32.mxu0 0.0
      %3600 = vmatmul.mubr.f32.gmra.mrb[0].mxu0 %v3379
      %v3601 = vpop.f32.mrb[0].mxu0
      %v3602 = vadd.f32 0.0, %v3601
      %v3603 = vpop.f32.mrb[0].mxu0
      %3604 = vmatprep.mubr.f32.mxu0 0.0
      %3605 = vmatmul.mubr.f32.gmra.mrb[0].mxu0 %v3382
      %v3606 = vpop.f32.mrb[0].mxu0
      %v3607 = vadd.f32 0.0, %v3606
      %v3608 = vpop.f32.mrb[0].mxu0
      %3609 = vmatprep.mubr.f32.mxu0 0.0
      %3610 = vmatmul.mubr.f32.gmra.mrb[0].mxu0 %v3385
      %v3611 = vpop.f32.mrb[0].mxu0
      %v3612 = vadd.f32 0.0, %v3611
      %v3613 = vpop.f32.mrb[0].mxu0
      %3614 = vdwg.mxu0
      %v3615 = vadd.f32 %v3225, %v3457
      %v3616 = vadd.f32 %v3226, %v3462
      %v3617 = vadd.f32 %v3227, %v3467
      %v3618 = vadd.f32 %v3228, %v3472
      %v3619 = vadd.f32 %v3229, %v3477
      %v3620 = vadd.f32 %v3230, %v3482
      %v3621 = vadd.f32 %v3231, %v3487
      %v3622 = vadd.f32 %v3232, %v3492
      %v3623 = vadd.f32 %v3233, %v3497
      %v3624 = vadd.f32 %v3234, %v3502
      %v3625 = vadd.f32 %v3235, %v3507
      %v3626 = vadd.f32 %v3236, %v3512
      %v3627 = vadd.f32 %v3237, %v3517
      %v3628 = vadd.f32 %v3238, %v3522
      %v3629 = vadd.f32 %v3239, %v3527
      %v3630 = vadd.f32 %v3240, %v3532
      %v3631 = vadd.f32 %v3241, %v3537
      %v3632 = vadd.f32 %v3242, %v3542
      %v3633 = vadd.f32 %v3243, %v3547
      %v3634 = vadd.f32 %v3244, %v3552
      %v3635 = vadd.f32 %v3245, %v3557
      %v3636 = vadd.f32 %v3246, %v3562
      %v3637 = vadd.f32 %v3247, %v3567
      %v3638 = vadd.f32 %v3248, %v3572
      %v3639 = vadd.f32 %v3249, %v3577
      %v3640 = vadd.f32 %v3250, %v3582
      %v3641 = vadd.f32 %v3251, %v3587
      %v3642 = vadd.f32 %v3252, %v3592
      %v3643 = vadd.f32 %v3253, %v3597
      %v3644 = vadd.f32 %v3254, %v3602
      %v3645 = vadd.f32 %v3255, %v3607
      %v3646 = vadd.f32 %v3256, %v3612
      %v3647 = vld [vmem:[%s2] sm:$0x1]
      %v3649 = vlaneseq
      %v3650 = vshrl.u32 %v3649, 7
      %v3651 = vsub.s32 0, %v3650
      %v3652 = vrot.slane %v3647, %v3651
      %v3654 = vmul.f32 %v3615, %v3652
      %v3655 = vmul.f32 %v3616, %v3652
      %v3656 = vmul.f32 %v3617, %v3652
      %v3657 = vmul.f32 %v3618, %v3652
      %v3658 = vmul.f32 %v3619, %v3652
      %v3659 = vmul.f32 %v3620, %v3652
      %v3660 = vmul.f32 %v3621, %v3652
      %v3661 = vmul.f32 %v3622, %v3652
      %v3662 = vmul.f32 %v3623, %v3652
      %v3663 = vmul.f32 %v3624, %v3652
      %v3664 = vmul.f32 %v3625, %v3652
      %v3665 = vmul.f32 %v3626, %v3652
      %v3666 = vmul.f32 %v3627, %v3652
      %v3667 = vmul.f32 %v3628, %v3652
      %v3668 = vmul.f32 %v3629, %v3652
      %v3669 = vmul.f32 %v3630, %v3652
      %v3670 = vmul.f32 %v3631, %v3652
      %v3671 = vmul.f32 %v3632, %v3652
      %v3672 = vmul.f32 %v3633, %v3652
      %v3673 = vmul.f32 %v3634, %v3652
      %v3674 = vmul.f32 %v3635, %v3652
      %v3675 = vmul.f32 %v3636, %v3652
      %v3676 = vmul.f32 %v3637, %v3652
      %v3677 = vmul.f32 %v3638, %v3652
      %v3678 = vmul.f32 %v3639, %v3652
      %v3679 = vmul.f32 %v3640, %v3652
      %v3680 = vmul.f32 %v3641, %v3652
      %v3681 = vmul.f32 %v3642, %v3652
      %v3682 = vmul.f32 %v3643, %v3652
      %v3683 = vmul.f32 %v3644, %v3652
      %v3684 = vmul.f32 %v3645, %v3652
      %v3685 = vmul.f32 %v3646, %v3652
      %v3686 = vld [vmem:[%s3] sm:$0x1]
      %v3688 = vlaneseq
      %v3689 = vshrl.u32 %v3688, 7
      %v3690 = vsub.s32 0, %v3689
      %v3691 = vrot.slane %v3686, %v3690
      %v3693 = vadd.f32 %v3654, %v3691
      %v3694 = vadd.f32 %v3655, %v3691
      %v3695 = vadd.f32 %v3656, %v3691
      %v3696 = vadd.f32 %v3657, %v3691
      %v3697 = vadd.f32 %v3658, %v3691
      %v3698 = vadd.f32 %v3659, %v3691
      %v3699 = vadd.f32 %v3660, %v3691
      %v3700 = vadd.f32 %v3661, %v3691
      %v3701 = vadd.f32 %v3662, %v3691
      %v3702 = vadd.f32 %v3663, %v3691
      %v3703 = vadd.f32 %v3664, %v3691
      %v3704 = vadd.f32 %v3665, %v3691
      %v3705 = vadd.f32 %v3666, %v3691
      %v3706 = vadd.f32 %v3667, %v3691
      %v3707 = vadd.f32 %v3668, %v3691
      %v3708 = vadd.f32 %v3669, %v3691
      %v3709 = vadd.f32 %v3670, %v3691
      %v3710 = vadd.f32 %v3671, %v3691
      %v3711 = vadd.f32 %v3672, %v3691
      %v3712 = vadd.f32 %v3673, %v3691
      %v3713 = vadd.f32 %v3674, %v3691
      %v3714 = vadd.f32 %v3675, %v3691
      %v3715 = vadd.f32 %v3676, %v3691
      %v3716 = vadd.f32 %v3677, %v3691
      %v3717 = vadd.f32 %v3678, %v3691
      %v3718 = vadd.f32 %v3679, %v3691
      %v3719 = vadd.f32 %v3680, %v3691
      %v3720 = vadd.f32 %v3681, %v3691
      %v3721 = vadd.f32 %v3682, %v3691
      %v3722 = vadd.f32 %v3683, %v3691
      %v3723 = vadd.f32 %v3684, %v3691
      %v3724 = vadd.f32 %v3685, %v3691
      %v3725 = vxor.u32 %v3693, 2147483648
      %v3726 = vxor.u32 %v3694, 2147483648
      %v3727 = vxor.u32 %v3695, 2147483648
      %v3728 = vxor.u32 %v3696, 2147483648
      %v3729 = vxor.u32 %v3697, 2147483648
      %v3730 = vxor.u32 %v3698, 2147483648
      %v3731 = vxor.u32 %v3699, 2147483648
      %v3732 = vxor.u32 %v3700, 2147483648
      %v3733 = vxor.u32 %v3701, 2147483648
      %v3734 = vxor.u32 %v3702, 2147483648
      %v3735 = vxor.u32 %v3703, 2147483648
      %v3736 = vxor.u32 %v3704, 2147483648
      %v3737 = vxor.u32 %v3705, 2147483648
      %v3738 = vxor.u32 %v3706, 2147483648
      %v3739 = vxor.u32 %v3707, 2147483648
      %v3740 = vxor.u32 %v3708, 2147483648
      %v3741 = vxor.u32 %v3709, 2147483648
      %v3742 = vxor.u32 %v3710, 2147483648
      %v3743 = vxor.u32 %v3711, 2147483648
      %v3744 = vxor.u32 %v3712, 2147483648
      %v3745 = vxor.u32 %v3713, 2147483648
      %v3746 = vxor.u32 %v3714, 2147483648
      %v3747 = vxor.u32 %v3715, 2147483648
      %v3748 = vxor.u32 %v3716, 2147483648
      %v3749 = vxor.u32 %v3717, 2147483648
      %v3750 = vxor.u32 %v3718, 2147483648
      %v3751 = vxor.u32 %v3719, 2147483648
      %v3752 = vxor.u32 %v3720, 2147483648
      %v3753 = vxor.u32 %v3721, 2147483648
      %v3754 = vxor.u32 %v3722, 2147483648
      %v3755 = vxor.u32 %v3723, 2147483648
      %v3756 = vxor.u32 %v3724, 2147483648
      %v3757 = vmul.f32 %v3725, 1.442695
      %v3758 = vpow.pop %v3757
      %v3759 = vmul.f32 %v3726, 1.442695
      %v3760 = vpow.pop %v3759
      %v3761 = vmul.f32 %v3727, 1.442695
      %v3762 = vpow.pop %v3761
      %v3763 = vmul.f32 %v3728, 1.442695
      %v3764 = vpow.pop %v3763
      %v3765 = vmul.f32 %v3729, 1.442695
      %v3766 = vpow.pop %v3765
      %v3767 = vmul.f32 %v3730, 1.442695
      %v3768 = vpow.pop %v3767
      %v3769 = vmul.f32 %v3731, 1.442695
      %v3770 = vpow.pop %v3769
      %v3771 = vmul.f32 %v3732, 1.442695
      %v3772 = vpow.pop %v3771
      %v3773 = vmul.f32 %v3733, 1.442695
      %v3774 = vpow.pop %v3773
      %v3775 = vmul.f32 %v3734, 1.442695
      %v3776 = vpow.pop %v3775
      %v3777 = vmul.f32 %v3735, 1.442695
      %v3778 = vpow.pop %v3777
      %v3779 = vmul.f32 %v3736, 1.442695
      %v3780 = vpow.pop %v3779
      %v3781 = vmul.f32 %v3737, 1.442695
      %v3782 = vpow.pop %v3781
      %v3783 = vmul.f32 %v3738, 1.442695
      %v3784 = vpow.pop %v3783
      %v3785 = vmul.f32 %v3739, 1.442695
      %v3786 = vpow.pop %v3785
      %v3787 = vmul.f32 %v3740, 1.442695
      %v3788 = vpow.pop %v3787
      %v3789 = vmul.f32 %v3741, 1.442695
      %v3790 = vpow.pop %v3789
      %v3791 = vmul.f32 %v3742, 1.442695
      %v3792 = vpow.pop %v3791
      %v3793 = vmul.f32 %v3743, 1.442695
      %v3794 = vpow.pop %v3793
      %v3795 = vmul.f32 %v3744, 1.442695
      %v3796 = vpow.pop %v3795
      %v3797 = vmul.f32 %v3745, 1.442695
      %v3798 = vpow.pop %v3797
      %v3799 = vmul.f32 %v3746, 1.442695
      %v3800 = vpow.pop %v3799
      %v3801 = vmul.f32 %v3747, 1.442695
      %v3802 = vpow.pop %v3801
      %v3803 = vmul.f32 %v3748, 1.442695
      %v3804 = vpow.pop %v3803
      %v3805 = vmul.f32 %v3749, 1.442695
      %v3806 = vpow.pop %v3805
      %v3807 = vmul.f32 %v3750, 1.442695
      %v3808 = vpow.pop %v3807
      %v3809 = vmul.f32 %v3751, 1.442695
      %v3810 = vpow.pop %v3809
      %v3811 = vmul.f32 %v3752, 1.442695
      %v3812 = vpow.pop %v3811
      %v3813 = vmul.f32 %v3753, 1.442695
      %v3814 = vpow.pop %v3813
      %v3815 = vmul.f32 %v3754, 1.442695
      %v3816 = vpow.pop %v3815
      %v3817 = vmul.f32 %v3755, 1.442695
      %v3818 = vpow.pop %v3817
      %v3819 = vmul.f32 %v3756, 1.442695
      %v3820 = vpow.pop %v3819
      %v3821 = vadd.f32 %v3758, 1.0
      %v3822 = vadd.f32 %v3760, 1.0
      %v3823 = vadd.f32 %v3762, 1.0
      %v3824 = vadd.f32 %v3764, 1.0
      %v3825 = vadd.f32 %v3766, 1.0
      %v3826 = vadd.f32 %v3768, 1.0
      %v3827 = vadd.f32 %v3770, 1.0
      %v3828 = vadd.f32 %v3772, 1.0
      %v3829 = vadd.f32 %v3774, 1.0
      %v3830 = vadd.f32 %v3776, 1.0
      %v3831 = vadd.f32 %v3778, 1.0
      %v3832 = vadd.f32 %v3780, 1.0
      %v3833 = vadd.f32 %v3782, 1.0
      %v3834 = vadd.f32 %v3784, 1.0
      %v3835 = vadd.f32 %v3786, 1.0
      %v3836 = vadd.f32 %v3788, 1.0
      %v3837 = vadd.f32 %v3790, 1.0
      %v3838 = vadd.f32 %v3792, 1.0
      %v3839 = vadd.f32 %v3794, 1.0
      %v3840 = vadd.f32 %v3796, 1.0
      %v3841 = vadd.f32 %v3798, 1.0
      %v3842 = vadd.f32 %v3800, 1.0
      %v3843 = vadd.f32 %v3802, 1.0
      %v3844 = vadd.f32 %v3804, 1.0
      %v3845 = vadd.f32 %v3806, 1.0
      %v3846 = vadd.f32 %v3808, 1.0
      %v3847 = vadd.f32 %v3810, 1.0
      %v3848 = vadd.f32 %v3812, 1.0
      %v3849 = vadd.f32 %v3814, 1.0
      %v3850 = vadd.f32 %v3816, 1.0
      %v3851 = vadd.f32 %v3818, 1.0
      %v3852 = vadd.f32 %v3820, 1.0
      %v3853 = vrcp.pop %v3821
      %v3854 = vmul.f32 1.0, %v3853
      %v3855 = vrcp.pop %v3822
      %v3856 = vmul.f32 1.0, %v3855
      %v3857 = vrcp.pop %v3823
      %v3858 = vmul.f32 1.0, %v3857
      %v3859 = vrcp.pop %v3824
      %v3860 = vmul.f32 1.0, %v3859
      %v3861 = vrcp.pop %v3825
      %v3862 = vmul.f32 1.0, %v3861
      %v3863 = vrcp.pop %v3826
      %v3864 = vmul.f32 1.0, %v3863
      %v3865 = vrcp.pop %v3827
      %v3866 = vmul.f32 1.0, %v3865
      %v3867 = vrcp.pop %v3828
      %v3868 = vmul.f32 1.0, %v3867
      %v3869 = vrcp.pop %v3829
      %v3870 = vmul.f32 1.0, %v3869
      %v3871 = vrcp.pop %v3830
      %v3872 = vmul.f32 1.0, %v3871
      %v3873 = vrcp.pop %v3831
      %v3874 = vmul.f32 1.0, %v3873
      %v3875 = vrcp.pop %v3832
      %v3876 = vmul.f32 1.0, %v3875
      %v3877 = vrcp.pop %v3833
      %v3878 = vmul.f32 1.0, %v3877
      %v3879 = vrcp.pop %v3834
      %v3880 = vmul.f32 1.0, %v3879
      %v3881 = vrcp.pop %v3835
      %v3882 = vmul.f32 1.0, %v3881
      %v3883 = vrcp.pop %v3836
      %v3884 = vmul.f32 1.0, %v3883
      %v3885 = vrcp.pop %v3837
      %v3886 = vmul.f32 1.0, %v3885
      %v3887 = vrcp.pop %v3838
      %v3888 = vmul.f32 1.0, %v3887
      %v3889 = vrcp.pop %v3839
      %v3890 = vmul.f32 1.0, %v3889
      %v3891 = vrcp.pop %v3840
      %v3892 = vmul.f32 1.0, %v3891
      %v3893 = vrcp.pop %v3841
      %v3894 = vmul.f32 1.0, %v3893
      %v3895 = vrcp.pop %v3842
      %v3896 = vmul.f32 1.0, %v3895
      %v3897 = vrcp.pop %v3843
      %v3898 = vmul.f32 1.0, %v3897
      %v3899 = vrcp.pop %v3844
      %v3900 = vmul.f32 1.0, %v3899
      %v3901 = vrcp.pop %v3845
      %v3902 = vmul.f32 1.0, %v3901
      %v3903 = vrcp.pop %v3846
      %v3904 = vmul.f32 1.0, %v3903
      %v3905 = vrcp.pop %v3847
      %v3906 = vmul.f32 1.0, %v3905
      %v3907 = vrcp.pop %v3848
      %v3908 = vmul.f32 1.0, %v3907
      %v3909 = vrcp.pop %v3849
      %v3910 = vmul.f32 1.0, %v3909
      %v3911 = vrcp.pop %v3850
      %v3912 = vmul.f32 1.0, %v3911
      %v3913 = vrcp.pop %v3851
      %v3914 = vmul.f32 1.0, %v3913
      %v3915 = vrcp.pop %v3852
      %v3916 = vmul.f32 1.0, %v3915
      %v3917 = vmul.f32 %v3693, %v3854
      %v3918 = vmul.f32 %v3694, %v3856
      %v3919 = vmul.f32 %v3695, %v3858
      %v3920 = vmul.f32 %v3696, %v3860
      %v3921 = vmul.f32 %v3697, %v3862
      %v3922 = vmul.f32 %v3698, %v3864
      %v3923 = vmul.f32 %v3699, %v3866
      %v3924 = vmul.f32 %v3700, %v3868
      %v3925 = vmul.f32 %v3701, %v3870
      %v3926 = vmul.f32 %v3702, %v3872
      %v3927 = vmul.f32 %v3703, %v3874
      %v3928 = vmul.f32 %v3704, %v3876
      %v3929 = vmul.f32 %v3705, %v3878
      %v3930 = vmul.f32 %v3706, %v3880
      %v3931 = vmul.f32 %v3707, %v3882
      %v3932 = vmul.f32 %v3708, %v3884
      %v3933 = vmul.f32 %v3709, %v3886
      %v3934 = vmul.f32 %v3710, %v3888
      %v3935 = vmul.f32 %v3711, %v3890
      %v3936 = vmul.f32 %v3712, %v3892
      %v3937 = vmul.f32 %v3713, %v3894
      %v3938 = vmul.f32 %v3714, %v3896
      %v3939 = vmul.f32 %v3715, %v3898
      %v3940 = vmul.f32 %v3716, %v3900
      %v3941 = vmul.f32 %v3717, %v3902
      %v3942 = vmul.f32 %v3718, %v3904
      %v3943 = vmul.f32 %v3719, %v3906
      %v3944 = vmul.f32 %v3720, %v3908
      %v3945 = vmul.f32 %v3721, %v3910
      %v3946 = vmul.f32 %v3722, %v3912
      %v3947 = vmul.f32 %v3723, %v3914
      %v3948 = vmul.f32 %v3724, %v3916
      %3949 = vst.msk [vmem:[%s197] sm:$0xff] %vm265, %v3917
      %3950 = vst.msk [vmem:[%s197 + $0x8] sm:$0xff] %vm265, %v3918
      %3951 = vst.msk [vmem:[%s197 + $0x10] sm:$0xff] %vm265, %v3919
      %3952 = vst.msk [vmem:[%s197 + $0x18] sm:$0xff] %vm265, %v3920
      %3953 = vst.msk [vmem:[%s197 + $0x20] sm:$0xff] %vm265, %v3921
      %3954 = vst.msk [vmem:[%s197 + $0x28] sm:$0xff] %vm265, %v3922
      %3955 = vst.msk [vmem:[%s197 + $0x30] sm:$0xff] %vm265, %v3923
      %3956 = vst.msk [vmem:[%s197 + $0x38] sm:$0xff] %vm265, %v3924
      %3957 = vst.msk [vmem:[%s197 + $0x40] sm:$0xff] %vm265, %v3925
      %3958 = vst.msk [vmem:[%s197 + $0x48] sm:$0xff] %vm265, %v3926
      %3959 = vst.msk [vmem:[%s197 + $0x50] sm:$0xff] %vm265, %v3927
      %3960 = vst.msk [vmem:[%s197 + $0x58] sm:$0xff] %vm265, %v3928
      %3961 = vst.msk [vmem:[%s197 + $0x60] sm:$0xff] %vm265, %v3929
      %3962 = vst.msk [vmem:[%s197 + $0x68] sm:$0xff] %vm265, %v3930
      %3963 = vst.msk [vmem:[%s197 + $0x70] sm:$0xff] %vm265, %v3931
      %3964 = vst.msk [vmem:[%s197 + $0x78] sm:$0xff] %vm265, %v3932
      %3965 = vst.msk [vmem:[%s197 + $0x80] sm:$0xff] %vm265, %v3933
      %3966 = vst.msk [vmem:[%s197 + $0x88] sm:$0xff] %vm265, %v3934
      %3967 = vst.msk [vmem:[%s197 + $0x90] sm:$0xff] %vm265, %v3935
      %3968 = vst.msk [vmem:[%s197 + $0x98] sm:$0xff] %vm265, %v3936
      %3969 = vst.msk [vmem:[%s197 + $0xa0] sm:$0xff] %vm265, %v3937
      %3970 = vst.msk [vmem:[%s197 + $0xa8] sm:$0xff] %vm265, %v3938
      %3971 = vst.msk [vmem:[%s197 + $0xb0] sm:$0xff] %vm265, %v3939
      %3972 = vst.msk [vmem:[%s197 + $0xb8] sm:$0xff] %vm265, %v3940
      %3973 = vst.msk [vmem:[%s197 + $0xc0] sm:$0xff] %vm265, %v3941
      %3974 = vst.msk [vmem:[%s197 + $0xc8] sm:$0xff] %vm265, %v3942
      %3975 = vst.msk [vmem:[%s197 + $0xd0] sm:$0xff] %vm265, %v3943
      %3976 = vst.msk [vmem:[%s197 + $0xd8] sm:$0xff] %vm265, %v3944
      %3977 = vst.msk [vmem:[%s197 + $0xe0] sm:$0xff] %vm265, %v3945
      %3978 = vst.msk [vmem:[%s197 + $0xe8] sm:$0xff] %vm265, %v3946
      %3979 = vst.msk [vmem:[%s197 + $0xf0] sm:$0xff] %vm265, %v3947
      %3980 = vst.msk [vmem:[%s197 + $0xf8] sm:$0xff] %vm265, %v3948
      %p3981 = scmp.lt.s32.totalorder %s15, 1
      %s3982 = scalar_select %p3981, %s15, 1
      %s3983 = smul.addr %s3982, 32
      %s3984 = smul.addr %s3983, 8
      %s3985 = scalar_lea.vmem %s4, %s3984
      // Predicated region
      $region37: #{c3_forward.5} parent=35 // pred_check
        %p3986 = pneg %p122
      $region38: #{c3_forward.5} parent=35 // pred_check_branch
        %3988 = sbr.rel (%p3986) target = $region40
      $region39: #{c3_forward.5} parent=35 // pred_region
        _
      $region40: #{c3_forward.5} parent=35 // pred_fallthru
        _
    $region36: #{c3_forward.5} parent=5 // pred_fallthru
      _
    %p3989 = scmp.le.s32.totalorder 2, %s10
    // Predicated region
    $region41: #{c3_forward.5} parent=5 // pred_check
      %p3990 = pneg %p3989
    $region42: #{c3_forward.5} parent=5 // pred_check_branch
      %3992 = sbr.rel (%p3990) target = $region44
    $region43: #{c3_forward.5} parent=5 // pred_region
      %s3993 = ssub.s32 %s10, 2
      // Predicated region
      $region45: #{c3_forward.5} parent=43 // pred_check
        %p3994 = pneg %p128
      $region46: #{c3_forward.5} parent=43 // pred_check_branch
        %3996 = sbr.rel (%p3994) target = $region48
      $region47: #{c3_forward.5} parent=43 // pred_region
        %p3997 = scmp.lt.s32.totalorder %s16, 1
        %s3998 = scalar_select %p3997, %s16, 1
        %s3999 = smul.addr %s3998, 32
        %s4000 = smul.addr %s3999, 8
        %s4001 = scalar_lea.vmem %s4, %s4000
      $region48: #{c3_forward.5} parent=43 // pred_fallthru
        _
    $region44: #{c3_forward.5} parent=5 // pred_fallthru
      _
  $region6: #{c3_forward.5} parent=0 // loop_footer
    %s14 = sadd.s32 1, %s10
  $region7: #{c3_forward.5} parent=0 // loop_footer_branch
    %9 = sbr.rel target = $region3
  $region8: #{c3_forward.5} parent=0 // loop_exit
    _

// kernel: c3_forward.6
$region0: #{c3_forward.6}
  #allocation0 [shape = 'u32[]', space=smem, size = 0x4, offset = 0x4, fixed_abs, tag = 'smem constant byte address 0x4 - core index']
  #allocation1 [shape = 'u32[144,128]{1,0:T(1,128)}', space=vmem, size = 0x12000, scoped, tag = 'internal scratch']
  %s0 = inlined_call_operand.vmem [shape: f32[2,18,18,4], index: 0, kind: input, shape index: {}]
  %s1 = inlined_call_operand.vmem [shape: f32[9,4,4], index: 1, kind: input, shape index: {}]
  %s2 = inlined_call_operand.vmem [shape: f32[1,4], index: 2, kind: input, shape index: {}]
  %s3 = inlined_call_operand.vmem [shape: f32[1,4], index: 3, kind: input, shape index: {}]
  %s4 = inlined_call_operand.vmem [shape: f32[2,16,16,4], index: 4, kind: input, shape index: {}]
  %s5 = inlined_call_operand.vmem [shape: f32[2,16,16,4], index: 5, kind: output, shape index: {}]
  %s6 = sld [smem:[#allocation0]]
  $region53: #{c3_forward.6} parent=0
    _
  %s8 = ssub.s32 1, %s6
  %s9 = scalar_select 0, %s8, %s6
  loop: start=0, step=1, limit=4
  $region2: #{c3_forward.6} parent=0 // loop_pre_header
    _
  $region3: #{c3_forward.6} parent=0 // loop_header
    %s11 = sphi 0, %s15
    %p12 = scmp.ge.s32.totalorder %s11, 4
    %s21 = sphi 0, %s23
    %s24 = sphi 0, %s21
    %s25 = sphi 0, %s24
    %s41 = sphi 0, %s25
    %s45 = sphi 0, %s45
    %s47 = sphi 0, %s45
    %s48 = sphi 0, %s47
    %s62 = sphi 0, %s48
    %s66 = sphi 0, %s66
    %s68 = sphi 0, %s66
    %s69 = sphi 0, %s68
    %s83 = sphi 0, %s69
    %s87 = sphi 0, %s87
    %s89 = sphi 0, %s87
    %s90 = sphi 0, %s89
    %s104 = sphi 0, %s90
    %s110 = sphi 0, %s112
    %s113 = sphi 0, %s110
    %s114 = sphi 0, %s113
    %s130 = sphi 0, %s114
    %s136 = sphi 0, %s138
    %s139 = sphi 0, %s136
    %s140 = sphi 0, %s139
    %s156 = sphi 0, %s140
  $region4: #{c3_forward.6} parent=0 // loop_header_branch
    %14 = sbr.rel (%p12) target = $region8
  $region5: #{c3_forward.6} parent=0 // loop_body
    %s16 = ssub.s32 %s11, 1
    %s17 = ssub.s32 %s11, 2
    %s18 = sadd.s32 %s11, 1
    %s19 = ssub.s32 %s11, %s18
    %p20 = scmp.eq.s32.totalorder %s19, 0
    %s22 = sadd.s32 %s21, 1
    %s23 = scalar_select %p20, %s21, %s22
    %p26 = pneg %p20
    %p27 = scmp.eq.s32.totalorder %s11, 1
    %p28 = por %p26, %p27
    %p29 = scmp.ne.s32.totalorder %s21, %s24
    %p30 = scmp.eq.s32.totalorder %s11, 0
    %p31 = por %p29, %p30
    %p32 = scmp.ne.s32.totalorder %s21, %s24
    %p33 = scmp.eq.s32.totalorder %s16, 1
    %p34 = por %p32, %p33
    %p35 = scmp.ne.s32.totalorder %s24, %s25
    %p36 = scmp.eq.s32.totalorder %s16, 0
    %p37 = por %p35, %p36
    %p38 = scmp.ne.s32.totalorder %s24, %s25
    %p39 = scmp.eq.s32.totalorder %s17, 1
    %p40 = por %p38, %p39
    %p42 = scmp.ne.s32.totalorder %s25, %s41
    %p43 = scmp.eq.s32.totalorder %s17, 0
    %p44 = por %p42, %p43
    %s46 = sadd.s32 %s45, 1
    %p49 = scmp.eq.s32.totalorder %s11, 1
    %p50 = scmp.ne.s32.totalorder %s45, %s47
    %p51 = scmp.eq.s32.totalorder %s11, 0
    %p52 = por %p50, %p51
    %p53 = scmp.ne.s32.totalorder %s45, %s47
    %p54 = scmp.eq.s32.totalorder %s16, 1
    %p55 = por %p53, %p54
    %p56 = scmp.ne.s32.totalorder %s47, %s48
    %p57 = scmp.eq.s32.totalorder %s16, 0
    %p58 = por %p56, %p57
    %p59 = scmp.ne.s32.totalorder %s47, %s48
    %p60 = scmp.eq.s32.totalorder %s17, 1
    %p61 = por %p59, %p60
    %p63 = scmp.ne.s32.totalorder %s48, %s62
    %p64 = scmp.eq.s32.totalorder %s17, 0
    %p65 = por %p63, %p64
    %s67 = sadd.s32 %s66, 1
    %p70 = scmp.eq.s32.totalorder %s11, 1
    %p71 = scmp.ne.s32.totalorder %s66, %s68
    %p72 = scmp.eq.s32.totalorder %s11, 0
    %p73 = por %p71, %p72
    %p74 = scmp.ne.s32.totalorder %s66, %s68
    %p75 = scmp.eq.s32.totalorder %s16, 1
    %p76 = por %p74, %p75
    %p77 = scmp.ne.s32.totalorder %s68, %s69
    %p78 = scmp.eq.s32.totalorder %s16, 0
    %p79 = por %p77, %p78
    %p80 = scmp.ne.s32.totalorder %s68, %s69
    %p81 = scmp.eq.s32.totalorder %s17, 1
    %p82 = por %p80, %p81
    %p84 = scmp.ne.s32.totalorder %s69, %s83
    %p85 = scmp.eq.s32.totalorder %s17, 0
    %p86 = por %p84, %p85
    %s88 = sadd.s32 %s87, 1
    %p91 = scmp.eq.s32.totalorder %s11, 1
    %p92 = scmp.ne.s32.totalorder %s87, %s89
    %p93 = scmp.eq.s32.totalorder %s11, 0
    %p94 = por %p92, %p93
    %p95 = scmp.ne.s32.totalorder %s87, %s89
    %p96 = scmp.eq.s32.totalorder %s16, 1
    %p97 = por %p95, %p96
    %p98 = scmp.ne.s32.totalorder %s89, %s90
    %p99 = scmp.eq.s32.totalorder %s16, 0
    %p100 = por %p98, %p99
    %p101 = scmp.ne.s32.totalorder %s89, %s90
    %p102 = scmp.eq.s32.totalorder %s17, 1
    %p103 = por %p101, %p102
    %p105 = scmp.ne.s32.totalorder %s90, %s104
    %p106 = scmp.eq.s32.totalorder %s17, 0
    %p107 = por %p105, %p106
    %s108 = ssub.s32 %s11, %s18
    %p109 = scmp.eq.s32.totalorder %s108, 0
    %s111 = sadd.s32 %s110, 1
    %s112 = scalar_select %p109, %s110, %s111
    %p115 = pneg %p109
    %p116 = scmp.eq.s32.totalorder %s11, 1
    %p117 = por %p115, %p116
    %p118 = scmp.ne.s32.totalorder %s110, %s113
    %p119 = scmp.eq.s32.totalorder %s11, 0
    %p120 = por %p118, %p119
    %p121 = scmp.ne.s32.totalorder %s110, %s113
    %p122 = scmp.eq.s32.totalorder %s16, 1
    %p123 = por %p121, %p122
    %p124 = scmp.ne.s32.totalorder %s113, %s114
    %p125 = scmp.eq.s32.totalorder %s16, 0
    %p126 = por %p124, %p125
    %p127 = scmp.ne.s32.totalorder %s113, %s114
    %p128 = scmp.eq.s32.totalorder %s17, 1
    %p129 = por %p127, %p128
    %p131 = scmp.ne.s32.totalorder %s114, %s130
    %p132 = scmp.eq.s32.totalorder %s17, 0
    %p133 = por %p131, %p132
    %s134 = ssub.s32 %s11, %s18
    %p135 = scmp.eq.s32.totalorder %s134, 0
    %s137 = sadd.s32 %s136, 1
    %s138 = scalar_select %p135, %s136, %s137
    %p141 = pneg %p135
    %p142 = scmp.eq.s32.totalorder %s11, 1
    %p143 = por %p141, %p142
    %p144 = scmp.ne.s32.totalorder %s136, %s139
    %p145 = scmp.eq.s32.totalorder %s11, 0
    %p146 = por %p144, %p145
    %p147 = scmp.ne.s32.totalorder %s136, %s139
    %p148 = scmp.eq.s32.totalorder %s16, 1
    %p149 = por %p147, %p148
    %p150 = scmp.ne.s32.totalorder %s139, %s140
    %p151 = scmp.eq.s32.totalorder %s16, 0
    %p152 = por %p150, %p151
    %p153 = scmp.ne.s32.totalorder %s139, %s140
    %p154 = scmp.eq.s32.totalorder %s17, 1
    %p155 = por %p153, %p154
    %p157 = scmp.ne.s32.totalorder %s140, %s156
    %p158 = scmp.eq.s32.totalorder %s17, 0
    %p159 = por %p157, %p158
    %p160 = scmp.le.s32.totalorder 1, %s11
    %p161 = scmp.lt.s32.totalorder %s11, 3
    %p162 = pnand %p160, %p161
    %p163 = pneg %p162
    // Predicated region
    $region9: #{c3_forward.6} parent=5 // pred_check
      _
    $region10: #{c3_forward.6} parent=5 // pred_check_branch
      %165 = sbr.rel (%p162) target = $region12
    $region11: #{c3_forward.6} parent=5 // pred_region
      %s166 = ssub.s32 %s11, 1
      // Predicated region
      $region13: #{c3_forward.6} parent=11 // pred_check
        %p167 = pneg %p58
      $region14: #{c3_forward.6} parent=11 // pred_check_branch
        %169 = sbr.rel (%p167) target = $region16
      $region15: #{c3_forward.6} parent=11 // pred_region
        _
      $region16: #{c3_forward.6} parent=11 // pred_fallthru
        _
      // Predicated region
      $region17: #{c3_forward.6} parent=11 // pred_check
        %p170 = pneg %p79
      $region18: #{c3_forward.6} parent=11 // pred_check_branch
        %172 = sbr.rel (%p170) target = $region20
      $region19: #{c3_forward.6} parent=11 // pred_region
        _
      $region20: #{c3_forward.6} parent=11 // pred_fallthru
        _
      // Predicated region
      $region21: #{c3_forward.6} parent=11 // pred_check
        %p173 = pneg %p100
      $region22: #{c3_forward.6} parent=11 // pred_check_branch
        %175 = sbr.rel (%p173) target = $region24
      $region23: #{c3_forward.6} parent=11 // pred_region
        _
      $region24: #{c3_forward.6} parent=11 // pred_fallthru
        _
    $region12: #{c3_forward.6} parent=5 // pred_fallthru
      _
    %p176 = scmp.lt.s32.totalorder %s11, 2
    // Predicated region
    $region25: #{c3_forward.6} parent=5 // pred_check
      %p177 = pneg %p176
    $region26: #{c3_forward.6} parent=5 // pred_check_branch
      %179 = sbr.rel (%p177) target = $region28
    $region27: #{c3_forward.6} parent=5 // pred_region
      // Predicated region
      $region29: #{c3_forward.6} parent=27 // pred_check
        %p180 = pneg %p31
      $region30: #{c3_forward.6} parent=27 // pred_check_branch
        %182 = sbr.rel (%p180) target = $region32
      $region31: #{c3_forward.6} parent=27 // pred_region
        %p183 = scmp.lt.s32.totalorder %s11, 1
        %s184 = scalar_select %p183, %s11, 1
        %s185 = smul.addr %s184, 54
        %s186 = smul.addr %s185, 8
        %s187 = scalar_lea.vmem %s0, %s186
      $region32: #{c3_forward.6} parent=27 // pred_fallthru
        _
      // Predicated region
      $region33: #{c3_forward.6} parent=27 // pred_check
        %p188 = pneg %p120
      $region34: #{c3_forward.6} parent=27 // pred_check_branch
        %190 = sbr.rel (%p188) target = $region36
      $region35: #{c3_forward.6} parent=27 // pred_region
        %p191 = scmp.lt.s32.totalorder %s11, 1
        %s192 = scalar_select %p191, %s11, 1
        %s193 = smul.addr %s192, 32
        %s194 = smul.addr %s193, 8
        %s195 = scalar_lea.vmem %s4, %s194
      $region36: #{c3_forward.6} parent=27 // pred_fallthru
        _
    $region28: #{c3_forward.6} parent=5 // pred_fallthru
      _
    %p196 = scmp.le.s32.totalorder 1, %s11
    %p197 = scmp.lt.s32.totalorder %s11, 3
    %p198 = pnand %p196, %p197
    %p199 = pneg %p198
    // Predicated region
    $region37: #{c3_forward.6} parent=5 // pred_check
      _
    $region38: #{c3_forward.6} parent=5 // pred_check_branch
      %201 = sbr.rel (%p198) target = $region40
    $region39: #{c3_forward.6} parent=5 // pred_region
      %s202 = ssub.s32 %s11, 1
      %p203 = scmp.lt.s32.totalorder %s16, 1
      %s204 = scalar_select %p203, %s16, 1
      %s205 = smul.addr %s204, 54
      %s206 = smul.addr %s205, 8
      %s207 = scalar_lea.vmem %s0, %s206
      %p208 = pneg %p37
      %p209 = pneg %p34
      %p210 = pneg %p58
      %p211 = pneg %p55
      %p212 = pneg %p79
      %p213 = pneg %p76
      %p214 = pneg %p100
      %p215 = pneg %p97
      %p216 = scmp.lt.s32.totalorder %s16, 1
      %s217 = scalar_select %p216, %s16, 1
      %s218 = smul.addr %s217, 32
      %s219 = smul.addr %s218, 8
      %s220 = scalar_lea.vmem %s4, %s219
      %p221 = pneg %p126
      %p222 = pneg %p123
      %p223 = pneg %p152
      %p224 = pneg %p149
      %p225 = scmp.lt.s32.totalorder %s16, 1
      %s226 = scalar_select %p225, %s16, 1
      %s227 = smul.addr %s226, 32
      %s228 = smul.addr %s227, 8
      %s229 = scalar_lea.vmem %s5, %s228
      %p230 = scmp.lt.s32.totalorder %s16, 1
      %s231 = scalar_select %p230, %s16, 1
      %s232 = smul.addr %s231, 54
      %s233 = smul.addr %s232, 8
      %s234 = scalar_lea.vmem %s0, %s233
      %p235 = scmp.lt.s32.totalorder %s16, 1
      %s236 = scalar_select %p235, %s16, 1
      %s237 = smul.addr %s236, 32
      %s238 = smul.addr %s237, 8
      %s239 = scalar_lea.vmem %s4, %s238
      %p240 = scmp.lt.s32.totalorder %s16, 1
      %s241 = scalar_select %p240, %s16, 1
      %s242 = smul.addr %s241, 32
      %s243 = smul.addr %s242, 8
      %s244 = scalar_lea.vmem %s5, %s243
      %v245 = vld [vmem:[%s234] sm:$0xff]
      %v246 = vld [vmem:[%s234 + $0x8] sm:$0xff]
      %v247 = vld [vmem:[%s234 + $0x18] sm:$0xff]
      %v248 = vld [vmem:[%s234 + $0x20] sm:$0xff]
      %v249 = vld [vmem:[%s234 + $0x30] sm:$0xff]
      %v250 = vld [vmem:[%s234 + $0x38] sm:$0xff]
      %v251 = vld [vmem:[%s234 + $0x48] sm:$0xff]
      %v252 = vld [vmem:[%s234 + $0x50] sm:$0xff]
      %v253 = vld [vmem:[%s234 + $0x60] sm:$0xff]
      %v254 = vld [vmem:[%s234 + $0x68] sm:$0xff]
      %v255 = vld [vmem:[%s234 + $0x78] sm:$0xff]
      %v256 = vld [vmem:[%s234 + $0x80] sm:$0xff]
      %v257 = vld [vmem:[%s234 + $0x90] sm:$0xff]
      %v258 = vld [vmem:[%s234 + $0x98] sm:$0xff]
      %v259 = vld [vmem:[%s234 + $0xa8] sm:$0xff]
      %v260 = vld [vmem:[%s234 + $0xb0] sm:$0xff]
      %v261 = vld [vmem:[%s234 + $0xc0] sm:$0xff]
      %v262 = vld [vmem:[%s234 + $0xc8] sm:$0xff]
      %v263 = vld [vmem:[%s234 + $0xd8] sm:$0xff]
      %v264 = vld [vmem:[%s234 + $0xe0] sm:$0xff]
      %v265 = vld [vmem:[%s234 + $0xf0] sm:$0xff]
      %v266 = vld [vmem:[%s234 + $0xf8] sm:$0xff]
      %v267 = vld [vmem:[%s234 + $0x108] sm:$0xff]
      %v268 = vld [vmem:[%s234 + $0x110] sm:$0xff]
      %v269 = vld [vmem:[%s234 + $0x120] sm:$0xff]
      %v270 = vld [vmem:[%s234 + $0x128] sm:$0xff]
      %v271 = vld [vmem:[%s234 + $0x138] sm:$0xff]
      %v272 = vld [vmem:[%s234 + $0x140] sm:$0xff]
      %v273 = vld [vmem:[%s234 + $0x150] sm:$0xff]
      %v274 = vld [vmem:[%s234 + $0x158] sm:$0xff]
      %v275 = vld [vmem:[%s234 + $0x168] sm:$0xff]
      %v276 = vld [vmem:[%s234 + $0x170] sm:$0xff]
      %v277 = vld [vmem:[%s1] sm:$0xf]
      %v278 = vld [vmem:[%s234 + $0x1] sm:$0xff]
      %v279 = vld [vmem:[%s234 + $0x9] sm:$0xff]
      %v280 = vld [vmem:[%s234 + $0x19] sm:$0xff]
      %v281 = vld [vmem:[%s234 + $0x21] sm:$0xff]
      %v282 = vld [vmem:[%s234 + $0x31] sm:$0xff]
      %v283 = vld [vmem:[%s234 + $0x39] sm:$0xff]
      %v284 = vld [vmem:[%s234 + $0x49] sm:$0xff]
      %v285 = vld [vmem:[%s234 + $0x51] sm:$0xff]
      %v286 = vld [vmem:[%s234 + $0x61] sm:$0xff]
      %v287 = vld [vmem:[%s234 + $0x69] sm:$0xff]
      %v288 = vld [vmem:[%s234 + $0x79] sm:$0xff]
      %v289 = vld [vmem:[%s234 + $0x81] sm:$0xff]
      %v290 = vld [vmem:[%s234 + $0x91] sm:$0xff]
      %v291 = vld [vmem:[%s234 + $0x99] sm:$0xff]
      %v292 = vld [vmem:[%s234 + $0xa9] sm:$0xff]
      %v293 = vld [vmem:[%s234 + $0xb1] sm:$0xff]
      %v294 = vld [vmem:[%s234 + $0xc1] sm:$0xff]
      %v295 = vld [vmem:[%s234 + $0xc9] sm:$0xff]
      %v296 = vld [vmem:[%s234 + $0xd9] sm:$0xff]
      %v297 = vld [vmem:[%s234 + $0xe1] sm:$0xff]
      %v298 = vld [vmem:[%s234 + $0xf1] sm:$0xff]
      %v299 = vld [vmem:[%s234 + $0xf9] sm:$0xff]
      %v300 = vld [vmem:[%s234 + $0x109] sm:$0xff]
      %v301 = vld [vmem:[%s234 + $0x111] sm:$0xff]
      %v302 = vld [vmem:[%s234 + $0x121] sm:$0xff]
      %v303 = vld [vmem:[%s234 + $0x129] sm:$0xff]
      %v304 = vld [vmem:[%s234 + $0x139] sm:$0xff]
      %v305 = vld [vmem:[%s234 + $0x141] sm:$0xff]
      %v306 = vld [vmem:[%s234 + $0x151] sm:$0xff]
      %v307 = vld [vmem:[%s234 + $0x159] sm:$0xff]
      %v308 = vld [vmem:[%s234 + $0x169] sm:$0xff]
      %v309 = vld [vmem:[%s234 + $0x171] sm:$0xff]
      %s310 = scalar_lea.vmem %s1, 4
      %v311 = vld [vmem:[%s310] sm:$0xf]
      %vm312 = vcmask 31744
      %v314 = vsel %vm312, %v278, 0
      %v317 = vsel %vm312, %v279, 0
      %v320 = vsel %vm312, %v280, 0
      %v323 = vsel %vm312, %v281, 0
      %v326 = vsel %vm312, %v282, 0
      %v329 = vsel %vm312, %v283, 0
      %v332 = vsel %vm312, %v284, 0
      %v335 = vsel %vm312, %v285, 0
      %v338 = vsel %vm312, %v286, 0
      %v341 = vsel %vm312, %v287, 0
      %v344 = vsel %vm312, %v288, 0
      %v347 = vsel %vm312, %v289, 0
      %v350 = vsel %vm312, %v290, 0
      %v353 = vsel %vm312, %v291, 0
      %v356 = vsel %vm312, %v292, 0
      %v359 = vsel %vm312, %v293, 0
      %v362 = vsel %vm312, %v294, 0
      %v365 = vsel %vm312, %v295, 0
      %v368 = vsel %vm312, %v296, 0
      %v371 = vsel %vm312, %v297, 0
      %v374 = vsel %vm312, %v298, 0
      %v377 = vsel %vm312, %v299, 0
      %v380 = vsel %vm312, %v300, 0
      %v383 = vsel %vm312, %v301, 0
      %v386 = vsel %vm312, %v302, 0
      %v389 = vsel %vm312, %v303, 0
      %v392 = vsel %vm312, %v304, 0
      %v395 = vsel %vm312, %v305, 0
      %v398 = vsel %vm312, %v306, 0
      %v401 = vsel %vm312, %v307, 0
      %v404 = vsel %vm312, %v308, 0
      %v407 = vsel %vm312, %v309, 0
      %vm409 = vcmask 1043456
      %v411 = vsel %vm409, %v311, 0
      %413 = vmatprep.subr.mxu0 0.0
      %414 = vmatpush1.msra.mxu0 %v411
      %415 = vmatprep.subr.mxu0 0.0
      %416 = vmatpush1.msra.mxu0 0.0
      %417 = vmatprep.subr.mxu0 0.0
      %418 = vmatpush1.msra.mxu0 0.0
      %419 = vmatprep.subr.mxu0 0.0
      %420 = vmatpush1.msra.mxu0 0.0
      %421 = vmatprep.subr.mxu0 0.0
      %422 = vmatpush1.msra.mxu0 0.0
      %423 = vmatprep.subr.mxu0 0.0
      %424 = vmatpush1.msra.mxu0 0.0
      %425 = vmatprep.subr.mxu0 0.0
      %426 = vmatpush1.msra.mxu0 0.0
      %427 = vmatprep.subr.mxu0 0.0
      %428 = vmatpush1.msra.mxu0 0.0
      %429 = vmatprep.subr.mxu0 0.0
      %430 = vmatpush1.msra.mxu0 0.0
      %431 = vmatprep.subr.mxu0 0.0
      %432 = vmatpush1.msra.mxu0 0.0
      %433 = vmatprep.subr.mxu0 0.0
      %434 = vmatpush1.msra.mxu0 0.0
      %435 = vmatprep.subr.mxu0 0.0
      %436 = vmatpush1.msra.mxu0 0.0
      %437 = vmatprep.subr.mxu0 0.0
      %438 = vmatpush1.msra.mxu0 0.0
      %439 = vmatprep.subr.mxu0 0.0
      %440 = vmatpush1.msra.mxu0 0.0
      %441 = vmatprep.subr.mxu0 0.0
      %442 = vmatpush1.msra.mxu0 0.0
      %443 = vmatprep.subr.mxu0 0.0
      %444 = vmatpush1.msra.mxu0 0.0
      %445 = vmatprep.subr.mxu0 0.0
      %446 = vmatpush1.msra.mxu0 0.0
      %447 = vmatprep.subr.mxu0 0.0
      %448 = vmatpush1.msra.mxu0 0.0
      %449 = vmatprep.subr.mxu0 0.0
      %450 = vmatpush1.msra.mxu0 0.0
      %451 = vmatprep.subr.mxu0 0.0
      %452 = vmatpush1.msra.mxu0 0.0
      %453 = vmatprep.subr.mxu0 0.0
      %454 = vmatpush1.msra.mxu0 0.0
      %455 = vmatprep.subr.mxu0 0.0
      %456 = vmatpush1.msra.mxu0 0.0
      %457 = vmatprep.subr.mxu0 0.0
      %458 = vmatpush1.msra.mxu0 0.0
      %459 = vmatprep.subr.mxu0 0.0
      %460 = vmatpush1.msra.mxu0 0.0
      %461 = vmatprep.subr.mxu0 0.0
      %462 = vmatpush1.msra.mxu0 0.0
      %463 = vmatprep.subr.mxu0 0.0
      %464 = vmatpush1.msra.mxu0 0.0
      %465 = vmatprep.subr.mxu0 0.0
      %466 = vmatpush1.msra.mxu0 0.0
      %467 = vmatprep.subr.mxu0 0.0
      %468 = vmatpush1.msra.mxu0 0.0
      %469 = vmatprep.subr.mxu0 0.0
      %470 = vmatpush1.msra.mxu0 0.0
      %471 = vmatprep.subr.mxu0 0.0
      %472 = vmatpush1.msra.mxu0 0.0
      %473 = vmatprep.subr.mxu0 0.0
      %474 = vmatpush1.msra.mxu0 0.0
      %475 = vmatprep.subr.mxu0 0.0
      %476 = vmatpush1.msra.mxu0 0.0
      %477 = vmatprep.mubr.f32.mxu0 0.0
      %478 = vmatmul.mubr.f32.gmra.mrb[0].mxu0 %v314
      %v479 = vpop.f32.mrb[0].mxu0
      %v480 = vadd.f32 0.0, %v479
      %v481 = vpop.f32.mrb[0].mxu0
      %482 = vmatprep.mubr.f32.mxu0 0.0
      %483 = vmatmul.mubr.f32.gmra.mrb[0].mxu0 %v317
      %v484 = vpop.f32.mrb[0].mxu0
      %v485 = vadd.f32 0.0, %v484
      %v486 = vpop.f32.mrb[0].mxu0
      %487 = vmatprep.mubr.f32.mxu0 0.0
      %488 = vmatmul.mubr.f32.gmra.mrb[0].mxu0 %v320
      %v489 = vpop.f32.mrb[0].mxu0
      %v490 = vadd.f32 0.0, %v489
      %v491 = vpop.f32.mrb[0].mxu0
      %492 = vmatprep.mubr.f32.mxu0 0.0
      %493 = vmatmul.mubr.f32.gmra.mrb[0].mxu0 %v323
      %v494 = vpop.f32.mrb[0].mxu0
      %v495 = vadd.f32 0.0, %v494
      %v496 = vpop.f32.mrb[0].mxu0
      %497 = vmatprep.mubr.f32.mxu0 0.0
      %498 = vmatmul.mubr.f32.gmra.mrb[0].mxu0 %v326
      %v499 = vpop.f32.mrb[0].mxu0
      %v500 = vadd.f32 0.0, %v499
      %v501 = vpop.f32.mrb[0].mxu0
      %502 = vmatprep.mubr.f32.mxu0 0.0
      %503 = vmatmul.mubr.f32.gmra.mrb[0].mxu0 %v329
      %v504 = vpop.f32.mrb[0].mxu0
      %v505 = vadd.f32 0.0, %v504
      %v506 = vpop.f32.mrb[0].mxu0
      %507 = vmatprep.mubr.f32.mxu0 0.0
      %508 = vmatmul.mubr.f32.gmra.mrb[0].mxu0 %v332
      %v509 = vpop.f32.mrb[0].mxu0
      %v510 = vadd.f32 0.0, %v509
      %v511 = vpop.f32.mrb[0].mxu0
      %512 = vmatprep.mubr.f32.mxu0 0.0
      %513 = vmatmul.mubr.f32.gmra.mrb[0].mxu0 %v335
      %v514 = vpop.f32.mrb[0].mxu0
      %v515 = vadd.f32 0.0, %v514
      %v516 = vpop.f32.mrb[0].mxu0
      %517 = vmatprep.mubr.f32.mxu0 0.0
      %518 = vmatmul.mubr.f32.gmra.mrb[0].mxu0 %v338
      %v519 = vpop.f32.mrb[0].mxu0
      %v520 = vadd.f32 0.0, %v519
      %v521 = vpop.f32.mrb[0].mxu0
      %522 = vmatprep.mubr.f32.mxu0 0.0
      %523 = vmatmul.mubr.f32.gmra.mrb[0].mxu0 %v341
      %v524 = vpop.f32.mrb[0].mxu0
      %v525 = vadd.f32 0.0, %v524
      %v526 = vpop.f32.mrb[0].mxu0
      %527 = vmatprep.mubr.f32.mxu0 0.0
      %528 = vmatmul.mubr.f32.gmra.mrb[0].mxu0 %v344
      %v529 = vpop.f32.mrb[0].mxu0
      %v530 = vadd.f32 0.0, %v529
      %v531 = vpop.f32.mrb[0].mxu0
      %532 = vmatprep.mubr.f32.mxu0 0.0
      %533 = vmatmul.mubr.f32.gmra.mrb[0].mxu0 %v347
      %v534 = vpop.f32.mrb[0].mxu0
      %v535 = vadd.f32 0.0, %v534
      %v536 = vpop.f32.mrb[0].mxu0
      %537 = vmatprep.mubr.f32.mxu0 0.0
      %538 = vmatmul.mubr.f32.gmra.mrb[0].mxu0 %v350
      %v539 = vpop.f32.mrb[0].mxu0
      %v540 = vadd.f32 0.0, %v539
      %v541 = vpop.f32.mrb[0].mxu0
      %542 = vmatprep.mubr.f32.mxu0 0.0
      %543 = vmatmul.mubr.f32.gmra.mrb[0].mxu0 %v353
      %v544 = vpop.f32.mrb[0].mxu0
      %v545 = vadd.f32 0.0, %v544
      %v546 = vpop.f32.mrb[0].mxu0
      %547 = vmatprep.mubr.f32.mxu0 0.0
      %548 = vmatmul.mubr.f32.gmra.mrb[0].mxu0 %v356
      %v549 = vpop.f32.mrb[0].mxu0
      %v550 = vadd.f32 0.0, %v549
      %v551 = vpop.f32.mrb[0].mxu0
      %552 = vmatprep.mubr.f32.mxu0 0.0
      %553 = vmatmul.mubr.f32.gmra.mrb[0].mxu0 %v359
      %v554 = vpop.f32.mrb[0].mxu0
      %v555 = vadd.f32 0.0, %v554
      %v556 = vpop.f32.mrb[0].mxu0
      %557 = vmatprep.mubr.f32.mxu0 0.0
      %558 = vmatmul.mubr.f32.gmra.mrb[0].mxu0 %v362
      %v559 = vpop.f32.mrb[0].mxu0
      %v560 = vadd.f32 0.0, %v559
      %v561 = vpop.f32.mrb[0].mxu0
      %562 = vmatprep.mubr.f32.mxu0 0.0
      %563 = vmatmul.mubr.f32.gmra.mrb[0].mxu0 %v365
      %v564 = vpop.f32.mrb[0].mxu0
      %v565 = vadd.f32 0.0, %v564
      %v566 = vpop.f32.mrb[0].mxu0
      %567 = vmatprep.mubr.f32.mxu0 0.0
      %568 = vmatmul.mubr.f32.gmra.mrb[0].mxu0 %v368
      %v569 = vpop.f32.mrb[0].mxu0
      %v570 = vadd.f32 0.0, %v569
      %v571 = vpop.f32.mrb[0].mxu0
      %572 = vmatprep.mubr.f32.mxu0 0.0
      %573 = vmatmul.mubr.f32.gmra.mrb[0].mxu0 %v371
      %v574 = vpop.f32.mrb[0].mxu0
      %v575 = vadd.f32 0.0, %v574
      %v576 = vpop.f32.mrb[0].mxu0
      %577 = vmatprep.mubr.f32.mxu0 0.0
      %578 = vmatmul.mubr.f32.gmra.mrb[0].mxu0 %v374
      %v579 = vpop.f32.mrb[0].mxu0
      %v580 = vadd.f32 0.0, %v579
      %v581 = vpop.f32.mrb[0].mxu0
      %582 = vmatprep.mubr.f32.mxu0 0.0
      %583 = vmatmul.mubr.f32.gmra.mrb[0].mxu0 %v377
      %v584 = vpop.f32.mrb[0].mxu0
      %v585 = vadd.f32 0.0, %v584
      %v586 = vpop.f32.mrb[0].mxu0
      %587 = vmatprep.mubr.f32.mxu0 0.0
      %588 = vmatmul.mubr.f32.gmra.mrb[0].mxu0 %v380
      %v589 = vpop.f32.mrb[0].mxu0
      %v590 = vadd.f32 0.0, %v589
      %v591 = vpop.f32.mrb[0].mxu0
      %592 = vmatprep.mubr.f32.mxu0 0.0
      %593 = vmatmul.mubr.f32.gmra.mrb[0].mxu0 %v383
      %v594 = vpop.f32.mrb[0].mxu0
      %v595 = vadd.f32 0.0, %v594
      %v596 = vpop.f32.mrb[0].mxu0
      %597 = vmatprep.mubr.f32.mxu0 0.0
      %598 = vmatmul.mubr.f32.gmra.mrb[0].mxu0 %v386
      %v599 = vpop.f32.mrb[0].mxu0
      %v600 = vadd.f32 0.0, %v599
      %v601 = vpop.f32.mrb[0].mxu0
      %602 = vmatprep.mubr.f32.mxu0 0.0
      %603 = vmatmul.mubr.f32.gmra.mrb[0].mxu0 %v389
      %v604 = vpop.f32.mrb[0].mxu0
      %v605 = vadd.f32 0.0, %v604
      %v606 = vpop.f32.mrb[0].mxu0
      %607 = vmatprep.mubr.f32.mxu0 0.0
      %608 = vmatmul.mubr.f32.gmra.mrb[0].mxu0 %v392
      %v609 = vpop.f32.mrb[0].mxu0
      %v610 = vadd.f32 0.0, %v609
      %v611 = vpop.f32.mrb[0].mxu0
      %612 = vmatprep.mubr.f32.mxu0 0.0
      %613 = vmatmul.mubr.f32.gmra.mrb[0].mxu0 %v395
      %v614 = vpop.f32.mrb[0].mxu0
      %v615 = vadd.f32 0.0, %v614
      %v616 = vpop.f32.mrb[0].mxu0
      %617 = vmatprep.mubr.f32.mxu0 0.0
      %618 = vmatmul.mubr.f32.gmra.mrb[0].mxu0 %v398
      %v619 = vpop.f32.mrb[0].mxu0
      %v620 = vadd.f32 0.0, %v619
      %v621 = vpop.f32.mrb[0].mxu0
      %622 = vmatprep.mubr.f32.mxu0 0.0
      %623 = vmatmul.mubr.f32.gmra.mrb[0].mxu0 %v401
      %v624 = vpop.f32.mrb[0].mxu0
      %v625 = vadd.f32 0.0, %v624
      %v626 = vpop.f32.mrb[0].mxu0
      %627 = vmatprep.mubr.f32.mxu0 0.0
      %628 = vmatmul.mubr.f32.gmra.mrb[0].mxu0 %v404
      %v629 = vpop.f32.mrb[0].mxu0
      %v630 = vadd.f32 0.0, %v629
      %v631 = vpop.f32.mrb[0].mxu0
      %632 = vmatprep.mubr.f32.mxu0 0.0
      %633 = vmatmul.mubr.f32.gmra.mrb[0].mxu0 %v407
      %v634 = vpop.f32.mrb[0].mxu0
      %v635 = vadd.f32 0.0, %v634
      %v636 = vpop.f32.mrb[0].mxu0
      %637 = vdwg.mxu0
      %v639 = vsel %vm312, %v245, 0
      %v642 = vsel %vm312, %v246, 0
      %v645 = vsel %vm312, %v247, 0
      %v648 = vsel %vm312, %v248, 0
      %v651 = vsel %vm312, %v249, 0
      %v654 = vsel %vm312, %v250, 0
      %v657 = vsel %vm312, %v251, 0
      %v660 = vsel %vm312, %v252, 0
      %v663 = vsel %vm312, %v253, 0
      %v666 = vsel %vm312, %v254, 0
      %v669 = vsel %vm312, %v255, 0
      %v672 = vsel %vm312, %v256, 0
      %v675 = vsel %vm312, %v257, 0
      %v678 = vsel %vm312, %v258, 0
      %v681 = vsel %vm312, %v259, 0
      %v684 = vsel %vm312, %v260, 0
      %v687 = vsel %vm312, %v261, 0
      %v690 = vsel %vm312, %v262, 0
      %v693 = vsel %vm312, %v263, 0
      %v696 = vsel %vm312, %v264, 0
      %v699 = vsel %vm312, %v265, 0
      %v702 = vsel %vm312, %v266, 0
      %v705 = vsel %vm312, %v267, 0
      %v708 = vsel %vm312, %v268, 0
      %v711 = vsel %vm312, %v269, 0
      %v714 = vsel %vm312, %v270, 0
      %v717 = vsel %vm312, %v271, 0
      %v720 = vsel %vm312, %v272, 0
      %v723 = vsel %vm312, %v273, 0
      %v726 = vsel %vm312, %v274, 0
      %v729 = vsel %vm312, %v275, 0
      %v732 = vsel %vm312, %v276, 0
      %v735 = vsel %vm409, %v277, 0
      %737 = vmatprep.subr.mxu0 0.0
      %738 = vmatpush1.msra.mxu0 %v735
      %739 = vmatprep.subr.mxu0 0.0
      %740 = vmatpush1.msra.mxu0 0.0
      %741 = vmatprep.subr.mxu0 0.0
      %742 = vmatpush1.msra.mxu0 0.0
      %743 = vmatprep.subr.mxu0 0.0
      %744 = vmatpush1.msra.mxu0 0.0
      %745 = vmatprep.subr.mxu0 0.0
      %746 = vmatpush1.msra.mxu0 0.0
      %747 = vmatprep.subr.mxu0 0.0
      %748 = vmatpush1.msra.mxu0 0.0
      %749 = vmatprep.subr.mxu0 0.0
      %750 = vmatpush1.msra.mxu0 0.0
      %751 = vmatprep.subr.mxu0 0.0
      %752 = vmatpush1.msra.mxu0 0.0
      %753 = vmatprep.subr.mxu0 0.0
      %754 = vmatpush1.msra.mxu0 0.0
      %755 = vmatprep.subr.mxu0 0.0
      %756 = vmatpush1.msra.mxu0 0.0
      %757 = vmatprep.subr.mxu0 0.0
      %758 = vmatpush1.msra.mxu0 0.0
      %759 = vmatprep.subr.mxu0 0.0
      %760 = vmatpush1.msra.mxu0 0.0
      %761 = vmatprep.subr.mxu0 0.0
      %762 = vmatpush1.msra.mxu0 0.0
      %763 = vmatprep.subr.mxu0 0.0
      %764 = vmatpush1.msra.mxu0 0.0
      %765 = vmatprep.subr.mxu0 0.0
      %766 = vmatpush1.msra.mxu0 0.0
      %767 = vmatprep.subr.mxu0 0.0
      %768 = vmatpush1.msra.mxu0 0.0
      %769 = vmatprep.subr.mxu0 0.0
      %770 = vmatpush1.msra.mxu0 0.0
      %771 = vmatprep.subr.mxu0 0.0
      %772 = vmatpush1.msra.mxu0 0.0
      %773 = vmatprep.subr.mxu0 0.0
      %774 = vmatpush1.msra.mxu0 0.0
      %775 = vmatprep.subr.mxu0 0.0
      %776 = vmatpush1.msra.mxu0 0.0
      %777 = vmatprep.subr.mxu0 0.0
      %778 = vmatpush1.msra.mxu0 0.0
      %779 = vmatprep.subr.mxu0 0.0
      %780 = vmatpush1.msra.mxu0 0.0
      %781 = vmatprep.subr.mxu0 0.0
      %782 = vmatpush1.msra.mxu0 0.0
      %783 = vmatprep.subr.mxu0 0.0
      %784 = vmatpush1.msra.mxu0 0.0
      %785 = vmatprep.subr.mxu0 0.0
      %786 = vmatpush1.msra.mxu0 0.0
      %787 = vmatprep.subr.mxu0 0.0
      %788 = vmatpush1.msra.mxu0 0.0
      %789 = vmatprep.subr.mxu0 0.0
      %790 = vmatpush1.msra.mxu0 0.0
      %791 = vmatprep.subr.mxu0 0.0
      %792 = vmatpush1.msra.mxu0 0.0
      %793 = vmatprep.subr.mxu0 0.0
      %794 = vmatpush1.msra.mxu0 0.0
      %795 = vmatprep.subr.mxu0 0.0
      %796 = vmatpush1.msra.mxu0 0.0
      %797 = vmatprep.subr.mxu0 0.0
      %798 = vmatpush1.msra.mxu0 0.0
      %799 = vmatprep.subr.mxu0 0.0
      %800 = vmatpush1.msra.mxu0 0.0
      %801 = vmatprep.mubr.f32.mxu0 0.0
      %802 = vmatmul.mubr.f32.gmra.mrb[0].mxu0 %v639
      %v803 = vpop.f32.mrb[0].mxu0
      %v804 = vadd.f32 %v480, %v803
      %v805 = vpop.f32.mrb[0].mxu0
      %806 = vmatprep.mubr.f32.mxu0 0.0
      %807 = vmatmul.mubr.f32.gmra.mrb[0].mxu0 %v642
      %v808 = vpop.f32.mrb[0].mxu0
      %v809 = vadd.f32 %v485, %v808
      %v810 = vpop.f32.mrb[0].mxu0
      %811 = vmatprep.mubr.f32.mxu0 0.0
      %812 = vmatmul.mubr.f32.gmra.mrb[0].mxu0 %v645
      %v813 = vpop.f32.mrb[0].mxu0
      %v814 = vadd.f32 %v490, %v813
      %v815 = vpop.f32.mrb[0].mxu0
      %816 = vmatprep.mubr.f32.mxu0 0.0
      %817 = vmatmul.mubr.f32.gmra.mrb[0].mxu0 %v648
      %v818 = vpop.f32.mrb[0].mxu0
      %v819 = vadd.f32 %v495, %v818
      %v820 = vpop.f32.mrb[0].mxu0
      %821 = vmatprep.mubr.f32.mxu0 0.0
      %822 = vmatmul.mubr.f32.gmra.mrb[0].mxu0 %v651
      %v823 = vpop.f32.mrb[0].mxu0
      %v824 = vadd.f32 %v500, %v823
      %v825 = vpop.f32.mrb[0].mxu0
      %826 = vmatprep.mubr.f32.mxu0 0.0
      %827 = vmatmul.mubr.f32.gmra.mrb[0].mxu0 %v654
      %v828 = vpop.f32.mrb[0].mxu0
      %v829 = vadd.f32 %v505, %v828
      %v830 = vpop.f32.mrb[0].mxu0
      %831 = vmatprep.mubr.f32.mxu0 0.0
      %832 = vmatmul.mubr.f32.gmra.mrb[0].mxu0 %v657
      %v833 = vpop.f32.mrb[0].mxu0
      %v834 = vadd.f32 %v510, %v833
      %v835 = vpop.f32.mrb[0].mxu0
      %836 = vmatprep.mubr.f32.mxu0 0.0
      %837 = vmatmul.mubr.f32.gmra.mrb[0].mxu0 %v660
      %v838 = vpop.f32.mrb[0].mxu0
      %v839 = vadd.f32 %v515, %v838
      %v840 = vpop.f32.mrb[0].mxu0
      %841 = vmatprep.mubr.f32.mxu0 0.0
      %842 = vmatmul.mubr.f32.gmra.mrb[0].mxu0 %v663
      %v843 = vpop.f32.mrb[0].mxu0
      %v844 = vadd.f32 %v520, %v843
      %v845 = vpop.f32.mrb[0].mxu0
      %846 = vmatprep.mubr.f32.mxu0 0.0
      %847 = vmatmul.mubr.f32.gmra.mrb[0].mxu0 %v666
      %v848 = vpop.f32.mrb[0].mxu0
      %v849 = vadd.f32 %v525, %v848
      %v850 = vpop.f32.mrb[0].mxu0
      %851 = vmatprep.mubr.f32.mxu0 0.0
      %852 = vmatmul.mubr.f32.gmra.mrb[0].mxu0 %v669
      %v853 = vpop.f32.mrb[0].mxu0
      %v854 = vadd.f32 %v530, %v853
      %v855 = vpop.f32.mrb[0].mxu0
      %856 = vmatprep.mubr.f32.mxu0 0.0
      %857 = vmatmul.mubr.f32.gmra.mrb[0].mxu0 %v672
      %v858 = vpop.f32.mrb[0].mxu0
      %v859 = vadd.f32 %v535, %v858
      %v860 = vpop.f32.mrb[0].mxu0
      %861 = vmatprep.mubr.f32.mxu0 0.0
      %862 = vmatmul.mubr.f32.gmra.mrb[0].mxu0 %v675
      %v863 = vpop.f32.mrb[0].mxu0
      %v864 = vadd.f32 %v540, %v863
      %v865 = vpop.f32.mrb[0].mxu0
      %866 = vmatprep.mubr.f32.mxu0 0.0
      %867 = vmatmul.mubr.f32.gmra.mrb[0].mxu0 %v678
      %v868 = vpop.f32.mrb[0].mxu0
      %v869 = vadd.f32 %v545, %v868
      %v870 = vpop.f32.mrb[0].mxu0
      %871 = vmatprep.mubr.f32.mxu0 0.0
      %872 = vmatmul.mubr.f32.gmra.mrb[0].mxu0 %v681
      %v873 = vpop.f32.mrb[0].mxu0
      %v874 = vadd.f32 %v550, %v873
      %v875 = vpop.f32.mrb[0].mxu0
      %876 = vmatprep.mubr.f32.mxu0 0.0
      %877 = vmatmul.mubr.f32.gmra.mrb[0].mxu0 %v684
      %v878 = vpop.f32.mrb[0].mxu0
      %v879 = vadd.f32 %v555, %v878
      %v880 = vpop.f32.mrb[0].mxu0
      %881 = vmatprep.mubr.f32.mxu0 0.0
      %882 = vmatmul.mubr.f32.gmra.mrb[0].mxu0 %v687
      %v883 = vpop.f32.mrb[0].mxu0
      %v884 = vadd.f32 %v560, %v883
      %v885 = vpop.f32.mrb[0].mxu0
      %886 = vmatprep.mubr.f32.mxu0 0.0
      %887 = vmatmul.mubr.f32.gmra.mrb[0].mxu0 %v690
      %v888 = vpop.f32.mrb[0].mxu0
      %v889 = vadd.f32 %v565, %v888
      %v890 = vpop.f32.mrb[0].mxu0
      %891 = vmatprep.mubr.f32.mxu0 0.0
      %892 = vmatmul.mubr.f32.gmra.mrb[0].mxu0 %v693
      %v893 = vpop.f32.mrb[0].mxu0
      %v894 = vadd.f32 %v570, %v893
      %v895 = vpop.f32.mrb[0].mxu0
      %896 = vmatprep.mubr.f32.mxu0 0.0
      %897 = vmatmul.mubr.f32.gmra.mrb[0].mxu0 %v696
      %v898 = vpop.f32.mrb[0].mxu0
      %v899 = vadd.f32 %v575, %v898
      %v900 = vpop.f32.mrb[0].mxu0
      %901 = vmatprep.mubr.f32.mxu0 0.0
      %902 = vmatmul.mubr.f32.gmra.mrb[0].mxu0 %v699
      %v903 = vpop.f32.mrb[0].mxu0
      %v904 = vadd.f32 %v580, %v903
      %v905 = vpop.f32.mrb[0].mxu0
      %906 = vmatprep.mubr.f32.mxu0 0.0
      %907 = vmatmul.mubr.f32.gmra.mrb[0].mxu0 %v702
      %v908 = vpop.f32.mrb[0].mxu0
      %v909 = vadd.f32 %v585, %v908
      %v910 = vpop.f32.mrb[0].mxu0
      %911 = vmatprep.mubr.f32.mxu0 0.0
      %912 = vmatmul.mubr.f32.gmra.mrb[0].mxu0 %v705
      %v913 = vpop.f32.mrb[0].mxu0
      %v914 = vadd.f32 %v590, %v913
      %v915 = vpop.f32.mrb[0].mxu0
      %916 = vmatprep.mubr.f32.mxu0 0.0
      %917 = vmatmul.mubr.f32.gmra.mrb[0].mxu0 %v708
      %v918 = vpop.f32.mrb[0].mxu0
      %v919 = vadd.f32 %v595, %v918
      %v920 = vpop.f32.mrb[0].mxu0
      %921 = vmatprep.mubr.f32.mxu0 0.0
      %922 = vmatmul.mubr.f32.gmra.mrb[0].mxu0 %v711
      %v923 = vpop.f32.mrb[0].mxu0
      %v924 = vadd.f32 %v600, %v923
      %v925 = vpop.f32.mrb[0].mxu0
      %926 = vmatprep.mubr.f32.mxu0 0.0
      %927 = vmatmul.mubr.f32.gmra.mrb[0].mxu0 %v714
      %v928 = vpop.f32.mrb[0].mxu0
      %v929 = vadd.f32 %v605, %v928
      %v930 = vpop.f32.mrb[0].mxu0
      %931 = vmatprep.mubr.f32.mxu0 0.0
      %932 = vmatmul.mubr.f32.gmra.mrb[0].mxu0 %v717
      %v933 = vpop.f32.mrb[0].mxu0
      %v934 = vadd.f32 %v610, %v933
      %v935 = vpop.f32.mrb[0].mxu0
      %936 = vmatprep.mubr.f32.mxu0 0.0
      %937 = vmatmul.mubr.f32.gmra.mrb[0].mxu0 %v720
      %v938 = vpop.f32.mrb[0].mxu0
      %v939 = vadd.f32 %v615, %v938
      %v940 = vpop.f32.mrb[0].mxu0
      %941 = vmatprep.mubr.f32.mxu0 0.0
      %942 = vmatmul.mubr.f32.gmra.mrb[0].mxu0 %v723
      %v943 = vpop.f32.mrb[0].mxu0
      %v944 = vadd.f32 %v620, %v943
      %v945 = vpop.f32.mrb[0].mxu0
      %946 = vmatprep.mubr.f32.mxu0 0.0
      %947 = vmatmul.mubr.f32.gmra.mrb[0].mxu0 %v726
      %v948 = vpop.f32.mrb[0].mxu0
      %v949 = vadd.f32 %v625, %v948
      %v950 = vpop.f32.mrb[0].mxu0
      %951 = vmatprep.mubr.f32.mxu0 0.0
      %952 = vmatmul.mubr.f32.gmra.mrb[0].mxu0 %v729
      %v953 = vpop.f32.mrb[0].mxu0
      %v954 = vadd.f32 %v630, %v953
      %v955 = vpop.f32.mrb[0].mxu0
      %956 = vmatprep.mubr.f32.mxu0 0.0
      %957 = vmatmul.mubr.f32.gmra.mrb[0].mxu0 %v732
      %v958 = vpop.f32.mrb[0].mxu0
      %v959 = vadd.f32 %v635, %v958
      %v960 = vpop.f32.mrb[0].mxu0
      %961 = vdwg.mxu0
      %v962 = vld [vmem:[%s234 + $0x2] sm:$0xff]
      %v963 = vld [vmem:[%s234 + $0xa] sm:$0xff]
      %v964 = vld [vmem:[%s234 + $0x1a] sm:$0xff]
      %v965 = vld [vmem:[%s234 + $0x22] sm:$0xff]
      %v966 = vld [vmem:[%s234 + $0x32] sm:$0xff]
      %v967 = vld [vmem:[%s234 + $0x3a] sm:$0xff]
      %v968 = vld [vmem:[%s234 + $0x4a] sm:$0xff]
      %v969 = vld [vmem:[%s234 + $0x52] sm:$0xff]
      %v970 = vld [vmem:[%s234 + $0x62] sm:$0xff]
      %v971 = vld [vmem:[%s234 + $0x6a] sm:$0xff]
      %v972 = vld [vmem:[%s234 + $0x7a] sm:$0xff]
      %v973 = vld [vmem:[%s234 + $0x82] sm:$0xff]
      %v974 = vld [vmem:[%s234 + $0x92] sm:$0xff]
      %v975 = vld [vmem:[%s234 + $0x9a] sm:$0xff]
      %v976 = vld [vmem:[%s234 + $0xaa] sm:$0xff]
      %v977 = vld [vmem:[%s234 + $0xb2] sm:$0xff]
      %v978 = vld [vmem:[%s234 + $0xc2] sm:$0xff]
      %v979 = vld [vmem:[%s234 + $0xca] sm:$0xff]
      %v980 = vld [vmem:[%s234 + $0xda] sm:$0xff]
      %v981 = vld [vmem:[%s234 + $0xe2] sm:$0xff]
      %v982 = vld [vmem:[%s234 + $0xf2] sm:$0xff]
      %v983 = vld [vmem:[%s234 + $0xfa] sm:$0xff]
      %v984 = vld [vmem:[%s234 + $0x10a] sm:$0xff]
      %v985 = vld [vmem:[%s234 + $0x112] sm:$0xff]
      %v986 = vld [vmem:[%s234 + $0x122] sm:$0xff]
      %v987 = vld [vmem:[%s234 + $0x12a] sm:$0xff]
      %v988 = vld [vmem:[%s234 + $0x13a] sm:$0xff]
      %v989 = vld [vmem:[%s234 + $0x142] sm:$0xff]
      %v990 = vld [vmem:[%s234 + $0x152] sm:$0xff]
      %v991 = vld [vmem:[%s234 + $0x15a] sm:$0xff]
      %v992 = vld [vmem:[%s234 + $0x16a] sm:$0xff]
      %v993 = vld [vmem:[%s234 + $0x172] sm:$0xff]
      %s994 = scalar_lea.vmem %s1, 8
      %v995 = vld [vmem:[%s994] sm:$0xf]
      %v997 = vsel %vm312, %v962, 0
      %v1000 = vsel %vm312, %v963, 0
      %v1003 = vsel %vm312, %v964, 0
      %v1006 = vsel %vm312, %v965, 0
      %v1009 = vsel %vm312, %v966, 0
      %v1012 = vsel %vm312, %v967, 0
      %v1015 = vsel %vm312, %v968, 0
      %v1018 = vsel %vm312, %v969, 0
      %v1021 = vsel %vm312, %v970, 0
      %v1024 = vsel %vm312, %v971, 0
      %v1027 = vsel %vm312, %v972, 0
      %v1030 = vsel %vm312, %v973, 0
      %v1033 = vsel %vm312, %v974, 0
      %v1036 = vsel %vm312, %v975, 0
      %v1039 = vsel %vm312, %v976, 0
      %v1042 = vsel %vm312, %v977, 0
      %v1045 = vsel %vm312, %v978, 0
      %v1048 = vsel %vm312, %v979, 0
      %v1051 = vsel %vm312, %v980, 0
      %v1054 = vsel %vm312, %v981, 0
      %v1057 = vsel %vm312, %v982, 0
      %v1060 = vsel %vm312, %v983, 0
      %v1063 = vsel %vm312, %v984, 0
      %v1066 = vsel %vm312, %v985, 0
      %v1069 = vsel %vm312, %v986, 0
      %v1072 = vsel %vm312, %v987, 0
      %v1075 = vsel %vm312, %v988, 0
      %v1078 = vsel %vm312, %v989, 0
      %v1081 = vsel %vm312, %v990, 0
      %v1084 = vsel %vm312, %v991, 0
      %v1087 = vsel %vm312, %v992, 0
      %v1090 = vsel %vm312, %v993, 0
      %v1093 = vsel %vm409, %v995, 0
      %1095 = vmatprep.subr.mxu0 0.0
      %1096 = vmatpush1.msra.mxu0 %v1093
      %1097 = vmatprep.subr.mxu0 0.0
      %1098 = vmatpush1.msra.mxu0 0.0
      %1099 = vmatprep.subr.mxu0 0.0
      %1100 = vmatpush1.msra.mxu0 0.0
      %1101 = vmatprep.subr.mxu0 0.0
      %1102 = vmatpush1.msra.mxu0 0.0
      %1103 = vmatprep.subr.mxu0 0.0
      %1104 = vmatpush1.msra.mxu0 0.0
      %1105 = vmatprep.subr.mxu0 0.0
      %1106 = vmatpush1.msra.mxu0 0.0
      %1107 = vmatprep.subr.mxu0 0.0
      %1108 = vmatpush1.msra.mxu0 0.0
      %1109 = vmatprep.subr.mxu0 0.0
      %1110 = vmatpush1.msra.mxu0 0.0
      %1111 = vmatprep.subr.mxu0 0.0
      %1112 = vmatpush1.msra.mxu0 0.0
      %1113 = vmatprep.subr.mxu0 0.0
      %1114 = vmatpush1.msra.mxu0 0.0
      %1115 = vmatprep.subr.mxu0 0.0
      %1116 = vmatpush1.msra.mxu0 0.0
      %1117 = vmatprep.subr.mxu0 0.0
      %1118 = vmatpush1.msra.mxu0 0.0
      %1119 = vmatprep.subr.mxu0 0.0
      %1120 = vmatpush1.msra.mxu0 0.0
      %1121 = vmatprep.subr.mxu0 0.0
      %1122 = vmatpush1.msra.mxu0 0.0
      %1123 = vmatprep.subr.mxu0 0.0
      %1124 = vmatpush1.msra.mxu0 0.0
      %1125 = vmatprep.subr.mxu0 0.0
      %1126 = vmatpush1.msra.mxu0 0.0
      %1127 = vmatprep.subr.mxu0 0.0
      %1128 = vmatpush1.msra.mxu0 0.0
      %1129 = vmatprep.subr.mxu0 0.0
      %1130 = vmatpush1.msra.mxu0 0.0
      %1131 = vmatprep.subr.mxu0 0.0
      %1132 = vmatpush1.msra.mxu0 0.0
      %1133 = vmatprep.subr.mxu0 0.0
      %1134 = vmatpush1.msra.mxu0 0.0
      %1135 = vmatprep.subr.mxu0 0.0
      %1136 = vmatpush1.msra.mxu0 0.0
      %1137 = vmatprep.subr.mxu0 0.0
      %1138 = vmatpush1.msra.mxu0 0.0
      %1139 = vmatprep.subr.mxu0 0.0
      %1140 = vmatpush1.msra.mxu0 0.0
      %1141 = vmatprep.subr.mxu0 0.0
      %1142 = vmatpush1.msra.mxu0 0.0
      %1143 = vmatprep.subr.mxu0 0.0
      %1144 = vmatpush1.msra.mxu0 0.0
      %1145 = vmatprep.subr.mxu0 0.0
      %1146 = vmatpush1.msra.mxu0 0.0
      %1147 = vmatprep.subr.mxu0 0.0
      %1148 = vmatpush1.msra.mxu0 0.0
      %1149 = vmatprep.subr.mxu0 0.0
      %1150 = vmatpush1.msra.mxu0 0.0
      %1151 = vmatprep.subr.mxu0 0.0
      %1152 = vmatpush1.msra.mxu0 0.0
      %1153 = vmatprep.subr.mxu0 0.0
      %1154 = vmatpush1.msra.mxu0 0.0
      %1155 = vmatprep.subr.mxu0 0.0
      %1156 = vmatpush1.msra.mxu0 0.0
      %1157 = vmatprep.subr.mxu0 0.0
      %1158 = vmatpush1.msra.mxu0 0.0
      %1159 = vmatprep.mubr.f32.mxu0 0.0
      %1160 = vmatmul.mubr.f32.gmra.mrb[0].mxu0 %v997
      %v1161 = vpop.f32.mrb[0].mxu0
      %v1162 = vadd.f32 0.0, %v1161
      %v1163 = vpop.f32.mrb[0].mxu0
      %1164 = vmatprep.mubr.f32.mxu0 0.0
      %1165 = vmatmul.mubr.f32.gmra.mrb[0].mxu0 %v1000
      %v1166 = vpop.f32.mrb[0].mxu0
      %v1167 = vadd.f32 0.0, %v1166
      %v1168 = vpop.f32.mrb[0].mxu0
      %1169 = vmatprep.mubr.f32.mxu0 0.0
      %1170 = vmatmul.mubr.f32.gmra.mrb[0].mxu0 %v1003
      %v1171 = vpop.f32.mrb[0].mxu0
      %v1172 = vadd.f32 0.0, %v1171
      %v1173 = vpop.f32.mrb[0].mxu0
      %1174 = vmatprep.mubr.f32.mxu0 0.0
      %1175 = vmatmul.mubr.f32.gmra.mrb[0].mxu0 %v1006
      %v1176 = vpop.f32.mrb[0].mxu0
      %v1177 = vadd.f32 0.0, %v1176
      %v1178 = vpop.f32.mrb[0].mxu0
      %1179 = vmatprep.mubr.f32.mxu0 0.0
      %1180 = vmatmul.mubr.f32.gmra.mrb[0].mxu0 %v1009
      %v1181 = vpop.f32.mrb[0].mxu0
      %v1182 = vadd.f32 0.0, %v1181
      %v1183 = vpop.f32.mrb[0].mxu0
      %1184 = vmatprep.mubr.f32.mxu0 0.0
      %1185 = vmatmul.mubr.f32.gmra.mrb[0].mxu0 %v1012
      %v1186 = vpop.f32.mrb[0].mxu0
      %v1187 = vadd.f32 0.0, %v1186
      %v1188 = vpop.f32.mrb[0].mxu0
      %1189 = vmatprep.mubr.f32.mxu0 0.0
      %1190 = vmatmul.mubr.f32.gmra.mrb[0].mxu0 %v1015
      %v1191 = vpop.f32.mrb[0].mxu0
      %v1192 = vadd.f32 0.0, %v1191
      %v1193 = vpop.f32.mrb[0].mxu0
      %1194 = vmatprep.mubr.f32.mxu0 0.0
      %1195 = vmatmul.mubr.f32.gmra.mrb[0].mxu0 %v1018
      %v1196 = vpop.f32.mrb[0].mxu0
      %v1197 = vadd.f32 0.0, %v1196
      %v1198 = vpop.f32.mrb[0].mxu0
      %1199 = vmatprep.mubr.f32.mxu0 0.0
      %1200 = vmatmul.mubr.f32.gmra.mrb[0].mxu0 %v1021
      %v1201 = vpop.f32.mrb[0].mxu0
      %v1202 = vadd.f32 0.0, %v1201
      %v1203 = vpop.f32.mrb[0].mxu0
      %1204 = vmatprep.mubr.f32.mxu0 0.0
      %1205 = vmatmul.mubr.f32.gmra.mrb[0].mxu0 %v1024
      %v1206 = vpop.f32.mrb[0].mxu0
      %v1207 = vadd.f32 0.0, %v1206
      %v1208 = vpop.f32.mrb[0].mxu0
      %1209 = vmatprep.mubr.f32.mxu0 0.0
      %1210 = vmatmul.mubr.f32.gmra.mrb[0].mxu0 %v1027
      %v1211 = vpop.f32.mrb[0].mxu0
      %v1212 = vadd.f32 0.0, %v1211
      %v1213 = vpop.f32.mrb[0].mxu0
      %1214 = vmatprep.mubr.f32.mxu0 0.0
      %1215 = vmatmul.mubr.f32.gmra.mrb[0].mxu0 %v1030
      %v1216 = vpop.f32.mrb[0].mxu0
      %v1217 = vadd.f32 0.0, %v1216
      %v1218 = vpop.f32.mrb[0].mxu0
      %1219 = vmatprep.mubr.f32.mxu0 0.0
      %1220 = vmatmul.mubr.f32.gmra.mrb[0].mxu0 %v1033
      %v1221 = vpop.f32.mrb[0].mxu0
      %v1222 = vadd.f32 0.0, %v1221
      %v1223 = vpop.f32.mrb[0].mxu0
      %1224 = vmatprep.mubr.f32.mxu0 0.0
      %1225 = vmatmul.mubr.f32.gmra.mrb[0].mxu0 %v1036
      %v1226 = vpop.f32.mrb[0].mxu0
      %v1227 = vadd.f32 0.0, %v1226
      %v1228 = vpop.f32.mrb[0].mxu0
      %1229 = vmatprep.mubr.f32.mxu0 0.0
      %1230 = vmatmul.mubr.f32.gmra.mrb[0].mxu0 %v1039
      %v1231 = vpop.f32.mrb[0].mxu0
      %v1232 = vadd.f32 0.0, %v1231
      %v1233 = vpop.f32.mrb[0].mxu0
      %1234 = vmatprep.mubr.f32.mxu0 0.0
      %1235 = vmatmul.mubr.f32.gmra.mrb[0].mxu0 %v1042
      %v1236 = vpop.f32.mrb[0].mxu0
      %v1237 = vadd.f32 0.0, %v1236
      %v1238 = vpop.f32.mrb[0].mxu0
      %1239 = vmatprep.mubr.f32.mxu0 0.0
      %1240 = vmatmul.mubr.f32.gmra.mrb[0].mxu0 %v1045
      %v1241 = vpop.f32.mrb[0].mxu0
      %v1242 = vadd.f32 0.0, %v1241
      %v1243 = vpop.f32.mrb[0].mxu0
      %1244 = vmatprep.mubr.f32.mxu0 0.0
      %1245 = vmatmul.mubr.f32.gmra.mrb[0].mxu0 %v1048
      %v1246 = vpop.f32.mrb[0].mxu0
      %v1247 = vadd.f32 0.0, %v1246
      %v1248 = vpop.f32.mrb[0].mxu0
      %1249 = vmatprep.mubr.f32.mxu0 0.0
      %1250 = vmatmul.mubr.f32.gmra.mrb[0].mxu0 %v1051
      %v1251 = vpop.f32.mrb[0].mxu0
      %v1252 = vadd.f32 0.0, %v1251
      %v1253 = vpop.f32.mrb[0].mxu0
      %1254 = vmatprep.mubr.f32.mxu0 0.0
      %1255 = vmatmul.mubr.f32.gmra.mrb[0].mxu0 %v1054
      %v1256 = vpop.f32.mrb[0].mxu0
      %v1257 = vadd.f32 0.0, %v1256
      %v1258 = vpop.f32.mrb[0].mxu0
      %1259 = vmatprep.mubr.f32.mxu0 0.0
      %1260 = vmatmul.mubr.f32.gmra.mrb[0].mxu0 %v1057
      %v1261 = vpop.f32.mrb[0].mxu0
      %v1262 = vadd.f32 0.0, %v1261
      %v1263 = vpop.f32.mrb[0].mxu0
      %1264 = vmatprep.mubr.f32.mxu0 0.0
      %1265 = vmatmul.mubr.f32.gmra.mrb[0].mxu0 %v1060
      %v1266 = vpop.f32.mrb[0].mxu0
      %v1267 = vadd.f32 0.0, %v1266
      %v1268 = vpop.f32.mrb[0].mxu0
      %1269 = vmatprep.mubr.f32.mxu0 0.0
      %1270 = vmatmul.mubr.f32.gmra.mrb[0].mxu0 %v1063
      %v1271 = vpop.f32.mrb[0].mxu0
      %v1272 = vadd.f32 0.0, %v1271
      %v1273 = vpop.f32.mrb[0].mxu0
      %1274 = vmatprep.mubr.f32.mxu0 0.0
      %1275 = vmatmul.mubr.f32.gmra.mrb[0].mxu0 %v1066
      %v1276 = vpop.f32.mrb[0].mxu0
      %v1277 = vadd.f32 0.0, %v1276
      %v1278 = vpop.f32.mrb[0].mxu0
      %1279 = vmatprep.mubr.f32.mxu0 0.0
      %1280 = vmatmul.mubr.f32.gmra.mrb[0].mxu0 %v1069
      %v1281 = vpop.f32.mrb[0].mxu0
      %v1282 = vadd.f32 0.0, %v1281
      %v1283 = vpop.f32.mrb[0].mxu0
      %1284 = vmatprep.mubr.f32.mxu0 0.0
      %1285 = vmatmul.mubr.f32.gmra.mrb[0].mxu0 %v1072
      %v1286 = vpop.f32.mrb[0].mxu0
      %v1287 = vadd.f32 0.0, %v1286
      %v1288 = vpop.f32.mrb[0].mxu0
      %1289 = vmatprep.mubr.f32.mxu0 0.0
      %1290 = vmatmul.mubr.f32.gmra.mrb[0].mxu0 %v1075
      %v1291 = vpop.f32.mrb[0].mxu0
      %v1292 = vadd.f32 0.0, %v1291
      %v1293 = vpop.f32.mrb[0].mxu0
      %1294 = vmatprep.mubr.f32.mxu0 0.0
      %1295 = vmatmul.mubr.f32.gmra.mrb[0].mxu0 %v1078
      %v1296 = vpop.f32.mrb[0].mxu0
      %v1297 = vadd.f32 0.0, %v1296
      %v1298 = vpop.f32.mrb[0].mxu0
      %1299 = vmatprep.mubr.f32.mxu0 0.0
      %1300 = vmatmul.mubr.f32.gmra.mrb[0].mxu0 %v1081
      %v1301 = vpop.f32.mrb[0].mxu0
      %v1302 = vadd.f32 0.0, %v1301
      %v1303 = vpop.f32.mrb[0].mxu0
      %1304 = vmatprep.mubr.f32.mxu0 0.0
      %1305 = vmatmul.mubr.f32.gmra.mrb[0].mxu0 %v1084
      %v1306 = vpop.f32.mrb[0].mxu0
      %v1307 = vadd.f32 0.0, %v1306
      %v1308 = vpop.f32.mrb[0].mxu0
      %1309 = vmatprep.mubr.f32.mxu0 0.0
      %1310 = vmatmul.mubr.f32.gmra.mrb[0].mxu0 %v1087
      %v1311 = vpop.f32.mrb[0].mxu0
      %v1312 = vadd.f32 0.0, %v1311
      %v1313 = vpop.f32.mrb[0].mxu0
      %1314 = vmatprep.mubr.f32.mxu0 0.0
      %1315 = vmatmul.mubr.f32.gmra.mrb[0].mxu0 %v1090
      %v1316 = vpop.f32.mrb[0].mxu0
      %v1317 = vadd.f32 0.0, %v1316
      %v1318 = vpop.f32.mrb[0].mxu0
      %1319 = vdwg.mxu0
      %v1320 = vadd.f32 %v804, %v1162
      %v1321 = vadd.f32 %v809, %v1167
      %v1322 = vadd.f32 %v814, %v1172
      %v1323 = vadd.f32 %v819, %v1177
      %v1324 = vadd.f32 %v824, %v1182
      %v1325 = vadd.f32 %v829, %v1187
      %v1326 = vadd.f32 %v834, %v1192
      %v1327 = vadd.f32 %v839, %v1197
      %v1328 = vadd.f32 %v844, %v1202
      %v1329 = vadd.f32 %v849, %v1207
      %v1330 = vadd.f32 %v854, %v1212
      %v1331 = vadd.f32 %v859, %v1217
      %v1332 = vadd.f32 %v864, %v1222
      %v1333 = vadd.f32 %v869, %v1227
      %v1334 = vadd.f32 %v874, %v1232
      %v1335 = vadd.f32 %v879, %v1237
      %v1336 = vadd.f32 %v884, %v1242
      %v1337 = vadd.f32 %v889, %v1247
      %v1338 = vadd.f32 %v894, %v1252
      %v1339 = vadd.f32 %v899, %v1257
      %v1340 = vadd.f32 %v904, %v1262
      %v1341 = vadd.f32 %v909, %v1267
      %v1342 = vadd.f32 %v914, %v1272
      %v1343 = vadd.f32 %v919, %v1277
      %v1344 = vadd.f32 %v924, %v1282
      %v1345 = vadd.f32 %v929, %v1287
      %v1346 = vadd.f32 %v934, %v1292
      %v1347 = vadd.f32 %v939, %v1297
      %v1348 = vadd.f32 %v944, %v1302
      %v1349 = vadd.f32 %v949, %v1307
      %v1350 = vadd.f32 %v954, %v1312
      %v1351 = vadd.f32 %v959, %v1317
      %s1352 = scalar_lea.vmem %s234, 24
      %v1353 = vld [vmem:[%s1352] sm:$0xff]
      %v1354 = vld [vmem:[%s1352 + $0x8] sm:$0xff]
      %v1355 = vld [vmem:[%s1352 + $0x18] sm:$0xff]
      %v1356 = vld [vmem:[%s1352 + $0x20] sm:$0xff]
      %v1357 = vld [vmem:[%s1352 + $0x30] sm:$0xff]
      %v1358 = vld [vmem:[%s1352 + $0x38] sm:$0xff]
      %v1359 = vld [vmem:[%s1352 + $0x48] sm:$0xff]
      %v1360 = vld [vmem:[%s1352 + $0x50] sm:$0xff]
      %v1361 = vld [vmem:[%s1352 + $0x60] sm:$0xff]
      %v1362 = vld [vmem:[%s1352 + $0x68] sm:$0xff]
      %v1363 = vld [vmem:[%s1352 + $0x78] sm:$0xff]
      %v1364 = vld [vmem:[%s1352 + $0x80] sm:$0xff]
      %v1365 = vld [vmem:[%s1352 + $0x90] sm:$0xff]
      %v1366 = vld [vmem:[%s1352 + $0x98] sm:$0xff]
      %v1367 = vld [vmem:[%s1352 + $0xa8] sm:$0xff]
      %v1368 = vld [vmem:[%s1352 + $0xb0] sm:$0xff]
      %v1369 = vld [vmem:[%s1352 + $0xc0] sm:$0xff]
      %v1370 = vld [vmem:[%s1352 + $0xc8] sm:$0xff]
      %v1371 = vld [vmem:[%s1352 + $0xd8] sm:$0xff]
      %v1372 = vld [vmem:[%s1352 + $0xe0] sm:$0xff]
      %v1373 = vld [vmem:[%s1352 + $0xf0] sm:$0xff]
      %v1374 = vld [vmem:[%s1352 + $0xf8] sm:$0xff]
      %v1375 = vld [vmem:[%s1352 + $0x108] sm:$0xff]
      %v1376 = vld [vmem:[%s1352 + $0x110] sm:$0xff]
      %v1377 = vld [vmem:[%s1352 + $0x120] sm:$0xff]
      %v1378 = vld [vmem:[%s1352 + $0x128] sm:$0xff]
      %v1379 = vld [vmem:[%s1352 + $0x138] sm:$0xff]
      %v1380 = vld [vmem:[%s1352 + $0x140] sm:$0xff]
      %v1381 = vld [vmem:[%s1352 + $0x150] sm:$0xff]
      %v1382 = vld [vmem:[%s1352 + $0x158] sm:$0xff]
      %v1383 = vld [vmem:[%s1352 + $0x168] sm:$0xff]
      %v1384 = vld [vmem:[%s1352 + $0x170] sm:$0xff]
      %s1385 = scalar_lea.vmem %s1, 12
      %v1386 = vld [vmem:[%s1385] sm:$0xf]
      %v1388 = vsel %vm312, %v1353, 0
      %v1391 = vsel %vm312, %v1354, 0
      %v1394 = vsel %vm312, %v1355, 0
      %v1397 = vsel %vm312, %v1356, 0
      %v1400 = vsel %vm312, %v1357, 0
      %v1403 = vsel %vm312, %v1358, 0
      %v1406 = vsel %vm312, %v1359, 0
      %v1409 = vsel %vm312, %v1360, 0
      %v1412 = vsel %vm312, %v1361, 0
      %v1415 = vsel %vm312, %v1362, 0
      %v1418 = vsel %vm312, %v1363, 0
      %v1421 = vsel %vm312, %v1364, 0
      %v1424 = vsel %vm312, %v1365, 0
      %v1427 = vsel %vm312, %v1366, 0
      %v1430 = vsel %vm312, %v1367, 0
      %v1433 = vsel %vm312, %v1368, 0
      %v1436 = vsel %vm312, %v1369, 0
      %v1439 = vsel %vm312, %v1370, 0
      %v1442 = vsel %vm312, %v1371, 0
      %v1445 = vsel %vm312, %v1372, 0
      %v1448 = vsel %vm312, %v1373, 0
      %v1451 = vsel %vm312, %v1374, 0
      %v1454 = vsel %vm312, %v1375, 0
      %v1457 = vsel %vm312, %v1376, 0
      %v1460 = vsel %vm312, %v1377, 0
      %v1463 = vsel %vm312, %v1378, 0
      %v1466 = vsel %vm312, %v1379, 0
      %v1469 = vsel %vm312, %v1380, 0
      %v1472 = vsel %vm312, %v1381, 0
      %v1475 = vsel %vm312, %v1382, 0
      %v1478 = vsel %vm312, %v1383, 0
      %v1481 = vsel %vm312, %v1384, 0
      %v1484 = vsel %vm409, %v1386, 0
      %1486 = vmatprep.subr.mxu0 0.0
      %1487 = vmatpush1.msra.mxu0 %v1484
      %1488 = vmatprep.subr.mxu0 0.0
      %1489 = vmatpush1.msra.mxu0 0.0
      %1490 = vmatprep.subr.mxu0 0.0
      %1491 = vmatpush1.msra.mxu0 0.0
      %1492 = vmatprep.subr.mxu0 0.0
      %1493 = vmatpush1.msra.mxu0 0.0
      %1494 = vmatprep.subr.mxu0 0.0
      %1495 = vmatpush1.msra.mxu0 0.0
      %1496 = vmatprep.subr.mxu0 0.0
      %1497 = vmatpush1.msra.mxu0 0.0
      %1498 = vmatprep.subr.mxu0 0.0
      %1499 = vmatpush1.msra.mxu0 0.0
      %1500 = vmatprep.subr.mxu0 0.0
      %1501 = vmatpush1.msra.mxu0 0.0
      %1502 = vmatprep.subr.mxu0 0.0
      %1503 = vmatpush1.msra.mxu0 0.0
      %1504 = vmatprep.subr.mxu0 0.0
      %1505 = vmatpush1.msra.mxu0 0.0
      %1506 = vmatprep.subr.mxu0 0.0
      %1507 = vmatpush1.msra.mxu0 0.0
      %1508 = vmatprep.subr.mxu0 0.0
      %1509 = vmatpush1.msra.mxu0 0.0
      %1510 = vmatprep.subr.mxu0 0.0
      %1511 = vmatpush1.msra.mxu0 0.0
      %1512 = vmatprep.subr.mxu0 0.0
      %1513 = vmatpush1.msra.mxu0 0.0
      %1514 = vmatprep.subr.mxu0 0.0
      %1515 = vmatpush1.msra.mxu0 0.0
      %1516 = vmatprep.subr.mxu0 0.0
      %1517 = vmatpush1.msra.mxu0 0.0
      %1518 = vmatprep.subr.mxu0 0.0
      %1519 = vmatpush1.msra.mxu0 0.0
      %1520 = vmatprep.subr.mxu0 0.0
      %1521 = vmatpush1.msra.mxu0 0.0
      %1522 = vmatprep.subr.mxu0 0.0
      %1523 = vmatpush1.msra.mxu0 0.0
      %1524 = vmatprep.subr.mxu0 0.0
      %1525 = vmatpush1.msra.mxu0 0.0
      %1526 = vmatprep.subr.mxu0 0.0
      %1527 = vmatpush1.msra.mxu0 0.0
      %1528 = vmatprep.subr.mxu0 0.0
      %1529 = vmatpush1.msra.mxu0 0.0
      %1530 = vmatprep.subr.mxu0 0.0
      %1531 = vmatpush1.msra.mxu0 0.0
      %1532 = vmatprep.subr.mxu0 0.0
      %1533 = vmatpush1.msra.mxu0 0.0
      %1534 = vmatprep.subr.mxu0 0.0
      %1535 = vmatpush1.msra.mxu0 0.0
      %1536 = vmatprep.subr.mxu0 0.0
      %1537 = vmatpush1.msra.mxu0 0.0
      %1538 = vmatprep.subr.mxu0 0.0
      %1539 = vmatpush1.msra.mxu0 0.0
      %1540 = vmatprep.subr.mxu0 0.0
      %1541 = vmatpush1.msra.mxu0 0.0
      %1542 = vmatprep.subr.mxu0 0.0
      %1543 = vmatpush1.msra.mxu0 0.0
      %1544 = vmatprep.subr.mxu0 0.0
      %1545 = vmatpush1.msra.mxu0 0.0
      %1546 = vmatprep.subr.mxu0 0.0
      %1547 = vmatpush1.msra.mxu0 0.0
      %1548 = vmatprep.subr.mxu0 0.0
      %1549 = vmatpush1.msra.mxu0 0.0
      %1550 = vmatprep.mubr.f32.mxu0 0.0
      %1551 = vmatmul.mubr.f32.gmra.mrb[0].mxu0 %v1388
      %v1552 = vpop.f32.mrb[0].mxu0
      %v1553 = vadd.f32 0.0, %v1552
      %v1554 = vpop.f32.mrb[0].mxu0
      %1555 = vmatprep.mubr.f32.mxu0 0.0
      %1556 = vmatmul.mubr.f32.gmra.mrb[0].mxu0 %v1391
      %v1557 = vpop.f32.mrb[0].mxu0
      %v1558 = vadd.f32 0.0, %v1557
      %v1559 = vpop.f32.mrb[0].mxu0
      %1560 = vmatprep.mubr.f32.mxu0 0.0
      %1561 = vmatmul.mubr.f32.gmra.mrb[0].mxu0 %v1394
      %v1562 = vpop.f32.mrb[0].mxu0
      %v1563 = vadd.f32 0.0, %v1562
      %v1564 = vpop.f32.mrb[0].mxu0
      %1565 = vmatprep.mubr.f32.mxu0 0.0
      %1566 = vmatmul.mubr.f32.gmra.mrb[0].mxu0 %v1397
      %v1567 = vpop.f32.mrb[0].mxu0
      %v1568 = vadd.f32 0.0, %v1567
      %v1569 = vpop.f32.mrb[0].mxu0
      %1570 = vmatprep.mubr.f32.mxu0 0.0
      %1571 = vmatmul.mubr.f32.gmra.mrb[0].mxu0 %v1400
      %v1572 = vpop.f32.mrb[0].mxu0
      %v1573 = vadd.f32 0.0, %v1572
      %v1574 = vpop.f32.mrb[0].mxu0
      %1575 = vmatprep.mubr.f32.mxu0 0.0
      %1576 = vmatmul.mubr.f32.gmra.mrb[0].mxu0 %v1403
      %v1577 = vpop.f32.mrb[0].mxu0
      %v1578 = vadd.f32 0.0, %v1577
      %v1579 = vpop.f32.mrb[0].mxu0
      %1580 = vmatprep.mubr.f32.mxu0 0.0
      %1581 = vmatmul.mubr.f32.gmra.mrb[0].mxu0 %v1406
      %v1582 = vpop.f32.mrb[0].mxu0
      %v1583 = vadd.f32 0.0, %v1582
      %v1584 = vpop.f32.mrb[0].mxu0
      %1585 = vmatprep.mubr.f32.mxu0 0.0
      %1586 = vmatmul.mubr.f32.gmra.mrb[0].mxu0 %v1409
      %v1587 = vpop.f32.mrb[0].mxu0
      %v1588 = vadd.f32 0.0, %v1587
      %v1589 = vpop.f32.mrb[0].mxu0
      %1590 = vmatprep.mubr.f32.mxu0 0.0
      %1591 = vmatmul.mubr.f32.gmra.mrb[0].mxu0 %v1412
      %v1592 = vpop.f32.mrb[0].mxu0
      %v1593 = vadd.f32 0.0, %v1592
      %v1594 = vpop.f32.mrb[0].mxu0
      %1595 = vmatprep.mubr.f32.mxu0 0.0
      %1596 = vmatmul.mubr.f32.gmra.mrb[0].mxu0 %v1415
      %v1597 = vpop.f32.mrb[0].mxu0
      %v1598 = vadd.f32 0.0, %v1597
      %v1599 = vpop.f32.mrb[0].mxu0
      %1600 = vmatprep.mubr.f32.mxu0 0.0
      %1601 = vmatmul.mubr.f32.gmra.mrb[0].mxu0 %v1418
      %v1602 = vpop.f32.mrb[0].mxu0
      %v1603 = vadd.f32 0.0, %v1602
      %v1604 = vpop.f32.mrb[0].mxu0
      %1605 = vmatprep.mubr.f32.mxu0 0.0
      %1606 = vmatmul.mubr.f32.gmra.mrb[0].mxu0 %v1421
      %v1607 = vpop.f32.mrb[0].mxu0
      %v1608 = vadd.f32 0.0, %v1607
      %v1609 = vpop.f32.mrb[0].mxu0
      %1610 = vmatprep.mubr.f32.mxu0 0.0
      %1611 = vmatmul.mubr.f32.gmra.mrb[0].mxu0 %v1424
      %v1612 = vpop.f32.mrb[0].mxu0
      %v1613 = vadd.f32 0.0, %v1612
      %v1614 = vpop.f32.mrb[0].mxu0
      %1615 = vmatprep.mubr.f32.mxu0 0.0
      %1616 = vmatmul.mubr.f32.gmra.mrb[0].mxu0 %v1427
      %v1617 = vpop.f32.mrb[0].mxu0
      %v1618 = vadd.f32 0.0, %v1617
      %v1619 = vpop.f32.mrb[0].mxu0
      %1620 = vmatprep.mubr.f32.mxu0 0.0
      %1621 = vmatmul.mubr.f32.gmra.mrb[0].mxu0 %v1430
      %v1622 = vpop.f32.mrb[0].mxu0
      %v1623 = vadd.f32 0.0, %v1622
      %v1624 = vpop.f32.mrb[0].mxu0
      %1625 = vmatprep.mubr.f32.mxu0 0.0
      %1626 = vmatmul.mubr.f32.gmra.mrb[0].mxu0 %v1433
      %v1627 = vpop.f32.mrb[0].mxu0
      %v1628 = vadd.f32 0.0, %v1627
      %v1629 = vpop.f32.mrb[0].mxu0
      %1630 = vmatprep.mubr.f32.mxu0 0.0
      %1631 = vmatmul.mubr.f32.gmra.mrb[0].mxu0 %v1436
      %v1632 = vpop.f32.mrb[0].mxu0
      %v1633 = vadd.f32 0.0, %v1632
      %v1634 = vpop.f32.mrb[0].mxu0
      %1635 = vmatprep.mubr.f32.mxu0 0.0
      %1636 = vmatmul.mubr.f32.gmra.mrb[0].mxu0 %v1439
      %v1637 = vpop.f32.mrb[0].mxu0
      %v1638 = vadd.f32 0.0, %v1637
      %v1639 = vpop.f32.mrb[0].mxu0
      %1640 = vmatprep.mubr.f32.mxu0 0.0
      %1641 = vmatmul.mubr.f32.gmra.mrb[0].mxu0 %v1442
      %v1642 = vpop.f32.mrb[0].mxu0
      %v1643 = vadd.f32 0.0, %v1642
      %v1644 = vpop.f32.mrb[0].mxu0
      %1645 = vmatprep.mubr.f32.mxu0 0.0
      %1646 = vmatmul.mubr.f32.gmra.mrb[0].mxu0 %v1445
      %v1647 = vpop.f32.mrb[0].mxu0
      %v1648 = vadd.f32 0.0, %v1647
      %v1649 = vpop.f32.mrb[0].mxu0
      %1650 = vmatprep.mubr.f32.mxu0 0.0
      %1651 = vmatmul.mubr.f32.gmra.mrb[0].mxu0 %v1448
      %v1652 = vpop.f32.mrb[0].mxu0
      %v1653 = vadd.f32 0.0, %v1652
      %v1654 = vpop.f32.mrb[0].mxu0
      %1655 = vmatprep.mubr.f32.mxu0 0.0
      %1656 = vmatmul.mubr.f32.gmra.mrb[0].mxu0 %v1451
      %v1657 = vpop.f32.mrb[0].mxu0
      %v1658 = vadd.f32 0.0, %v1657
      %v1659 = vpop.f32.mrb[0].mxu0
      %1660 = vmatprep.mubr.f32.mxu0 0.0
      %1661 = vmatmul.mubr.f32.gmra.mrb[0].mxu0 %v1454
      %v1662 = vpop.f32.mrb[0].mxu0
      %v1663 = vadd.f32 0.0, %v1662
      %v1664 = vpop.f32.mrb[0].mxu0
      %1665 = vmatprep.mubr.f32.mxu0 0.0
      %1666 = vmatmul.mubr.f32.gmra.mrb[0].mxu0 %v1457
      %v1667 = vpop.f32.mrb[0].mxu0
      %v1668 = vadd.f32 0.0, %v1667
      %v1669 = vpop.f32.mrb[0].mxu0
      %1670 = vmatprep.mubr.f32.mxu0 0.0
      %1671 = vmatmul.mubr.f32.gmra.mrb[0].mxu0 %v1460
      %v1672 = vpop.f32.mrb[0].mxu0
      %v1673 = vadd.f32 0.0, %v1672
      %v1674 = vpop.f32.mrb[0].mxu0
      %1675 = vmatprep.mubr.f32.mxu0 0.0
      %1676 = vmatmul.mubr.f32.gmra.mrb[0].mxu0 %v1463
      %v1677 = vpop.f32.mrb[0].mxu0
      %v1678 = vadd.f32 0.0, %v1677
      %v1679 = vpop.f32.mrb[0].mxu0
      %1680 = vmatprep.mubr.f32.mxu0 0.0
      %1681 = vmatmul.mubr.f32.gmra.mrb[0].mxu0 %v1466
      %v1682 = vpop.f32.mrb[0].mxu0
      %v1683 = vadd.f32 0.0, %v1682
      %v1684 = vpop.f32.mrb[0].mxu0
      %1685 = vmatprep.mubr.f32.mxu0 0.0
      %1686 = vmatmul.mubr.f32.gmra.mrb[0].mxu0 %v1469
      %v1687 = vpop.f32.mrb[0].mxu0
      %v1688 = vadd.f32 0.0, %v1687
      %v1689 = vpop.f32.mrb[0].mxu0
      %1690 = vmatprep.mubr.f32.mxu0 0.0
      %1691 = vmatmul.mubr.f32.gmra.mrb[0].mxu0 %v1472
      %v1692 = vpop.f32.mrb[0].mxu0
      %v1693 = vadd.f32 0.0, %v1692
      %v1694 = vpop.f32.mrb[0].mxu0
      %1695 = vmatprep.mubr.f32.mxu0 0.0
      %1696 = vmatmul.mubr.f32.gmra.mrb[0].mxu0 %v1475
      %v1697 = vpop.f32.mrb[0].mxu0
      %v1698 = vadd.f32 0.0, %v1697
      %v1699 = vpop.f32.mrb[0].mxu0
      %1700 = vmatprep.mubr.f32.mxu0 0.0
      %1701 = vmatmul.mubr.f32.gmra.mrb[0].mxu0 %v1478
      %v1702 = vpop.f32.mrb[0].mxu0
      %v1703 = vadd.f32 0.0, %v1702
      %v1704 = vpop.f32.mrb[0].mxu0
      %1705 = vmatprep.mubr.f32.mxu0 0.0
      %1706 = vmatmul.mubr.f32.gmra.mrb[0].mxu0 %v1481
      %v1707 = vpop.f32.mrb[0].mxu0
      %v1708 = vadd.f32 0.0, %v1707
      %v1709 = vpop.f32.mrb[0].mxu0
      %1710 = vdwg.mxu0
      %v1711 = vadd.f32 %v1320, %v1553
      %v1712 = vadd.f32 %v1321, %v1558
      %v1713 = vadd.f32 %v1322, %v1563
      %v1714 = vadd.f32 %v1323, %v1568
      %v1715 = vadd.f32 %v1324, %v1573
      %v1716 = vadd.f32 %v1325, %v1578
      %v1717 = vadd.f32 %v1326, %v1583
      %v1718 = vadd.f32 %v1327, %v1588
      %v1719 = vadd.f32 %v1328, %v1593
      %v1720 = vadd.f32 %v1329, %v1598
      %v1721 = vadd.f32 %v1330, %v1603
      %v1722 = vadd.f32 %v1331, %v1608
      %v1723 = vadd.f32 %v1332, %v1613
      %v1724 = vadd.f32 %v1333, %v1618
      %v1725 = vadd.f32 %v1334, %v1623
      %v1726 = vadd.f32 %v1335, %v1628
      %v1727 = vadd.f32 %v1336, %v1633
      %v1728 = vadd.f32 %v1337, %v1638
      %v1729 = vadd.f32 %v1338, %v1643
      %v1730 = vadd.f32 %v1339, %v1648
      %v1731 = vadd.f32 %v1340, %v1653
      %v1732 = vadd.f32 %v1341, %v1658
      %v1733 = vadd.f32 %v1342, %v1663
      %v1734 = vadd.f32 %v1343, %v1668
      %v1735 = vadd.f32 %v1344, %v1673
      %v1736 = vadd.f32 %v1345, %v1678
      %v1737 = vadd.f32 %v1346, %v1683
      %v1738 = vadd.f32 %v1347, %v1688
      %v1739 = vadd.f32 %v1348, %v1693
      %v1740 = vadd.f32 %v1349, %v1698
      %v1741 = vadd.f32 %v1350, %v1703
      %v1742 = vadd.f32 %v1351, %v1708
      %v1743 = vld [vmem:[%s1352 + $0x1] sm:$0xff]
      %v1744 = vld [vmem:[%s1352 + $0x9] sm:$0xff]
      %v1745 = vld [vmem:[%s1352 + $0x19] sm:$0xff]
      %v1746 = vld [vmem:[%s1352 + $0x21] sm:$0xff]
      %v1747 = vld [vmem:[%s1352 + $0x31] sm:$0xff]
      %v1748 = vld [vmem:[%s1352 + $0x39] sm:$0xff]
      %v1749 = vld [vmem:[%s1352 + $0x49] sm:$0xff]
      %v1750 = vld [vmem:[%s1352 + $0x51] sm:$0xff]
      %v1751 = vld [vmem:[%s1352 + $0x61] sm:$0xff]
      %v1752 = vld [vmem:[%s1352 + $0x69] sm:$0xff]
      %v1753 = vld [vmem:[%s1352 + $0x79] sm:$0xff]
      %v1754 = vld [vmem:[%s1352 + $0x81] sm:$0xff]
      %v1755 = vld [vmem:[%s1352 + $0x91] sm:$0xff]
      %v1756 = vld [vmem:[%s1352 + $0x99] sm:$0xff]
      %v1757 = vld [vmem:[%s1352 + $0xa9] sm:$0xff]
      %v1758 = vld [vmem:[%s1352 + $0xb1] sm:$0xff]
      %v1759 = vld [vmem:[%s1352 + $0xc1] sm:$0xff]
      %v1760 = vld [vmem:[%s1352 + $0xc9] sm:$0xff]
      %v1761 = vld [vmem:[%s1352 + $0xd9] sm:$0xff]
      %v1762 = vld [vmem:[%s1352 + $0xe1] sm:$0xff]
      %v1763 = vld [vmem:[%s1352 + $0xf1] sm:$0xff]
      %v1764 = vld [vmem:[%s1352 + $0xf9] sm:$0xff]
      %v1765 = vld [vmem:[%s1352 + $0x109] sm:$0xff]
      %v1766 = vld [vmem:[%s1352 + $0x111] sm:$0xff]
      %v1767 = vld [vmem:[%s1352 + $0x121] sm:$0xff]
      %v1768 = vld [vmem:[%s1352 + $0x129] sm:$0xff]
      %v1769 = vld [vmem:[%s1352 + $0x139] sm:$0xff]
      %v1770 = vld [vmem:[%s1352 + $0x141] sm:$0xff]
      %v1771 = vld [vmem:[%s1352 + $0x151] sm:$0xff]
      %v1772 = vld [vmem:[%s1352 + $0x159] sm:$0xff]
      %v1773 = vld [vmem:[%s1352 + $0x169] sm:$0xff]
      %v1774 = vld [vmem:[%s1352 + $0x171] sm:$0xff]
      %s1775 = scalar_lea.vmem %s1, 16
      %v1776 = vld [vmem:[%s1775] sm:$0xf]
      %v1778 = vsel %vm312, %v1743, 0
      %v1781 = vsel %vm312, %v1744, 0
      %v1784 = vsel %vm312, %v1745, 0
      %v1787 = vsel %vm312, %v1746, 0
      %v1790 = vsel %vm312, %v1747, 0
      %v1793 = vsel %vm312, %v1748, 0
      %v1796 = vsel %vm312, %v1749, 0
      %v1799 = vsel %vm312, %v1750, 0
      %v1802 = vsel %vm312, %v1751, 0
      %v1805 = vsel %vm312, %v1752, 0
      %v1808 = vsel %vm312, %v1753, 0
      %v1811 = vsel %vm312, %v1754, 0
      %v1814 = vsel %vm312, %v1755, 0
      %v1817 = vsel %vm312, %v1756, 0
      %v1820 = vsel %vm312, %v1757, 0
      %v1823 = vsel %vm312, %v1758, 0
      %v1826 = vsel %vm312, %v1759, 0
      %v1829 = vsel %vm312, %v1760, 0
      %v1832 = vsel %vm312, %v1761, 0
      %v1835 = vsel %vm312, %v1762, 0
      %v1838 = vsel %vm312, %v1763, 0
      %v1841 = vsel %vm312, %v1764, 0
      %v1844 = vsel %vm312, %v1765, 0
      %v1847 = vsel %vm312, %v1766, 0
      %v1850 = vsel %vm312, %v1767, 0
      %v1853 = vsel %vm312, %v1768, 0
      %v1856 = vsel %vm312, %v1769, 0
      %v1859 = vsel %vm312, %v1770, 0
      %v1862 = vsel %vm312, %v1771, 0
      %v1865 = vsel %vm312, %v1772, 0
      %v1868 = vsel %vm312, %v1773, 0
      %v1871 = vsel %vm312, %v1774, 0
      %v1874 = vsel %vm409, %v1776, 0
      %1876 = vmatprep.subr.mxu0 0.0
      %1877 = vmatpush1.msra.mxu0 %v1874
      %1878 = vmatprep.subr.mxu0 0.0
      %1879 = vmatpush1.msra.mxu0 0.0
      %1880 = vmatprep.subr.mxu0 0.0
      %1881 = vmatpush1.msra.mxu0 0.0
      %1882 = vmatprep.subr.mxu0 0.0
      %1883 = vmatpush1.msra.mxu0 0.0
      %1884 = vmatprep.subr.mxu0 0.0
      %1885 = vmatpush1.msra.mxu0 0.0
      %1886 = vmatprep.subr.mxu0 0.0
      %1887 = vmatpush1.msra.mxu0 0.0
      %1888 = vmatprep.subr.mxu0 0.0
      %1889 = vmatpush1.msra.mxu0 0.0
      %1890 = vmatprep.subr.mxu0 0.0
      %1891 = vmatpush1.msra.mxu0 0.0
      %1892 = vmatprep.subr.mxu0 0.0
      %1893 = vmatpush1.msra.mxu0 0.0
      %1894 = vmatprep.subr.mxu0 0.0
      %1895 = vmatpush1.msra.mxu0 0.0
      %1896 = vmatprep.subr.mxu0 0.0
      %1897 = vmatpush1.msra.mxu0 0.0
      %1898 = vmatprep.subr.mxu0 0.0
      %1899 = vmatpush1.msra.mxu0 0.0
      %1900 = vmatprep.subr.mxu0 0.0
      %1901 = vmatpush1.msra.mxu0 0.0
      %1902 = vmatprep.subr.mxu0 0.0
      %1903 = vmatpush1.msra.mxu0 0.0
      %1904 = vmatprep.subr.mxu0 0.0
      %1905 = vmatpush1.msra.mxu0 0.0
      %1906 = vmatprep.subr.mxu0 0.0
      %1907 = vmatpush1.msra.mxu0 0.0
      %1908 = vmatprep.subr.mxu0 0.0
      %1909 = vmatpush1.msra.mxu0 0.0
      %1910 = vmatprep.subr.mxu0 0.0
      %1911 = vmatpush1.msra.mxu0 0.0
      %1912 = vmatprep.subr.mxu0 0.0
      %1913 = vmatpush1.msra.mxu0 0.0
      %1914 = vmatprep.subr.mxu0 0.0
      %1915 = vmatpush1.msra.mxu0 0.0
      %1916 = vmatprep.subr.mxu0 0.0
      %1917 = vmatpush1.msra.mxu0 0.0
      %1918 = vmatprep.subr.mxu0 0.0
      %1919 = vmatpush1.msra.mxu0 0.0
      %1920 = vmatprep.subr.mxu0 0.0
      %1921 = vmatpush1.msra.mxu0 0.0
      %1922 = vmatprep.subr.mxu0 0.0
      %1923 = vmatpush1.msra.mxu0 0.0
      %1924 = vmatprep.subr.mxu0 0.0
      %1925 = vmatpush1.msra.mxu0 0.0
      %1926 = vmatprep.subr.mxu0 0.0
      %1927 = vmatpush1.msra.mxu0 0.0
      %1928 = vmatprep.subr.mxu0 0.0
      %1929 = vmatpush1.msra.mxu0 0.0
      %1930 = vmatprep.subr.mxu0 0.0
      %1931 = vmatpush1.msra.mxu0 0.0
      %1932 = vmatprep.subr.mxu0 0.0
      %1933 = vmatpush1.msra.mxu0 0.0
      %1934 = vmatprep.subr.mxu0 0.0
      %1935 = vmatpush1.msra.mxu0 0.0
      %1936 = vmatprep.subr.mxu0 0.0
      %1937 = vmatpush1.msra.mxu0 0.0
      %1938 = vmatprep.subr.mxu0 0.0
      %1939 = vmatpush1.msra.mxu0 0.0
      %1940 = vmatprep.mubr.f32.mxu0 0.0
      %1941 = vmatmul.mubr.f32.gmra.mrb[0].mxu0 %v1778
      %v1942 = vpop.f32.mrb[0].mxu0
      %v1943 = vadd.f32 0.0, %v1942
      %v1944 = vpop.f32.mrb[0].mxu0
      %1945 = vmatprep.mubr.f32.mxu0 0.0
      %1946 = vmatmul.mubr.f32.gmra.mrb[0].mxu0 %v1781
      %v1947 = vpop.f32.mrb[0].mxu0
      %v1948 = vadd.f32 0.0, %v1947
      %v1949 = vpop.f32.mrb[0].mxu0
      %1950 = vmatprep.mubr.f32.mxu0 0.0
      %1951 = vmatmul.mubr.f32.gmra.mrb[0].mxu0 %v1784
      %v1952 = vpop.f32.mrb[0].mxu0
      %v1953 = vadd.f32 0.0, %v1952
      %v1954 = vpop.f32.mrb[0].mxu0
      %1955 = vmatprep.mubr.f32.mxu0 0.0
      %1956 = vmatmul.mubr.f32.gmra.mrb[0].mxu0 %v1787
      %v1957 = vpop.f32.mrb[0].mxu0
      %v1958 = vadd.f32 0.0, %v1957
      %v1959 = vpop.f32.mrb[0].mxu0
      %1960 = vmatprep.mubr.f32.mxu0 0.0
      %1961 = vmatmul.mubr.f32.gmra.mrb[0].mxu0 %v1790
      %v1962 = vpop.f32.mrb[0].mxu0
      %v1963 = vadd.f32 0.0, %v1962
      %v1964 = vpop.f32.mrb[0].mxu0
      %1965 = vmatprep.mubr.f32.mxu0 0.0
      %1966 = vmatmul.mubr.f32.gmra.mrb[0].mxu0 %v1793
      %v1967 = vpop.f32.mrb[0].mxu0
      %v1968 = vadd.f32 0.0, %v1967
      %v1969 = vpop.f32.mrb[0].mxu0
      %1970 = vmatprep.mubr.f32.mxu0 0.0
      %1971 = vmatmul.mubr.f32.gmra.mrb[0].mxu0 %v1796
      %v1972 = vpop.f32.mrb[0].mxu0
      %v1973 = vadd.f32 0.0, %v1972
      %v1974 = vpop.f32.mrb[0].mxu0
      %1975 = vmatprep.mubr.f32.mxu0 0.0
      %1976 = vmatmul.mubr.f32.gmra.mrb[0].mxu0 %v1799
      %v1977 = vpop.f32.mrb[0].mxu0
      %v1978 = vadd.f32 0.0, %v1977
      %v1979 = vpop.f32.mrb[0].mxu0
      %1980 = vmatprep.mubr.f32.mxu0 0.0
      %1981 = vmatmul.mubr.f32.gmra.mrb[0].mxu0 %v1802
      %v1982 = vpop.f32.mrb[0].mxu0
      %v1983 = vadd.f32 0.0, %v1982
      %v1984 = vpop.f32.mrb[0].mxu0
      %1985 = vmatprep.mubr.f32.mxu0 0.0
      %1986 = vmatmul.mubr.f32.gmra.mrb[0].mxu0 %v1805
      %v1987 = vpop.f32.mrb[0].mxu0
      %v1988 = vadd.f32 0.0, %v1987
      %v1989 = vpop.f32.mrb[0].mxu0
      %1990 = vmatprep.mubr.f32.mxu0 0.0
      %1991 = vmatmul.mubr.f32.gmra.mrb[0].mxu0 %v1808
      %v1992 = vpop.f32.mrb[0].mxu0
      %v1993 = vadd.f32 0.0, %v1992
      %v1994 = vpop.f32.mrb[0].mxu0
      %1995 = vmatprep.mubr.f32.mxu0 0.0
      %1996 = vmatmul.mubr.f32.gmra.mrb[0].mxu0 %v1811
      %v1997 = vpop.f32.mrb[0].mxu0
      %v1998 = vadd.f32 0.0, %v1997
      %v1999 = vpop.f32.mrb[0].mxu0
      %2000 = vmatprep.mubr.f32.mxu0 0.0
      %2001 = vmatmul.mubr.f32.gmra.mrb[0].mxu0 %v1814
      %v2002 = vpop.f32.mrb[0].mxu0
      %v2003 = vadd.f32 0.0, %v2002
      %v2004 = vpop.f32.mrb[0].mxu0
      %2005 = vmatprep.mubr.f32.mxu0 0.0
      %2006 = vmatmul.mubr.f32.gmra.mrb[0].mxu0 %v1817
      %v2007 = vpop.f32.mrb[0].mxu0
      %v2008 = vadd.f32 0.0, %v2007
      %v2009 = vpop.f32.mrb[0].mxu0
      %2010 = vmatprep.mubr.f32.mxu0 0.0
      %2011 = vmatmul.mubr.f32.gmra.mrb[0].mxu0 %v1820
      %v2012 = vpop.f32.mrb[0].mxu0
      %v2013 = vadd.f32 0.0, %v2012
      %v2014 = vpop.f32.mrb[0].mxu0
      %2015 = vmatprep.mubr.f32.mxu0 0.0
      %2016 = vmatmul.mubr.f32.gmra.mrb[0].mxu0 %v1823
      %v2017 = vpop.f32.mrb[0].mxu0
      %v2018 = vadd.f32 0.0, %v2017
      %v2019 = vpop.f32.mrb[0].mxu0
      %2020 = vmatprep.mubr.f32.mxu0 0.0
      %2021 = vmatmul.mubr.f32.gmra.mrb[0].mxu0 %v1826
      %v2022 = vpop.f32.mrb[0].mxu0
      %v2023 = vadd.f32 0.0, %v2022
      %v2024 = vpop.f32.mrb[0].mxu0
      %2025 = vmatprep.mubr.f32.mxu0 0.0
      %2026 = vmatmul.mubr.f32.gmra.mrb[0].mxu0 %v1829
      %v2027 = vpop.f32.mrb[0].mxu0
      %v2028 = vadd.f32 0.0, %v2027
      %v2029 = vpop.f32.mrb[0].mxu0
      %2030 = vmatprep.mubr.f32.mxu0 0.0
      %2031 = vmatmul.mubr.f32.gmra.mrb[0].mxu0 %v1832
      %v2032 = vpop.f32.mrb[0].mxu0
      %v2033 = vadd.f32 0.0, %v2032
      %v2034 = vpop.f32.mrb[0].mxu0
      %2035 = vmatprep.mubr.f32.mxu0 0.0
      %2036 = vmatmul.mubr.f32.gmra.mrb[0].mxu0 %v1835
      %v2037 = vpop.f32.mrb[0].mxu0
      %v2038 = vadd.f32 0.0, %v2037
      %v2039 = vpop.f32.mrb[0].mxu0
      %2040 = vmatprep.mubr.f32.mxu0 0.0
      %2041 = vmatmul.mubr.f32.gmra.mrb[0].mxu0 %v1838
      %v2042 = vpop.f32.mrb[0].mxu0
      %v2043 = vadd.f32 0.0, %v2042
      %v2044 = vpop.f32.mrb[0].mxu0
      %2045 = vmatprep.mubr.f32.mxu0 0.0
      %2046 = vmatmul.mubr.f32.gmra.mrb[0].mxu0 %v1841
      %v2047 = vpop.f32.mrb[0].mxu0
      %v2048 = vadd.f32 0.0, %v2047
      %v2049 = vpop.f32.mrb[0].mxu0
      %2050 = vmatprep.mubr.f32.mxu0 0.0
      %2051 = vmatmul.mubr.f32.gmra.mrb[0].mxu0 %v1844
      %v2052 = vpop.f32.mrb[0].mxu0
      %v2053 = vadd.f32 0.0, %v2052
      %v2054 = vpop.f32.mrb[0].mxu0
      %2055 = vmatprep.mubr.f32.mxu0 0.0
      %2056 = vmatmul.mubr.f32.gmra.mrb[0].mxu0 %v1847
      %v2057 = vpop.f32.mrb[0].mxu0
      %v2058 = vadd.f32 0.0, %v2057
      %v2059 = vpop.f32.mrb[0].mxu0
      %2060 = vmatprep.mubr.f32.mxu0 0.0
      %2061 = vmatmul.mubr.f32.gmra.mrb[0].mxu0 %v1850
      %v2062 = vpop.f32.mrb[0].mxu0
      %v2063 = vadd.f32 0.0, %v2062
      %v2064 = vpop.f32.mrb[0].mxu0
      %2065 = vmatprep.mubr.f32.mxu0 0.0
      %2066 = vmatmul.mubr.f32.gmra.mrb[0].mxu0 %v1853
      %v2067 = vpop.f32.mrb[0].mxu0
      %v2068 = vadd.f32 0.0, %v2067
      %v2069 = vpop.f32.mrb[0].mxu0
      %2070 = vmatprep.mubr.f32.mxu0 0.0
      %2071 = vmatmul.mubr.f32.gmra.mrb[0].mxu0 %v1856
      %v2072 = vpop.f32.mrb[0].mxu0
      %v2073 = vadd.f32 0.0, %v2072
      %v2074 = vpop.f32.mrb[0].mxu0
      %2075 = vmatprep.mubr.f32.mxu0 0.0
      %2076 = vmatmul.mubr.f32.gmra.mrb[0].mxu0 %v1859
      %v2077 = vpop.f32.mrb[0].mxu0
      %v2078 = vadd.f32 0.0, %v2077
      %v2079 = vpop.f32.mrb[0].mxu0
      %2080 = vmatprep.mubr.f32.mxu0 0.0
      %2081 = vmatmul.mubr.f32.gmra.mrb[0].mxu0 %v1862
      %v2082 = vpop.f32.mrb[0].mxu0
      %v2083 = vadd.f32 0.0, %v2082
      %v2084 = vpop.f32.mrb[0].mxu0
      %2085 = vmatprep.mubr.f32.mxu0 0.0
      %2086 = vmatmul.mubr.f32.gmra.mrb[0].mxu0 %v1865
      %v2087 = vpop.f32.mrb[0].mxu0
      %v2088 = vadd.f32 0.0, %v2087
      %v2089 = vpop.f32.mrb[0].mxu0
      %2090 = vmatprep.mubr.f32.mxu0 0.0
      %2091 = vmatmul.mubr.f32.gmra.mrb[0].mxu0 %v1868
      %v2092 = vpop.f32.mrb[0].mxu0
      %v2093 = vadd.f32 0.0, %v2092
      %v2094 = vpop.f32.mrb[0].mxu0
      %2095 = vmatprep.mubr.f32.mxu0 0.0
      %2096 = vmatmul.mubr.f32.gmra.mrb[0].mxu0 %v1871
      %v2097 = vpop.f32.mrb[0].mxu0
      %v2098 = vadd.f32 0.0, %v2097
      %v2099 = vpop.f32.mrb[0].mxu0
      %2100 = vdwg.mxu0
      %v2101 = vadd.f32 %v1711, %v1943
      %v2102 = vadd.f32 %v1712, %v1948
      %v2103 = vadd.f32 %v1713, %v1953
      %v2104 = vadd.f32 %v1714, %v1958
      %v2105 = vadd.f32 %v1715, %v1963
      %v2106 = vadd.f32 %v1716, %v1968
      %v2107 = vadd.f32 %v1717, %v1973
      %v2108 = vadd.f32 %v1718, %v1978
      %v2109 = vadd.f32 %v1719, %v1983
      %v2110 = vadd.f32 %v1720, %v1988
      %v2111 = vadd.f32 %v1721, %v1993
      %v2112 = vadd.f32 %v1722, %v1998
      %v2113 = vadd.f32 %v1723, %v2003
      %v2114 = vadd.f32 %v1724, %v2008
      %v2115 = vadd.f32 %v1725, %v2013
      %v2116 = vadd.f32 %v1726, %v2018
      %v2117 = vadd.f32 %v1727, %v2023
      %v2118 = vadd.f32 %v1728, %v2028
      %v2119 = vadd.f32 %v1729, %v2033
      %v2120 = vadd.f32 %v1730, %v2038
      %v2121 = vadd.f32 %v1731, %v2043
      %v2122 = vadd.f32 %v1732, %v2048
      %v2123 = vadd.f32 %v1733, %v2053
      %v2124 = vadd.f32 %v1734, %v2058
      %v2125 = vadd.f32 %v1735, %v2063
      %v2126 = vadd.f32 %v1736, %v2068
      %v2127 = vadd.f32 %v1737, %v2073
      %v2128 = vadd.f32 %v1738, %v2078
      %v2129 = vadd.f32 %v1739, %v2083
      %v2130 = vadd.f32 %v1740, %v2088
      %v2131 = vadd.f32 %v1741, %v2093
      %v2132 = vadd.f32 %v1742, %v2098
      %v2133 = vld [vmem:[%s1352 + $0x2] sm:$0xff]
      %v2134 = vld [vmem:[%s1352 + $0xa] sm:$0xff]
      %v2135 = vld [vmem:[%s1352 + $0x1a] sm:$0xff]
      %v2136 = vld [vmem:[%s1352 + $0x22] sm:$0xff]
      %v2137 = vld [vmem:[%s1352 + $0x32] sm:$0xff]
      %v2138 = vld [vmem:[%s1352 + $0x3a] sm:$0xff]
      %v2139 = vld [vmem:[%s1352 + $0x4a] sm:$0xff]
      %v2140 = vld [vmem:[%s1352 + $0x52] sm:$0xff]
      %v2141 = vld [vmem:[%s1352 + $0x62] sm:$0xff]
      %v2142 = vld [vmem:[%s1352 + $0x6a] sm:$0xff]
      %v2143 = vld [vmem:[%s1352 + $0x7a] sm:$0xff]
      %v2144 = vld [vmem:[%s1352 + $0x82] sm:$0xff]
      %v2145 = vld [vmem:[%s1352 + $0x92] sm:$0xff]
      %v2146 = vld [vmem:[%s1352 + $0x9a] sm:$0xff]
      %v2147 = vld [vmem:[%s1352 + $0xaa] sm:$0xff]
      %v2148 = vld [vmem:[%s1352 + $0xb2] sm:$0xff]
      %v2149 = vld [vmem:[%s1352 + $0xc2] sm:$0xff]
      %v2150 = vld [vmem:[%s1352 + $0xca] sm:$0xff]
      %v2151 = vld [vmem:[%s1352 + $0xda] sm:$0xff]
      %v2152 = vld [vmem:[%s1352 + $0xe2] sm:$0xff]
      %v2153 = vld [vmem:[%s1352 + $0xf2] sm:$0xff]
      %v2154 = vld [vmem:[%s1352 + $0xfa] sm:$0xff]
      %v2155 = vld [vmem:[%s1352 + $0x10a] sm:$0xff]
      %v2156 = vld [vmem:[%s1352 + $0x112] sm:$0xff]
      %v2157 = vld [vmem:[%s1352 + $0x122] sm:$0xff]
      %v2158 = vld [vmem:[%s1352 + $0x12a] sm:$0xff]
      %v2159 = vld [vmem:[%s1352 + $0x13a] sm:$0xff]
      %v2160 = vld [vmem:[%s1352 + $0x142] sm:$0xff]
      %v2161 = vld [vmem:[%s1352 + $0x152] sm:$0xff]
      %v2162 = vld [vmem:[%s1352 + $0x15a] sm:$0xff]
      %v2163 = vld [vmem:[%s1352 + $0x16a] sm:$0xff]
      %v2164 = vld [vmem:[%s1352 + $0x172] sm:$0xff]
      %s2165 = scalar_lea.vmem %s1, 20
      %v2166 = vld [vmem:[%s2165] sm:$0xf]
      %v2168 = vsel %vm312, %v2133, 0
      %v2171 = vsel %vm312, %v2134, 0
      %v2174 = vsel %vm312, %v2135, 0
      %v2177 = vsel %vm312, %v2136, 0
      %v2180 = vsel %vm312, %v2137, 0
      %v2183 = vsel %vm312, %v2138, 0
      %v2186 = vsel %vm312, %v2139, 0
      %v2189 = vsel %vm312, %v2140, 0
      %v2192 = vsel %vm312, %v2141, 0
      %v2195 = vsel %vm312, %v2142, 0
      %v2198 = vsel %vm312, %v2143, 0
      %v2201 = vsel %vm312, %v2144, 0
      %v2204 = vsel %vm312, %v2145, 0
      %v2207 = vsel %vm312, %v2146, 0
      %v2210 = vsel %vm312, %v2147, 0
      %v2213 = vsel %vm312, %v2148, 0
      %v2216 = vsel %vm312, %v2149, 0
      %v2219 = vsel %vm312, %v2150, 0
      %v2222 = vsel %vm312, %v2151, 0
      %v2225 = vsel %vm312, %v2152, 0
      %v2228 = vsel %vm312, %v2153, 0
      %v2231 = vsel %vm312, %v2154, 0
      %v2234 = vsel %vm312, %v2155, 0
      %v2237 = vsel %vm312, %v2156, 0
      %v2240 = vsel %vm312, %v2157, 0
      %v2243 = vsel %vm312, %v2158, 0
      %v2246 = vsel %vm312, %v2159, 0
      %v2249 = vsel %vm312, %v2160, 0
      %v2252 = vsel %vm312, %v2161, 0
      %v2255 = vsel %vm312, %v2162, 0
      %v2258 = vsel %vm312, %v2163, 0
      %v2261 = vsel %vm312, %v2164, 0
      %v2264 = vsel %vm409, %v2166, 0
      %2266 = vmatprep.subr.mxu0 0.0
      %2267 = vmatpush1.msra.mxu0 %v2264
      %2268 = vmatprep.subr.mxu0 0.0
      %2269 = vmatpush1.msra.mxu0 0.0
      %2270 = vmatprep.subr.mxu0 0.0
      %2271 = vmatpush1.msra.mxu0 0.0
      %2272 = vmatprep.subr.mxu0 0.0
      %2273 = vmatpush1.msra.mxu0 0.0
      %2274 = vmatprep.subr.mxu0 0.0
      %2275 = vmatpush1.msra.mxu0 0.0
      %2276 = vmatprep.subr.mxu0 0.0
      %2277 = vmatpush1.msra.mxu0 0.0
      %2278 = vmatprep.subr.mxu0 0.0
      %2279 = vmatpush1.msra.mxu0 0.0
      %2280 = vmatprep.subr.mxu0 0.0
      %2281 = vmatpush1.msra.mxu0 0.0
      %2282 = vmatprep.subr.mxu0 0.0
      %2283 = vmatpush1.msra.mxu0 0.0
      %2284 = vmatprep.subr.mxu0 0.0
      %2285 = vmatpush1.msra.mxu0 0.0
      %2286 = vmatprep.subr.mxu0 0.0
      %2287 = vmatpush1.msra.mxu0 0.0
      %2288 = vmatprep.subr.mxu0 0.0
      %2289 = vmatpush1.msra.mxu0 0.0
      %2290 = vmatprep.subr.mxu0 0.0
      %2291 = vmatpush1.msra.mxu0 0.0
      %2292 = vmatprep.subr.mxu0 0.0
      %2293 = vmatpush1.msra.mxu0 0.0
      %2294 = vmatprep.subr.mxu0 0.0
      %2295 = vmatpush1.msra.mxu0 0.0
      %2296 = vmatprep.subr.mxu0 0.0
      %2297 = vmatpush1.msra.mxu0 0.0
      %2298 = vmatprep.subr.mxu0 0.0
      %2299 = vmatpush1.msra.mxu0 0.0
      %2300 = vmatprep.subr.mxu0 0.0
      %2301 = vmatpush1.msra.mxu0 0.0
      %2302 = vmatprep.subr.mxu0 0.0
      %2303 = vmatpush1.msra.mxu0 0.0
      %2304 = vmatprep.subr.mxu0 0.0
      %2305 = vmatpush1.msra.mxu0 0.0
      %2306 = vmatprep.subr.mxu0 0.0
      %2307 = vmatpush1.msra.mxu0 0.0
      %2308 = vmatprep.subr.mxu0 0.0
      %2309 = vmatpush1.msra.mxu0 0.0
      %2310 = vmatprep.subr.mxu0 0.0
      %2311 = vmatpush1.msra.mxu0 0.0
      %2312 = vmatprep.subr.mxu0 0.0
      %2313 = vmatpush1.msra.mxu0 0.0
      %2314 = vmatprep.subr.mxu0 0.0
      %2315 = vmatpush1.msra.mxu0 0.0
      %2316 = vmatprep.subr.mxu0 0.0
      %2317 = vmatpush1.msra.mxu0 0.0
      %2318 = vmatprep.subr.mxu0 0.0
      %2319 = vmatpush1.msra.mxu0 0.0
      %2320 = vmatprep.subr.mxu0 0.0
      %2321 = vmatpush1.msra.mxu0 0.0
      %2322 = vmatprep.subr.mxu0 0.0
      %2323 = vmatpush1.msra.mxu0 0.0
      %2324 = vmatprep.subr.mxu0 0.0
      %2325 = vmatpush1.msra.mxu0 0.0
      %2326 = vmatprep.subr.mxu0 0.0
      %2327 = vmatpush1.msra.mxu0 0.0
      %2328 = vmatprep.subr.mxu0 0.0
      %2329 = vmatpush1.msra.mxu0 0.0
      %2330 = vmatprep.mubr.f32.mxu0 0.0
      %2331 = vmatmul.mubr.f32.gmra.mrb[0].mxu0 %v2168
      %v2332 = vpop.f32.mrb[0].mxu0
      %v2333 = vadd.f32 0.0, %v2332
      %v2334 = vpop.f32.mrb[0].mxu0
      %2335 = vmatprep.mubr.f32.mxu0 0.0
      %2336 = vmatmul.mubr.f32.gmra.mrb[0].mxu0 %v2171
      %v2337 = vpop.f32.mrb[0].mxu0
      %v2338 = vadd.f32 0.0, %v2337
      %v2339 = vpop.f32.mrb[0].mxu0
      %2340 = vmatprep.mubr.f32.mxu0 0.0
      %2341 = vmatmul.mubr.f32.gmra.mrb[0].mxu0 %v2174
      %v2342 = vpop.f32.mrb[0].mxu0
      %v2343 = vadd.f32 0.0, %v2342
      %v2344 = vpop.f32.mrb[0].mxu0
      %2345 = vmatprep.mubr.f32.mxu0 0.0
      %2346 = vmatmul.mubr.f32.gmra.mrb[0].mxu0 %v2177
      %v2347 = vpop.f32.mrb[0].mxu0
      %v2348 = vadd.f32 0.0, %v2347
      %v2349 = vpop.f32.mrb[0].mxu0
      %2350 = vmatprep.mubr.f32.mxu0 0.0
      %2351 = vmatmul.mubr.f32.gmra.mrb[0].mxu0 %v2180
      %v2352 = vpop.f32.mrb[0].mxu0
      %v2353 = vadd.f32 0.0, %v2352
      %v2354 = vpop.f32.mrb[0].mxu0
      %2355 = vmatprep.mubr.f32.mxu0 0.0
      %2356 = vmatmul.mubr.f32.gmra.mrb[0].mxu0 %v2183
      %v2357 = vpop.f32.mrb[0].mxu0
      %v2358 = vadd.f32 0.0, %v2357
      %v2359 = vpop.f32.mrb[0].mxu0
      %2360 = vmatprep.mubr.f32.mxu0 0.0
      %2361 = vmatmul.mubr.f32.gmra.mrb[0].mxu0 %v2186
      %v2362 = vpop.f32.mrb[0].mxu0
      %v2363 = vadd.f32 0.0, %v2362
      %v2364 = vpop.f32.mrb[0].mxu0
      %2365 = vmatprep.mubr.f32.mxu0 0.0
      %2366 = vmatmul.mubr.f32.gmra.mrb[0].mxu0 %v2189
      %v2367 = vpop.f32.mrb[0].mxu0
      %v2368 = vadd.f32 0.0, %v2367
      %v2369 = vpop.f32.mrb[0].mxu0
      %2370 = vmatprep.mubr.f32.mxu0 0.0
      %2371 = vmatmul.mubr.f32.gmra.mrb[0].mxu0 %v2192
      %v2372 = vpop.f32.mrb[0].mxu0
      %v2373 = vadd.f32 0.0, %v2372
      %v2374 = vpop.f32.mrb[0].mxu0
      %2375 = vmatprep.mubr.f32.mxu0 0.0
      %2376 = vmatmul.mubr.f32.gmra.mrb[0].mxu0 %v2195
      %v2377 = vpop.f32.mrb[0].mxu0
      %v2378 = vadd.f32 0.0, %v2377
      %v2379 = vpop.f32.mrb[0].mxu0
      %2380 = vmatprep.mubr.f32.mxu0 0.0
      %2381 = vmatmul.mubr.f32.gmra.mrb[0].mxu0 %v2198
      %v2382 = vpop.f32.mrb[0].mxu0
      %v2383 = vadd.f32 0.0, %v2382
      %v2384 = vpop.f32.mrb[0].mxu0
      %2385 = vmatprep.mubr.f32.mxu0 0.0
      %2386 = vmatmul.mubr.f32.gmra.mrb[0].mxu0 %v2201
      %v2387 = vpop.f32.mrb[0].mxu0
      %v2388 = vadd.f32 0.0, %v2387
      %v2389 = vpop.f32.mrb[0].mxu0
      %2390 = vmatprep.mubr.f32.mxu0 0.0
      %2391 = vmatmul.mubr.f32.gmra.mrb[0].mxu0 %v2204
      %v2392 = vpop.f32.mrb[0].mxu0
      %v2393 = vadd.f32 0.0, %v2392
      %v2394 = vpop.f32.mrb[0].mxu0
      %2395 = vmatprep.mubr.f32.mxu0 0.0
      %2396 = vmatmul.mubr.f32.gmra.mrb[0].mxu0 %v2207
      %v2397 = vpop.f32.mrb[0].mxu0
      %v2398 = vadd.f32 0.0, %v2397
      %v2399 = vpop.f32.mrb[0].mxu0
      %2400 = vmatprep.mubr.f32.mxu0 0.0
      %2401 = vmatmul.mubr.f32.gmra.mrb[0].mxu0 %v2210
      %v2402 = vpop.f32.mrb[0].mxu0
      %v2403 = vadd.f32 0.0, %v2402
      %v2404 = vpop.f32.mrb[0].mxu0
      %2405 = vmatprep.mubr.f32.mxu0 0.0
      %2406 = vmatmul.mubr.f32.gmra.mrb[0].mxu0 %v2213
      %v2407 = vpop.f32.mrb[0].mxu0
      %v2408 = vadd.f32 0.0, %v2407
      %v2409 = vpop.f32.mrb[0].mxu0
      %2410 = vmatprep.mubr.f32.mxu0 0.0
      %2411 = vmatmul.mubr.f32.gmra.mrb[0].mxu0 %v2216
      %v2412 = vpop.f32.mrb[0].mxu0
      %v2413 = vadd.f32 0.0, %v2412
      %v2414 = vpop.f32.mrb[0].mxu0
      %2415 = vmatprep.mubr.f32.mxu0 0.0
      %2416 = vmatmul.mubr.f32.gmra.mrb[0].mxu0 %v2219
      %v2417 = vpop.f32.mrb[0].mxu0
      %v2418 = vadd.f32 0.0, %v2417
      %v2419 = vpop.f32.mrb[0].mxu0
      %2420 = vmatprep.mubr.f32.mxu0 0.0
      %2421 = vmatmul.mubr.f32.gmra.mrb[0].mxu0 %v2222
      %v2422 = vpop.f32.mrb[0].mxu0
      %v2423 = vadd.f32 0.0, %v2422
      %v2424 = vpop.f32.mrb[0].mxu0
      %2425 = vmatprep.mubr.f32.mxu0 0.0
      %2426 = vmatmul.mubr.f32.gmra.mrb[0].mxu0 %v2225
      %v2427 = vpop.f32.mrb[0].mxu0
      %v2428 = vadd.f32 0.0, %v2427
      %v2429 = vpop.f32.mrb[0].mxu0
      %2430 = vmatprep.mubr.f32.mxu0 0.0
      %2431 = vmatmul.mubr.f32.gmra.mrb[0].mxu0 %v2228
      %v2432 = vpop.f32.mrb[0].mxu0
      %v2433 = vadd.f32 0.0, %v2432
      %v2434 = vpop.f32.mrb[0].mxu0
      %2435 = vmatprep.mubr.f32.mxu0 0.0
      %2436 = vmatmul.mubr.f32.gmra.mrb[0].mxu0 %v2231
      %v2437 = vpop.f32.mrb[0].mxu0
      %v2438 = vadd.f32 0.0, %v2437
      %v2439 = vpop.f32.mrb[0].mxu0
      %2440 = vmatprep.mubr.f32.mxu0 0.0
      %2441 = vmatmul.mubr.f32.gmra.mrb[0].mxu0 %v2234
      %v2442 = vpop.f32.mrb[0].mxu0
      %v2443 = vadd.f32 0.0, %v2442
      %v2444 = vpop.f32.mrb[0].mxu0
      %2445 = vmatprep.mubr.f32.mxu0 0.0
      %2446 = vmatmul.mubr.f32.gmra.mrb[0].mxu0 %v2237
      %v2447 = vpop.f32.mrb[0].mxu0
      %v2448 = vadd.f32 0.0, %v2447
      %v2449 = vpop.f32.mrb[0].mxu0
      %2450 = vmatprep.mubr.f32.mxu0 0.0
      %2451 = vmatmul.mubr.f32.gmra.mrb[0].mxu0 %v2240
      %v2452 = vpop.f32.mrb[0].mxu0
      %v2453 = vadd.f32 0.0, %v2452
      %v2454 = vpop.f32.mrb[0].mxu0
      %2455 = vmatprep.mubr.f32.mxu0 0.0
      %2456 = vmatmul.mubr.f32.gmra.mrb[0].mxu0 %v2243
      %v2457 = vpop.f32.mrb[0].mxu0
      %v2458 = vadd.f32 0.0, %v2457
      %v2459 = vpop.f32.mrb[0].mxu0
      %2460 = vmatprep.mubr.f32.mxu0 0.0
      %2461 = vmatmul.mubr.f32.gmra.mrb[0].mxu0 %v2246
      %v2462 = vpop.f32.mrb[0].mxu0
      %v2463 = vadd.f32 0.0, %v2462
      %v2464 = vpop.f32.mrb[0].mxu0
      %2465 = vmatprep.mubr.f32.mxu0 0.0
      %2466 = vmatmul.mubr.f32.gmra.mrb[0].mxu0 %v2249
      %v2467 = vpop.f32.mrb[0].mxu0
      %v2468 = vadd.f32 0.0, %v2467
      %v2469 = vpop.f32.mrb[0].mxu0
      %2470 = vmatprep.mubr.f32.mxu0 0.0
      %2471 = vmatmul.mubr.f32.gmra.mrb[0].mxu0 %v2252
      %v2472 = vpop.f32.mrb[0].mxu0
      %v2473 = vadd.f32 0.0, %v2472
      %v2474 = vpop.f32.mrb[0].mxu0
      %2475 = vmatprep.mubr.f32.mxu0 0.0
      %2476 = vmatmul.mubr.f32.gmra.mrb[0].mxu0 %v2255
      %v2477 = vpop.f32.mrb[0].mxu0
      %v2478 = vadd.f32 0.0, %v2477
      %v2479 = vpop.f32.mrb[0].mxu0
      %2480 = vmatprep.mubr.f32.mxu0 0.0
      %2481 = vmatmul.mubr.f32.gmra.mrb[0].mxu0 %v2258
      %v2482 = vpop.f32.mrb[0].mxu0
      %v2483 = vadd.f32 0.0, %v2482
      %v2484 = vpop.f32.mrb[0].mxu0
      %2485 = vmatprep.mubr.f32.mxu0 0.0
      %2486 = vmatmul.mubr.f32.gmra.mrb[0].mxu0 %v2261
      %v2487 = vpop.f32.mrb[0].mxu0
      %v2488 = vadd.f32 0.0, %v2487
      %v2489 = vpop.f32.mrb[0].mxu0
      %2490 = vdwg.mxu0
      %v2491 = vadd.f32 %v2101, %v2333
      %v2492 = vadd.f32 %v2102, %v2338
      %v2493 = vadd.f32 %v2103, %v2343
      %v2494 = vadd.f32 %v2104, %v2348
      %v2495 = vadd.f32 %v2105, %v2353
      %v2496 = vadd.f32 %v2106, %v2358
      %v2497 = vadd.f32 %v2107, %v2363
      %v2498 = vadd.f32 %v2108, %v2368
      %v2499 = vadd.f32 %v2109, %v2373
      %v2500 = vadd.f32 %v2110, %v2378
      %v2501 = vadd.f32 %v2111, %v2383
      %v2502 = vadd.f32 %v2112, %v2388
      %v2503 = vadd.f32 %v2113, %v2393
      %v2504 = vadd.f32 %v2114, %v2398
      %v2505 = vadd.f32 %v2115, %v2403
      %v2506 = vadd.f32 %v2116, %v2408
      %v2507 = vadd.f32 %v2117, %v2413
      %v2508 = vadd.f32 %v2118, %v2418
      %v2509 = vadd.f32 %v2119, %v2423
      %v2510 = vadd.f32 %v2120, %v2428
      %v2511 = vadd.f32 %v2121, %v2433
      %v2512 = vadd.f32 %v2122, %v2438
      %v2513 = vadd.f32 %v2123, %v2443
      %v2514 = vadd.f32 %v2124, %v2448
      %v2515 = vadd.f32 %v2125, %v2453
      %v2516 = vadd.f32 %v2126, %v2458
      %v2517 = vadd.f32 %v2127, %v2463
      %v2518 = vadd.f32 %v2128, %v2468
      %v2519 = vadd.f32 %v2129, %v2473
      %v2520 = vadd.f32 %v2130, %v2478
      %v2521 = vadd.f32 %v2131, %v2483
      %v2522 = vadd.f32 %v2132, %v2488
      %s2523 = scalar_lea.vmem %s234, 48
      %v2524 = vld [vmem:[%s2523] sm:$0xff]
      %v2525 = vld [vmem:[%s2523 + $0x8] sm:$0xff]
      %v2526 = vld [vmem:[%s2523 + $0x18] sm:$0xff]
      %v2527 = vld [vmem:[%s2523 + $0x20] sm:$0xff]
      %v2528 = vld [vmem:[%s2523 + $0x30] sm:$0xff]
      %v2529 = vld [vmem:[%s2523 + $0x38] sm:$0xff]
      %v2530 = vld [vmem:[%s2523 + $0x48] sm:$0xff]
      %v2531 = vld [vmem:[%s2523 + $0x50] sm:$0xff]
      %v2532 = vld [vmem:[%s2523 + $0x60] sm:$0xff]
      %v2533 = vld [vmem:[%s2523 + $0x68] sm:$0xff]
      %v2534 = vld [vmem:[%s2523 + $0x78] sm:$0xff]
      %v2535 = vld [vmem:[%s2523 + $0x80] sm:$0xff]
      %v2536 = vld [vmem:[%s2523 + $0x90] sm:$0xff]
      %v2537 = vld [vmem:[%s2523 + $0x98] sm:$0xff]
      %v2538 = vld [vmem:[%s2523 + $0xa8] sm:$0xff]
      %v2539 = vld [vmem:[%s2523 + $0xb0] sm:$0xff]
      %v2540 = vld [vmem:[%s2523 + $0xc0] sm:$0xff]
      %v2541 = vld [vmem:[%s2523 + $0xc8] sm:$0xff]
      %v2542 = vld [vmem:[%s2523 + $0xd8] sm:$0xff]
      %v2543 = vld [vmem:[%s2523 + $0xe0] sm:$0xff]
      %v2544 = vld [vmem:[%s2523 + $0xf0] sm:$0xff]
      %v2545 = vld [vmem:[%s2523 + $0xf8] sm:$0xff]
      %v2546 = vld [vmem:[%s2523 + $0x108] sm:$0xff]
      %v2547 = vld [vmem:[%s2523 + $0x110] sm:$0xff]
      %v2548 = vld [vmem:[%s2523 + $0x120] sm:$0xff]
      %v2549 = vld [vmem:[%s2523 + $0x128] sm:$0xff]
      %v2550 = vld [vmem:[%s2523 + $0x138] sm:$0xff]
      %v2551 = vld [vmem:[%s2523 + $0x140] sm:$0xff]
      %v2552 = vld [vmem:[%s2523 + $0x150] sm:$0xff]
      %v2553 = vld [vmem:[%s2523 + $0x158] sm:$0xff]
      %v2554 = vld [vmem:[%s2523 + $0x168] sm:$0xff]
      %v2555 = vld [vmem:[%s2523 + $0x170] sm:$0xff]
      %s2556 = scalar_lea.vmem %s1, 24
      %v2557 = vld [vmem:[%s2556] sm:$0xf]
      %v2559 = vsel %vm312, %v2524, 0
      %v2562 = vsel %vm312, %v2525, 0
      %v2565 = vsel %vm312, %v2526, 0
      %v2568 = vsel %vm312, %v2527, 0
      %v2571 = vsel %vm312, %v2528, 0
      %v2574 = vsel %vm312, %v2529, 0
      %v2577 = vsel %vm312, %v2530, 0
      %v2580 = vsel %vm312, %v2531, 0
      %v2583 = vsel %vm312, %v2532, 0
      %v2586 = vsel %vm312, %v2533, 0
      %v2589 = vsel %vm312, %v2534, 0
      %v2592 = vsel %vm312, %v2535, 0
      %v2595 = vsel %vm312, %v2536, 0
      %v2598 = vsel %vm312, %v2537, 0
      %v2601 = vsel %vm312, %v2538, 0
      %v2604 = vsel %vm312, %v2539, 0
      %v2607 = vsel %vm312, %v2540, 0
      %v2610 = vsel %vm312, %v2541, 0
      %v2613 = vsel %vm312, %v2542, 0
      %v2616 = vsel %vm312, %v2543, 0
      %v2619 = vsel %vm312, %v2544, 0
      %v2622 = vsel %vm312, %v2545, 0
      %v2625 = vsel %vm312, %v2546, 0
      %v2628 = vsel %vm312, %v2547, 0
      %v2631 = vsel %vm312, %v2548, 0
      %v2634 = vsel %vm312, %v2549, 0
      %v2637 = vsel %vm312, %v2550, 0
      %v2640 = vsel %vm312, %v2551, 0
      %v2643 = vsel %vm312, %v2552, 0
      %v2646 = vsel %vm312, %v2553, 0
      %v2649 = vsel %vm312, %v2554, 0
      %v2652 = vsel %vm312, %v2555, 0
      %v2655 = vsel %vm409, %v2557, 0
      %2657 = vmatprep.subr.mxu0 0.0
      %2658 = vmatpush1.msra.mxu0 %v2655
      %2659 = vmatprep.subr.mxu0 0.0
      %2660 = vmatpush1.msra.mxu0 0.0
      %2661 = vmatprep.subr.mxu0 0.0
      %2662 = vmatpush1.msra.mxu0 0.0
      %2663 = vmatprep.subr.mxu0 0.0
      %2664 = vmatpush1.msra.mxu0 0.0
      %2665 = vmatprep.subr.mxu0 0.0
      %2666 = vmatpush1.msra.mxu0 0.0
      %2667 = vmatprep.subr.mxu0 0.0
      %2668 = vmatpush1.msra.mxu0 0.0
      %2669 = vmatprep.subr.mxu0 0.0
      %2670 = vmatpush1.msra.mxu0 0.0
      %2671 = vmatprep.subr.mxu0 0.0
      %2672 = vmatpush1.msra.mxu0 0.0
      %2673 = vmatprep.subr.mxu0 0.0
      %2674 = vmatpush1.msra.mxu0 0.0
      %2675 = vmatprep.subr.mxu0 0.0
      %2676 = vmatpush1.msra.mxu0 0.0
      %2677 = vmatprep.subr.mxu0 0.0
      %2678 = vmatpush1.msra.mxu0 0.0
      %2679 = vmatprep.subr.mxu0 0.0
      %2680 = vmatpush1.msra.mxu0 0.0
      %2681 = vmatprep.subr.mxu0 0.0
      %2682 = vmatpush1.msra.mxu0 0.0
      %2683 = vmatprep.subr.mxu0 0.0
      %2684 = vmatpush1.msra.mxu0 0.0
      %2685 = vmatprep.subr.mxu0 0.0
      %2686 = vmatpush1.msra.mxu0 0.0
      %2687 = vmatprep.subr.mxu0 0.0
      %2688 = vmatpush1.msra.mxu0 0.0
      %2689 = vmatprep.subr.mxu0 0.0
      %2690 = vmatpush1.msra.mxu0 0.0
      %2691 = vmatprep.subr.mxu0 0.0
      %2692 = vmatpush1.msra.mxu0 0.0
      %2693 = vmatprep.subr.mxu0 0.0
      %2694 = vmatpush1.msra.mxu0 0.0
      %2695 = vmatprep.subr.mxu0 0.0
      %2696 = vmatpush1.msra.mxu0 0.0
      %2697 = vmatprep.subr.mxu0 0.0
      %2698 = vmatpush1.msra.mxu0 0.0
      %2699 = vmatprep.subr.mxu0 0.0
      %2700 = vmatpush1.msra.mxu0 0.0
      %2701 = vmatprep.subr.mxu0 0.0
      %2702 = vmatpush1.msra.mxu0 0.0
      %2703 = vmatprep.subr.mxu0 0.0
      %2704 = vmatpush1.msra.mxu0 0.0
      %2705 = vmatprep.subr.mxu0 0.0
      %2706 = vmatpush1.msra.mxu0 0.0
      %2707 = vmatprep.subr.mxu0 0.0
      %2708 = vmatpush1.msra.mxu0 0.0
      %2709 = vmatprep.subr.mxu0 0.0
      %2710 = vmatpush1.msra.mxu0 0.0
      %2711 = vmatprep.subr.mxu0 0.0
      %2712 = vmatpush1.msra.mxu0 0.0
      %2713 = vmatprep.subr.mxu0 0.0
      %2714 = vmatpush1.msra.mxu0 0.0
      %2715 = vmatprep.subr.mxu0 0.0
      %2716 = vmatpush1.msra.mxu0 0.0
      %2717 = vmatprep.subr.mxu0 0.0
      %2718 = vmatpush1.msra.mxu0 0.0
      %2719 = vmatprep.subr.mxu0 0.0
      %2720 = vmatpush1.msra.mxu0 0.0
      %2721 = vmatprep.mubr.f32.mxu0 0.0
      %2722 = vmatmul.mubr.f32.gmra.mrb[0].mxu0 %v2559
      %v2723 = vpop.f32.mrb[0].mxu0
      %v2724 = vadd.f32 0.0, %v2723
      %v2725 = vpop.f32.mrb[0].mxu0
      %2726 = vmatprep.mubr.f32.mxu0 0.0
      %2727 = vmatmul.mubr.f32.gmra.mrb[0].mxu0 %v2562
      %v2728 = vpop.f32.mrb[0].mxu0
      %v2729 = vadd.f32 0.0, %v2728
      %v2730 = vpop.f32.mrb[0].mxu0
      %2731 = vmatprep.mubr.f32.mxu0 0.0
      %2732 = vmatmul.mubr.f32.gmra.mrb[0].mxu0 %v2565
      %v2733 = vpop.f32.mrb[0].mxu0
      %v2734 = vadd.f32 0.0, %v2733
      %v2735 = vpop.f32.mrb[0].mxu0
      %2736 = vmatprep.mubr.f32.mxu0 0.0
      %2737 = vmatmul.mubr.f32.gmra.mrb[0].mxu0 %v2568
      %v2738 = vpop.f32.mrb[0].mxu0
      %v2739 = vadd.f32 0.0, %v2738
      %v2740 = vpop.f32.mrb[0].mxu0
      %2741 = vmatprep.mubr.f32.mxu0 0.0
      %2742 = vmatmul.mubr.f32.gmra.mrb[0].mxu0 %v2571
      %v2743 = vpop.f32.mrb[0].mxu0
      %v2744 = vadd.f32 0.0, %v2743
      %v2745 = vpop.f32.mrb[0].mxu0
      %2746 = vmatprep.mubr.f32.mxu0 0.0
      %2747 = vmatmul.mubr.f32.gmra.mrb[0].mxu0 %v2574
      %v2748 = vpop.f32.mrb[0].mxu0
      %v2749 = vadd.f32 0.0, %v2748
      %v2750 = vpop.f32.mrb[0].mxu0
      %2751 = vmatprep.mubr.f32.mxu0 0.0
      %2752 = vmatmul.mubr.f32.gmra.mrb[0].mxu0 %v2577
      %v2753 = vpop.f32.mrb[0].mxu0
      %v2754 = vadd.f32 0.0, %v2753
      %v2755 = vpop.f32.mrb[0].mxu0
      %2756 = vmatprep.mubr.f32.mxu0 0.0
      %2757 = vmatmul.mubr.f32.gmra.mrb[0].mxu0 %v2580
      %v2758 = vpop.f32.mrb[0].mxu0
      %v2759 = vadd.f32 0.0, %v2758
      %v2760 = vpop.f32.mrb[0].mxu0
      %2761 = vmatprep.mubr.f32.mxu0 0.0
      %2762 = vmatmul.mubr.f32.gmra.mrb[0].mxu0 %v2583
      %v2763 = vpop.f32.mrb[0].mxu0
      %v2764 = vadd.f32 0.0, %v2763
      %v2765 = vpop.f32.mrb[0].mxu0
      %2766 = vmatprep.mubr.f32.mxu0 0.0
      %2767 = vmatmul.mubr.f32.gmra.mrb[0].mxu0 %v2586
      %v2768 = vpop.f32.mrb[0].mxu0
      %v2769 = vadd.f32 0.0, %v2768
      %v2770 = vpop.f32.mrb[0].mxu0
      %2771 = vmatprep.mubr.f32.mxu0 0.0
      %2772 = vmatmul.mubr.f32.gmra.mrb[0].mxu0 %v2589
      %v2773 = vpop.f32.mrb[0].mxu0
      %v2774 = vadd.f32 0.0, %v2773
      %v2775 = vpop.f32.mrb[0].mxu0
      %2776 = vmatprep.mubr.f32.mxu0 0.0
      %2777 = vmatmul.mubr.f32.gmra.mrb[0].mxu0 %v2592
      %v2778 = vpop.f32.mrb[0].mxu0
      %v2779 = vadd.f32 0.0, %v2778
      %v2780 = vpop.f32.mrb[0].mxu0
      %2781 = vmatprep.mubr.f32.mxu0 0.0
      %2782 = vmatmul.mubr.f32.gmra.mrb[0].mxu0 %v2595
      %v2783 = vpop.f32.mrb[0].mxu0
      %v2784 = vadd.f32 0.0, %v2783
      %v2785 = vpop.f32.mrb[0].mxu0
      %2786 = vmatprep.mubr.f32.mxu0 0.0
      %2787 = vmatmul.mubr.f32.gmra.mrb[0].mxu0 %v2598
      %v2788 = vpop.f32.mrb[0].mxu0
      %v2789 = vadd.f32 0.0, %v2788
      %v2790 = vpop.f32.mrb[0].mxu0
      %2791 = vmatprep.mubr.f32.mxu0 0.0
      %2792 = vmatmul.mubr.f32.gmra.mrb[0].mxu0 %v2601
      %v2793 = vpop.f32.mrb[0].mxu0
      %v2794 = vadd.f32 0.0, %v2793
      %v2795 = vpop.f32.mrb[0].mxu0
      %2796 = vmatprep.mubr.f32.mxu0 0.0
      %2797 = vmatmul.mubr.f32.gmra.mrb[0].mxu0 %v2604
      %v2798 = vpop.f32.mrb[0].mxu0
      %v2799 = vadd.f32 0.0, %v2798
      %v2800 = vpop.f32.mrb[0].mxu0
      %2801 = vmatprep.mubr.f32.mxu0 0.0
      %2802 = vmatmul.mubr.f32.gmra.mrb[0].mxu0 %v2607
      %v2803 = vpop.f32.mrb[0].mxu0
      %v2804 = vadd.f32 0.0, %v2803
      %v2805 = vpop.f32.mrb[0].mxu0
      %2806 = vmatprep.mubr.f32.mxu0 0.0
      %2807 = vmatmul.mubr.f32.gmra.mrb[0].mxu0 %v2610
      %v2808 = vpop.f32.mrb[0].mxu0
      %v2809 = vadd.f32 0.0, %v2808
      %v2810 = vpop.f32.mrb[0].mxu0
      %2811 = vmatprep.mubr.f32.mxu0 0.0
      %2812 = vmatmul.mubr.f32.gmra.mrb[0].mxu0 %v2613
      %v2813 = vpop.f32.mrb[0].mxu0
      %v2814 = vadd.f32 0.0, %v2813
      %v2815 = vpop.f32.mrb[0].mxu0
      %2816 = vmatprep.mubr.f32.mxu0 0.0
      %2817 = vmatmul.mubr.f32.gmra.mrb[0].mxu0 %v2616
      %v2818 = vpop.f32.mrb[0].mxu0
      %v2819 = vadd.f32 0.0, %v2818
      %v2820 = vpop.f32.mrb[0].mxu0
      %2821 = vmatprep.mubr.f32.mxu0 0.0
      %2822 = vmatmul.mubr.f32.gmra.mrb[0].mxu0 %v2619
      %v2823 = vpop.f32.mrb[0].mxu0
      %v2824 = vadd.f32 0.0, %v2823
      %v2825 = vpop.f32.mrb[0].mxu0
      %2826 = vmatprep.mubr.f32.mxu0 0.0
      %2827 = vmatmul.mubr.f32.gmra.mrb[0].mxu0 %v2622
      %v2828 = vpop.f32.mrb[0].mxu0
      %v2829 = vadd.f32 0.0, %v2828
      %v2830 = vpop.f32.mrb[0].mxu0
      %2831 = vmatprep.mubr.f32.mxu0 0.0
      %2832 = vmatmul.mubr.f32.gmra.mrb[0].mxu0 %v2625
      %v2833 = vpop.f32.mrb[0].mxu0
      %v2834 = vadd.f32 0.0, %v2833
      %v2835 = vpop.f32.mrb[0].mxu0
      %2836 = vmatprep.mubr.f32.mxu0 0.0
      %2837 = vmatmul.mubr.f32.gmra.mrb[0].mxu0 %v2628
      %v2838 = vpop.f32.mrb[0].mxu0
      %v2839 = vadd.f32 0.0, %v2838
      %v2840 = vpop.f32.mrb[0].mxu0
      %2841 = vmatprep.mubr.f32.mxu0 0.0
      %2842 = vmatmul.mubr.f32.gmra.mrb[0].mxu0 %v2631
      %v2843 = vpop.f32.mrb[0].mxu0
      %v2844 = vadd.f32 0.0, %v2843
      %v2845 = vpop.f32.mrb[0].mxu0
      %2846 = vmatprep.mubr.f32.mxu0 0.0
      %2847 = vmatmul.mubr.f32.gmra.mrb[0].mxu0 %v2634
      %v2848 = vpop.f32.mrb[0].mxu0
      %v2849 = vadd.f32 0.0, %v2848
      %v2850 = vpop.f32.mrb[0].mxu0
      %2851 = vmatprep.mubr.f32.mxu0 0.0
      %2852 = vmatmul.mubr.f32.gmra.mrb[0].mxu0 %v2637
      %v2853 = vpop.f32.mrb[0].mxu0
      %v2854 = vadd.f32 0.0, %v2853
      %v2855 = vpop.f32.mrb[0].mxu0
      %2856 = vmatprep.mubr.f32.mxu0 0.0
      %2857 = vmatmul.mubr.f32.gmra.mrb[0].mxu0 %v2640
      %v2858 = vpop.f32.mrb[0].mxu0
      %v2859 = vadd.f32 0.0, %v2858
      %v2860 = vpop.f32.mrb[0].mxu0
      %2861 = vmatprep.mubr.f32.mxu0 0.0
      %2862 = vmatmul.mubr.f32.gmra.mrb[0].mxu0 %v2643
      %v2863 = vpop.f32.mrb[0].mxu0
      %v2864 = vadd.f32 0.0, %v2863
      %v2865 = vpop.f32.mrb[0].mxu0
      %2866 = vmatprep.mubr.f32.mxu0 0.0
      %2867 = vmatmul.mubr.f32.gmra.mrb[0].mxu0 %v2646
      %v2868 = vpop.f32.mrb[0].mxu0
      %v2869 = vadd.f32 0.0, %v2868
      %v2870 = vpop.f32.mrb[0].mxu0
      %2871 = vmatprep.mubr.f32.mxu0 0.0
      %2872 = vmatmul.mubr.f32.gmra.mrb[0].mxu0 %v2649
      %v2873 = vpop.f32.mrb[0].mxu0
      %v2874 = vadd.f32 0.0, %v2873
      %v2875 = vpop.f32.mrb[0].mxu0
      %2876 = vmatprep.mubr.f32.mxu0 0.0
      %2877 = vmatmul.mubr.f32.gmra.mrb[0].mxu0 %v2652
      %v2878 = vpop.f32.mrb[0].mxu0
      %v2879 = vadd.f32 0.0, %v2878
      %v2880 = vpop.f32.mrb[0].mxu0
      %2881 = vdwg.mxu0
      %v2882 = vadd.f32 %v2491, %v2724
      %v2883 = vadd.f32 %v2492, %v2729
      %v2884 = vadd.f32 %v2493, %v2734
      %v2885 = vadd.f32 %v2494, %v2739
      %v2886 = vadd.f32 %v2495, %v2744
      %v2887 = vadd.f32 %v2496, %v2749
      %v2888 = vadd.f32 %v2497, %v2754
      %v2889 = vadd.f32 %v2498, %v2759
      %v2890 = vadd.f32 %v2499, %v2764
      %v2891 = vadd.f32 %v2500, %v2769
      %v2892 = vadd.f32 %v2501, %v2774
      %v2893 = vadd.f32 %v2502, %v2779
      %v2894 = vadd.f32 %v2503, %v2784
      %v2895 = vadd.f32 %v2504, %v2789
      %v2896 = vadd.f32 %v2505, %v2794
      %v2897 = vadd.f32 %v2506, %v2799
      %v2898 = vadd.f32 %v2507, %v2804
      %v2899 = vadd.f32 %v2508, %v2809
      %v2900 = vadd.f32 %v2509, %v2814
      %v2901 = vadd.f32 %v2510, %v2819
      %v2902 = vadd.f32 %v2511, %v2824
      %v2903 = vadd.f32 %v2512, %v2829
      %v2904 = vadd.f32 %v2513, %v2834
      %v2905 = vadd.f32 %v2514, %v2839
      %v2906 = vadd.f32 %v2515, %v2844
      %v2907 = vadd.f32 %v2516, %v2849
      %v2908 = vadd.f32 %v2517, %v2854
      %v2909 = vadd.f32 %v2518, %v2859
      %v2910 = vadd.f32 %v2519, %v2864
      %v2911 = vadd.f32 %v2520, %v2869
      %v2912 = vadd.f32 %v2521, %v2874
      %v2913 = vadd.f32 %v2522, %v2879
      %v2914 = vld [vmem:[%s2523 + $0x1] sm:$0xff]
      %v2915 = vld [vmem:[%s2523 + $0x9] sm:$0xff]
      %v2916 = vld [vmem:[%s2523 + $0x19] sm:$0xff]
      %v2917 = vld [vmem:[%s2523 + $0x21] sm:$0xff]
      %v2918 = vld [vmem:[%s2523 + $0x31] sm:$0xff]
      %v2919 = vld [vmem:[%s2523 + $0x39] sm:$0xff]
      %v2920 = vld [vmem:[%s2523 + $0x49] sm:$0xff]
      %v2921 = vld [vmem:[%s2523 + $0x51] sm:$0xff]
      %v2922 = vld [vmem:[%s2523 + $0x61] sm:$0xff]
      %v2923 = vld [vmem:[%s2523 + $0x69] sm:$0xff]
      %v2924 = vld [vmem:[%s2523 + $0x79] sm:$0xff]
      %v2925 = vld [vmem:[%s2523 + $0x81] sm:$0xff]
      %v2926 = vld [vmem:[%s2523 + $0x91] sm:$0xff]
      %v2927 = vld [vmem:[%s2523 + $0x99] sm:$0xff]
      %v2928 = vld [vmem:[%s2523 + $0xa9] sm:$0xff]
      %v2929 = vld [vmem:[%s2523 + $0xb1] sm:$0xff]
      %v2930 = vld [vmem:[%s2523 + $0xc1] sm:$0xff]
      %v2931 = vld [vmem:[%s2523 + $0xc9] sm:$0xff]
      %v2932 = vld [vmem:[%s2523 + $0xd9] sm:$0xff]
      %v2933 = vld [vmem:[%s2523 + $0xe1] sm:$0xff]
      %v2934 = vld [vmem:[%s2523 + $0xf1] sm:$0xff]
      %v2935 = vld [vmem:[%s2523 + $0xf9] sm:$0xff]
      %v2936 = vld [vmem:[%s2523 + $0x109] sm:$0xff]
      %v2937 = vld [vmem:[%s2523 + $0x111] sm:$0xff]
      %v2938 = vld [vmem:[%s2523 + $0x121] sm:$0xff]
      %v2939 = vld [vmem:[%s2523 + $0x129] sm:$0xff]
      %v2940 = vld [vmem:[%s2523 + $0x139] sm:$0xff]
      %v2941 = vld [vmem:[%s2523 + $0x141] sm:$0xff]
      %v2942 = vld [vmem:[%s2523 + $0x151] sm:$0xff]
      %v2943 = vld [vmem:[%s2523 + $0x159] sm:$0xff]
      %v2944 = vld [vmem:[%s2523 + $0x169] sm:$0xff]
      %v2945 = vld [vmem:[%s2523 + $0x171] sm:$0xff]
      %s2946 = scalar_lea.vmem %s1, 28
      %v2947 = vld [vmem:[%s2946] sm:$0xf]
      %v2949 = vsel %vm312, %v2914, 0
      %v2952 = vsel %vm312, %v2915, 0
      %v2955 = vsel %vm312, %v2916, 0
      %v2958 = vsel %vm312, %v2917, 0
      %v2961 = vsel %vm312, %v2918, 0
      %v2964 = vsel %vm312, %v2919, 0
      %v2967 = vsel %vm312, %v2920, 0
      %v2970 = vsel %vm312, %v2921, 0
      %v2973 = vsel %vm312, %v2922, 0
      %v2976 = vsel %vm312, %v2923, 0
      %v2979 = vsel %vm312, %v2924, 0
      %v2982 = vsel %vm312, %v2925, 0
      %v2985 = vsel %vm312, %v2926, 0
      %v2988 = vsel %vm312, %v2927, 0
      %v2991 = vsel %vm312, %v2928, 0
      %v2994 = vsel %vm312, %v2929, 0
      %v2997 = vsel %vm312, %v2930, 0
      %v3000 = vsel %vm312, %v2931, 0
      %v3003 = vsel %vm312, %v2932, 0
      %v3006 = vsel %vm312, %v2933, 0
      %v3009 = vsel %vm312, %v2934, 0
      %v3012 = vsel %vm312, %v2935, 0
      %v3015 = vsel %vm312, %v2936, 0
      %v3018 = vsel %vm312, %v2937, 0
      %v3021 = vsel %vm312, %v2938, 0
      %v3024 = vsel %vm312, %v2939, 0
      %v3027 = vsel %vm312, %v2940, 0
      %v3030 = vsel %vm312, %v2941, 0
      %v3033 = vsel %vm312, %v2942, 0
      %v3036 = vsel %vm312, %v2943, 0
      %v3039 = vsel %vm312, %v2944, 0
      %v3042 = vsel %vm312, %v2945, 0
      %v3045 = vsel %vm409, %v2947, 0
      %3047 = vmatprep.subr.mxu0 0.0
      %3048 = vmatpush1.msra.mxu0 %v3045
      %3049 = vmatprep.subr.mxu0 0.0
      %3050 = vmatpush1.msra.mxu0 0.0
      %3051 = vmatprep.subr.mxu0 0.0
      %3052 = vmatpush1.msra.mxu0 0.0
      %3053 = vmatprep.subr.mxu0 0.0
      %3054 = vmatpush1.msra.mxu0 0.0
      %3055 = vmatprep.subr.mxu0 0.0
      %3056 = vmatpush1.msra.mxu0 0.0
      %3057 = vmatprep.subr.mxu0 0.0
      %3058 = vmatpush1.msra.mxu0 0.0
      %3059 = vmatprep.subr.mxu0 0.0
      %3060 = vmatpush1.msra.mxu0 0.0
      %3061 = vmatprep.subr.mxu0 0.0
      %3062 = vmatpush1.msra.mxu0 0.0
      %3063 = vmatprep.subr.mxu0 0.0
      %3064 = vmatpush1.msra.mxu0 0.0
      %3065 = vmatprep.subr.mxu0 0.0
      %3066 = vmatpush1.msra.mxu0 0.0
      %3067 = vmatprep.subr.mxu0 0.0
      %3068 = vmatpush1.msra.mxu0 0.0
      %3069 = vmatprep.subr.mxu0 0.0
      %3070 = vmatpush1.msra.mxu0 0.0
      %3071 = vmatprep.subr.mxu0 0.0
      %3072 = vmatpush1.msra.mxu0 0.0
      %3073 = vmatprep.subr.mxu0 0.0
      %3074 = vmatpush1.msra.mxu0 0.0
      %3075 = vmatprep.subr.mxu0 0.0
      %3076 = vmatpush1.msra.mxu0 0.0
      %3077 = vmatprep.subr.mxu0 0.0
      %3078 = vmatpush1.msra.mxu0 0.0
      %3079 = vmatprep.subr.mxu0 0.0
      %3080 = vmatpush1.msra.mxu0 0.0
      %3081 = vmatprep.subr.mxu0 0.0
      %3082 = vmatpush1.msra.mxu0 0.0
      %3083 = vmatprep.subr.mxu0 0.0
      %3084 = vmatpush1.msra.mxu0 0.0
      %3085 = vmatprep.subr.mxu0 0.0
      %3086 = vmatpush1.msra.mxu0 0.0
      %3087 = vmatprep.subr.mxu0 0.0
      %3088 = vmatpush1.msra.mxu0 0.0
      %3089 = vmatprep.subr.mxu0 0.0
      %3090 = vmatpush1.msra.mxu0 0.0
      %3091 = vmatprep.subr.mxu0 0.0
      %3092 = vmatpush1.msra.mxu0 0.0
      %3093 = vmatprep.subr.mxu0 0.0
      %3094 = vmatpush1.msra.mxu0 0.0
      %3095 = vmatprep.subr.mxu0 0.0
      %3096 = vmatpush1.msra.mxu0 0.0
      %3097 = vmatprep.subr.mxu0 0.0
      %3098 = vmatpush1.msra.mxu0 0.0
      %3099 = vmatprep.subr.mxu0 0.0
      %3100 = vmatpush1.msra.mxu0 0.0
      %3101 = vmatprep.subr.mxu0 0.0
      %3102 = vmatpush1.msra.mxu0 0.0
      %3103 = vmatprep.subr.mxu0 0.0
      %3104 = vmatpush1.msra.mxu0 0.0
      %3105 = vmatprep.subr.mxu0 0.0
      %3106 = vmatpush1.msra.mxu0 0.0
      %3107 = vmatprep.subr.mxu0 0.0
      %3108 = vmatpush1.msra.mxu0 0.0
      %3109 = vmatprep.subr.mxu0 0.0
      %3110 = vmatpush1.msra.mxu0 0.0
      %3111 = vmatprep.mubr.f32.mxu0 0.0
      %3112 = vmatmul.mubr.f32.gmra.mrb[0].mxu0 %v2949
      %v3113 = vpop.f32.mrb[0].mxu0
      %v3114 = vadd.f32 0.0, %v3113
      %v3115 = vpop.f32.mrb[0].mxu0
      %3116 = vmatprep.mubr.f32.mxu0 0.0
      %3117 = vmatmul.mubr.f32.gmra.mrb[0].mxu0 %v2952
      %v3118 = vpop.f32.mrb[0].mxu0
      %v3119 = vadd.f32 0.0, %v3118
      %v3120 = vpop.f32.mrb[0].mxu0
      %3121 = vmatprep.mubr.f32.mxu0 0.0
      %3122 = vmatmul.mubr.f32.gmra.mrb[0].mxu0 %v2955
      %v3123 = vpop.f32.mrb[0].mxu0
      %v3124 = vadd.f32 0.0, %v3123
      %v3125 = vpop.f32.mrb[0].mxu0
      %3126 = vmatprep.mubr.f32.mxu0 0.0
      %3127 = vmatmul.mubr.f32.gmra.mrb[0].mxu0 %v2958
      %v3128 = vpop.f32.mrb[0].mxu0
      %v3129 = vadd.f32 0.0, %v3128
      %v3130 = vpop.f32.mrb[0].mxu0
      %3131 = vmatprep.mubr.f32.mxu0 0.0
      %3132 = vmatmul.mubr.f32.gmra.mrb[0].mxu0 %v2961
      %v3133 = vpop.f32.mrb[0].mxu0
      %v3134 = vadd.f32 0.0, %v3133
      %v3135 = vpop.f32.mrb[0].mxu0
      %3136 = vmatprep.mubr.f32.mxu0 0.0
      %3137 = vmatmul.mubr.f32.gmra.mrb[0].mxu0 %v2964
      %v3138 = vpop.f32.mrb[0].mxu0
      %v3139 = vadd.f32 0.0, %v3138
      %v3140 = vpop.f32.mrb[0].mxu0
      %3141 = vmatprep.mubr.f32.mxu0 0.0
      %3142 = vmatmul.mubr.f32.gmra.mrb[0].mxu0 %v2967
      %v3143 = vpop.f32.mrb[0].mxu0
      %v3144 = vadd.f32 0.0, %v3143
      %v3145 = vpop.f32.mrb[0].mxu0
      %3146 = vmatprep.mubr.f32.mxu0 0.0
      %3147 = vmatmul.mubr.f32.gmra.mrb[0].mxu0 %v2970
      %v3148 = vpop.f32.mrb[0].mxu0
      %v3149 = vadd.f32 0.0, %v3148
      %v3150 = vpop.f32.mrb[0].mxu0
      %3151 = vmatprep.mubr.f32.mxu0 0.0
      %3152 = vmatmul.mubr.f32.gmra.mrb[0].mxu0 %v2973
      %v3153 = vpop.f32.mrb[0].mxu0
      %v3154 = vadd.f32 0.0, %v3153
      %v3155 = vpop.f32.mrb[0].mxu0
      %3156 = vmatprep.mubr.f32.mxu0 0.0
      %3157 = vmatmul.mubr.f32.gmra.mrb[0].mxu0 %v2976
      %v3158 = vpop.f32.mrb[0].mxu0
      %v3159 = vadd.f32 0.0, %v3158
      %v3160 = vpop.f32.mrb[0].mxu0
      %3161 = vmatprep.mubr.f32.mxu0 0.0
      %3162 = vmatmul.mubr.f32.gmra.mrb[0].mxu0 %v2979
      %v3163 = vpop.f32.mrb[0].mxu0
      %v3164 = vadd.f32 0.0, %v3163
      %v3165 = vpop.f32.mrb[0].mxu0
      %3166 = vmatprep.mubr.f32.mxu0 0.0
      %3167 = vmatmul.mubr.f32.gmra.mrb[0].mxu0 %v2982
      %v3168 = vpop.f32.mrb[0].mxu0
      %v3169 = vadd.f32 0.0, %v3168
      %v3170 = vpop.f32.mrb[0].mxu0
      %3171 = vmatprep.mubr.f32.mxu0 0.0
      %3172 = vmatmul.mubr.f32.gmra.mrb[0].mxu0 %v2985
      %v3173 = vpop.f32.mrb[0].mxu0
      %v3174 = vadd.f32 0.0, %v3173
      %v3175 = vpop.f32.mrb[0].mxu0
      %3176 = vmatprep.mubr.f32.mxu0 0.0
      %3177 = vmatmul.mubr.f32.gmra.mrb[0].mxu0 %v2988
      %v3178 = vpop.f32.mrb[0].mxu0
      %v3179 = vadd.f32 0.0, %v3178
      %v3180 = vpop.f32.mrb[0].mxu0
      %3181 = vmatprep.mubr.f32.mxu0 0.0
      %3182 = vmatmul.mubr.f32.gmra.mrb[0].mxu0 %v2991
      %v3183 = vpop.f32.mrb[0].mxu0
      %v3184 = vadd.f32 0.0, %v3183
      %v3185 = vpop.f32.mrb[0].mxu0
      %3186 = vmatprep.mubr.f32.mxu0 0.0
      %3187 = vmatmul.mubr.f32.gmra.mrb[0].mxu0 %v2994
      %v3188 = vpop.f32.mrb[0].mxu0
      %v3189 = vadd.f32 0.0, %v3188
      %v3190 = vpop.f32.mrb[0].mxu0
      %3191 = vmatprep.mubr.f32.mxu0 0.0
      %3192 = vmatmul.mubr.f32.gmra.mrb[0].mxu0 %v2997
      %v3193 = vpop.f32.mrb[0].mxu0
      %v3194 = vadd.f32 0.0, %v3193
      %v3195 = vpop.f32.mrb[0].mxu0
      %3196 = vmatprep.mubr.f32.mxu0 0.0
      %3197 = vmatmul.mubr.f32.gmra.mrb[0].mxu0 %v3000
      %v3198 = vpop.f32.mrb[0].mxu0
      %v3199 = vadd.f32 0.0, %v3198
      %v3200 = vpop.f32.mrb[0].mxu0
      %3201 = vmatprep.mubr.f32.mxu0 0.0
      %3202 = vmatmul.mubr.f32.gmra.mrb[0].mxu0 %v3003
      %v3203 = vpop.f32.mrb[0].mxu0
      %v3204 = vadd.f32 0.0, %v3203
      %v3205 = vpop.f32.mrb[0].mxu0
      %3206 = vmatprep.mubr.f32.mxu0 0.0
      %3207 = vmatmul.mubr.f32.gmra.mrb[0].mxu0 %v3006
      %v3208 = vpop.f32.mrb[0].mxu0
      %v3209 = vadd.f32 0.0, %v3208
      %v3210 = vpop.f32.mrb[0].mxu0
      %3211 = vmatprep.mubr.f32.mxu0 0.0
      %3212 = vmatmul.mubr.f32.gmra.mrb[0].mxu0 %v3009
      %v3213 = vpop.f32.mrb[0].mxu0
      %v3214 = vadd.f32 0.0, %v3213
      %v3215 = vpop.f32.mrb[0].mxu0
      %3216 = vmatprep.mubr.f32.mxu0 0.0
      %3217 = vmatmul.mubr.f32.gmra.mrb[0].mxu0 %v3012
      %v3218 = vpop.f32.mrb[0].mxu0
      %v3219 = vadd.f32 0.0, %v3218
      %v3220 = vpop.f32.mrb[0].mxu0
      %3221 = vmatprep.mubr.f32.mxu0 0.0
      %3222 = vmatmul.mubr.f32.gmra.mrb[0].mxu0 %v3015
      %v3223 = vpop.f32.mrb[0].mxu0
      %v3224 = vadd.f32 0.0, %v3223
      %v3225 = vpop.f32.mrb[0].mxu0
      %3226 = vmatprep.mubr.f32.mxu0 0.0
      %3227 = vmatmul.mubr.f32.gmra.mrb[0].mxu0 %v3018
      %v3228 = vpop.f32.mrb[0].mxu0
      %v3229 = vadd.f32 0.0, %v3228
      %v3230 = vpop.f32.mrb[0].mxu0
      %3231 = vmatprep.mubr.f32.mxu0 0.0
      %3232 = vmatmul.mubr.f32.gmra.mrb[0].mxu0 %v3021
      %v3233 = vpop.f32.mrb[0].mxu0
      %v3234 = vadd.f32 0.0, %v3233
      %v3235 = vpop.f32.mrb[0].mxu0
      %3236 = vmatprep.mubr.f32.mxu0 0.0
      %3237 = vmatmul.mubr.f32.gmra.mrb[0].mxu0 %v3024
      %v3238 = vpop.f32.mrb[0].mxu0
      %v3239 = vadd.f32 0.0, %v3238
      %v3240 = vpop.f32.mrb[0].mxu0
      %3241 = vmatprep.mubr.f32.mxu0 0.0
      %3242 = vmatmul.mubr.f32.gmra.mrb[0].mxu0 %v3027
      %v3243 = vpop.f32.mrb[0].mxu0
      %v3244 = vadd.f32 0.0, %v3243
      %v3245 = vpop.f32.mrb[0].mxu0
      %3246 = vmatprep.mubr.f32.mxu0 0.0
      %3247 = vmatmul.mubr.f32.gmra.mrb[0].mxu0 %v3030
      %v3248 = vpop.f32.mrb[0].mxu0
      %v3249 = vadd.f32 0.0, %v3248
      %v3250 = vpop.f32.mrb[0].mxu0
      %3251 = vmatprep.mubr.f32.mxu0 0.0
      %3252 = vmatmul.mubr.f32.gmra.mrb[0].mxu0 %v3033
      %v3253 = vpop.f32.mrb[0].mxu0
      %v3254 = vadd.f32 0.0, %v3253
      %v3255 = vpop.f32.mrb[0].mxu0
      %3256 = vmatprep.mubr.f32.mxu0 0.0
      %3257 = vmatmul.mubr.f32.gmra.mrb[0].mxu0 %v3036
      %v3258 = vpop.f32.mrb[0].mxu0
      %v3259 = vadd.f32 0.0, %v3258
      %v3260 = vpop.f32.mrb[0].mxu0
      %3261 = vmatprep.mubr.f32.mxu0 0.0
      %3262 = vmatmul.mubr.f32.gmra.mrb[0].mxu0 %v3039
      %v3263 = vpop.f32.mrb[0].mxu0
      %v3264 = vadd.f32 0.0, %v3263
      %v3265 = vpop.f32.mrb[0].mxu0
      %3266 = vmatprep.mubr.f32.mxu0 0.0
      %3267 = vmatmul.mubr.f32.gmra.mrb[0].mxu0 %v3042
      %v3268 = vpop.f32.mrb[0].mxu0
      %v3269 = vadd.f32 0.0, %v3268
      %v3270 = vpop.f32.mrb[0].mxu0
      %3271 = vdwg.mxu0
      %v3272 = vadd.f32 %v2882, %v3114
      %v3273 = vadd.f32 %v2883, %v3119
      %v3274 = vadd.f32 %v2884, %v3124
      %v3275 = vadd.f32 %v2885, %v3129
      %v3276 = vadd.f32 %v2886, %v3134
      %v3277 = vadd.f32 %v2887, %v3139
      %v3278 = vadd.f32 %v2888, %v3144
      %v3279 = vadd.f32 %v2889, %v3149
      %v3280 = vadd.f32 %v2890, %v3154
      %v3281 = vadd.f32 %v2891, %v3159
      %v3282 = vadd.f32 %v2892, %v3164
      %v3283 = vadd.f32 %v2893, %v3169
      %v3284 = vadd.f32 %v2894, %v3174
      %v3285 = vadd.f32 %v2895, %v3179
      %v3286 = vadd.f32 %v2896, %v3184
      %v3287 = vadd.f32 %v2897, %v3189
      %v3288 = vadd.f32 %v2898, %v3194
      %v3289 = vadd.f32 %v2899, %v3199
      %v3290 = vadd.f32 %v2900, %v3204
      %v3291 = vadd.f32 %v2901, %v3209
      %v3292 = vadd.f32 %v2902, %v3214
      %v3293 = vadd.f32 %v2903, %v3219
      %v3294 = vadd.f32 %v2904, %v3224
      %v3295 = vadd.f32 %v2905, %v3229
      %v3296 = vadd.f32 %v2906, %v3234
      %v3297 = vadd.f32 %v2907, %v3239
      %v3298 = vadd.f32 %v2908, %v3244
      %v3299 = vadd.f32 %v2909, %v3249
      %v3300 = vadd.f32 %v2910, %v3254
      %v3301 = vadd.f32 %v2911, %v3259
      %v3302 = vadd.f32 %v2912, %v3264
      %v3303 = vadd.f32 %v2913, %v3269
      %v3304 = vld [vmem:[%s2523 + $0x2] sm:$0xff]
      %v3305 = vld [vmem:[%s2523 + $0xa] sm:$0xff]
      %v3306 = vld [vmem:[%s2523 + $0x1a] sm:$0xff]
      %v3307 = vld [vmem:[%s2523 + $0x22] sm:$0xff]
      %v3308 = vld [vmem:[%s2523 + $0x32] sm:$0xff]
      %v3309 = vld [vmem:[%s2523 + $0x3a] sm:$0xff]
      %v3310 = vld [vmem:[%s2523 + $0x4a] sm:$0xff]
      %v3311 = vld [vmem:[%s2523 + $0x52] sm:$0xff]
      %v3312 = vld [vmem:[%s2523 + $0x62] sm:$0xff]
      %v3313 = vld [vmem:[%s2523 + $0x6a] sm:$0xff]
      %v3314 = vld [vmem:[%s2523 + $0x7a] sm:$0xff]
      %v3315 = vld [vmem:[%s2523 + $0x82] sm:$0xff]
      %v3316 = vld [vmem:[%s2523 + $0x92] sm:$0xff]
      %v3317 = vld [vmem:[%s2523 + $0x9a] sm:$0xff]
      %v3318 = vld [vmem:[%s2523 + $0xaa] sm:$0xff]
      %v3319 = vld [vmem:[%s2523 + $0xb2] sm:$0xff]
      %v3320 = vld [vmem:[%s2523 + $0xc2] sm:$0xff]
      %v3321 = vld [vmem:[%s2523 + $0xca] sm:$0xff]
      %v3322 = vld [vmem:[%s2523 + $0xda] sm:$0xff]
      %v3323 = vld [vmem:[%s2523 + $0xe2] sm:$0xff]
      %v3324 = vld [vmem:[%s2523 + $0xf2] sm:$0xff]
      %v3325 = vld [vmem:[%s2523 + $0xfa] sm:$0xff]
      %v3326 = vld [vmem:[%s2523 + $0x10a] sm:$0xff]
      %v3327 = vld [vmem:[%s2523 + $0x112] sm:$0xff]
      %v3328 = vld [vmem:[%s2523 + $0x122] sm:$0xff]
      %v3329 = vld [vmem:[%s2523 + $0x12a] sm:$0xff]
      %v3330 = vld [vmem:[%s2523 + $0x13a] sm:$0xff]
      %v3331 = vld [vmem:[%s2523 + $0x142] sm:$0xff]
      %v3332 = vld [vmem:[%s2523 + $0x152] sm:$0xff]
      %v3333 = vld [vmem:[%s2523 + $0x15a] sm:$0xff]
      %v3334 = vld [vmem:[%s2523 + $0x16a] sm:$0xff]
      %v3335 = vld [vmem:[%s2523 + $0x172] sm:$0xff]
      %s3336 = scalar_lea.vmem %s1, 32
      %v3337 = vld [vmem:[%s3336] sm:$0xf]
      %v3339 = vsel %vm312, %v3304, 0
      %v3342 = vsel %vm312, %v3305, 0
      %v3345 = vsel %vm312, %v3306, 0
      %v3348 = vsel %vm312, %v3307, 0
      %v3351 = vsel %vm312, %v3308, 0
      %v3354 = vsel %vm312, %v3309, 0
      %v3357 = vsel %vm312, %v3310, 0
      %v3360 = vsel %vm312, %v3311, 0
      %v3363 = vsel %vm312, %v3312, 0
      %v3366 = vsel %vm312, %v3313, 0
      %v3369 = vsel %vm312, %v3314, 0
      %v3372 = vsel %vm312, %v3315, 0
      %v3375 = vsel %vm312, %v3316, 0
      %v3378 = vsel %vm312, %v3317, 0
      %v3381 = vsel %vm312, %v3318, 0
      %v3384 = vsel %vm312, %v3319, 0
      %v3387 = vsel %vm312, %v3320, 0
      %v3390 = vsel %vm312, %v3321, 0
      %v3393 = vsel %vm312, %v3322, 0
      %v3396 = vsel %vm312, %v3323, 0
      %v3399 = vsel %vm312, %v3324, 0
      %v3402 = vsel %vm312, %v3325, 0
      %v3405 = vsel %vm312, %v3326, 0
      %v3408 = vsel %vm312, %v3327, 0
      %v3411 = vsel %vm312, %v3328, 0
      %v3414 = vsel %vm312, %v3329, 0
      %v3417 = vsel %vm312, %v3330, 0
      %v3420 = vsel %vm312, %v3331, 0
      %v3423 = vsel %vm312, %v3332, 0
      %v3426 = vsel %vm312, %v3333, 0
      %v3429 = vsel %vm312, %v3334, 0
      %v3432 = vsel %vm312, %v3335, 0
      %v3435 = vsel %vm409, %v3337, 0
      %3437 = vmatprep.subr.mxu0 0.0
      %3438 = vmatpush1.msra.mxu0 %v3435
      %3439 = vmatprep.subr.mxu0 0.0
      %3440 = vmatpush1.msra.mxu0 0.0
      %3441 = vmatprep.subr.mxu0 0.0
      %3442 = vmatpush1.msra.mxu0 0.0
      %3443 = vmatprep.subr.mxu0 0.0
      %3444 = vmatpush1.msra.mxu0 0.0
      %3445 = vmatprep.subr.mxu0 0.0
      %3446 = vmatpush1.msra.mxu0 0.0
      %3447 = vmatprep.subr.mxu0 0.0
      %3448 = vmatpush1.msra.mxu0 0.0
      %3449 = vmatprep.subr.mxu0 0.0
      %3450 = vmatpush1.msra.mxu0 0.0
      %3451 = vmatprep.subr.mxu0 0.0
      %3452 = vmatpush1.msra.mxu0 0.0
      %3453 = vmatprep.subr.mxu0 0.0
      %3454 = vmatpush1.msra.mxu0 0.0
      %3455 = vmatprep.subr.mxu0 0.0
      %3456 = vmatpush1.msra.mxu0 0.0
      %3457 = vmatprep.subr.mxu0 0.0
      %3458 = vmatpush1.msra.mxu0 0.0
      %3459 = vmatprep.subr.mxu0 0.0
      %3460 = vmatpush1.msra.mxu0 0.0
      %3461 = vmatprep.subr.mxu0 0.0
      %3462 = vmatpush1.msra.mxu0 0.0
      %3463 = vmatprep.subr.mxu0 0.0
      %3464 = vmatpush1.msra.mxu0 0.0
      %3465 = vmatprep.subr.mxu0 0.0
      %3466 = vmatpush1.msra.mxu0 0.0
      %3467 = vmatprep.subr.mxu0 0.0
      %3468 = vmatpush1.msra.mxu0 0.0
      %3469 = vmatprep.subr.mxu0 0.0
      %3470 = vmatpush1.msra.mxu0 0.0
      %3471 = vmatprep.subr.mxu0 0.0
      %3472 = vmatpush1.msra.mxu0 0.0
      %3473 = vmatprep.subr.mxu0 0.0
      %3474 = vmatpush1.msra.mxu0 0.0
      %3475 = vmatprep.subr.mxu0 0.0
      %3476 = vmatpush1.msra.mxu0 0.0
      %3477 = vmatprep.subr.mxu0 0.0
      %3478 = vmatpush1.msra.mxu0 0.0
      %3479 = vmatprep.subr.mxu0 0.0
      %3480 = vmatpush1.msra.mxu0 0.0
      %3481 = vmatprep.subr.mxu0 0.0
      %3482 = vmatpush1.msra.mxu0 0.0
      %3483 = vmatprep.subr.mxu0 0.0
      %3484 = vmatpush1.msra.mxu0 0.0
      %3485 = vmatprep.subr.mxu0 0.0
      %3486 = vmatpush1.msra.mxu0 0.0
      %3487 = vmatprep.subr.mxu0 0.0
      %3488 = vmatpush1.msra.mxu0 0.0
      %3489 = vmatprep.subr.mxu0 0.0
      %3490 = vmatpush1.msra.mxu0 0.0
      %3491 = vmatprep.subr.mxu0 0.0
      %3492 = vmatpush1.msra.mxu0 0.0
      %3493 = vmatprep.subr.mxu0 0.0
      %3494 = vmatpush1.msra.mxu0 0.0
      %3495 = vmatprep.subr.mxu0 0.0
      %3496 = vmatpush1.msra.mxu0 0.0
      %3497 = vmatprep.subr.mxu0 0.0
      %3498 = vmatpush1.msra.mxu0 0.0
      %3499 = vmatprep.subr.mxu0 0.0
      %3500 = vmatpush1.msra.mxu0 0.0
      %3501 = vmatprep.mubr.f32.mxu0 0.0
      %3502 = vmatmul.mubr.f32.gmra.mrb[0].mxu0 %v3339
      %v3503 = vpop.f32.mrb[0].mxu0
      %v3504 = vadd.f32 0.0, %v3503
      %v3505 = vpop.f32.mrb[0].mxu0
      %3506 = vmatprep.mubr.f32.mxu0 0.0
      %3507 = vmatmul.mubr.f32.gmra.mrb[0].mxu0 %v3342
      %v3508 = vpop.f32.mrb[0].mxu0
      %v3509 = vadd.f32 0.0, %v3508
      %v3510 = vpop.f32.mrb[0].mxu0
      %3511 = vmatprep.mubr.f32.mxu0 0.0
      %3512 = vmatmul.mubr.f32.gmra.mrb[0].mxu0 %v3345
      %v3513 = vpop.f32.mrb[0].mxu0
      %v3514 = vadd.f32 0.0, %v3513
      %v3515 = vpop.f32.mrb[0].mxu0
      %3516 = vmatprep.mubr.f32.mxu0 0.0
      %3517 = vmatmul.mubr.f32.gmra.mrb[0].mxu0 %v3348
      %v3518 = vpop.f32.mrb[0].mxu0
      %v3519 = vadd.f32 0.0, %v3518
      %v3520 = vpop.f32.mrb[0].mxu0
      %3521 = vmatprep.mubr.f32.mxu0 0.0
      %3522 = vmatmul.mubr.f32.gmra.mrb[0].mxu0 %v3351
      %v3523 = vpop.f32.mrb[0].mxu0
      %v3524 = vadd.f32 0.0, %v3523
      %v3525 = vpop.f32.mrb[0].mxu0
      %3526 = vmatprep.mubr.f32.mxu0 0.0
      %3527 = vmatmul.mubr.f32.gmra.mrb[0].mxu0 %v3354
      %v3528 = vpop.f32.mrb[0].mxu0
      %v3529 = vadd.f32 0.0, %v3528
      %v3530 = vpop.f32.mrb[0].mxu0
      %3531 = vmatprep.mubr.f32.mxu0 0.0
      %3532 = vmatmul.mubr.f32.gmra.mrb[0].mxu0 %v3357
      %v3533 = vpop.f32.mrb[0].mxu0
      %v3534 = vadd.f32 0.0, %v3533
      %v3535 = vpop.f32.mrb[0].mxu0
      %3536 = vmatprep.mubr.f32.mxu0 0.0
      %3537 = vmatmul.mubr.f32.gmra.mrb[0].mxu0 %v3360
      %v3538 = vpop.f32.mrb[0].mxu0
      %v3539 = vadd.f32 0.0, %v3538
      %v3540 = vpop.f32.mrb[0].mxu0
      %3541 = vmatprep.mubr.f32.mxu0 0.0
      %3542 = vmatmul.mubr.f32.gmra.mrb[0].mxu0 %v3363
      %v3543 = vpop.f32.mrb[0].mxu0
      %v3544 = vadd.f32 0.0, %v3543
      %v3545 = vpop.f32.mrb[0].mxu0
      %3546 = vmatprep.mubr.f32.mxu0 0.0
      %3547 = vmatmul.mubr.f32.gmra.mrb[0].mxu0 %v3366
      %v3548 = vpop.f32.mrb[0].mxu0
      %v3549 = vadd.f32 0.0, %v3548
      %v3550 = vpop.f32.mrb[0].mxu0
      %3551 = vmatprep.mubr.f32.mxu0 0.0
      %3552 = vmatmul.mubr.f32.gmra.mrb[0].mxu0 %v3369
      %v3553 = vpop.f32.mrb[0].mxu0
      %v3554 = vadd.f32 0.0, %v3553
      %v3555 = vpop.f32.mrb[0].mxu0
      %3556 = vmatprep.mubr.f32.mxu0 0.0
      %3557 = vmatmul.mubr.f32.gmra.mrb[0].mxu0 %v3372
      %v3558 = vpop.f32.mrb[0].mxu0
      %v3559 = vadd.f32 0.0, %v3558
      %v3560 = vpop.f32.mrb[0].mxu0
      %3561 = vmatprep.mubr.f32.mxu0 0.0
      %3562 = vmatmul.mubr.f32.gmra.mrb[0].mxu0 %v3375
      %v3563 = vpop.f32.mrb[0].mxu0
      %v3564 = vadd.f32 0.0, %v3563
      %v3565 = vpop.f32.mrb[0].mxu0
      %3566 = vmatprep.mubr.f32.mxu0 0.0
      %3567 = vmatmul.mubr.f32.gmra.mrb[0].mxu0 %v3378
      %v3568 = vpop.f32.mrb[0].mxu0
      %v3569 = vadd.f32 0.0, %v3568
      %v3570 = vpop.f32.mrb[0].mxu0
      %3571 = vmatprep.mubr.f32.mxu0 0.0
      %3572 = vmatmul.mubr.f32.gmra.mrb[0].mxu0 %v3381
      %v3573 = vpop.f32.mrb[0].mxu0
      %v3574 = vadd.f32 0.0, %v3573
      %v3575 = vpop.f32.mrb[0].mxu0
      %3576 = vmatprep.mubr.f32.mxu0 0.0
      %3577 = vmatmul.mubr.f32.gmra.mrb[0].mxu0 %v3384
      %v3578 = vpop.f32.mrb[0].mxu0
      %v3579 = vadd.f32 0.0, %v3578
      %v3580 = vpop.f32.mrb[0].mxu0
      %3581 = vmatprep.mubr.f32.mxu0 0.0
      %3582 = vmatmul.mubr.f32.gmra.mrb[0].mxu0 %v3387
      %v3583 = vpop.f32.mrb[0].mxu0
      %v3584 = vadd.f32 0.0, %v3583
      %v3585 = vpop.f32.mrb[0].mxu0
      %3586 = vmatprep.mubr.f32.mxu0 0.0
      %3587 = vmatmul.mubr.f32.gmra.mrb[0].mxu0 %v3390
      %v3588 = vpop.f32.mrb[0].mxu0
      %v3589 = vadd.f32 0.0, %v3588
      %v3590 = vpop.f32.mrb[0].mxu0
      %3591 = vmatprep.mubr.f32.mxu0 0.0
      %3592 = vmatmul.mubr.f32.gmra.mrb[0].mxu0 %v3393
      %v3593 = vpop.f32.mrb[0].mxu0
      %v3594 = vadd.f32 0.0, %v3593
      %v3595 = vpop.f32.mrb[0].mxu0
      %3596 = vmatprep.mubr.f32.mxu0 0.0
      %3597 = vmatmul.mubr.f32.gmra.mrb[0].mxu0 %v3396
      %v3598 = vpop.f32.mrb[0].mxu0
      %v3599 = vadd.f32 0.0, %v3598
      %v3600 = vpop.f32.mrb[0].mxu0
      %3601 = vmatprep.mubr.f32.mxu0 0.0
      %3602 = vmatmul.mubr.f32.gmra.mrb[0].mxu0 %v3399
      %v3603 = vpop.f32.mrb[0].mxu0
      %v3604 = vadd.f32 0.0, %v3603
      %v3605 = vpop.f32.mrb[0].mxu0
      %3606 = vmatprep.mubr.f32.mxu0 0.0
      %3607 = vmatmul.mubr.f32.gmra.mrb[0].mxu0 %v3402
      %v3608 = vpop.f32.mrb[0].mxu0
      %v3609 = vadd.f32 0.0, %v3608
      %v3610 = vpop.f32.mrb[0].mxu0
      %3611 = vmatprep.mubr.f32.mxu0 0.0
      %3612 = vmatmul.mubr.f32.gmra.mrb[0].mxu0 %v3405
      %v3613 = vpop.f32.mrb[0].mxu0
      %v3614 = vadd.f32 0.0, %v3613
      %v3615 = vpop.f32.mrb[0].mxu0
      %3616 = vmatprep.mubr.f32.mxu0 0.0
      %3617 = vmatmul.mubr.f32.gmra.mrb[0].mxu0 %v3408
      %v3618 = vpop.f32.mrb[0].mxu0
      %v3619 = vadd.f32 0.0, %v3618
      %v3620 = vpop.f32.mrb[0].mxu0
      %3621 = vmatprep.mubr.f32.mxu0 0.0
      %3622 = vmatmul.mubr.f32.gmra.mrb[0].mxu0 %v3411
      %v3623 = vpop.f32.mrb[0].mxu0
      %v3624 = vadd.f32 0.0, %v3623
      %v3625 = vpop.f32.mrb[0].mxu0
      %3626 = vmatprep.mubr.f32.mxu0 0.0
      %3627 = vmatmul.mubr.f32.gmra.mrb[0].mxu0 %v3414
      %v3628 = vpop.f32.mrb[0].mxu0
      %v3629 = vadd.f32 0.0, %v3628
      %v3630 = vpop.f32.mrb[0].mxu0
      %3631 = vmatprep.mubr.f32.mxu0 0.0
      %3632 = vmatmul.mubr.f32.gmra.mrb[0].mxu0 %v3417
      %v3633 = vpop.f32.mrb[0].mxu0
      %v3634 = vadd.f32 0.0, %v3633
      %v3635 = vpop.f32.mrb[0].mxu0
      %3636 = vmatprep.mubr.f32.mxu0 0.0
      %3637 = vmatmul.mubr.f32.gmra.mrb[0].mxu0 %v3420
      %v3638 = vpop.f32.mrb[0].mxu0
      %v3639 = vadd.f32 0.0, %v3638
      %v3640 = vpop.f32.mrb[0].mxu0
      %3641 = vmatprep.mubr.f32.mxu0 0.0
      %3642 = vmatmul.mubr.f32.gmra.mrb[0].mxu0 %v3423
      %v3643 = vpop.f32.mrb[0].mxu0
      %v3644 = vadd.f32 0.0, %v3643
      %v3645 = vpop.f32.mrb[0].mxu0
      %3646 = vmatprep.mubr.f32.mxu0 0.0
      %3647 = vmatmul.mubr.f32.gmra.mrb[0].mxu0 %v3426
      %v3648 = vpop.f32.mrb[0].mxu0
      %v3649 = vadd.f32 0.0, %v3648
      %v3650 = vpop.f32.mrb[0].mxu0
      %3651 = vmatprep.mubr.f32.mxu0 0.0
      %3652 = vmatmul.mubr.f32.gmra.mrb[0].mxu0 %v3429
      %v3653 = vpop.f32.mrb[0].mxu0
      %v3654 = vadd.f32 0.0, %v3653
      %v3655 = vpop.f32.mrb[0].mxu0
      %3656 = vmatprep.mubr.f32.mxu0 0.0
      %3657 = vmatmul.mubr.f32.gmra.mrb[0].mxu0 %v3432
      %v3658 = vpop.f32.mrb[0].mxu0
      %v3659 = vadd.f32 0.0, %v3658
      %v3660 = vpop.f32.mrb[0].mxu0
      %3661 = vdwg.mxu0
      %v3662 = vadd.f32 %v3272, %v3504
      %v3663 = vadd.f32 %v3273, %v3509
      %v3664 = vadd.f32 %v3274, %v3514
      %v3665 = vadd.f32 %v3275, %v3519
      %v3666 = vadd.f32 %v3276, %v3524
      %v3667 = vadd.f32 %v3277, %v3529
      %v3668 = vadd.f32 %v3278, %v3534
      %v3669 = vadd.f32 %v3279, %v3539
      %v3670 = vadd.f32 %v3280, %v3544
      %v3671 = vadd.f32 %v3281, %v3549
      %v3672 = vadd.f32 %v3282, %v3554
      %v3673 = vadd.f32 %v3283, %v3559
      %v3674 = vadd.f32 %v3284, %v3564
      %v3675 = vadd.f32 %v3285, %v3569
      %v3676 = vadd.f32 %v3286, %v3574
      %v3677 = vadd.f32 %v3287, %v3579
      %v3678 = vadd.f32 %v3288, %v3584
      %v3679 = vadd.f32 %v3289, %v3589
      %v3680 = vadd.f32 %v3290, %v3594
      %v3681 = vadd.f32 %v3291, %v3599
      %v3682 = vadd.f32 %v3292, %v3604
      %v3683 = vadd.f32 %v3293, %v3609
      %v3684 = vadd.f32 %v3294, %v3614
      %v3685 = vadd.f32 %v3295, %v3619
      %v3686 = vadd.f32 %v3296, %v3624
      %v3687 = vadd.f32 %v3297, %v3629
      %v3688 = vadd.f32 %v3298, %v3634
      %v3689 = vadd.f32 %v3299, %v3639
      %v3690 = vadd.f32 %v3300, %v3644
      %v3691 = vadd.f32 %v3301, %v3649
      %v3692 = vadd.f32 %v3302, %v3654
      %v3693 = vadd.f32 %v3303, %v3659
      %v3694 = vld [vmem:[%s2] sm:$0x1]
      %v3696 = vlaneseq
      %v3697 = vshrl.u32 %v3696, 7
      %v3698 = vsub.s32 0, %v3697
      %v3699 = vrot.slane %v3694, %v3698
      %v3701 = vmul.f32 %v3662, %v3699
      %v3702 = vmul.f32 %v3663, %v3699
      %v3703 = vmul.f32 %v3664, %v3699
      %v3704 = vmul.f32 %v3665, %v3699
      %v3705 = vmul.f32 %v3666, %v3699
      %v3706 = vmul.f32 %v3667, %v3699
      %v3707 = vmul.f32 %v3668, %v3699
      %v3708 = vmul.f32 %v3669, %v3699
      %v3709 = vmul.f32 %v3670, %v3699
      %v3710 = vmul.f32 %v3671, %v3699
      %v3711 = vmul.f32 %v3672, %v3699
      %v3712 = vmul.f32 %v3673, %v3699
      %v3713 = vmul.f32 %v3674, %v3699
      %v3714 = vmul.f32 %v3675, %v3699
      %v3715 = vmul.f32 %v3676, %v3699
      %v3716 = vmul.f32 %v3677, %v3699
      %v3717 = vmul.f32 %v3678, %v3699
      %v3718 = vmul.f32 %v3679, %v3699
      %v3719 = vmul.f32 %v3680, %v3699
      %v3720 = vmul.f32 %v3681, %v3699
      %v3721 = vmul.f32 %v3682, %v3699
      %v3722 = vmul.f32 %v3683, %v3699
      %v3723 = vmul.f32 %v3684, %v3699
      %v3724 = vmul.f32 %v3685, %v3699
      %v3725 = vmul.f32 %v3686, %v3699
      %v3726 = vmul.f32 %v3687, %v3699
      %v3727 = vmul.f32 %v3688, %v3699
      %v3728 = vmul.f32 %v3689, %v3699
      %v3729 = vmul.f32 %v3690, %v3699
      %v3730 = vmul.f32 %v3691, %v3699
      %v3731 = vmul.f32 %v3692, %v3699
      %v3732 = vmul.f32 %v3693, %v3699
      %v3733 = vld [vmem:[%s3] sm:$0x1]
      %v3735 = vlaneseq
      %v3736 = vshrl.u32 %v3735, 7
      %v3737 = vsub.s32 0, %v3736
      %v3738 = vrot.slane %v3733, %v3737
      %v3740 = vadd.f32 %v3701, %v3738
      %v3741 = vadd.f32 %v3702, %v3738
      %v3742 = vadd.f32 %v3703, %v3738
      %v3743 = vadd.f32 %v3704, %v3738
      %v3744 = vadd.f32 %v3705, %v3738
      %v3745 = vadd.f32 %v3706, %v3738
      %v3746 = vadd.f32 %v3707, %v3738
      %v3747 = vadd.f32 %v3708, %v3738
      %v3748 = vadd.f32 %v3709, %v3738
      %v3749 = vadd.f32 %v3710, %v3738
      %v3750 = vadd.f32 %v3711, %v3738
      %v3751 = vadd.f32 %v3712, %v3738
      %v3752 = vadd.f32 %v3713, %v3738
      %v3753 = vadd.f32 %v3714, %v3738
      %v3754 = vadd.f32 %v3715, %v3738
      %v3755 = vadd.f32 %v3716, %v3738
      %v3756 = vadd.f32 %v3717, %v3738
      %v3757 = vadd.f32 %v3718, %v3738
      %v3758 = vadd.f32 %v3719, %v3738
      %v3759 = vadd.f32 %v3720, %v3738
      %v3760 = vadd.f32 %v3721, %v3738
      %v3761 = vadd.f32 %v3722, %v3738
      %v3762 = vadd.f32 %v3723, %v3738
      %v3763 = vadd.f32 %v3724, %v3738
      %v3764 = vadd.f32 %v3725, %v3738
      %v3765 = vadd.f32 %v3726, %v3738
      %v3766 = vadd.f32 %v3727, %v3738
      %v3767 = vadd.f32 %v3728, %v3738
      %v3768 = vadd.f32 %v3729, %v3738
      %v3769 = vadd.f32 %v3730, %v3738
      %v3770 = vadd.f32 %v3731, %v3738
      %v3771 = vadd.f32 %v3732, %v3738
      %v3772 = vxor.u32 %v3740, 2147483648
      %v3773 = vxor.u32 %v3741, 2147483648
      %v3774 = vxor.u32 %v3742, 2147483648
      %v3775 = vxor.u32 %v3743, 2147483648
      %v3776 = vxor.u32 %v3744, 2147483648
      %v3777 = vxor.u32 %v3745, 2147483648
      %v3778 = vxor.u32 %v3746, 2147483648
      %v3779 = vxor.u32 %v3747, 2147483648
      %v3780 = vxor.u32 %v3748, 2147483648
      %v3781 = vxor.u32 %v3749, 2147483648
      %v3782 = vxor.u32 %v3750, 2147483648
      %v3783 = vxor.u32 %v3751, 2147483648
      %v3784 = vxor.u32 %v3752, 2147483648
      %v3785 = vxor.u32 %v3753, 2147483648
      %v3786 = vxor.u32 %v3754, 2147483648
      %v3787 = vxor.u32 %v3755, 2147483648
      %v3788 = vxor.u32 %v3756, 2147483648
      %v3789 = vxor.u32 %v3757, 2147483648
      %v3790 = vxor.u32 %v3758, 2147483648
      %v3791 = vxor.u32 %v3759, 2147483648
      %v3792 = vxor.u32 %v3760, 2147483648
      %v3793 = vxor.u32 %v3761, 2147483648
      %v3794 = vxor.u32 %v3762, 2147483648
      %v3795 = vxor.u32 %v3763, 2147483648
      %v3796 = vxor.u32 %v3764, 2147483648
      %v3797 = vxor.u32 %v3765, 2147483648
      %v3798 = vxor.u32 %v3766, 2147483648
      %v3799 = vxor.u32 %v3767, 2147483648
      %v3800 = vxor.u32 %v3768, 2147483648
      %v3801 = vxor.u32 %v3769, 2147483648
      %v3802 = vxor.u32 %v3770, 2147483648
      %v3803 = vxor.u32 %v3771, 2147483648
      %v3804 = vmul.f32 %v3772, 1.442695
      %v3805 = vpow.pop %v3804
      %v3806 = vmul.f32 %v3773, 1.442695
      %v3807 = vpow.pop %v3806
      %v3808 = vmul.f32 %v3774, 1.442695
      %v3809 = vpow.pop %v3808
      %v3810 = vmul.f32 %v3775, 1.442695
      %v3811 = vpow.pop %v3810
      %v3812 = vmul.f32 %v3776, 1.442695
      %v3813 = vpow.pop %v3812
      %v3814 = vmul.f32 %v3777, 1.442695
      %v3815 = vpow.pop %v3814
      %v3816 = vmul.f32 %v3778, 1.442695
      %v3817 = vpow.pop %v3816
      %v3818 = vmul.f32 %v3779, 1.442695
      %v3819 = vpow.pop %v3818
      %v3820 = vmul.f32 %v3780, 1.442695
      %v3821 = vpow.pop %v3820
      %v3822 = vmul.f32 %v3781, 1.442695
      %v3823 = vpow.pop %v3822
      %v3824 = vmul.f32 %v3782, 1.442695
      %v3825 = vpow.pop %v3824
      %v3826 = vmul.f32 %v3783, 1.442695
      %v3827 = vpow.pop %v3826
      %v3828 = vmul.f32 %v3784, 1.442695
      %v3829 = vpow.pop %v3828
      %v3830 = vmul.f32 %v3785, 1.442695
      %v3831 = vpow.pop %v3830
      %v3832 = vmul.f32 %v3786, 1.442695
      %v3833 = vpow.pop %v3832
      %v3834 = vmul.f32 %v3787, 1.442695
      %v3835 = vpow.pop %v3834
      %v3836 = vmul.f32 %v3788, 1.442695
      %v3837 = vpow.pop %v3836
      %v3838 = vmul.f32 %v3789, 1.442695
      %v3839 = vpow.pop %v3838
      %v3840 = vmul.f32 %v3790, 1.442695
      %v3841 = vpow.pop %v3840
      %v3842 = vmul.f32 %v3791, 1.442695
      %v3843 = vpow.pop %v3842
      %v3844 = vmul.f32 %v3792, 1.442695
      %v3845 = vpow.pop %v3844
      %v3846 = vmul.f32 %v3793, 1.442695
      %v3847 = vpow.pop %v3846
      %v3848 = vmul.f32 %v3794, 1.442695
      %v3849 = vpow.pop %v3848
      %v3850 = vmul.f32 %v3795, 1.442695
      %v3851 = vpow.pop %v3850
      %v3852 = vmul.f32 %v3796, 1.442695
      %v3853 = vpow.pop %v3852
      %v3854 = vmul.f32 %v3797, 1.442695
      %v3855 = vpow.pop %v3854
      %v3856 = vmul.f32 %v3798, 1.442695
      %v3857 = vpow.pop %v3856
      %v3858 = vmul.f32 %v3799, 1.442695
      %v3859 = vpow.pop %v3858
      %v3860 = vmul.f32 %v3800, 1.442695
      %v3861 = vpow.pop %v3860
      %v3862 = vmul.f32 %v3801, 1.442695
      %v3863 = vpow.pop %v3862
      %v3864 = vmul.f32 %v3802, 1.442695
      %v3865 = vpow.pop %v3864
      %v3866 = vmul.f32 %v3803, 1.442695
      %v3867 = vpow.pop %v3866
      %v3868 = vadd.f32 %v3805, 1.0
      %v3869 = vadd.f32 %v3807, 1.0
      %v3870 = vadd.f32 %v3809, 1.0
      %v3871 = vadd.f32 %v3811, 1.0
      %v3872 = vadd.f32 %v3813, 1.0
      %v3873 = vadd.f32 %v3815, 1.0
      %v3874 = vadd.f32 %v3817, 1.0
      %v3875 = vadd.f32 %v3819, 1.0
      %v3876 = vadd.f32 %v3821, 1.0
      %v3877 = vadd.f32 %v3823, 1.0
      %v3878 = vadd.f32 %v3825, 1.0
      %v3879 = vadd.f32 %v3827, 1.0
      %v3880 = vadd.f32 %v3829, 1.0
      %v3881 = vadd.f32 %v3831, 1.0
      %v3882 = vadd.f32 %v3833, 1.0
      %v3883 = vadd.f32 %v3835, 1.0
      %v3884 = vadd.f32 %v3837, 1.0
      %v3885 = vadd.f32 %v3839, 1.0
      %v3886 = vadd.f32 %v3841, 1.0
      %v3887 = vadd.f32 %v3843, 1.0
      %v3888 = vadd.f32 %v3845, 1.0
      %v3889 = vadd.f32 %v3847, 1.0
      %v3890 = vadd.f32 %v3849, 1.0
      %v3891 = vadd.f32 %v3851, 1.0
      %v3892 = vadd.f32 %v3853, 1.0
      %v3893 = vadd.f32 %v3855, 1.0
      %v3894 = vadd.f32 %v3857, 1.0
      %v3895 = vadd.f32 %v3859, 1.0
      %v3896 = vadd.f32 %v3861, 1.0
      %v3897 = vadd.f32 %v3863, 1.0
      %v3898 = vadd.f32 %v3865, 1.0
      %v3899 = vadd.f32 %v3867, 1.0
      %v3900 = vrcp.pop %v3868
      %v3901 = vmul.f32 1.0, %v3900
      %v3902 = vrcp.pop %v3869
      %v3903 = vmul.f32 1.0, %v3902
      %v3904 = vrcp.pop %v3870
      %v3905 = vmul.f32 1.0, %v3904
      %v3906 = vrcp.pop %v3871
      %v3907 = vmul.f32 1.0, %v3906
      %v3908 = vrcp.pop %v3872
      %v3909 = vmul.f32 1.0, %v3908
      %v3910 = vrcp.pop %v3873
      %v3911 = vmul.f32 1.0, %v3910
      %v3912 = vrcp.pop %v3874
      %v3913 = vmul.f32 1.0, %v3912
      %v3914 = vrcp.pop %v3875
      %v3915 = vmul.f32 1.0, %v3914
      %v3916 = vrcp.pop %v3876
      %v3917 = vmul.f32 1.0, %v3916
      %v3918 = vrcp.pop %v3877
      %v3919 = vmul.f32 1.0, %v3918
      %v3920 = vrcp.pop %v3878
      %v3921 = vmul.f32 1.0, %v3920
      %v3922 = vrcp.pop %v3879
      %v3923 = vmul.f32 1.0, %v3922
      %v3924 = vrcp.pop %v3880
      %v3925 = vmul.f32 1.0, %v3924
      %v3926 = vrcp.pop %v3881
      %v3927 = vmul.f32 1.0, %v3926
      %v3928 = vrcp.pop %v3882
      %v3929 = vmul.f32 1.0, %v3928
      %v3930 = vrcp.pop %v3883
      %v3931 = vmul.f32 1.0, %v3930
      %v3932 = vrcp.pop %v3884
      %v3933 = vmul.f32 1.0, %v3932
      %v3934 = vrcp.pop %v3885
      %v3935 = vmul.f32 1.0, %v3934
      %v3936 = vrcp.pop %v3886
      %v3937 = vmul.f32 1.0, %v3936
      %v3938 = vrcp.pop %v3887
      %v3939 = vmul.f32 1.0, %v3938
      %v3940 = vrcp.pop %v3888
      %v3941 = vmul.f32 1.0, %v3940
      %v3942 = vrcp.pop %v3889
      %v3943 = vmul.f32 1.0, %v3942
      %v3944 = vrcp.pop %v3890
      %v3945 = vmul.f32 1.0, %v3944
      %v3946 = vrcp.pop %v3891
      %v3947 = vmul.f32 1.0, %v3946
      %v3948 = vrcp.pop %v3892
      %v3949 = vmul.f32 1.0, %v3948
      %v3950 = vrcp.pop %v3893
      %v3951 = vmul.f32 1.0, %v3950
      %v3952 = vrcp.pop %v3894
      %v3953 = vmul.f32 1.0, %v3952
      %v3954 = vrcp.pop %v3895
      %v3955 = vmul.f32 1.0, %v3954
      %v3956 = vrcp.pop %v3896
      %v3957 = vmul.f32 1.0, %v3956
      %v3958 = vrcp.pop %v3897
      %v3959 = vmul.f32 1.0, %v3958
      %v3960 = vrcp.pop %v3898
      %v3961 = vmul.f32 1.0, %v3960
      %v3962 = vrcp.pop %v3899
      %v3963 = vmul.f32 1.0, %v3962
      %v3964 = vmul.f32 %v3740, %v3901
      %v3965 = vmul.f32 %v3741, %v3903
      %v3966 = vmul.f32 %v3742, %v3905
      %v3967 = vmul.f32 %v3743, %v3907
      %v3968 = vmul.f32 %v3744, %v3909
      %v3969 = vmul.f32 %v3745, %v3911
      %v3970 = vmul.f32 %v3746, %v3913
      %v3971 = vmul.f32 %v3747, %v3915
      %v3972 = vmul.f32 %v3748, %v3917
      %v3973 = vmul.f32 %v3749, %v3919
      %v3974 = vmul.f32 %v3750, %v3921
      %v3975 = vmul.f32 %v3751, %v3923
      %v3976 = vmul.f32 %v3752, %v3925
      %v3977 = vmul.f32 %v3753, %v3927
      %v3978 = vmul.f32 %v3754, %v3929
      %v3979 = vmul.f32 %v3755, %v3931
      %v3980 = vmul.f32 %v3756, %v3933
      %v3981 = vmul.f32 %v3757, %v3935
      %v3982 = vmul.f32 %v3758, %v3937
      %v3983 = vmul.f32 %v3759, %v3939
      %v3984 = vmul.f32 %v3760, %v3941
      %v3985 = vmul.f32 %v3761, %v3943
      %v3986 = vmul.f32 %v3762, %v3945
      %v3987 = vmul.f32 %v3763, %v3947
      %v3988 = vmul.f32 %v3764, %v3949
      %v3989 = vmul.f32 %v3765, %v3951
      %v3990 = vmul.f32 %v3766, %v3953
      %v3991 = vmul.f32 %v3767, %v3955
      %v3992 = vmul.f32 %v3768, %v3957
      %v3993 = vmul.f32 %v3769, %v3959
      %v3994 = vmul.f32 %v3770, %v3961
      %v3995 = vmul.f32 %v3771, %v3963
      %v3996 = vld [vmem:[%s239] sm:$0xff]
      %v3997 = vld [vmem:[%s239 + $0x8] sm:$0xff]
      %v3998 = vld [vmem:[%s239 + $0x10] sm:$0xff]
      %v3999 = vld [vmem:[%s239 + $0x18] sm:$0xff]
      %v4000 = vld [vmem:[%s239 + $0x20] sm:$0xff]
      %v4001 = vld [vmem:[%s239 + $0x28] sm:$0xff]
      %v4002 = vld [vmem:[%s239 + $0x30] sm:$0xff]
      %v4003 = vld [vmem:[%s239 + $0x38] sm:$0xff]
      %v4004 = vld [vmem:[%s239 + $0x40] sm:$0xff]
      %v4005 = vld [vmem:[%s239 + $0x48] sm:$0xff]
      %v4006 = vld [vmem:[%s239 + $0x50] sm:$0xff]
      %v4007 = vld [vmem:[%s239 + $0x58] sm:$0xff]
      %v4008 = vld [vmem:[%s239 + $0x60] sm:$0xff]
      %v4009 = vld [vmem:[%s239 + $0x68] sm:$0xff]
      %v4010 = vld [vmem:[%s239 + $0x70] sm:$0xff]
      %v4011 = vld [vmem:[%s239 + $0x78] sm:$0xff]
      %v4012 = vld [vmem:[%s239 + $0x80] sm:$0xff]
      %v4013 = vld [vmem:[%s239 + $0x88] sm:$0xff]
      %v4014 = vld [vmem:[%s239 + $0x90] sm:$0xff]
      %v4015 = vld [vmem:[%s239 + $0x98] sm:$0xff]
      %v4016 = vld [vmem:[%s239 + $0xa0] sm:$0xff]
      %v4017 = vld [vmem:[%s239 + $0xa8] sm:$0xff]
      %v4018 = vld [vmem:[%s239 + $0xb0] sm:$0xff]
      %v4019 = vld [vmem:[%s239 + $0xb8] sm:$0xff]
      %v4020 = vld [vmem:[%s239 + $0xc0] sm:$0xff]
      %v4021 = vld [vmem:[%s239 + $0xc8] sm:$0xff]
      %v4022 = vld [vmem:[%s239 + $0xd0] sm:$0xff]
      %v4023 = vld [vmem:[%s239 + $0xd8] sm:$0xff]
      %v4024 = vld [vmem:[%s239 + $0xe0] sm:$0xff]
      %v4025 = vld [vmem:[%s239 + $0xe8] sm:$0xff]
      %v4026 = vld [vmem:[%s239 + $0xf0] sm:$0xff]
      %v4027 = vld [vmem:[%s239 + $0xf8] sm:$0xff]
      %v4028 = vadd.f32 %v3964, %v3996
      %v4029 = vadd.f32 %v3965, %v3997
      %v4030 = vadd.f32 %v3966, %v3998
      %v4031 = vadd.f32 %v3967, %v3999
      %v4032 = vadd.f32 %v3968, %v4000
      %v4033 = vadd.f32 %v3969, %v4001
      %v4034 = vadd.f32 %v3970, %v4002
      %v4035 = vadd.f32 %v3971, %v4003
      %v4036 = vadd.f32 %v3972, %v4004
      %v4037 = vadd.f32 %v3973, %v4005
      %v4038 = vadd.f32 %v3974, %v4006
      %v4039 = vadd.f32 %v3975, %v4007
      %v4040 = vadd.f32 %v3976, %v4008
      %v4041 = vadd.f32 %v3977, %v4009
      %v4042 = vadd.f32 %v3978, %v4010
      %v4043 = vadd.f32 %v3979, %v4011
      %v4044 = vadd.f32 %v3980, %v4012
      %v4045 = vadd.f32 %v3981, %v4013
      %v4046 = vadd.f32 %v3982, %v4014
      %v4047 = vadd.f32 %v3983, %v4015
      %v4048 = vadd.f32 %v3984, %v4016
      %v4049 = vadd.f32 %v3985, %v4017
      %v4050 = vadd.f32 %v3986, %v4018
      %v4051 = vadd.f32 %v3987, %v4019
      %v4052 = vadd.f32 %v3988, %v4020
      %v4053 = vadd.f32 %v3989, %v4021
      %v4054 = vadd.f32 %v3990, %v4022
      %v4055 = vadd.f32 %v3991, %v4023
      %v4056 = vadd.f32 %v3992, %v4024
      %v4057 = vadd.f32 %v3993, %v4025
      %v4058 = vadd.f32 %v3994, %v4026
      %v4059 = vadd.f32 %v3995, %v4027
      %4060 = vst.msk [vmem:[%s244] sm:$0xff] %vm312, %v4028
      %4061 = vst.msk [vmem:[%s244 + $0x8] sm:$0xff] %vm312, %v4029
      %4062 = vst.msk [vmem:[%s244 + $0x10] sm:$0xff] %vm312, %v4030
      %4063 = vst.msk [vmem:[%s244 + $0x18] sm:$0xff] %vm312, %v4031
      %4064 = vst.msk [vmem:[%s244 + $0x20] sm:$0xff] %vm312, %v4032
      %4065 = vst.msk [vmem:[%s244 + $0x28] sm:$0xff] %vm312, %v4033
      %4066 = vst.msk [vmem:[%s244 + $0x30] sm:$0xff] %vm312, %v4034
      %4067 = vst.msk [vmem:[%s244 + $0x38] sm:$0xff] %vm312, %v4035
      %4068 = vst.msk [vmem:[%s244 + $0x40] sm:$0xff] %vm312, %v4036
      %4069 = vst.msk [vmem:[%s244 + $0x48] sm:$0xff] %vm312, %v4037
      %4070 = vst.msk [vmem:[%s244 + $0x50] sm:$0xff] %vm312, %v4038
      %4071 = vst.msk [vmem:[%s244 + $0x58] sm:$0xff] %vm312, %v4039
      %4072 = vst.msk [vmem:[%s244 + $0x60] sm:$0xff] %vm312, %v4040
      %4073 = vst.msk [vmem:[%s244 + $0x68] sm:$0xff] %vm312, %v4041
      %4074 = vst.msk [vmem:[%s244 + $0x70] sm:$0xff] %vm312, %v4042
      %4075 = vst.msk [vmem:[%s244 + $0x78] sm:$0xff] %vm312, %v4043
      %4076 = vst.msk [vmem:[%s244 + $0x80] sm:$0xff] %vm312, %v4044
      %4077 = vst.msk [vmem:[%s244 + $0x88] sm:$0xff] %vm312, %v4045
      %4078 = vst.msk [vmem:[%s244 + $0x90] sm:$0xff] %vm312, %v4046
      %4079 = vst.msk [vmem:[%s244 + $0x98] sm:$0xff] %vm312, %v4047
      %4080 = vst.msk [vmem:[%s244 + $0xa0] sm:$0xff] %vm312, %v4048
      %4081 = vst.msk [vmem:[%s244 + $0xa8] sm:$0xff] %vm312, %v4049
      %4082 = vst.msk [vmem:[%s244 + $0xb0] sm:$0xff] %vm312, %v4050
      %4083 = vst.msk [vmem:[%s244 + $0xb8] sm:$0xff] %vm312, %v4051
      %4084 = vst.msk [vmem:[%s244 + $0xc0] sm:$0xff] %vm312, %v4052
      %4085 = vst.msk [vmem:[%s244 + $0xc8] sm:$0xff] %vm312, %v4053
      %4086 = vst.msk [vmem:[%s244 + $0xd0] sm:$0xff] %vm312, %v4054
      %4087 = vst.msk [vmem:[%s244 + $0xd8] sm:$0xff] %vm312, %v4055
      %4088 = vst.msk [vmem:[%s244 + $0xe0] sm:$0xff] %vm312, %v4056
      %4089 = vst.msk [vmem:[%s244 + $0xe8] sm:$0xff] %vm312, %v4057
      %4090 = vst.msk [vmem:[%s244 + $0xf0] sm:$0xff] %vm312, %v4058
      %4091 = vst.msk [vmem:[%s244 + $0xf8] sm:$0xff] %vm312, %v4059
      %p4092 = scmp.lt.s32.totalorder %s16, 1
      %s4093 = scalar_select %p4092, %s16, 1
      %s4094 = smul.addr %s4093, 32
      %s4095 = smul.addr %s4094, 8
      %s4096 = scalar_lea.vmem %s5, %s4095
      // Predicated region
      $region41: #{c3_forward.6} parent=39 // pred_check
        %p4097 = pneg %p149
      $region42: #{c3_forward.6} parent=39 // pred_check_branch
        %4099 = sbr.rel (%p4097) target = $region44
      $region43: #{c3_forward.6} parent=39 // pred_region
        _
      $region44: #{c3_forward.6} parent=39 // pred_fallthru
        _
    $region40: #{c3_forward.6} parent=5 // pred_fallthru
      _
    %p4100 = scmp.le.s32.totalorder 2, %s11
    // Predicated region
    $region45: #{c3_forward.6} parent=5 // pred_check
      %p4101 = pneg %p4100
    $region46: #{c3_forward.6} parent=5 // pred_check_branch
      %4103 = sbr.rel (%p4101) target = $region48
    $region47: #{c3_forward.6} parent=5 // pred_region
      %s4104 = ssub.s32 %s11, 2
      // Predicated region
      $region49: #{c3_forward.6} parent=47 // pred_check
        %p4105 = pneg %p155
      $region50: #{c3_forward.6} parent=47 // pred_check_branch
        %4107 = sbr.rel (%p4105) target = $region52
      $region51: #{c3_forward.6} parent=47 // pred_region
        %p4108 = scmp.lt.s32.totalorder %s17, 1
        %s4109 = scalar_select %p4108, %s17, 1
        %s4110 = smul.addr %s4109, 32
        %s4111 = smul.addr %s4110, 8
        %s4112 = scalar_lea.vmem %s5, %s4111
      $region52: #{c3_forward.6} parent=47 // pred_fallthru
        _
    $region48: #{c3_forward.6} parent=5 // pred_fallthru
      _
  $region6: #{c3_forward.6} parent=0 // loop_footer
    %s15 = sadd.s32 1, %s11
  $region7: #{c3_forward.6} parent=0 // loop_footer_branch
    %10 = sbr.rel target = $region3
  $region8: #{c3_forward.6} parent=0 // loop_exit
    _

</llo_original>
